<compile_context>
chip_gen: v7x
topology: tpu7x:2x2x1
jax: 0.10.0
libtpu: 0.0.40
codegen_flags: <defaults>
</compile_context>

<pallas_src>
import functools
import math

import jax
import jax.numpy as jnp
from jax import lax
from jax.experimental import pallas as pl
from jax.experimental.pallas import tpu as pltpu

IN_CHANNELS = 576      # mode='small' in the PyTorch module
MID_CHANNELS = 128     # LR-ASPP internal channels
BN_EPS = 1e-5
HIGHEST = lax.Precision.HIGHEST


# ----------------------------------------------------------------------------
# Pallas kernel
# ----------------------------------------------------------------------------
def head_kernel(x_ref, u_ref, f2p_ref, w0t_ref, b0_ref, wpt_ref, bp_ref, o_ref):
    """Fused b0 conv1x1 (+folded BN) + ReLU, in-kernel bilinear-upsampled gate,
    and the projection conv1x1 — channel-major on one (C, t_hw) tile.

    x_ref  : (1, C, T)    bf16  activations (DMA'd as bf16, no in-kernel cast)
    u_ref  : (P, T)       f32   bilinear interpolation matrix tile
    f2p_ref: (1, 128, P)  f32   sigmoid(conv1x1(pooled_x)) for this batch
    w0t_ref: (128, C)     bf16  bn_scale-folded b0 weight, transposed
    b0_ref : (128, 1)     f32   folded BN bias
    wpt_ref: (nclass,128) bf16  projection weight, transposed
    bp_ref : (nclass, 1)  f32   projection bias
    o_ref  : (1, nclass, T) f32
    """
    x = x_ref[0]                                                             # (C, T) bf16
    feat1 = jnp.dot(w0t_ref[...], x, preferred_element_type=jnp.float32)    # (128, T)
    feat1 = jnp.maximum(feat1 + b0_ref[...], 0.0)

    # Bilinear upsample of the pooled gate as a tiny linear map:
    #   f2[:, t] = sum_p f2_pooled[:, p] * U[p, t]
    f2p = f2p_ref[0]                                                         # (128, P)
    u = u_ref[...]                                                           # (P, T)
    if u.shape[0] >= 16:
        # Larger pooled grids: let the gate construction ride the MXU.
        f2 = jnp.dot(f2p, u, preferred_element_type=jnp.float32)
    else:
        # Tiny pooled grid (ppix == 2 here): a couple of unrolled VPU FMAs.
        f2 = f2p[:, 0:1] * u[0:1, :]
        for p in range(1, u.shape[0]):                                       # static unroll
            f2 = f2 + f2p[:, p:p + 1] * u[p:p + 1, :]

    fused = (feat1 * f2).astype(jnp.bfloat16)                                # (128, T)
    out = jnp.dot(wpt_ref[...], fused, preferred_element_type=jnp.float32)   # (nclass, T)
    o_ref[0] = out + bp_ref[...]


# ----------------------------------------------------------------------------
# Plain-JAX glue
# ----------------------------------------------------------------------------
def avg_pool_49x49_nchw(x_nchw_f32):
    """AvgPool2d(kernel=(49,49), stride=(16,20)), VALID padding, NCHW, f32 accum."""
    s = lax.reduce_window(x_nchw_f32, 0.0, lax.add,
                          window_dimensions=(1, 1, 49, 49),
                          window_strides=(1, 1, 16, 20),
                          padding='VALID')
    return s / (49.0 * 49.0)


def interp_matrix(in_size, out_size):
    """(in_size, out_size) linear map for 1-D align_corners=True interpolation."""
    if in_size == 1:
        return jnp.ones((1, out_size), jnp.float32)
    src = jnp.arange(out_size, dtype=jnp.float32) * (in_size - 1) / (out_size - 1)
    i0 = jnp.clip(jnp.floor(src).astype(jnp.int32), 0, in_size - 1)
    i1 = jnp.clip(i0 + 1, 0, in_size - 1)
    wgt = src - i0.astype(jnp.float32)
    cols = jnp.arange(out_size)
    m = jnp.zeros((in_size, out_size), jnp.float32)
    m = m.at[i0, cols].add(1.0 - wgt)
    m = m.at[i1, cols].add(wgt)
    return m


def bilinear_resize_align_corners_nchw(x, out_h, out_w):
    """Reference bilinear (align_corners=True) on NCHW, matching F.interpolate."""
    _, _, ih, iw = x.shape

    def coords(in_size, out_size):
        if in_size == 1:
            src = jnp.zeros((out_size,), jnp.float32)
        else:
            src = jnp.arange(out_size, dtype=jnp.float32) * (in_size - 1) / (out_size - 1)
        i0 = jnp.clip(jnp.floor(src).astype(jnp.int32), 0, in_size - 1)
        i1 = jnp.clip(i0 + 1, 0, in_size - 1)
        w = src - i0.astype(jnp.float32)
        return i0, i1, w

    i0, i1, wh = coords(ih, out_h)
    j0, j1, ww = coords(iw, out_w)
    top = jnp.take(x, i0, axis=2)
    bot = jnp.take(x, i1, axis=2)

    def horiz(y):
        a = jnp.take(y, j0, axis=3)
        b = jnp.take(y, j1, axis=3)
        return a * (1.0 - ww) + b * ww

    t = horiz(top)
    b = horiz(bot)
    return t * (1.0 - wh)[None, None, :, None] + b * wh[None, None, :, None]


# ----------------------------------------------------------------------------
# Parameter init (deterministic, synthetic; BN in eval mode)
# ----------------------------------------------------------------------------
def init_params(key, in_channels, nclass):
    ks = jax.random.split(key, 8)
    w0 = jax.random.normal(ks[0], (in_channels, MID_CHANNELS), jnp.float32) / math.sqrt(in_channels)
    gamma = 1.0 + 0.1 * jax.random.normal(ks[1], (MID_CHANNELS,), jnp.float32)
    beta = 0.1 * jax.random.normal(ks[2], (MID_CHANNELS,), jnp.float32)
    r_mean = 0.1 * jax.random.normal(ks[3], (MID_CHANNELS,), jnp.float32)
    r_var = 0.5 + 0.5 * jnp.abs(jax.random.normal(ks[4], (MID_CHANNELS,), jnp.float32))
    bn_scale = gamma / jnp.sqrt(r_var + BN_EPS)
    bn_bias = beta - r_mean * bn_scale
    w1 = jax.random.normal(ks[5], (in_channels, MID_CHANNELS), jnp.float32) / math.sqrt(in_channels)
    wp = jax.random.normal(ks[6], (MID_CHANNELS, nclass), jnp.float32) / math.sqrt(MID_CHANNELS)
    bp = 0.1 * jax.random.normal(ks[7], (nclass,), jnp.float32)
    return dict(w0=w0, bn_scale=bn_scale, bn_bias=bn_bias, w1=w1, wp=wp, bp=bp)


# ----------------------------------------------------------------------------
# Forward pass (Pallas)
# ----------------------------------------------------------------------------
def head_forward(x_nchw, params, nclass, t_hw=1152):
    """x_nchw is expected in bf16 (upstream producer); f32 is accepted but
    incurs one extra cast pass.  Output is f32 NCHW."""
    n, c, h, w = x_nchw.shape
    hw = h * w

    x_bf16 = x_nchw if x_nchw.dtype == jnp.bfloat16 else x_nchw.astype(jnp.bfloat16)
    x_cm = x_bf16.reshape(n, c, hw)          # free reshape; no transpose / pad; bf16 in HBM

    # ---- b1 branch (tiny): AvgPool (bf16 read, f32 accumulation; the convert
    # fuses into the reduce_window input) -> 1x1 conv + sigmoid in plain XLA.
    pooled = avg_pool_49x49_nchw(x_bf16.astype(jnp.float32))          # (N, C, Ph, Pw) f32
    ph, pw = int(pooled.shape[2]), int(pooled.shape[3])
    ppix = ph * pw
    f2p = jax.nn.sigmoid(
        jnp.einsum('ncij,co->noij', pooled, params['w1'], precision=HIGHEST)
    ).reshape(n, MID_CHANNELS, ppix)                                  # (N, 128, Ppix) f32

    # ---- align_corners=True bilinear upsample as a (Ppix, HW) interpolation matrix
    rh = interp_matrix(ph, h)                                         # (Ph, H)
    rw = interp_matrix(pw, w)                                         # (Pw, W)
    u = (rh[:, None, :, None] * rw[None, :, None, :]).reshape(ppix, hw)

    # ---- kernel-form weights: BN folded into w0, bf16 MXU operands (tiny one-time casts)
    w0t = (jnp.transpose(params['w0'])
           * params['bn_scale'][:, None]).astype(jnp.bfloat16)            # (128, C)
    b0 = params['bn_bias'].reshape(MID_CHANNELS, 1).astype(jnp.float32)   # (128, 1)
    wpt = jnp.transpose(params['wp']).astype(jnp.bfloat16)                # (nclass, 128)
    bp = params['bp'].reshape(nclass, 1).astype(jnp.float32)              # (nclass, 1)

    # ---- main fused kernel, tiled over the (lane-dense) H*W axis
    t_hw = min(t_hw, hw)                                  # t_hw a multiple of 128 when tiling
    grid = (n, pl.cdiv(hw, t_hw))   # partial last tile: OOB reads padded, writes masked
    flops = 2 * n * hw * (c * MID_CHANNELS + MID_CHANNELS * nclass + MID_CHANNELS * ppix)
    bytes_accessed = (x_cm.size * 2 + n * nclass * hw * 4 + u.size * 4
                      + f2p.size * 4 + w0t.size * 2 + wpt.size * 2)

    out = pl.pallas_call(
        head_kernel,
        out_shape=jax.ShapeDtypeStruct((n, nclass, hw), jnp.float32),
        grid=grid,
        in_specs=[
            pl.BlockSpec((1, c, t_hw), lambda i, j: (i, 0, j)),              # x tile (bf16)
            pl.BlockSpec((ppix, t_hw), lambda i, j: (0, j)),                 # upsample weights
            pl.BlockSpec((1, MID_CHANNELS, ppix), lambda i, j: (i, 0, 0)),   # pooled gate
            pl.BlockSpec((MID_CHANNELS, c), lambda i, j: (0, 0)),            # w0t (VMEM-resident)
            pl.BlockSpec((MID_CHANNELS, 1), lambda i, j: (0, 0)),            # folded BN bias
            pl.BlockSpec((nclass, MID_CHANNELS), lambda i, j: (0, 0)),       # wpt
            pl.BlockSpec((nclass, 1), lambda i, j: (0, 0)),                  # bp
        ],
        out_specs=pl.BlockSpec((1, nclass, t_hw), lambda i, j: (i, 0, j)),
        compiler_params=pltpu.CompilerParams(
            dimension_semantics=("parallel", "parallel"),
            vmem_limit_bytes=32 * 1024 * 1024),
        cost_estimate=pl.CostEstimate(flops=flops, transcendentals=0,
                                      bytes_accessed=bytes_accessed),
    )(x_cm, u, f2p, w0t, b0, wpt, bp)

    return out.reshape(n, nclass, h, w)                   # already NCHW, free reshape


# ----------------------------------------------------------------------------
# Pure-JAX reference (mirrors the PyTorch forward in eval mode, f32 HIGHEST)
# ----------------------------------------------------------------------------
def reference_forward(x_nchw, p, nclass):
    x = x_nchw.astype(jnp.float32)
    _, _, h, w = x.shape
    feat1 = jnp.einsum('nchw,co->nohw', x, p['w0'], precision=HIGHEST)
    feat1 = jnp.maximum(feat1 * p['bn_scale'][None, :, None, None]
                        + p['bn_bias'][None, :, None, None], 0.0)
    pooled = avg_pool_49x49_nchw(x)
    f2 = jax.nn.sigmoid(jnp.einsum('ncij,co->noij', pooled, p['w1'], precision=HIGHEST))
    f2_up = bilinear_resize_align_corners_nchw(f2, h, w)
    fused = feat1 * f2_up
    out = jnp.einsum('nchw,co->nohw', fused, p['wp'], precision=HIGHEST)
    return out + p['bp'][None, :, None, None]


if __name__ == "__main__":
    key = jax.random.PRNGKey(0)
    k_x, k_p = jax.random.split(key)

    # AvgPool2d(49x49) requires H,W >= 49; mode='small' fixes in_channels=576.
    # (H, W) = (49, 69) -> pooled grid (1, 2), HW = 3381 -> 3 tiles of 1152.
    N, Cin, H, W = 2, IN_CHANNELS, 49, 69
    NCLASS = 19

    # Upstream layer is assumed to emit bf16 activations; construct x that way
    # once so both the pool pass and the head kernel read bf16 from HBM.
    x_bf16 = jax.random.normal(k_x, (N, Cin, H, W), jnp.float32).astype(jnp.bfloat16)
    params = init_params(k_p, Cin, NCLASS)

    fwd = jax.jit(functools.partial(head_forward, nclass=NCLASS))
    out = jax.block_until_ready(fwd(x_bf16, params))
    ref = jax.block_until_ready(reference_forward(x_bf16, params, NCLASS))

    assert out.shape == (N, NCLASS, H, W), out.shape
    err = jnp.abs(out - ref)
    max_err = float(jnp.max(err))
    mean_err = float(jnp.mean(err))
    # Numerical contract: bf16 activations + bf16 folded-BN / projection weights
    # on the MXU with f32 accumulation -> ~1e-2-level max deviation from the
    # f32/HIGHEST reference is expected and acceptable for inference.
    assert max_err < 5e-2, f"max abs error {max_err}"
    assert mean_err < 5e-3, f"mean abs error {mean_err}"

    print("KERNEL_OK")
</pallas_src>

<mosaic_0001>
module attributes {stable_mosaic.version = 11 : i64} {
  func.func @head_kernel(%arg0: i32, %arg1: i32, %arg2: memref<1x576x1152xbf16, #tpu.memory_space<vmem>>, %arg3: memref<2x1152xf32, #tpu.memory_space<vmem>>, %arg4: memref<1x128x2xf32, #tpu.memory_space<vmem>>, %arg5: memref<128x576xbf16, #tpu.memory_space<vmem>>, %arg6: memref<128x1xf32, #tpu.memory_space<vmem>>, %arg7: memref<19x128xbf16, #tpu.memory_space<vmem>>, %arg8: memref<19x1xf32, #tpu.memory_space<vmem>>, %arg9: memref<1x19x1152xf32, #tpu.memory_space<vmem>>) attributes {dimension_semantics = [#tpu.dimension_semantics<parallel>, #tpu.dimension_semantics<parallel>], iteration_bounds = array<i64: 2, 3>, scalar_prefetch = 0 : i64, scratch_operands = 0 : i64, tpu.core_type = #tpu.core_type<tc>, window_params = [{transform_indices = @transform_0, window_bounds = array<i64: 1, 576, 1152>}, {transform_indices = @transform_1, window_bounds = array<i64: 2, 1152>}, {transform_indices = @transform_2, window_bounds = array<i64: 1, 128, 2>}, {pipeline_mode = #tpu.pipeline_mode<synchronous>, transform_indices = @transform_3, window_bounds = array<i64: 128, 576>}, {pipeline_mode = #tpu.pipeline_mode<synchronous>, transform_indices = @transform_4, window_bounds = array<i64: 128, 1>}, {pipeline_mode = #tpu.pipeline_mode<synchronous>, transform_indices = @transform_5, window_bounds = array<i64: 19, 128>}, {pipeline_mode = #tpu.pipeline_mode<synchronous>, transform_indices = @transform_6, window_bounds = array<i64: 19, 1>}, {transform_indices = @transform_7, window_bounds = array<i64: 1, 19, 1152>}]} {
    %c0 = arith.constant 0 : index
    %c0_0 = arith.constant 0 : index
    %c0_1 = arith.constant 0 : index
    %0 = vector.load %arg2[%c0, %c0_0, %c0_1] : memref<1x576x1152xbf16, #tpu.memory_space<vmem>>, vector<1x576x1152xbf16>
    %1 = vector.shape_cast %0 : vector<1x576x1152xbf16> to vector<576x1152xbf16>
    %c0_2 = arith.constant 0 : index
    %c0_3 = arith.constant 0 : index
    %2 = vector.load %arg5[%c0_2, %c0_3] : memref<128x576xbf16, #tpu.memory_space<vmem>>, vector<128x576xbf16>
    %cst = arith.constant dense<0.000000e+00> : vector<128x1152xf32>
    %3 = tpu.matmul %2, %1, %cst {dimension_numbers = #tpu.dot_dimension_numbers<[1], [0], [0], [1], [0, 0, 1, 1], [], []>} : vector<128x576xbf16>, vector<576x1152xbf16>, vector<128x1152xf32> -> vector<128x1152xf32>
    %c0_4 = arith.constant 0 : index
    %c0_5 = arith.constant 0 : index
    %4 = vector.load %arg6[%c0_4, %c0_5] : memref<128x1xf32, #tpu.memory_space<vmem>>, vector<128x1xf32>
    %5 = vector.broadcast %4 : vector<128x1xf32> to vector<128x1152xf32>
    %6 = arith.addf %3, %5 : vector<128x1152xf32>
    %cst_6 = arith.constant 0.000000e+00 : f32
    %7 = vector.broadcast %cst_6 : f32 to vector<128x1152xf32>
    %8 = arith.maximumf %6, %7 : vector<128x1152xf32>
    %c0_7 = arith.constant 0 : index
    %c0_8 = arith.constant 0 : index
    %c0_9 = arith.constant 0 : index
    %9 = vector.load %arg4[%c0_7, %c0_8, %c0_9] : memref<1x128x2xf32, #tpu.memory_space<vmem>>, vector<1x128x2xf32>
    %10 = vector.shape_cast %9 : vector<1x128x2xf32> to vector<128x2xf32>
    %c0_10 = arith.constant 0 : index
    %c0_11 = arith.constant 0 : index
    %11 = vector.load %arg3[%c0_10, %c0_11] : memref<2x1152xf32, #tpu.memory_space<vmem>>, vector<2x1152xf32>
    %12 = vector.extract_strided_slice %10 {offsets = [0, 0], sizes = [128, 1], strides = [1, 1]} : vector<128x2xf32> to vector<128x1xf32>
    %13 = vector.extract_strided_slice %11 {offsets = [0, 0], sizes = [1, 1152], strides = [1, 1]} : vector<2x1152xf32> to vector<1x1152xf32>
    %14 = vector.broadcast %12 : vector<128x1xf32> to vector<128x1152xf32>
    %15 = vector.broadcast %13 : vector<1x1152xf32> to vector<128x1152xf32>
    %16 = arith.mulf %14, %15 : vector<128x1152xf32>
    %17 = vector.extract_strided_slice %10 {offsets = [0, 1], sizes = [128, 1], strides = [1, 1]} : vector<128x2xf32> to vector<128x1xf32>
    %18 = vector.extract_strided_slice %11 {offsets = [1, 0], sizes = [1, 1152], strides = [1, 1]} : vector<2x1152xf32> to vector<1x1152xf32>
    %19 = vector.broadcast %17 : vector<128x1xf32> to vector<128x1152xf32>
    %20 = vector.broadcast %18 : vector<1x1152xf32> to vector<128x1152xf32>
    %21 = arith.mulf %19, %20 : vector<128x1152xf32>
    %22 = arith.addf %16, %21 : vector<128x1152xf32>
    %23 = arith.mulf %8, %22 : vector<128x1152xf32>
    %24 = arith.truncf %23 : vector<128x1152xf32> to vector<128x1152xbf16>
    %c0_12 = arith.constant 0 : index
    %c0_13 = arith.constant 0 : index
    %25 = vector.load %arg7[%c0_12, %c0_13] : memref<19x128xbf16, #tpu.memory_space<vmem>>, vector<19x128xbf16>
    %cst_14 = arith.constant dense<0.000000e+00> : vector<19x1152xf32>
    %26 = tpu.matmul %25, %24, %cst_14 {dimension_numbers = #tpu.dot_dimension_numbers<[1], [0], [0], [1], [0, 0, 1, 1], [], []>} : vector<19x128xbf16>, vector<128x1152xbf16>, vector<19x1152xf32> -> vector<19x1152xf32>
    %c0_15 = arith.constant 0 : index
    %c0_16 = arith.constant 0 : index
    %27 = vector.load %arg8[%c0_15, %c0_16] : memref<19x1xf32, #tpu.memory_space<vmem>>, vector<19x1xf32>
    %28 = vector.broadcast %27 : vector<19x1xf32> to vector<19x1152xf32>
    %29 = arith.addf %26, %28 : vector<19x1152xf32>
    %c0_17 = arith.constant 0 : index
    %c0_18 = arith.constant 0 : index
    %c0_19 = arith.constant 0 : index
    %30 = vector.load %arg9[%c0_17, %c0_18, %c0_19] : memref<1x19x1152xf32, #tpu.memory_space<vmem>>, vector<1x19x1152xf32>
    %31 = vector.shape_cast %30 : vector<1x19x1152xf32> to vector<19x1152xf32>
    %32 = vector.shape_cast %29 : vector<19x1152xf32> to vector<1x19x1152xf32>
    tpu.vector_store %arg9[%c0_17, %c0_18, %c0_19], %32 {strides = array<i32>} : memref<1x19x1152xf32, #tpu.memory_space<vmem>>, vector<1x19x1152xf32>,
    return
  }
  func.func @transform_0(%arg0: i32, %arg1: i32) -> (i32, i32, i32) {
    %c0_i32 = arith.constant 0 : i32
    %c0_i32_0 = arith.constant 0 : i32
    return %arg0, %c0_i32, %arg1 : i32, i32, i32
  }
  func.func @transform_1(%arg0: i32, %arg1: i32) -> (i32, i32) {
    %c0_i32 = arith.constant 0 : i32
    %c0_i32_0 = arith.constant 0 : i32
    return %c0_i32, %arg1 : i32, i32
  }
  func.func @transform_2(%arg0: i32, %arg1: i32) -> (i32, i32, i32) {
    %c0_i32 = arith.constant 0 : i32
    %c0_i32_0 = arith.constant 0 : i32
    %c0_i32_1 = arith.constant 0 : i32
    return %arg0, %c0_i32, %c0_i32_0 : i32, i32, i32
  }
  func.func @transform_3(%arg0: i32, %arg1: i32) -> (i32, i32) {
    %c0_i32 = arith.constant 0 : i32
    %c0_i32_0 = arith.constant 0 : i32
    %c0_i32_1 = arith.constant 0 : i32
    return %c0_i32, %c0_i32_0 : i32, i32
  }
  func.func @transform_4(%arg0: i32, %arg1: i32) -> (i32, i32) {
    %c0_i32 = arith.constant 0 : i32
    %c0_i32_0 = arith.constant 0 : i32
    %c0_i32_1 = arith.constant 0 : i32
    return %c0_i32, %c0_i32_0 : i32, i32
  }
  func.func @transform_5(%arg0: i32, %arg1: i32) -> (i32, i32) {
    %c0_i32 = arith.constant 0 : i32
    %c0_i32_0 = arith.constant 0 : i32
    %c0_i32_1 = arith.constant 0 : i32
    return %c0_i32, %c0_i32_0 : i32, i32
  }
  func.func @transform_6(%arg0: i32, %arg1: i32) -> (i32, i32) {
    %c0_i32 = arith.constant 0 : i32
    %c0_i32_0 = arith.constant 0 : i32
    %c0_i32_1 = arith.constant 0 : i32
    return %c0_i32, %c0_i32_0 : i32, i32
  }
  func.func @transform_7(%arg0: i32, %arg1: i32) -> (i32, i32, i32) {
    %c0_i32 = arith.constant 0 : i32
    %c0_i32_0 = arith.constant 0 : i32
    return %arg0, %c0_i32, %arg1 : i32, i32, i32
  }
}

</mosaic_0001>

<llo_original>
// kernel: head_forward.1
$region0: #{head_forward.1}
  #allocation0 [shape = 'u32[]', space=smem, size = 0x4, offset = 0x4, fixed_abs, tag = 'smem constant byte address 0x4 - core index']
  #allocation1 [shape = 'u32[144,128]{1,0:T(1,128)}', space=vmem, size = 0x12000, scoped, tag = 'internal scratch']
  %s0 = inlined_call_operand.vmem [shape: bf16[2,576,3381], index: 0, kind: input, shape index: {}]
  %s1 = inlined_call_operand.vmem [shape: f32[2,3381], index: 1, kind: input, shape index: {}]
  %s2 = inlined_call_operand.vmem [shape: f32[2,128,2], index: 2, kind: input, shape index: {}]
  %s3 = inlined_call_operand.vmem [shape: bf16[128,576], index: 3, kind: input, shape index: {}]
  %s4 = inlined_call_operand.vmem [shape: f32[128,1], index: 4, kind: input, shape index: {}]
  %s5 = inlined_call_operand.vmem [shape: bf16[19,128], index: 5, kind: input, shape index: {}]
  %s6 = inlined_call_operand.vmem [shape: f32[19,1], index: 6, kind: input, shape index: {}]
  %s7 = inlined_call_operand.vmem [shape: f32[2,19,3381], index: 7, kind: output, shape index: {}]
  %s8 = sld [smem:[#allocation0]]
  $region106: #{head_forward.1} parent=0
    _
  %s10 = ssub.s32 1, %s8
  %s11 = scalar_select 0, %s10, %s8
  $region1: #{head_forward.1} parent=0
    #allocation2 [shape = 'u8[2654208]{0}', space=vmem, size = 0x288000, scoped, tag = 'input window, operand 0']
    #allocation3 [shape = 'u8[221184]{0}', space=vmem, size = 0x36000, scoped, tag = 'output window, operand 0']
    loop: start=0, step=1, limit=8
    $region2: #{head_forward.1} parent=1 // loop_pre_header
      _
    $region3: #{head_forward.1} parent=1 // loop_header
      %s13 = sphi 0, %s17
      %p14 = scmp.ge.s32.totalorder %s13, 8
      %s20 = sphi 0, %s32
      %s21 = sphi 0, %s28
      %s22 = sphi 0, %s20
      %s23 = sphi 0, %s21
      %s24 = sphi 0, %s22
      %s25 = sphi 0, %s23
      %s37 = sphi 0, %s39
      %s40 = sphi 0, %s37
      %s41 = sphi 0, %s40
      %s57 = sphi 0, %s41
      %s63 = sphi 0, %s65
      %s66 = sphi 0, %s63
      %s67 = sphi 0, %s66
      %s83 = sphi 0, %s67
      %s89 = sphi 0, %s91
      %s92 = sphi 0, %s89
      %s93 = sphi 0, %s92
      %s109 = sphi 0, %s93
      %s113 = sphi 0, %s113
      %s115 = sphi 0, %s113
      %s116 = sphi 0, %s115
      %s130 = sphi 0, %s116
      %s134 = sphi 0, %s134
      %s136 = sphi 0, %s134
      %s137 = sphi 0, %s136
      %s151 = sphi 0, %s137
      %s155 = sphi 0, %s155
      %s157 = sphi 0, %s155
      %s158 = sphi 0, %s157
      %s172 = sphi 0, %s158
      %s176 = sphi 0, %s176
      %s178 = sphi 0, %s176
      %s179 = sphi 0, %s178
      %s193 = sphi 0, %s179
      %s201 = sphi 0, %s203
      %s204 = sphi 0, %s201
      %s205 = sphi 0, %s204
      %s221 = sphi 0, %s205
    $region4: #{head_forward.1} parent=1 // loop_header_branch
      %16 = sbr.rel (%p14) target = $region8
    $region5: #{head_forward.1} parent=1 // loop_body
      %s18 = ssub.s32 %s13, 1
      %s19 = ssub.s32 %s13, 2
      %s26 = sadd.s32 1, %s21
      %p27 = scmp.ge.s32.totalorder %s26, 3
      %s28 = scalar_select %p27, 0, %s26
      %s29 = sadd.s32 1, %s20
      %s30 = scalar_select %p27, %s29, %s20
      %p31 = scmp.ge.s32.totalorder %s30, 2
      %s32 = scalar_select %p31, 0, %s30
      %s33 = ssub.s32 %s20, %s32
      %s34 = ssub.s32 %s21, %s28
      %s35 = sor.u32 %s33, %s34
      %p36 = scmp.eq.s32.totalorder %s35, 0
      %s38 = sadd.s32 %s37, 1
      %s39 = scalar_select %p36, %s37, %s38
      %p42 = pneg %p36
      %p43 = scmp.eq.s32.totalorder %s13, 5
      %p44 = por %p42, %p43
      %p45 = scmp.ne.s32.totalorder %s37, %s40
      %p46 = scmp.eq.s32.totalorder %s13, 0
      %p47 = por %p45, %p46
      %p48 = scmp.ne.s32.totalorder %s37, %s40
      %p49 = scmp.eq.s32.totalorder %s18, 5
      %p50 = por %p48, %p49
      %p51 = scmp.ne.s32.totalorder %s40, %s41
      %p52 = scmp.eq.s32.totalorder %s18, 0
      %p53 = por %p51, %p52
      %p54 = scmp.ne.s32.totalorder %s40, %s41
      %p55 = scmp.eq.s32.totalorder %s19, 5
      %p56 = por %p54, %p55
      %p58 = scmp.ne.s32.totalorder %s41, %s57
      %p59 = scmp.eq.s32.totalorder %s19, 0
      %p60 = por %p58, %p59
      %s61 = ssub.s32 %s21, %s28
      %p62 = scmp.eq.s32.totalorder %s61, 0
      %s64 = sadd.s32 %s63, 1
      %s65 = scalar_select %p62, %s63, %s64
      %p68 = pneg %p62
      %p69 = scmp.eq.s32.totalorder %s13, 5
      %p70 = por %p68, %p69
      %p71 = scmp.ne.s32.totalorder %s63, %s66
      %p72 = scmp.eq.s32.totalorder %s13, 0
      %p73 = por %p71, %p72
      %p74 = scmp.ne.s32.totalorder %s63, %s66
      %p75 = scmp.eq.s32.totalorder %s18, 5
      %p76 = por %p74, %p75
      %p77 = scmp.ne.s32.totalorder %s66, %s67
      %p78 = scmp.eq.s32.totalorder %s18, 0
      %p79 = por %p77, %p78
      %p80 = scmp.ne.s32.totalorder %s66, %s67
      %p81 = scmp.eq.s32.totalorder %s19, 5
      %p82 = por %p80, %p81
      %p84 = scmp.ne.s32.totalorder %s67, %s83
      %p85 = scmp.eq.s32.totalorder %s19, 0
      %p86 = por %p84, %p85
      %s87 = ssub.s32 %s20, %s32
      %p88 = scmp.eq.s32.totalorder %s87, 0
      %s90 = sadd.s32 %s89, 1
      %s91 = scalar_select %p88, %s89, %s90
      %p94 = pneg %p88
      %p95 = scmp.eq.s32.totalorder %s13, 5
      %p96 = por %p94, %p95
      %p97 = scmp.ne.s32.totalorder %s89, %s92
      %p98 = scmp.eq.s32.totalorder %s13, 0
      %p99 = por %p97, %p98
      %p100 = scmp.ne.s32.totalorder %s89, %s92
      %p101 = scmp.eq.s32.totalorder %s18, 5
      %p102 = por %p100, %p101
      %p103 = scmp.ne.s32.totalorder %s92, %s93
      %p104 = scmp.eq.s32.totalorder %s18, 0
      %p105 = por %p103, %p104
      %p106 = scmp.ne.s32.totalorder %s92, %s93
      %p107 = scmp.eq.s32.totalorder %s19, 5
      %p108 = por %p106, %p107
      %p110 = scmp.ne.s32.totalorder %s93, %s109
      %p111 = scmp.eq.s32.totalorder %s19, 0
      %p112 = por %p110, %p111
      %s114 = sadd.s32 %s113, 1
      %p117 = scmp.eq.s32.totalorder %s13, 5
      %p118 = scmp.ne.s32.totalorder %s113, %s115
      %p119 = scmp.eq.s32.totalorder %s13, 0
      %p120 = por %p118, %p119
      %p121 = scmp.ne.s32.totalorder %s113, %s115
      %p122 = scmp.eq.s32.totalorder %s18, 5
      %p123 = por %p121, %p122
      %p124 = scmp.ne.s32.totalorder %s115, %s116
      %p125 = scmp.eq.s32.totalorder %s18, 0
      %p126 = por %p124, %p125
      %p127 = scmp.ne.s32.totalorder %s115, %s116
      %p128 = scmp.eq.s32.totalorder %s19, 5
      %p129 = por %p127, %p128
      %p131 = scmp.ne.s32.totalorder %s116, %s130
      %p132 = scmp.eq.s32.totalorder %s19, 0
      %p133 = por %p131, %p132
      %s135 = sadd.s32 %s134, 1
      %p138 = scmp.eq.s32.totalorder %s13, 5
      %p139 = scmp.ne.s32.totalorder %s134, %s136
      %p140 = scmp.eq.s32.totalorder %s13, 0
      %p141 = por %p139, %p140
      %p142 = scmp.ne.s32.totalorder %s134, %s136
      %p143 = scmp.eq.s32.totalorder %s18, 5
      %p144 = por %p142, %p143
      %p145 = scmp.ne.s32.totalorder %s136, %s137
      %p146 = scmp.eq.s32.totalorder %s18, 0
      %p147 = por %p145, %p146
      %p148 = scmp.ne.s32.totalorder %s136, %s137
      %p149 = scmp.eq.s32.totalorder %s19, 5
      %p150 = por %p148, %p149
      %p152 = scmp.ne.s32.totalorder %s137, %s151
      %p153 = scmp.eq.s32.totalorder %s19, 0
      %p154 = por %p152, %p153
      %s156 = sadd.s32 %s155, 1
      %p159 = scmp.eq.s32.totalorder %s13, 5
      %p160 = scmp.ne.s32.totalorder %s155, %s157
      %p161 = scmp.eq.s32.totalorder %s13, 0
      %p162 = por %p160, %p161
      %p163 = scmp.ne.s32.totalorder %s155, %s157
      %p164 = scmp.eq.s32.totalorder %s18, 5
      %p165 = por %p163, %p164
      %p166 = scmp.ne.s32.totalorder %s157, %s158
      %p167 = scmp.eq.s32.totalorder %s18, 0
      %p168 = por %p166, %p167
      %p169 = scmp.ne.s32.totalorder %s157, %s158
      %p170 = scmp.eq.s32.totalorder %s19, 5
      %p171 = por %p169, %p170
      %p173 = scmp.ne.s32.totalorder %s158, %s172
      %p174 = scmp.eq.s32.totalorder %s19, 0
      %p175 = por %p173, %p174
      %s177 = sadd.s32 %s176, 1
      %p180 = scmp.eq.s32.totalorder %s13, 5
      %p181 = scmp.ne.s32.totalorder %s176, %s178
      %p182 = scmp.eq.s32.totalorder %s13, 0
      %p183 = por %p181, %p182
      %p184 = scmp.ne.s32.totalorder %s176, %s178
      %p185 = scmp.eq.s32.totalorder %s18, 5
      %p186 = por %p184, %p185
      %p187 = scmp.ne.s32.totalorder %s178, %s179
      %p188 = scmp.eq.s32.totalorder %s18, 0
      %p189 = por %p187, %p188
      %p190 = scmp.ne.s32.totalorder %s178, %s179
      %p191 = scmp.eq.s32.totalorder %s19, 5
      %p192 = por %p190, %p191
      %p194 = scmp.ne.s32.totalorder %s179, %s193
      %p195 = scmp.eq.s32.totalorder %s19, 0
      %p196 = por %p194, %p195
      %s197 = ssub.s32 %s20, %s32
      %s198 = ssub.s32 %s21, %s28
      %s199 = sor.u32 %s197, %s198
      %p200 = scmp.eq.s32.totalorder %s199, 0
      %s202 = sadd.s32 %s201, 1
      %s203 = scalar_select %p200, %s201, %s202
      %p206 = pneg %p200
      %p207 = scmp.eq.s32.totalorder %s13, 5
      %p208 = por %p206, %p207
      %p209 = scmp.ne.s32.totalorder %s201, %s204
      %p210 = scmp.eq.s32.totalorder %s13, 0
      %p211 = por %p209, %p210
      %p212 = scmp.ne.s32.totalorder %s201, %s204
      %p213 = scmp.eq.s32.totalorder %s18, 5
      %p214 = por %p212, %p213
      %p215 = scmp.ne.s32.totalorder %s204, %s205
      %p216 = scmp.eq.s32.totalorder %s18, 0
      %p217 = por %p215, %p216
      %p218 = scmp.ne.s32.totalorder %s204, %s205
      %p219 = scmp.eq.s32.totalorder %s19, 5
      %p220 = por %p218, %p219
      %p222 = scmp.ne.s32.totalorder %s205, %s221
      %p223 = scmp.eq.s32.totalorder %s19, 0
      %p224 = por %p222, %p223
      %p225 = scmp.le.s32.totalorder 1, %s13
      %p226 = scmp.lt.s32.totalorder %s13, 7
      %p227 = pnand %p225, %p226
      %p228 = pneg %p227
      // Predicated region
      $region9: #{head_forward.1} parent=5 // pred_check
        _
      $region10: #{head_forward.1} parent=5 // pred_check_branch
        %230 = sbr.rel (%p227) target = $region12
      $region11: #{head_forward.1} parent=5 // pred_region
        %s231 = ssub.s32 %s13, 1
        // Predicated region
        $region13: #{head_forward.1} parent=11 // pred_check
          %p232 = pneg %p126
        $region14: #{head_forward.1} parent=11 // pred_check_branch
          %234 = sbr.rel (%p232) target = $region16
        $region15: #{head_forward.1} parent=11 // pred_region
          _
        $region16: #{head_forward.1} parent=11 // pred_fallthru
          _
        // Predicated region
        $region17: #{head_forward.1} parent=11 // pred_check
          %p235 = pneg %p147
        $region18: #{head_forward.1} parent=11 // pred_check_branch
          %237 = sbr.rel (%p235) target = $region20
        $region19: #{head_forward.1} parent=11 // pred_region
          _
        $region20: #{head_forward.1} parent=11 // pred_fallthru
          _
        // Predicated region
        $region21: #{head_forward.1} parent=11 // pred_check
          %p238 = pneg %p168
        $region22: #{head_forward.1} parent=11 // pred_check_branch
          %240 = sbr.rel (%p238) target = $region24
        $region23: #{head_forward.1} parent=11 // pred_region
          _
        $region24: #{head_forward.1} parent=11 // pred_fallthru
          _
        // Predicated region
        $region25: #{head_forward.1} parent=11 // pred_check
          %p241 = pneg %p189
        $region26: #{head_forward.1} parent=11 // pred_check_branch
          %243 = sbr.rel (%p241) target = $region28
        $region27: #{head_forward.1} parent=11 // pred_region
          _
        $region28: #{head_forward.1} parent=11 // pred_fallthru
          _
      $region12: #{head_forward.1} parent=5 // pred_fallthru
        _
      %p244 = scmp.lt.s32.totalorder %s13, 6
      // Predicated region
      $region29: #{head_forward.1} parent=5 // pred_check
        %p245 = pneg %p244
      $region30: #{head_forward.1} parent=5 // pred_check_branch
        %247 = sbr.rel (%p245) target = $region32
      $region31: #{head_forward.1} parent=5 // pred_region
        // Predicated region
        $region33: #{head_forward.1} parent=31 // pred_check
          %p248 = pneg %p47
        $region34: #{head_forward.1} parent=31 // pred_check_branch
          %250 = sbr.rel (%p248) target = $region36
        $region35: #{head_forward.1} parent=31 // pred_region
          %s251 = sand.u32 %s37, 1
          %s252 = sand.u32 %s37, 1
          %s253 = smul.addr %s252, 2592
          %s254 = scalar_lea.vmem [#allocation2], %s253
          %s255 = smul.u32 9, %s21
          %s256 = smul.addr %s20, 1944
          %s257 = sadd.s32 %s255, %s256
          %s258 = smul.addr %s257, 4
          %s259 = scalar_lea.vmem %s0, %s258
          // Predicated region
          $region37: #{head_forward.1} parent=35 // pred_check
            _
          $region38: #{head_forward.1} parent=35 // pred_check_branch
            %261 = sbr.rel (0) target = $region40
          $region39: #{head_forward.1} parent=35 // pred_region
            // Predicated region
            $region41: #{head_forward.1} parent=39 // pred_check
              _
            $region42: #{head_forward.1} parent=39 // pred_check_branch
              %263 = sbr.rel (0) target = $region44
            $region43: #{head_forward.1} parent=39 // pred_region
              %s264 = scalar_lea.vmem %s259, 32
              %s265 = scalar_lea.vmem %s254, 32 [#allocation2]
              loop: start=0, step=1, limit=1
              $region45: #{head_forward.1} parent=43 // loop_pre_header
                _
              $region46: #{head_forward.1} parent=43 // loop_header
                %s267 = sphi 0, %s271
                %p268 = scmp.ge.s32.totalorder %s267, 1
                %s272 = sphi %s259, %s259
                %s273 = sphi %s254, %s254
              $region47: #{head_forward.1} parent=43 // loop_header_branch
                %270 = sbr.rel (%p268) target = $region51
              $region48: #{head_forward.1} parent=43 // loop_body
                %v274 = vld [vmem:[%s272] sm:$0xff]
                %275 = vst [vmem:[%s273] sm:$0xff] %v274
                %v276 = vld [vmem:[%s272 + $0x8] sm:$0xff]
                %277 = vst [vmem:[%s273 + $0x8] sm:$0xff] %v276
                %v278 = vld [vmem:[%s272 + $0x10] sm:$0xff]
                %279 = vst [vmem:[%s273 + $0x10] sm:$0xff] %v278
                %v280 = vld [vmem:[%s272 + $0x18] sm:$0xff]
                %281 = vst [vmem:[%s273 + $0x18] sm:$0xff] %v280
                %v282 = vld [vmem:[%s272 + $0x6c] sm:$0xff]
                %283 = vst [vmem:[%s273 + $0x24] sm:$0xff] %v282
                %v284 = vld [vmem:[%s272 + $0x74] sm:$0xff]
                %285 = vst [vmem:[%s273 + $0x2c] sm:$0xff] %v284
                %v286 = vld [vmem:[%s272 + $0x7c] sm:$0xff]
                %287 = vst [vmem:[%s273 + $0x34] sm:$0xff] %v286
                %v288 = vld [vmem:[%s272 + $0x84] sm:$0xff]
                %289 = vst [vmem:[%s273 + $0x3c] sm:$0xff] %v288
                %v290 = vld [vmem:[%s272 + $0xd8] sm:$0xff]
                %291 = vst [vmem:[%s273 + $0x48] sm:$0xff] %v290
                %v292 = vld [vmem:[%s272 + $0xe0] sm:$0xff]
                %293 = vst [vmem:[%s273 + $0x50] sm:$0xff] %v292
                %v294 = vld [vmem:[%s272 + $0xe8] sm:$0xff]
                %295 = vst [vmem:[%s273 + $0x58] sm:$0xff] %v294
                %v296 = vld [vmem:[%s272 + $0xf0] sm:$0xff]
                %297 = vst [vmem:[%s273 + $0x60] sm:$0xff] %v296
                %v298 = vld [vmem:[%s272 + $0x144] sm:$0xff]
                %299 = vst [vmem:[%s273 + $0x6c] sm:$0xff] %v298
                %v300 = vld [vmem:[%s272 + $0x14c] sm:$0xff]
                %301 = vst [vmem:[%s273 + $0x74] sm:$0xff] %v300
                %v302 = vld [vmem:[%s272 + $0x154] sm:$0xff]
                %303 = vst [vmem:[%s273 + $0x7c] sm:$0xff] %v302
                %v304 = vld [vmem:[%s272 + $0x15c] sm:$0xff]
                %305 = vst [vmem:[%s273 + $0x84] sm:$0xff] %v304
                %v306 = vld [vmem:[%s272 + $0x1b0] sm:$0xff]
                %307 = vst [vmem:[%s273 + $0x90] sm:$0xff] %v306
                %v308 = vld [vmem:[%s272 + $0x1b8] sm:$0xff]
                %309 = vst [vmem:[%s273 + $0x98] sm:$0xff] %v308
                %v310 = vld [vmem:[%s272 + $0x1c0] sm:$0xff]
                %311 = vst [vmem:[%s273 + $0xa0] sm:$0xff] %v310
                %v312 = vld [vmem:[%s272 + $0x1c8] sm:$0xff]
                %313 = vst [vmem:[%s273 + $0xa8] sm:$0xff] %v312
                %v314 = vld [vmem:[%s272 + $0x21c] sm:$0xff]
                %315 = vst [vmem:[%s273 + $0xb4] sm:$0xff] %v314
                %v316 = vld [vmem:[%s272 + $0x224] sm:$0xff]
                %317 = vst [vmem:[%s273 + $0xbc] sm:$0xff] %v316
                %v318 = vld [vmem:[%s272 + $0x22c] sm:$0xff]
                %319 = vst [vmem:[%s273 + $0xc4] sm:$0xff] %v318
                %v320 = vld [vmem:[%s272 + $0x234] sm:$0xff]
                %321 = vst [vmem:[%s273 + $0xcc] sm:$0xff] %v320
                %v322 = vld [vmem:[%s272 + $0x288] sm:$0xff]
                %323 = vst [vmem:[%s273 + $0xd8] sm:$0xff] %v322
                %v324 = vld [vmem:[%s272 + $0x290] sm:$0xff]
                %325 = vst [vmem:[%s273 + $0xe0] sm:$0xff] %v324
                %v326 = vld [vmem:[%s272 + $0x298] sm:$0xff]
                %327 = vst [vmem:[%s273 + $0xe8] sm:$0xff] %v326
                %v328 = vld [vmem:[%s272 + $0x2a0] sm:$0xff]
                %329 = vst [vmem:[%s273 + $0xf0] sm:$0xff] %v328
                %v330 = vld [vmem:[%s272 + $0x2f4] sm:$0xff]
                %331 = vst [vmem:[%s273 + $0xfc] sm:$0xff] %v330
                %v332 = vld [vmem:[%s272 + $0x2fc] sm:$0xff]
                %333 = vst [vmem:[%s273 + $0x104] sm:$0xff] %v332
                %v334 = vld [vmem:[%s272 + $0x304] sm:$0xff]
                %335 = vst [vmem:[%s273 + $0x10c] sm:$0xff] %v334
                %v336 = vld [vmem:[%s272 + $0x30c] sm:$0xff]
                %337 = vst [vmem:[%s273 + $0x114] sm:$0xff] %v336
                %v338 = vld [vmem:[%s272 + $0x360] sm:$0xff]
                %339 = vst [vmem:[%s273 + $0x120] sm:$0xff] %v338
                %v340 = vld [vmem:[%s272 + $0x368] sm:$0xff]
                %341 = vst [vmem:[%s273 + $0x128] sm:$0xff] %v340
                %v342 = vld [vmem:[%s272 + $0x370] sm:$0xff]
                %343 = vst [vmem:[%s273 + $0x130] sm:$0xff] %v342
                %v344 = vld [vmem:[%s272 + $0x378] sm:$0xff]
                %345 = vst [vmem:[%s273 + $0x138] sm:$0xff] %v344
                %v346 = vld [vmem:[%s272 + $0x3cc] sm:$0xff]
                %347 = vst [vmem:[%s273 + $0x144] sm:$0xff] %v346
                %v348 = vld [vmem:[%s272 + $0x3d4] sm:$0xff]
                %349 = vst [vmem:[%s273 + $0x14c] sm:$0xff] %v348
                %v350 = vld [vmem:[%s272 + $0x3dc] sm:$0xff]
                %351 = vst [vmem:[%s273 + $0x154] sm:$0xff] %v350
                %v352 = vld [vmem:[%s272 + $0x3e4] sm:$0xff]
                %353 = vst [vmem:[%s273 + $0x15c] sm:$0xff] %v352
                %v354 = vld [vmem:[%s272 + $0x438] sm:$0xff]
                %355 = vst [vmem:[%s273 + $0x168] sm:$0xff] %v354
                %v356 = vld [vmem:[%s272 + $0x440] sm:$0xff]
                %357 = vst [vmem:[%s273 + $0x170] sm:$0xff] %v356
                %v358 = vld [vmem:[%s272 + $0x448] sm:$0xff]
                %359 = vst [vmem:[%s273 + $0x178] sm:$0xff] %v358
                %v360 = vld [vmem:[%s272 + $0x450] sm:$0xff]
                %361 = vst [vmem:[%s273 + $0x180] sm:$0xff] %v360
                %v362 = vld [vmem:[%s272 + $0x4a4] sm:$0xff]
                %363 = vst [vmem:[%s273 + $0x18c] sm:$0xff] %v362
                %v364 = vld [vmem:[%s272 + $0x4ac] sm:$0xff]
                %365 = vst [vmem:[%s273 + $0x194] sm:$0xff] %v364
                %v366 = vld [vmem:[%s272 + $0x4b4] sm:$0xff]
                %367 = vst [vmem:[%s273 + $0x19c] sm:$0xff] %v366
                %v368 = vld [vmem:[%s272 + $0x4bc] sm:$0xff]
                %369 = vst [vmem:[%s273 + $0x1a4] sm:$0xff] %v368
                %v370 = vld [vmem:[%s272 + $0x510] sm:$0xff]
                %371 = vst [vmem:[%s273 + $0x1b0] sm:$0xff] %v370
                %v372 = vld [vmem:[%s272 + $0x518] sm:$0xff]
                %373 = vst [vmem:[%s273 + $0x1b8] sm:$0xff] %v372
                %v374 = vld [vmem:[%s272 + $0x520] sm:$0xff]
                %375 = vst [vmem:[%s273 + $0x1c0] sm:$0xff] %v374
                %v376 = vld [vmem:[%s272 + $0x528] sm:$0xff]
                %377 = vst [vmem:[%s273 + $0x1c8] sm:$0xff] %v376
                %v378 = vld [vmem:[%s272 + $0x57c] sm:$0xff]
                %379 = vst [vmem:[%s273 + $0x1d4] sm:$0xff] %v378
                %v380 = vld [vmem:[%s272 + $0x584] sm:$0xff]
                %381 = vst [vmem:[%s273 + $0x1dc] sm:$0xff] %v380
                %v382 = vld [vmem:[%s272 + $0x58c] sm:$0xff]
                %383 = vst [vmem:[%s273 + $0x1e4] sm:$0xff] %v382
                %v384 = vld [vmem:[%s272 + $0x594] sm:$0xff]
                %385 = vst [vmem:[%s273 + $0x1ec] sm:$0xff] %v384
                %v386 = vld [vmem:[%s272 + $0x5e8] sm:$0xff]
                %387 = vst [vmem:[%s273 + $0x1f8] sm:$0xff] %v386
                %v388 = vld [vmem:[%s272 + $0x5f0] sm:$0xff]
                %389 = vst [vmem:[%s273 + $0x200] sm:$0xff] %v388
                %v390 = vld [vmem:[%s272 + $0x5f8] sm:$0xff]
                %391 = vst [vmem:[%s273 + $0x208] sm:$0xff] %v390
                %v392 = vld [vmem:[%s272 + $0x600] sm:$0xff]
                %393 = vst [vmem:[%s273 + $0x210] sm:$0xff] %v392
                %v394 = vld [vmem:[%s272 + $0x654] sm:$0xff]
                %395 = vst [vmem:[%s273 + $0x21c] sm:$0xff] %v394
                %v396 = vld [vmem:[%s272 + $0x65c] sm:$0xff]
                %397 = vst [vmem:[%s273 + $0x224] sm:$0xff] %v396
                %v398 = vld [vmem:[%s272 + $0x664] sm:$0xff]
                %399 = vst [vmem:[%s273 + $0x22c] sm:$0xff] %v398
                %v400 = vld [vmem:[%s272 + $0x66c] sm:$0xff]
                %401 = vst [vmem:[%s273 + $0x234] sm:$0xff] %v400
                %v402 = vld [vmem:[%s272 + $0x6c0] sm:$0xff]
                %403 = vst [vmem:[%s273 + $0x240] sm:$0xff] %v402
                %v404 = vld [vmem:[%s272 + $0x6c8] sm:$0xff]
                %405 = vst [vmem:[%s273 + $0x248] sm:$0xff] %v404
                %v406 = vld [vmem:[%s272 + $0x6d0] sm:$0xff]
                %407 = vst [vmem:[%s273 + $0x250] sm:$0xff] %v406
                %v408 = vld [vmem:[%s272 + $0x6d8] sm:$0xff]
                %409 = vst [vmem:[%s273 + $0x258] sm:$0xff] %v408
                %v410 = vld [vmem:[%s272 + $0x72c] sm:$0xff]
                %411 = vst [vmem:[%s273 + $0x264] sm:$0xff] %v410
                %v412 = vld [vmem:[%s272 + $0x734] sm:$0xff]
                %413 = vst [vmem:[%s273 + $0x26c] sm:$0xff] %v412
                %v414 = vld [vmem:[%s272 + $0x73c] sm:$0xff]
                %415 = vst [vmem:[%s273 + $0x274] sm:$0xff] %v414
                %v416 = vld [vmem:[%s272 + $0x744] sm:$0xff]
                %417 = vst [vmem:[%s273 + $0x27c] sm:$0xff] %v416
                %v418 = vld [vmem:[%s272 + $0x798] sm:$0xff]
                %419 = vst [vmem:[%s273 + $0x288] sm:$0xff] %v418
                %v420 = vld [vmem:[%s272 + $0x7a0] sm:$0xff]
                %421 = vst [vmem:[%s273 + $0x290] sm:$0xff] %v420
                %v422 = vld [vmem:[%s272 + $0x7a8] sm:$0xff]
                %423 = vst [vmem:[%s273 + $0x298] sm:$0xff] %v422
                %v424 = vld [vmem:[%s272 + $0x7b0] sm:$0xff]
                %425 = vst [vmem:[%s273 + $0x2a0] sm:$0xff] %v424
                %v426 = vld [vmem:[%s272 + $0x804] sm:$0xff]
                %427 = vst [vmem:[%s273 + $0x2ac] sm:$0xff] %v426
                %v428 = vld [vmem:[%s272 + $0x80c] sm:$0xff]
                %429 = vst [vmem:[%s273 + $0x2b4] sm:$0xff] %v428
                %v430 = vld [vmem:[%s272 + $0x814] sm:$0xff]
                %431 = vst [vmem:[%s273 + $0x2bc] sm:$0xff] %v430
                %v432 = vld [vmem:[%s272 + $0x81c] sm:$0xff]
                %433 = vst [vmem:[%s273 + $0x2c4] sm:$0xff] %v432
                %v434 = vld [vmem:[%s272 + $0x870] sm:$0xff]
                %435 = vst [vmem:[%s273 + $0x2d0] sm:$0xff] %v434
                %v436 = vld [vmem:[%s272 + $0x878] sm:$0xff]
                %437 = vst [vmem:[%s273 + $0x2d8] sm:$0xff] %v436
                %v438 = vld [vmem:[%s272 + $0x880] sm:$0xff]
                %439 = vst [vmem:[%s273 + $0x2e0] sm:$0xff] %v438
                %v440 = vld [vmem:[%s272 + $0x888] sm:$0xff]
                %441 = vst [vmem:[%s273 + $0x2e8] sm:$0xff] %v440
                %v442 = vld [vmem:[%s272 + $0x8dc] sm:$0xff]
                %443 = vst [vmem:[%s273 + $0x2f4] sm:$0xff] %v442
                %v444 = vld [vmem:[%s272 + $0x8e4] sm:$0xff]
                %445 = vst [vmem:[%s273 + $0x2fc] sm:$0xff] %v444
                %v446 = vld [vmem:[%s272 + $0x8ec] sm:$0xff]
                %447 = vst [vmem:[%s273 + $0x304] sm:$0xff] %v446
                %v448 = vld [vmem:[%s272 + $0x8f4] sm:$0xff]
                %449 = vst [vmem:[%s273 + $0x30c] sm:$0xff] %v448
                %v450 = vld [vmem:[%s272 + $0x948] sm:$0xff]
                %451 = vst [vmem:[%s273 + $0x318] sm:$0xff] %v450
                %v452 = vld [vmem:[%s272 + $0x950] sm:$0xff]
                %453 = vst [vmem:[%s273 + $0x320] sm:$0xff] %v452
                %v454 = vld [vmem:[%s272 + $0x958] sm:$0xff]
                %455 = vst [vmem:[%s273 + $0x328] sm:$0xff] %v454
                %v456 = vld [vmem:[%s272 + $0x960] sm:$0xff]
                %457 = vst [vmem:[%s273 + $0x330] sm:$0xff] %v456
                %v458 = vld [vmem:[%s272 + $0x9b4] sm:$0xff]
                %459 = vst [vmem:[%s273 + $0x33c] sm:$0xff] %v458
                %v460 = vld [vmem:[%s272 + $0x9bc] sm:$0xff]
                %461 = vst [vmem:[%s273 + $0x344] sm:$0xff] %v460
                %v462 = vld [vmem:[%s272 + $0x9c4] sm:$0xff]
                %463 = vst [vmem:[%s273 + $0x34c] sm:$0xff] %v462
                %v464 = vld [vmem:[%s272 + $0x9cc] sm:$0xff]
                %465 = vst [vmem:[%s273 + $0x354] sm:$0xff] %v464
                %v466 = vld [vmem:[%s272 + $0xa20] sm:$0xff]
                %467 = vst [vmem:[%s273 + $0x360] sm:$0xff] %v466
                %v468 = vld [vmem:[%s272 + $0xa28] sm:$0xff]
                %469 = vst [vmem:[%s273 + $0x368] sm:$0xff] %v468
                %v470 = vld [vmem:[%s272 + $0xa30] sm:$0xff]
                %471 = vst [vmem:[%s273 + $0x370] sm:$0xff] %v470
                %v472 = vld [vmem:[%s272 + $0xa38] sm:$0xff]
                %473 = vst [vmem:[%s273 + $0x378] sm:$0xff] %v472
                %v474 = vld [vmem:[%s272 + $0xa8c] sm:$0xff]
                %475 = vst [vmem:[%s273 + $0x384] sm:$0xff] %v474
                %v476 = vld [vmem:[%s272 + $0xa94] sm:$0xff]
                %477 = vst [vmem:[%s273 + $0x38c] sm:$0xff] %v476
                %v478 = vld [vmem:[%s272 + $0xa9c] sm:$0xff]
                %479 = vst [vmem:[%s273 + $0x394] sm:$0xff] %v478
                %v480 = vld [vmem:[%s272 + $0xaa4] sm:$0xff]
                %481 = vst [vmem:[%s273 + $0x39c] sm:$0xff] %v480
                %v482 = vld [vmem:[%s272 + $0xaf8] sm:$0xff]
                %483 = vst [vmem:[%s273 + $0x3a8] sm:$0xff] %v482
                %v484 = vld [vmem:[%s272 + $0xb00] sm:$0xff]
                %485 = vst [vmem:[%s273 + $0x3b0] sm:$0xff] %v484
                %v486 = vld [vmem:[%s272 + $0xb08] sm:$0xff]
                %487 = vst [vmem:[%s273 + $0x3b8] sm:$0xff] %v486
                %v488 = vld [vmem:[%s272 + $0xb10] sm:$0xff]
                %489 = vst [vmem:[%s273 + $0x3c0] sm:$0xff] %v488
                %v490 = vld [vmem:[%s272 + $0xb64] sm:$0xff]
                %491 = vst [vmem:[%s273 + $0x3cc] sm:$0xff] %v490
                %v492 = vld [vmem:[%s272 + $0xb6c] sm:$0xff]
                %493 = vst [vmem:[%s273 + $0x3d4] sm:$0xff] %v492
                %v494 = vld [vmem:[%s272 + $0xb74] sm:$0xff]
                %495 = vst [vmem:[%s273 + $0x3dc] sm:$0xff] %v494
                %v496 = vld [vmem:[%s272 + $0xb7c] sm:$0xff]
                %497 = vst [vmem:[%s273 + $0x3e4] sm:$0xff] %v496
                %v498 = vld [vmem:[%s272 + $0xbd0] sm:$0xff]
                %499 = vst [vmem:[%s273 + $0x3f0] sm:$0xff] %v498
                %v500 = vld [vmem:[%s272 + $0xbd8] sm:$0xff]
                %501 = vst [vmem:[%s273 + $0x3f8] sm:$0xff] %v500
                %v502 = vld [vmem:[%s272 + $0xbe0] sm:$0xff]
                %503 = vst [vmem:[%s273 + $0x400] sm:$0xff] %v502
                %v504 = vld [vmem:[%s272 + $0xbe8] sm:$0xff]
                %505 = vst [vmem:[%s273 + $0x408] sm:$0xff] %v504
                %v506 = vld [vmem:[%s272 + $0xc3c] sm:$0xff]
                %507 = vst [vmem:[%s273 + $0x414] sm:$0xff] %v506
                %v508 = vld [vmem:[%s272 + $0xc44] sm:$0xff]
                %509 = vst [vmem:[%s273 + $0x41c] sm:$0xff] %v508
                %v510 = vld [vmem:[%s272 + $0xc4c] sm:$0xff]
                %511 = vst [vmem:[%s273 + $0x424] sm:$0xff] %v510
                %v512 = vld [vmem:[%s272 + $0xc54] sm:$0xff]
                %513 = vst [vmem:[%s273 + $0x42c] sm:$0xff] %v512
                %v514 = vld [vmem:[%s272 + $0xca8] sm:$0xff]
                %515 = vst [vmem:[%s273 + $0x438] sm:$0xff] %v514
                %v516 = vld [vmem:[%s272 + $0xcb0] sm:$0xff]
                %517 = vst [vmem:[%s273 + $0x440] sm:$0xff] %v516
                %v518 = vld [vmem:[%s272 + $0xcb8] sm:$0xff]
                %519 = vst [vmem:[%s273 + $0x448] sm:$0xff] %v518
                %v520 = vld [vmem:[%s272 + $0xcc0] sm:$0xff]
                %521 = vst [vmem:[%s273 + $0x450] sm:$0xff] %v520
                %v522 = vld [vmem:[%s272 + $0xd14] sm:$0xff]
                %523 = vst [vmem:[%s273 + $0x45c] sm:$0xff] %v522
                %v524 = vld [vmem:[%s272 + $0xd1c] sm:$0xff]
                %525 = vst [vmem:[%s273 + $0x464] sm:$0xff] %v524
                %v526 = vld [vmem:[%s272 + $0xd24] sm:$0xff]
                %527 = vst [vmem:[%s273 + $0x46c] sm:$0xff] %v526
                %v528 = vld [vmem:[%s272 + $0xd2c] sm:$0xff]
                %529 = vst [vmem:[%s273 + $0x474] sm:$0xff] %v528
                %v530 = vld [vmem:[%s272 + $0xd80] sm:$0xff]
                %531 = vst [vmem:[%s273 + $0x480] sm:$0xff] %v530
                %v532 = vld [vmem:[%s272 + $0xd88] sm:$0xff]
                %533 = vst [vmem:[%s273 + $0x488] sm:$0xff] %v532
                %v534 = vld [vmem:[%s272 + $0xd90] sm:$0xff]
                %535 = vst [vmem:[%s273 + $0x490] sm:$0xff] %v534
                %v536 = vld [vmem:[%s272 + $0xd98] sm:$0xff]
                %537 = vst [vmem:[%s273 + $0x498] sm:$0xff] %v536
                %v538 = vld [vmem:[%s272 + $0xdec] sm:$0xff]
                %539 = vst [vmem:[%s273 + $0x4a4] sm:$0xff] %v538
                %v540 = vld [vmem:[%s272 + $0xdf4] sm:$0xff]
                %541 = vst [vmem:[%s273 + $0x4ac] sm:$0xff] %v540
                %v542 = vld [vmem:[%s272 + $0xdfc] sm:$0xff]
                %543 = vst [vmem:[%s273 + $0x4b4] sm:$0xff] %v542
                %v544 = vld [vmem:[%s272 + $0xe04] sm:$0xff]
                %545 = vst [vmem:[%s273 + $0x4bc] sm:$0xff] %v544
                %v546 = vld [vmem:[%s272 + $0xe58] sm:$0xff]
                %547 = vst [vmem:[%s273 + $0x4c8] sm:$0xff] %v546
                %v548 = vld [vmem:[%s272 + $0xe60] sm:$0xff]
                %549 = vst [vmem:[%s273 + $0x4d0] sm:$0xff] %v548
                %v550 = vld [vmem:[%s272 + $0xe68] sm:$0xff]
                %551 = vst [vmem:[%s273 + $0x4d8] sm:$0xff] %v550
                %v552 = vld [vmem:[%s272 + $0xe70] sm:$0xff]
                %553 = vst [vmem:[%s273 + $0x4e0] sm:$0xff] %v552
                %v554 = vld [vmem:[%s272 + $0xec4] sm:$0xff]
                %555 = vst [vmem:[%s273 + $0x4ec] sm:$0xff] %v554
                %v556 = vld [vmem:[%s272 + $0xecc] sm:$0xff]
                %557 = vst [vmem:[%s273 + $0x4f4] sm:$0xff] %v556
                %v558 = vld [vmem:[%s272 + $0xed4] sm:$0xff]
                %559 = vst [vmem:[%s273 + $0x4fc] sm:$0xff] %v558
                %v560 = vld [vmem:[%s272 + $0xedc] sm:$0xff]
                %561 = vst [vmem:[%s273 + $0x504] sm:$0xff] %v560
                %v562 = vld [vmem:[%s272 + $0xf30] sm:$0xff]
                %563 = vst [vmem:[%s273 + $0x510] sm:$0xff] %v562
                %v564 = vld [vmem:[%s272 + $0xf38] sm:$0xff]
                %565 = vst [vmem:[%s273 + $0x518] sm:$0xff] %v564
                %v566 = vld [vmem:[%s272 + $0xf40] sm:$0xff]
                %567 = vst [vmem:[%s273 + $0x520] sm:$0xff] %v566
                %v568 = vld [vmem:[%s272 + $0xf48] sm:$0xff]
                %569 = vst [vmem:[%s273 + $0x528] sm:$0xff] %v568
                %v570 = vld [vmem:[%s272 + $0xf9c] sm:$0xff]
                %571 = vst [vmem:[%s273 + $0x534] sm:$0xff] %v570
                %v572 = vld [vmem:[%s272 + $0xfa4] sm:$0xff]
                %573 = vst [vmem:[%s273 + $0x53c] sm:$0xff] %v572
                %v574 = vld [vmem:[%s272 + $0xfac] sm:$0xff]
                %575 = vst [vmem:[%s273 + $0x544] sm:$0xff] %v574
                %v576 = vld [vmem:[%s272 + $0xfb4] sm:$0xff]
                %577 = vst [vmem:[%s273 + $0x54c] sm:$0xff] %v576
                %v578 = vld [vmem:[%s272 + $0x1008] sm:$0xff]
                %579 = vst [vmem:[%s273 + $0x558] sm:$0xff] %v578
                %v580 = vld [vmem:[%s272 + $0x1010] sm:$0xff]
                %581 = vst [vmem:[%s273 + $0x560] sm:$0xff] %v580
                %v582 = vld [vmem:[%s272 + $0x1018] sm:$0xff]
                %583 = vst [vmem:[%s273 + $0x568] sm:$0xff] %v582
                %v584 = vld [vmem:[%s272 + $0x1020] sm:$0xff]
                %585 = vst [vmem:[%s273 + $0x570] sm:$0xff] %v584
                %v586 = vld [vmem:[%s272 + $0x1074] sm:$0xff]
                %587 = vst [vmem:[%s273 + $0x57c] sm:$0xff] %v586
                %v588 = vld [vmem:[%s272 + $0x107c] sm:$0xff]
                %589 = vst [vmem:[%s273 + $0x584] sm:$0xff] %v588
                %v590 = vld [vmem:[%s272 + $0x1084] sm:$0xff]
                %591 = vst [vmem:[%s273 + $0x58c] sm:$0xff] %v590
                %v592 = vld [vmem:[%s272 + $0x108c] sm:$0xff]
                %593 = vst [vmem:[%s273 + $0x594] sm:$0xff] %v592
                %v594 = vld [vmem:[%s272 + $0x10e0] sm:$0xff]
                %595 = vst [vmem:[%s273 + $0x5a0] sm:$0xff] %v594
                %v596 = vld [vmem:[%s272 + $0x10e8] sm:$0xff]
                %597 = vst [vmem:[%s273 + $0x5a8] sm:$0xff] %v596
                %v598 = vld [vmem:[%s272 + $0x10f0] sm:$0xff]
                %599 = vst [vmem:[%s273 + $0x5b0] sm:$0xff] %v598
                %v600 = vld [vmem:[%s272 + $0x10f8] sm:$0xff]
                %601 = vst [vmem:[%s273 + $0x5b8] sm:$0xff] %v600
                %v602 = vld [vmem:[%s272 + $0x114c] sm:$0xff]
                %603 = vst [vmem:[%s273 + $0x5c4] sm:$0xff] %v602
                %v604 = vld [vmem:[%s272 + $0x1154] sm:$0xff]
                %605 = vst [vmem:[%s273 + $0x5cc] sm:$0xff] %v604
                %v606 = vld [vmem:[%s272 + $0x115c] sm:$0xff]
                %607 = vst [vmem:[%s273 + $0x5d4] sm:$0xff] %v606
                %v608 = vld [vmem:[%s272 + $0x1164] sm:$0xff]
                %609 = vst [vmem:[%s273 + $0x5dc] sm:$0xff] %v608
                %v610 = vld [vmem:[%s272 + $0x11b8] sm:$0xff]
                %611 = vst [vmem:[%s273 + $0x5e8] sm:$0xff] %v610
                %v612 = vld [vmem:[%s272 + $0x11c0] sm:$0xff]
                %613 = vst [vmem:[%s273 + $0x5f0] sm:$0xff] %v612
                %v614 = vld [vmem:[%s272 + $0x11c8] sm:$0xff]
                %615 = vst [vmem:[%s273 + $0x5f8] sm:$0xff] %v614
                %v616 = vld [vmem:[%s272 + $0x11d0] sm:$0xff]
                %617 = vst [vmem:[%s273 + $0x600] sm:$0xff] %v616
                %v618 = vld [vmem:[%s272 + $0x1224] sm:$0xff]
                %619 = vst [vmem:[%s273 + $0x60c] sm:$0xff] %v618
                %v620 = vld [vmem:[%s272 + $0x122c] sm:$0xff]
                %621 = vst [vmem:[%s273 + $0x614] sm:$0xff] %v620
                %v622 = vld [vmem:[%s272 + $0x1234] sm:$0xff]
                %623 = vst [vmem:[%s273 + $0x61c] sm:$0xff] %v622
                %v624 = vld [vmem:[%s272 + $0x123c] sm:$0xff]
                %625 = vst [vmem:[%s273 + $0x624] sm:$0xff] %v624
                %v626 = vld [vmem:[%s272 + $0x1290] sm:$0xff]
                %627 = vst [vmem:[%s273 + $0x630] sm:$0xff] %v626
                %v628 = vld [vmem:[%s272 + $0x1298] sm:$0xff]
                %629 = vst [vmem:[%s273 + $0x638] sm:$0xff] %v628
                %v630 = vld [vmem:[%s272 + $0x12a0] sm:$0xff]
                %631 = vst [vmem:[%s273 + $0x640] sm:$0xff] %v630
                %v632 = vld [vmem:[%s272 + $0x12a8] sm:$0xff]
                %633 = vst [vmem:[%s273 + $0x648] sm:$0xff] %v632
                %v634 = vld [vmem:[%s272 + $0x12fc] sm:$0xff]
                %635 = vst [vmem:[%s273 + $0x654] sm:$0xff] %v634
                %v636 = vld [vmem:[%s272 + $0x1304] sm:$0xff]
                %637 = vst [vmem:[%s273 + $0x65c] sm:$0xff] %v636
                %v638 = vld [vmem:[%s272 + $0x130c] sm:$0xff]
                %639 = vst [vmem:[%s273 + $0x664] sm:$0xff] %v638
                %v640 = vld [vmem:[%s272 + $0x1314] sm:$0xff]
                %641 = vst [vmem:[%s273 + $0x66c] sm:$0xff] %v640
                %v642 = vld [vmem:[%s272 + $0x1368] sm:$0xff]
                %643 = vst [vmem:[%s273 + $0x678] sm:$0xff] %v642
                %v644 = vld [vmem:[%s272 + $0x1370] sm:$0xff]
                %645 = vst [vmem:[%s273 + $0x680] sm:$0xff] %v644
                %v646 = vld [vmem:[%s272 + $0x1378] sm:$0xff]
                %647 = vst [vmem:[%s273 + $0x688] sm:$0xff] %v646
                %v648 = vld [vmem:[%s272 + $0x1380] sm:$0xff]
                %649 = vst [vmem:[%s273 + $0x690] sm:$0xff] %v648
                %v650 = vld [vmem:[%s272 + $0x13d4] sm:$0xff]
                %651 = vst [vmem:[%s273 + $0x69c] sm:$0xff] %v650
                %v652 = vld [vmem:[%s272 + $0x13dc] sm:$0xff]
                %653 = vst [vmem:[%s273 + $0x6a4] sm:$0xff] %v652
                %v654 = vld [vmem:[%s272 + $0x13e4] sm:$0xff]
                %655 = vst [vmem:[%s273 + $0x6ac] sm:$0xff] %v654
                %v656 = vld [vmem:[%s272 + $0x13ec] sm:$0xff]
                %657 = vst [vmem:[%s273 + $0x6b4] sm:$0xff] %v656
                %v658 = vld [vmem:[%s272 + $0x1440] sm:$0xff]
                %659 = vst [vmem:[%s273 + $0x6c0] sm:$0xff] %v658
                %v660 = vld [vmem:[%s272 + $0x1448] sm:$0xff]
                %661 = vst [vmem:[%s273 + $0x6c8] sm:$0xff] %v660
                %v662 = vld [vmem:[%s272 + $0x1450] sm:$0xff]
                %663 = vst [vmem:[%s273 + $0x6d0] sm:$0xff] %v662
                %v664 = vld [vmem:[%s272 + $0x1458] sm:$0xff]
                %665 = vst [vmem:[%s273 + $0x6d8] sm:$0xff] %v664
                %v666 = vld [vmem:[%s272 + $0x14ac] sm:$0xff]
                %667 = vst [vmem:[%s273 + $0x6e4] sm:$0xff] %v666
                %v668 = vld [vmem:[%s272 + $0x14b4] sm:$0xff]
                %669 = vst [vmem:[%s273 + $0x6ec] sm:$0xff] %v668
                %v670 = vld [vmem:[%s272 + $0x14bc] sm:$0xff]
                %671 = vst [vmem:[%s273 + $0x6f4] sm:$0xff] %v670
                %v672 = vld [vmem:[%s272 + $0x14c4] sm:$0xff]
                %673 = vst [vmem:[%s273 + $0x6fc] sm:$0xff] %v672
                %v674 = vld [vmem:[%s272 + $0x1518] sm:$0xff]
                %675 = vst [vmem:[%s273 + $0x708] sm:$0xff] %v674
                %v676 = vld [vmem:[%s272 + $0x1520] sm:$0xff]
                %677 = vst [vmem:[%s273 + $0x710] sm:$0xff] %v676
                %v678 = vld [vmem:[%s272 + $0x1528] sm:$0xff]
                %679 = vst [vmem:[%s273 + $0x718] sm:$0xff] %v678
                %v680 = vld [vmem:[%s272 + $0x1530] sm:$0xff]
                %681 = vst [vmem:[%s273 + $0x720] sm:$0xff] %v680
                %v682 = vld [vmem:[%s272 + $0x1584] sm:$0xff]
                %683 = vst [vmem:[%s273 + $0x72c] sm:$0xff] %v682
                %v684 = vld [vmem:[%s272 + $0x158c] sm:$0xff]
                %685 = vst [vmem:[%s273 + $0x734] sm:$0xff] %v684
                %v686 = vld [vmem:[%s272 + $0x1594] sm:$0xff]
                %687 = vst [vmem:[%s273 + $0x73c] sm:$0xff] %v686
                %v688 = vld [vmem:[%s272 + $0x159c] sm:$0xff]
                %689 = vst [vmem:[%s273 + $0x744] sm:$0xff] %v688
                %v690 = vld [vmem:[%s272 + $0x15f0] sm:$0xff]
                %691 = vst [vmem:[%s273 + $0x750] sm:$0xff] %v690
                %v692 = vld [vmem:[%s272 + $0x15f8] sm:$0xff]
                %693 = vst [vmem:[%s273 + $0x758] sm:$0xff] %v692
                %v694 = vld [vmem:[%s272 + $0x1600] sm:$0xff]
                %695 = vst [vmem:[%s273 + $0x760] sm:$0xff] %v694
                %v696 = vld [vmem:[%s272 + $0x1608] sm:$0xff]
                %697 = vst [vmem:[%s273 + $0x768] sm:$0xff] %v696
                %v698 = vld [vmem:[%s272 + $0x165c] sm:$0xff]
                %699 = vst [vmem:[%s273 + $0x774] sm:$0xff] %v698
                %v700 = vld [vmem:[%s272 + $0x1664] sm:$0xff]
                %701 = vst [vmem:[%s273 + $0x77c] sm:$0xff] %v700
                %v702 = vld [vmem:[%s272 + $0x166c] sm:$0xff]
                %703 = vst [vmem:[%s273 + $0x784] sm:$0xff] %v702
                %v704 = vld [vmem:[%s272 + $0x1674] sm:$0xff]
                %705 = vst [vmem:[%s273 + $0x78c] sm:$0xff] %v704
                %v706 = vld [vmem:[%s272 + $0x16c8] sm:$0xff]
                %707 = vst [vmem:[%s273 + $0x798] sm:$0xff] %v706
                %v708 = vld [vmem:[%s272 + $0x16d0] sm:$0xff]
                %709 = vst [vmem:[%s273 + $0x7a0] sm:$0xff] %v708
                %v710 = vld [vmem:[%s272 + $0x16d8] sm:$0xff]
                %711 = vst [vmem:[%s273 + $0x7a8] sm:$0xff] %v710
                %v712 = vld [vmem:[%s272 + $0x16e0] sm:$0xff]
                %713 = vst [vmem:[%s273 + $0x7b0] sm:$0xff] %v712
                %v714 = vld [vmem:[%s272 + $0x1734] sm:$0xff]
                %715 = vst [vmem:[%s273 + $0x7bc] sm:$0xff] %v714
                %v716 = vld [vmem:[%s272 + $0x173c] sm:$0xff]
                %717 = vst [vmem:[%s273 + $0x7c4] sm:$0xff] %v716
                %v718 = vld [vmem:[%s272 + $0x1744] sm:$0xff]
                %719 = vst [vmem:[%s273 + $0x7cc] sm:$0xff] %v718
                %v720 = vld [vmem:[%s272 + $0x174c] sm:$0xff]
                %721 = vst [vmem:[%s273 + $0x7d4] sm:$0xff] %v720
                %v722 = vld [vmem:[%s272 + $0x17a0] sm:$0xff]
                %723 = vst [vmem:[%s273 + $0x7e0] sm:$0xff] %v722
                %v724 = vld [vmem:[%s272 + $0x17a8] sm:$0xff]
                %725 = vst [vmem:[%s273 + $0x7e8] sm:$0xff] %v724
                %v726 = vld [vmem:[%s272 + $0x17b0] sm:$0xff]
                %727 = vst [vmem:[%s273 + $0x7f0] sm:$0xff] %v726
                %v728 = vld [vmem:[%s272 + $0x17b8] sm:$0xff]
                %729 = vst [vmem:[%s273 + $0x7f8] sm:$0xff] %v728
                %v730 = vld [vmem:[%s272 + $0x180c] sm:$0xff]
                %731 = vst [vmem:[%s273 + $0x804] sm:$0xff] %v730
                %v732 = vld [vmem:[%s272 + $0x1814] sm:$0xff]
                %733 = vst [vmem:[%s273 + $0x80c] sm:$0xff] %v732
                %v734 = vld [vmem:[%s272 + $0x181c] sm:$0xff]
                %735 = vst [vmem:[%s273 + $0x814] sm:$0xff] %v734
                %v736 = vld [vmem:[%s272 + $0x1824] sm:$0xff]
                %737 = vst [vmem:[%s273 + $0x81c] sm:$0xff] %v736
                %v738 = vld [vmem:[%s272 + $0x1878] sm:$0xff]
                %739 = vst [vmem:[%s273 + $0x828] sm:$0xff] %v738
                %v740 = vld [vmem:[%s272 + $0x1880] sm:$0xff]
                %741 = vst [vmem:[%s273 + $0x830] sm:$0xff] %v740
                %v742 = vld [vmem:[%s272 + $0x1888] sm:$0xff]
                %743 = vst [vmem:[%s273 + $0x838] sm:$0xff] %v742
                %v744 = vld [vmem:[%s272 + $0x1890] sm:$0xff]
                %745 = vst [vmem:[%s273 + $0x840] sm:$0xff] %v744
                %v746 = vld [vmem:[%s272 + $0x18e4] sm:$0xff]
                %747 = vst [vmem:[%s273 + $0x84c] sm:$0xff] %v746
                %v748 = vld [vmem:[%s272 + $0x18ec] sm:$0xff]
                %749 = vst [vmem:[%s273 + $0x854] sm:$0xff] %v748
                %v750 = vld [vmem:[%s272 + $0x18f4] sm:$0xff]
                %751 = vst [vmem:[%s273 + $0x85c] sm:$0xff] %v750
                %v752 = vld [vmem:[%s272 + $0x18fc] sm:$0xff]
                %753 = vst [vmem:[%s273 + $0x864] sm:$0xff] %v752
                %v754 = vld [vmem:[%s272 + $0x1950] sm:$0xff]
                %755 = vst [vmem:[%s273 + $0x870] sm:$0xff] %v754
                %v756 = vld [vmem:[%s272 + $0x1958] sm:$0xff]
                %757 = vst [vmem:[%s273 + $0x878] sm:$0xff] %v756
                %v758 = vld [vmem:[%s272 + $0x1960] sm:$0xff]
                %759 = vst [vmem:[%s273 + $0x880] sm:$0xff] %v758
                %v760 = vld [vmem:[%s272 + $0x1968] sm:$0xff]
                %761 = vst [vmem:[%s273 + $0x888] sm:$0xff] %v760
                %v762 = vld [vmem:[%s272 + $0x19bc] sm:$0xff]
                %763 = vst [vmem:[%s273 + $0x894] sm:$0xff] %v762
                %v764 = vld [vmem:[%s272 + $0x19c4] sm:$0xff]
                %765 = vst [vmem:[%s273 + $0x89c] sm:$0xff] %v764
                %v766 = vld [vmem:[%s272 + $0x19cc] sm:$0xff]
                %767 = vst [vmem:[%s273 + $0x8a4] sm:$0xff] %v766
                %v768 = vld [vmem:[%s272 + $0x19d4] sm:$0xff]
                %769 = vst [vmem:[%s273 + $0x8ac] sm:$0xff] %v768
                %v770 = vld [vmem:[%s272 + $0x1a28] sm:$0xff]
                %771 = vst [vmem:[%s273 + $0x8b8] sm:$0xff] %v770
                %v772 = vld [vmem:[%s272 + $0x1a30] sm:$0xff]
                %773 = vst [vmem:[%s273 + $0x8c0] sm:$0xff] %v772
                %v774 = vld [vmem:[%s272 + $0x1a38] sm:$0xff]
                %775 = vst [vmem:[%s273 + $0x8c8] sm:$0xff] %v774
                %v776 = vld [vmem:[%s272 + $0x1a40] sm:$0xff]
                %777 = vst [vmem:[%s273 + $0x8d0] sm:$0xff] %v776
                %v778 = vld [vmem:[%s272 + $0x1a94] sm:$0xff]
                %779 = vst [vmem:[%s273 + $0x8dc] sm:$0xff] %v778
                %v780 = vld [vmem:[%s272 + $0x1a9c] sm:$0xff]
                %781 = vst [vmem:[%s273 + $0x8e4] sm:$0xff] %v780
                %v782 = vld [vmem:[%s272 + $0x1aa4] sm:$0xff]
                %783 = vst [vmem:[%s273 + $0x8ec] sm:$0xff] %v782
                %v784 = vld [vmem:[%s272 + $0x1aac] sm:$0xff]
                %785 = vst [vmem:[%s273 + $0x8f4] sm:$0xff] %v784
                %v786 = vld [vmem:[%s272 + $0x1b00] sm:$0xff]
                %787 = vst [vmem:[%s273 + $0x900] sm:$0xff] %v786
                %v788 = vld [vmem:[%s272 + $0x1b08] sm:$0xff]
                %789 = vst [vmem:[%s273 + $0x908] sm:$0xff] %v788
                %v790 = vld [vmem:[%s272 + $0x1b10] sm:$0xff]
                %791 = vst [vmem:[%s273 + $0x910] sm:$0xff] %v790
                %v792 = vld [vmem:[%s272 + $0x1b18] sm:$0xff]
                %793 = vst [vmem:[%s273 + $0x918] sm:$0xff] %v792
                %v794 = vld [vmem:[%s272 + $0x1b6c] sm:$0xff]
                %795 = vst [vmem:[%s273 + $0x924] sm:$0xff] %v794
                %v796 = vld [vmem:[%s272 + $0x1b74] sm:$0xff]
                %797 = vst [vmem:[%s273 + $0x92c] sm:$0xff] %v796
                %v798 = vld [vmem:[%s272 + $0x1b7c] sm:$0xff]
                %799 = vst [vmem:[%s273 + $0x934] sm:$0xff] %v798
                %v800 = vld [vmem:[%s272 + $0x1b84] sm:$0xff]
                %801 = vst [vmem:[%s273 + $0x93c] sm:$0xff] %v800
                %v802 = vld [vmem:[%s272 + $0x1bd8] sm:$0xff]
                %803 = vst [vmem:[%s273 + $0x948] sm:$0xff] %v802
                %v804 = vld [vmem:[%s272 + $0x1be0] sm:$0xff]
                %805 = vst [vmem:[%s273 + $0x950] sm:$0xff] %v804
                %v806 = vld [vmem:[%s272 + $0x1be8] sm:$0xff]
                %807 = vst [vmem:[%s273 + $0x958] sm:$0xff] %v806
                %v808 = vld [vmem:[%s272 + $0x1bf0] sm:$0xff]
                %809 = vst [vmem:[%s273 + $0x960] sm:$0xff] %v808
                %v810 = vld [vmem:[%s272 + $0x1c44] sm:$0xff]
                %811 = vst [vmem:[%s273 + $0x96c] sm:$0xff] %v810
                %v812 = vld [vmem:[%s272 + $0x1c4c] sm:$0xff]
                %813 = vst [vmem:[%s273 + $0x974] sm:$0xff] %v812
                %v814 = vld [vmem:[%s272 + $0x1c54] sm:$0xff]
                %815 = vst [vmem:[%s273 + $0x97c] sm:$0xff] %v814
                %v816 = vld [vmem:[%s272 + $0x1c5c] sm:$0xff]
                %817 = vst [vmem:[%s273 + $0x984] sm:$0xff] %v816
                %v818 = vld [vmem:[%s272 + $0x1cb0] sm:$0xff]
                %819 = vst [vmem:[%s273 + $0x990] sm:$0xff] %v818
                %v820 = vld [vmem:[%s272 + $0x1cb8] sm:$0xff]
                %821 = vst [vmem:[%s273 + $0x998] sm:$0xff] %v820
                %v822 = vld [vmem:[%s272 + $0x1cc0] sm:$0xff]
                %823 = vst [vmem:[%s273 + $0x9a0] sm:$0xff] %v822
                %v824 = vld [vmem:[%s272 + $0x1cc8] sm:$0xff]
                %825 = vst [vmem:[%s273 + $0x9a8] sm:$0xff] %v824
                %v826 = vld [vmem:[%s272 + $0x1d1c] sm:$0xff]
                %827 = vst [vmem:[%s273 + $0x9b4] sm:$0xff] %v826
                %v828 = vld [vmem:[%s272 + $0x1d24] sm:$0xff]
                %829 = vst [vmem:[%s273 + $0x9bc] sm:$0xff] %v828
                %v830 = vld [vmem:[%s272 + $0x1d2c] sm:$0xff]
                %831 = vst [vmem:[%s273 + $0x9c4] sm:$0xff] %v830
                %v832 = vld [vmem:[%s272 + $0x1d34] sm:$0xff]
                %833 = vst [vmem:[%s273 + $0x9cc] sm:$0xff] %v832
                %v834 = vld [vmem:[%s272 + $0x1d88] sm:$0xff]
                %835 = vst [vmem:[%s273 + $0x9d8] sm:$0xff] %v834
                %v836 = vld [vmem:[%s272 + $0x1d90] sm:$0xff]
                %837 = vst [vmem:[%s273 + $0x9e0] sm:$0xff] %v836
                %v838 = vld [vmem:[%s272 + $0x1d98] sm:$0xff]
                %839 = vst [vmem:[%s273 + $0x9e8] sm:$0xff] %v838
                %v840 = vld [vmem:[%s272 + $0x1da0] sm:$0xff]
                %841 = vst [vmem:[%s273 + $0x9f0] sm:$0xff] %v840
                %v842 = vld [vmem:[%s272 + $0x1df4] sm:$0xff]
                %843 = vst [vmem:[%s273 + $0x9fc] sm:$0xff] %v842
                %v844 = vld [vmem:[%s272 + $0x1dfc] sm:$0xff]
                %845 = vst [vmem:[%s273 + $0xa04] sm:$0xff] %v844
                %v846 = vld [vmem:[%s272 + $0x1e04] sm:$0xff]
                %847 = vst [vmem:[%s273 + $0xa0c] sm:$0xff] %v846
                %v848 = vld [vmem:[%s272 + $0x1e0c] sm:$0xff]
                %849 = vst [vmem:[%s273 + $0xa14] sm:$0xff] %v848
              $region49: #{head_forward.1} parent=43 // loop_footer
                %s271 = sadd.s32 1, %s267
              $region50: #{head_forward.1} parent=43 // loop_footer_branch
                %266 = sbr.rel target = $region46
              $region51: #{head_forward.1} parent=43 // loop_exit
                _
              loop: start=0, step=1, limit=1
              $region52: #{head_forward.1} parent=43 // loop_pre_header
                _
              $region53: #{head_forward.1} parent=43 // loop_header
                %s852 = sphi 0, %s856
                %p853 = scmp.ge.s32.totalorder %s852, 1
                %s857 = sphi %s264, %s264
                %s858 = sphi %s265, %s265
              $region54: #{head_forward.1} parent=43 // loop_header_branch
                %855 = sbr.rel (%p853) target = $region58
              $region55: #{head_forward.1} parent=43 // loop_body
                %v859 = vld [vmem:[%s857] sm:$0xf]
                %860 = vst [vmem:[%s858] sm:$0xf] %v859
                %v861 = vld [vmem:[%s857 + $0x6c] sm:$0xf]
                %862 = vst [vmem:[%s858 + $0x24] sm:$0xf] %v861
                %v863 = vld [vmem:[%s857 + $0xd8] sm:$0xf]
                %864 = vst [vmem:[%s858 + $0x48] sm:$0xf] %v863
                %v865 = vld [vmem:[%s857 + $0x144] sm:$0xf]
                %866 = vst [vmem:[%s858 + $0x6c] sm:$0xf] %v865
                %v867 = vld [vmem:[%s857 + $0x1b0] sm:$0xf]
                %868 = vst [vmem:[%s858 + $0x90] sm:$0xf] %v867
                %v869 = vld [vmem:[%s857 + $0x21c] sm:$0xf]
                %870 = vst [vmem:[%s858 + $0xb4] sm:$0xf] %v869
                %v871 = vld [vmem:[%s857 + $0x288] sm:$0xf]
                %872 = vst [vmem:[%s858 + $0xd8] sm:$0xf] %v871
                %v873 = vld [vmem:[%s857 + $0x2f4] sm:$0xf]
                %874 = vst [vmem:[%s858 + $0xfc] sm:$0xf] %v873
                %v875 = vld [vmem:[%s857 + $0x360] sm:$0xf]
                %876 = vst [vmem:[%s858 + $0x120] sm:$0xf] %v875
                %v877 = vld [vmem:[%s857 + $0x3cc] sm:$0xf]
                %878 = vst [vmem:[%s858 + $0x144] sm:$0xf] %v877
                %v879 = vld [vmem:[%s857 + $0x438] sm:$0xf]
                %880 = vst [vmem:[%s858 + $0x168] sm:$0xf] %v879
                %v881 = vld [vmem:[%s857 + $0x4a4] sm:$0xf]
                %882 = vst [vmem:[%s858 + $0x18c] sm:$0xf] %v881
                %v883 = vld [vmem:[%s857 + $0x510] sm:$0xf]
                %884 = vst [vmem:[%s858 + $0x1b0] sm:$0xf] %v883
                %v885 = vld [vmem:[%s857 + $0x57c] sm:$0xf]
                %886 = vst [vmem:[%s858 + $0x1d4] sm:$0xf] %v885
                %v887 = vld [vmem:[%s857 + $0x5e8] sm:$0xf]
                %888 = vst [vmem:[%s858 + $0x1f8] sm:$0xf] %v887
                %v889 = vld [vmem:[%s857 + $0x654] sm:$0xf]
                %890 = vst [vmem:[%s858 + $0x21c] sm:$0xf] %v889
                %v891 = vld [vmem:[%s857 + $0x6c0] sm:$0xf]
                %892 = vst [vmem:[%s858 + $0x240] sm:$0xf] %v891
                %v893 = vld [vmem:[%s857 + $0x72c] sm:$0xf]
                %894 = vst [vmem:[%s858 + $0x264] sm:$0xf] %v893
                %v895 = vld [vmem:[%s857 + $0x798] sm:$0xf]
                %896 = vst [vmem:[%s858 + $0x288] sm:$0xf] %v895
                %v897 = vld [vmem:[%s857 + $0x804] sm:$0xf]
                %898 = vst [vmem:[%s858 + $0x2ac] sm:$0xf] %v897
                %v899 = vld [vmem:[%s857 + $0x870] sm:$0xf]
                %900 = vst [vmem:[%s858 + $0x2d0] sm:$0xf] %v899
                %v901 = vld [vmem:[%s857 + $0x8dc] sm:$0xf]
                %902 = vst [vmem:[%s858 + $0x2f4] sm:$0xf] %v901
                %v903 = vld [vmem:[%s857 + $0x948] sm:$0xf]
                %904 = vst [vmem:[%s858 + $0x318] sm:$0xf] %v903
                %v905 = vld [vmem:[%s857 + $0x9b4] sm:$0xf]
                %906 = vst [vmem:[%s858 + $0x33c] sm:$0xf] %v905
                %v907 = vld [vmem:[%s857 + $0xa20] sm:$0xf]
                %908 = vst [vmem:[%s858 + $0x360] sm:$0xf] %v907
                %v909 = vld [vmem:[%s857 + $0xa8c] sm:$0xf]
                %910 = vst [vmem:[%s858 + $0x384] sm:$0xf] %v909
                %v911 = vld [vmem:[%s857 + $0xaf8] sm:$0xf]
                %912 = vst [vmem:[%s858 + $0x3a8] sm:$0xf] %v911
                %v913 = vld [vmem:[%s857 + $0xb64] sm:$0xf]
                %914 = vst [vmem:[%s858 + $0x3cc] sm:$0xf] %v913
                %v915 = vld [vmem:[%s857 + $0xbd0] sm:$0xf]
                %916 = vst [vmem:[%s858 + $0x3f0] sm:$0xf] %v915
                %v917 = vld [vmem:[%s857 + $0xc3c] sm:$0xf]
                %918 = vst [vmem:[%s858 + $0x414] sm:$0xf] %v917
                %v919 = vld [vmem:[%s857 + $0xca8] sm:$0xf]
                %920 = vst [vmem:[%s858 + $0x438] sm:$0xf] %v919
                %v921 = vld [vmem:[%s857 + $0xd14] sm:$0xf]
                %922 = vst [vmem:[%s858 + $0x45c] sm:$0xf] %v921
                %v923 = vld [vmem:[%s857 + $0xd80] sm:$0xf]
                %924 = vst [vmem:[%s858 + $0x480] sm:$0xf] %v923
                %v925 = vld [vmem:[%s857 + $0xdec] sm:$0xf]
                %926 = vst [vmem:[%s858 + $0x4a4] sm:$0xf] %v925
                %v927 = vld [vmem:[%s857 + $0xe58] sm:$0xf]
                %928 = vst [vmem:[%s858 + $0x4c8] sm:$0xf] %v927
                %v929 = vld [vmem:[%s857 + $0xec4] sm:$0xf]
                %930 = vst [vmem:[%s858 + $0x4ec] sm:$0xf] %v929
                %v931 = vld [vmem:[%s857 + $0xf30] sm:$0xf]
                %932 = vst [vmem:[%s858 + $0x510] sm:$0xf] %v931
                %v933 = vld [vmem:[%s857 + $0xf9c] sm:$0xf]
                %934 = vst [vmem:[%s858 + $0x534] sm:$0xf] %v933
                %v935 = vld [vmem:[%s857 + $0x1008] sm:$0xf]
                %936 = vst [vmem:[%s858 + $0x558] sm:$0xf] %v935
                %v937 = vld [vmem:[%s857 + $0x1074] sm:$0xf]
                %938 = vst [vmem:[%s858 + $0x57c] sm:$0xf] %v937
                %v939 = vld [vmem:[%s857 + $0x10e0] sm:$0xf]
                %940 = vst [vmem:[%s858 + $0x5a0] sm:$0xf] %v939
                %v941 = vld [vmem:[%s857 + $0x114c] sm:$0xf]
                %942 = vst [vmem:[%s858 + $0x5c4] sm:$0xf] %v941
                %v943 = vld [vmem:[%s857 + $0x11b8] sm:$0xf]
                %944 = vst [vmem:[%s858 + $0x5e8] sm:$0xf] %v943
                %v945 = vld [vmem:[%s857 + $0x1224] sm:$0xf]
                %946 = vst [vmem:[%s858 + $0x60c] sm:$0xf] %v945
                %v947 = vld [vmem:[%s857 + $0x1290] sm:$0xf]
                %948 = vst [vmem:[%s858 + $0x630] sm:$0xf] %v947
                %v949 = vld [vmem:[%s857 + $0x12fc] sm:$0xf]
                %950 = vst [vmem:[%s858 + $0x654] sm:$0xf] %v949
                %v951 = vld [vmem:[%s857 + $0x1368] sm:$0xf]
                %952 = vst [vmem:[%s858 + $0x678] sm:$0xf] %v951
                %v953 = vld [vmem:[%s857 + $0x13d4] sm:$0xf]
                %954 = vst [vmem:[%s858 + $0x69c] sm:$0xf] %v953
                %v955 = vld [vmem:[%s857 + $0x1440] sm:$0xf]
                %956 = vst [vmem:[%s858 + $0x6c0] sm:$0xf] %v955
                %v957 = vld [vmem:[%s857 + $0x14ac] sm:$0xf]
                %958 = vst [vmem:[%s858 + $0x6e4] sm:$0xf] %v957
                %v959 = vld [vmem:[%s857 + $0x1518] sm:$0xf]
                %960 = vst [vmem:[%s858 + $0x708] sm:$0xf] %v959
                %v961 = vld [vmem:[%s857 + $0x1584] sm:$0xf]
                %962 = vst [vmem:[%s858 + $0x72c] sm:$0xf] %v961
                %v963 = vld [vmem:[%s857 + $0x15f0] sm:$0xf]
                %964 = vst [vmem:[%s858 + $0x750] sm:$0xf] %v963
                %v965 = vld [vmem:[%s857 + $0x165c] sm:$0xf]
                %966 = vst [vmem:[%s858 + $0x774] sm:$0xf] %v965
                %v967 = vld [vmem:[%s857 + $0x16c8] sm:$0xf]
                %968 = vst [vmem:[%s858 + $0x798] sm:$0xf] %v967
                %v969 = vld [vmem:[%s857 + $0x1734] sm:$0xf]
                %970 = vst [vmem:[%s858 + $0x7bc] sm:$0xf] %v969
                %v971 = vld [vmem:[%s857 + $0x17a0] sm:$0xf]
                %972 = vst [vmem:[%s858 + $0x7e0] sm:$0xf] %v971
                %v973 = vld [vmem:[%s857 + $0x180c] sm:$0xf]
                %974 = vst [vmem:[%s858 + $0x804] sm:$0xf] %v973
                %v975 = vld [vmem:[%s857 + $0x1878] sm:$0xf]
                %976 = vst [vmem:[%s858 + $0x828] sm:$0xf] %v975
                %v977 = vld [vmem:[%s857 + $0x18e4] sm:$0xf]
                %978 = vst [vmem:[%s858 + $0x84c] sm:$0xf] %v977
                %v979 = vld [vmem:[%s857 + $0x1950] sm:$0xf]
                %980 = vst [vmem:[%s858 + $0x870] sm:$0xf] %v979
                %v981 = vld [vmem:[%s857 + $0x19bc] sm:$0xf]
                %982 = vst [vmem:[%s858 + $0x894] sm:$0xf] %v981
                %v983 = vld [vmem:[%s857 + $0x1a28] sm:$0xf]
                %984 = vst [vmem:[%s858 + $0x8b8] sm:$0xf] %v983
                %v985 = vld [vmem:[%s857 + $0x1a94] sm:$0xf]
                %986 = vst [vmem:[%s858 + $0x8dc] sm:$0xf] %v985
                %v987 = vld [vmem:[%s857 + $0x1b00] sm:$0xf]
                %988 = vst [vmem:[%s858 + $0x900] sm:$0xf] %v987
                %v989 = vld [vmem:[%s857 + $0x1b6c] sm:$0xf]
                %990 = vst [vmem:[%s858 + $0x924] sm:$0xf] %v989
                %v991 = vld [vmem:[%s857 + $0x1bd8] sm:$0xf]
                %992 = vst [vmem:[%s858 + $0x948] sm:$0xf] %v991
                %v993 = vld [vmem:[%s857 + $0x1c44] sm:$0xf]
                %994 = vst [vmem:[%s858 + $0x96c] sm:$0xf] %v993
                %v995 = vld [vmem:[%s857 + $0x1cb0] sm:$0xf]
                %996 = vst [vmem:[%s858 + $0x990] sm:$0xf] %v995
                %v997 = vld [vmem:[%s857 + $0x1d1c] sm:$0xf]
                %998 = vst [vmem:[%s858 + $0x9b4] sm:$0xf] %v997
                %v999 = vld [vmem:[%s857 + $0x1d88] sm:$0xf]
                %1000 = vst [vmem:[%s858 + $0x9d8] sm:$0xf] %v999
                %v1001 = vld [vmem:[%s857 + $0x1df4] sm:$0xf]
                %1002 = vst [vmem:[%s858 + $0x9fc] sm:$0xf] %v1001
              $region56: #{head_forward.1} parent=43 // loop_footer
                %s856 = sadd.s32 1, %s852
              $region57: #{head_forward.1} parent=43 // loop_footer_branch
                %851 = sbr.rel target = $region53
              $region58: #{head_forward.1} parent=43 // loop_exit
                _
            $region44: #{head_forward.1} parent=39 // pred_fallthru
              _
          $region40: #{head_forward.1} parent=35 // pred_fallthru
            _
          %1003 = vnop
        $region36: #{head_forward.1} parent=31 // pred_fallthru
          _
        // Predicated region
        $region59: #{head_forward.1} parent=31 // pred_check
          %p1004 = pneg %p73
        $region60: #{head_forward.1} parent=31 // pred_check_branch
          %1006 = sbr.rel (%p1004) target = $region62
        $region61: #{head_forward.1} parent=31 // pred_region
          %s1007 = smul.u32 9, %s21
          %p1008 = scmp.lt.s32.totalorder %s1007, 26
          %s1009 = scalar_select %p1008, %s1007, 26
          %s1010 = smul.addr %s1009, 2
          %s1011 = scalar_lea.vmem %s1, %s1010
          %s1012 = smul.u32 9, %s21
        $region62: #{head_forward.1} parent=31 // pred_fallthru
          _
        // Predicated region
        $region63: #{head_forward.1} parent=31 // pred_check
          %p1013 = pneg %p99
        $region64: #{head_forward.1} parent=31 // pred_check_branch
          %1015 = sbr.rel (%p1013) target = $region66
        $region65: #{head_forward.1} parent=31 // pred_region
          %p1016 = scmp.lt.s32.totalorder %s20, 1
          %s1017 = scalar_select %p1016, %s20, 1
          %s1018 = smul.addr %s1017, 16
          %s1019 = smul.addr %s1018, 8
          %s1020 = scalar_lea.vmem %s2, %s1019
        $region66: #{head_forward.1} parent=31 // pred_fallthru
          _
      $region32: #{head_forward.1} parent=5 // pred_fallthru
        _
      %p1021 = scmp.le.s32.totalorder 1, %s13
      %p1022 = scmp.lt.s32.totalorder %s13, 7
      %p1023 = pnand %p1021, %p1022
      %p1024 = pneg %p1023
      // Predicated region
      $region67: #{head_forward.1} parent=5 // pred_check
        _
      $region68: #{head_forward.1} parent=5 // pred_check_branch
        %1026 = sbr.rel (%p1023) target = $region70
      $region69: #{head_forward.1} parent=5 // pred_region
        %s1027 = ssub.s32 %s13, 1
        %s1028 = sand.u32 %s40, 1
        %s1029 = sand.u32 %s40, 1
        %s1030 = smul.addr %s1029, 2592
        %s1031 = scalar_lea.vmem [#allocation2], %s1030
        // Predicated region
        $region71: #{head_forward.1} parent=69 // pred_check
          %p1032 = pneg %p53
        $region72: #{head_forward.1} parent=69 // pred_check_branch
          %1034 = sbr.rel (%p1032) target = $region74
        $region73: #{head_forward.1} parent=69 // pred_region
          _
        $region74: #{head_forward.1} parent=69 // pred_fallthru
          _
        %s1035 = sand.u32 %s40, 1
        %s1036 = sand.u32 %s40, 1
        %s1037 = smul.addr %s1036, 2592
        %s1038 = scalar_lea.vmem [#allocation2], %s1037
        %p1039 = pneg %p53
        %p1040 = pneg %p50
        %s1041 = smul.u32 9, %s23
        %p1042 = scmp.lt.s32.totalorder %s1041, 26
        %s1043 = scalar_select %p1042, %s1041, 26
        %s1044 = smul.addr %s1043, 2
        %s1045 = scalar_lea.vmem %s1, %s1044
        %p1046 = pneg %p79
        %p1047 = pneg %p76
        %p1048 = scmp.lt.s32.totalorder %s22, 1
        %s1049 = scalar_select %p1048, %s22, 1
        %s1050 = smul.addr %s1049, 16
        %s1051 = smul.addr %s1050, 8
        %s1052 = scalar_lea.vmem %s2, %s1051
        %p1053 = pneg %p105
        %p1054 = pneg %p102
        %p1055 = pneg %p126
        %p1056 = pneg %p123
        %p1057 = pneg %p147
        %p1058 = pneg %p144
        %p1059 = pneg %p168
        %p1060 = pneg %p165
        %p1061 = pneg %p189
        %p1062 = pneg %p186
        %p1063 = pneg %p217
        %p1064 = pneg %p214
        %s1065 = sand.u32 %s204, 1
        %s1066 = sand.u32 %s204, 1
        %s1067 = smul.addr %s1066, 216
        %s1068 = scalar_lea.vmem [#allocation3], %s1067
        %s1069 = smul.u32 9, %s23
        %s1070 = smul.u32 9, %s23
        %p1071 = scmp.lt.s32.totalorder %s1070, 26
        %s1072 = scalar_select %p1071, %s1070, 26
        %s1073 = smul.addr %s1072, 2
        %s1074 = scalar_lea.vmem %s1, %s1073
        %s1075 = smul.u32 9, %s23
        %p1076 = scmp.lt.s32.totalorder %s22, 1
        %s1077 = scalar_select %p1076, %s22, 1
        %s1078 = smul.addr %s1077, 16
        %s1079 = smul.addr %s1078, 8
        %s1080 = scalar_lea.vmem %s2, %s1079
        %s1081 = smul.u32 9, %s23
        %v1083 = vld [vmem:[%s1031] sm:$0xff]
        %v1084 = vld [vmem:[%s1031 + $0x8] sm:$0xff]
        %v1085 = vld [vmem:[%s1031 + $0x10] sm:$0xff]
        %v1086 = vld [vmem:[%s1031 + $0x18] sm:$0xff]
        %v1087 = vld [vmem:[%s1031 + $0x20] sm:$0xf]
        %v1088 = vld [vmem:[%s1031 + $0x24] sm:$0xff]
        %v1089 = vld [vmem:[%s1031 + $0x2c] sm:$0xff]
        %v1090 = vld [vmem:[%s1031 + $0x34] sm:$0xff]
        %v1091 = vld [vmem:[%s1031 + $0x3c] sm:$0xff]
        %v1092 = vld [vmem:[%s1031 + $0x44] sm:$0xf]
        %v1093 = vld [vmem:[%s1031 + $0x48] sm:$0xff]
        %v1094 = vld [vmem:[%s1031 + $0x50] sm:$0xff]
        %v1095 = vld [vmem:[%s1031 + $0x58] sm:$0xff]
        %v1096 = vld [vmem:[%s1031 + $0x60] sm:$0xff]
        %v1097 = vld [vmem:[%s1031 + $0x68] sm:$0xf]
        %v1098 = vld [vmem:[%s1031 + $0x6c] sm:$0xff]
        %v1099 = vld [vmem:[%s1031 + $0x74] sm:$0xff]
        %v1100 = vld [vmem:[%s1031 + $0x7c] sm:$0xff]
        %v1101 = vld [vmem:[%s1031 + $0x84] sm:$0xff]
        %v1102 = vld [vmem:[%s1031 + $0x8c] sm:$0xf]
        %v1103 = vld [vmem:[%s1031 + $0x90] sm:$0xff]
        %v1104 = vld [vmem:[%s1031 + $0x98] sm:$0xff]
        %v1105 = vld [vmem:[%s1031 + $0xa0] sm:$0xff]
        %v1106 = vld [vmem:[%s1031 + $0xa8] sm:$0xff]
        %v1107 = vld [vmem:[%s1031 + $0xb0] sm:$0xf]
        %v1108 = vld [vmem:[%s1031 + $0xb4] sm:$0xff]
        %v1109 = vld [vmem:[%s1031 + $0xbc] sm:$0xff]
        %v1110 = vld [vmem:[%s1031 + $0xc4] sm:$0xff]
        %v1111 = vld [vmem:[%s1031 + $0xcc] sm:$0xff]
        %v1112 = vld [vmem:[%s1031 + $0xd4] sm:$0xf]
        %v1113 = vld [vmem:[%s1031 + $0xd8] sm:$0xff]
        %v1114 = vld [vmem:[%s1031 + $0xe0] sm:$0xff]
        %v1115 = vld [vmem:[%s1031 + $0xe8] sm:$0xff]
        %v1116 = vld [vmem:[%s1031 + $0xf0] sm:$0xff]
        %v1117 = vld [vmem:[%s1031 + $0xf8] sm:$0xf]
        %v1118 = vld [vmem:[%s1031 + $0xfc] sm:$0xff]
        %v1119 = vld [vmem:[%s1031 + $0x104] sm:$0xff]
        %v1120 = vld [vmem:[%s1031 + $0x10c] sm:$0xff]
        %v1121 = vld [vmem:[%s1031 + $0x114] sm:$0xff]
        %v1122 = vld [vmem:[%s1031 + $0x11c] sm:$0xf]
        %v1123 = vld [vmem:[%s1031 + $0x120] sm:$0xff]
        %v1124 = vld [vmem:[%s1031 + $0x128] sm:$0xff]
        %v1125 = vld [vmem:[%s1031 + $0x130] sm:$0xff]
        %v1126 = vld [vmem:[%s1031 + $0x138] sm:$0xff]
        %v1127 = vld [vmem:[%s1031 + $0x140] sm:$0xf]
        %v1128 = vld [vmem:[%s1031 + $0x144] sm:$0xff]
        %v1129 = vld [vmem:[%s1031 + $0x14c] sm:$0xff]
        %v1130 = vld [vmem:[%s1031 + $0x154] sm:$0xff]
        %v1131 = vld [vmem:[%s1031 + $0x15c] sm:$0xff]
        %v1132 = vld [vmem:[%s1031 + $0x164] sm:$0xf]
        %v1133 = vld [vmem:[%s1031 + $0x168] sm:$0xff]
        %v1134 = vld [vmem:[%s1031 + $0x170] sm:$0xff]
        %v1135 = vld [vmem:[%s1031 + $0x178] sm:$0xff]
        %v1136 = vld [vmem:[%s1031 + $0x180] sm:$0xff]
        %v1137 = vld [vmem:[%s1031 + $0x188] sm:$0xf]
        %v1138 = vld [vmem:[%s1031 + $0x18c] sm:$0xff]
        %v1139 = vld [vmem:[%s1031 + $0x194] sm:$0xff]
        %v1140 = vld [vmem:[%s1031 + $0x19c] sm:$0xff]
        %v1141 = vld [vmem:[%s1031 + $0x1a4] sm:$0xff]
        %v1142 = vld [vmem:[%s1031 + $0x1ac] sm:$0xf]
        %v1143 = vld [vmem:[%s1031 + $0x1b0] sm:$0xff]
        %v1144 = vld [vmem:[%s1031 + $0x1b8] sm:$0xff]
        %v1145 = vld [vmem:[%s1031 + $0x1c0] sm:$0xff]
        %v1146 = vld [vmem:[%s1031 + $0x1c8] sm:$0xff]
        %v1147 = vld [vmem:[%s1031 + $0x1d0] sm:$0xf]
        %v1148 = vld [vmem:[%s1031 + $0x1d4] sm:$0xff]
        %v1149 = vld [vmem:[%s1031 + $0x1dc] sm:$0xff]
        %v1150 = vld [vmem:[%s1031 + $0x1e4] sm:$0xff]
        %v1151 = vld [vmem:[%s1031 + $0x1ec] sm:$0xff]
        %v1152 = vld [vmem:[%s1031 + $0x1f4] sm:$0xf]
        %v1153 = vld [vmem:[%s1031 + $0x1f8] sm:$0xff]
        %v1154 = vld [vmem:[%s1031 + $0x200] sm:$0xff]
        %v1155 = vld [vmem:[%s1031 + $0x208] sm:$0xff]
        %v1156 = vld [vmem:[%s1031 + $0x210] sm:$0xff]
        %v1157 = vld [vmem:[%s1031 + $0x218] sm:$0xf]
        %v1158 = vld [vmem:[%s1031 + $0x21c] sm:$0xff]
        %v1159 = vld [vmem:[%s1031 + $0x224] sm:$0xff]
        %v1160 = vld [vmem:[%s1031 + $0x22c] sm:$0xff]
        %v1161 = vld [vmem:[%s1031 + $0x234] sm:$0xff]
        %v1162 = vld [vmem:[%s1031 + $0x23c] sm:$0xf]
        %v1163 = vld [vmem:[%s1031 + $0x240] sm:$0xff]
        %v1164 = vld [vmem:[%s1031 + $0x248] sm:$0xff]
        %v1165 = vld [vmem:[%s1031 + $0x250] sm:$0xff]
        %v1166 = vld [vmem:[%s1031 + $0x258] sm:$0xff]
        %v1167 = vld [vmem:[%s1031 + $0x260] sm:$0xf]
        %v1168 = vld [vmem:[%s1031 + $0x264] sm:$0xff]
        %v1169 = vld [vmem:[%s1031 + $0x26c] sm:$0xff]
        %v1170 = vld [vmem:[%s1031 + $0x274] sm:$0xff]
        %v1171 = vld [vmem:[%s1031 + $0x27c] sm:$0xff]
        %v1172 = vld [vmem:[%s1031 + $0x284] sm:$0xf]
        %v1173 = vld [vmem:[%s1031 + $0x288] sm:$0xff]
        %v1174 = vld [vmem:[%s1031 + $0x290] sm:$0xff]
        %v1175 = vld [vmem:[%s1031 + $0x298] sm:$0xff]
        %v1176 = vld [vmem:[%s1031 + $0x2a0] sm:$0xff]
        %v1177 = vld [vmem:[%s1031 + $0x2a8] sm:$0xf]
        %v1178 = vld [vmem:[%s1031 + $0x2ac] sm:$0xff]
        %v1179 = vld [vmem:[%s1031 + $0x2b4] sm:$0xff]
        %v1180 = vld [vmem:[%s1031 + $0x2bc] sm:$0xff]
        %v1181 = vld [vmem:[%s1031 + $0x2c4] sm:$0xff]
        %v1182 = vld [vmem:[%s1031 + $0x2cc] sm:$0xf]
        %v1183 = vld [vmem:[%s1031 + $0x2d0] sm:$0xff]
        %v1184 = vld [vmem:[%s1031 + $0x2d8] sm:$0xff]
        %v1185 = vld [vmem:[%s1031 + $0x2e0] sm:$0xff]
        %v1186 = vld [vmem:[%s1031 + $0x2e8] sm:$0xff]
        %v1187 = vld [vmem:[%s1031 + $0x2f0] sm:$0xf]
        %v1188 = vld [vmem:[%s1031 + $0x2f4] sm:$0xff]
        %v1189 = vld [vmem:[%s1031 + $0x2fc] sm:$0xff]
        %v1190 = vld [vmem:[%s1031 + $0x304] sm:$0xff]
        %v1191 = vld [vmem:[%s1031 + $0x30c] sm:$0xff]
        %v1192 = vld [vmem:[%s1031 + $0x314] sm:$0xf]
        %v1193 = vld [vmem:[%s1031 + $0x318] sm:$0xff]
        %v1194 = vld [vmem:[%s1031 + $0x320] sm:$0xff]
        %v1195 = vld [vmem:[%s1031 + $0x328] sm:$0xff]
        %v1196 = vld [vmem:[%s1031 + $0x330] sm:$0xff]
        %v1197 = vld [vmem:[%s1031 + $0x338] sm:$0xf]
        %v1198 = vld [vmem:[%s1031 + $0x33c] sm:$0xff]
        %v1199 = vld [vmem:[%s1031 + $0x344] sm:$0xff]
        %v1200 = vld [vmem:[%s1031 + $0x34c] sm:$0xff]
        %v1201 = vld [vmem:[%s1031 + $0x354] sm:$0xff]
        %v1202 = vld [vmem:[%s1031 + $0x35c] sm:$0xf]
        %v1203 = vld [vmem:[%s1031 + $0x360] sm:$0xff]
        %v1204 = vld [vmem:[%s1031 + $0x368] sm:$0xff]
        %v1205 = vld [vmem:[%s1031 + $0x370] sm:$0xff]
        %v1206 = vld [vmem:[%s1031 + $0x378] sm:$0xff]
        %v1207 = vld [vmem:[%s1031 + $0x380] sm:$0xf]
        %v1208 = vld [vmem:[%s1031 + $0x384] sm:$0xff]
        %v1209 = vld [vmem:[%s1031 + $0x38c] sm:$0xff]
        %v1210 = vld [vmem:[%s1031 + $0x394] sm:$0xff]
        %v1211 = vld [vmem:[%s1031 + $0x39c] sm:$0xff]
        %v1212 = vld [vmem:[%s1031 + $0x3a4] sm:$0xf]
        %v1213 = vld [vmem:[%s1031 + $0x3a8] sm:$0xff]
        %v1214 = vld [vmem:[%s1031 + $0x3b0] sm:$0xff]
        %v1215 = vld [vmem:[%s1031 + $0x3b8] sm:$0xff]
        %v1216 = vld [vmem:[%s1031 + $0x3c0] sm:$0xff]
        %v1217 = vld [vmem:[%s1031 + $0x3c8] sm:$0xf]
        %v1218 = vld [vmem:[%s1031 + $0x3cc] sm:$0xff]
        %v1219 = vld [vmem:[%s1031 + $0x3d4] sm:$0xff]
        %v1220 = vld [vmem:[%s1031 + $0x3dc] sm:$0xff]
        %v1221 = vld [vmem:[%s1031 + $0x3e4] sm:$0xff]
        %v1222 = vld [vmem:[%s1031 + $0x3ec] sm:$0xf]
        %v1223 = vld [vmem:[%s1031 + $0x3f0] sm:$0xff]
        %v1224 = vld [vmem:[%s1031 + $0x3f8] sm:$0xff]
        %v1225 = vld [vmem:[%s1031 + $0x400] sm:$0xff]
        %v1226 = vld [vmem:[%s1031 + $0x408] sm:$0xff]
        %v1227 = vld [vmem:[%s1031 + $0x410] sm:$0xf]
        %v1228 = vld [vmem:[%s1031 + $0x414] sm:$0xff]
        %v1229 = vld [vmem:[%s1031 + $0x41c] sm:$0xff]
        %v1230 = vld [vmem:[%s1031 + $0x424] sm:$0xff]
        %v1231 = vld [vmem:[%s1031 + $0x42c] sm:$0xff]
        %v1232 = vld [vmem:[%s1031 + $0x434] sm:$0xf]
        %v1233 = vld [vmem:[%s1031 + $0x438] sm:$0xff]
        %v1234 = vld [vmem:[%s1031 + $0x440] sm:$0xff]
        %v1235 = vld [vmem:[%s1031 + $0x448] sm:$0xff]
        %v1236 = vld [vmem:[%s1031 + $0x450] sm:$0xff]
        %v1237 = vld [vmem:[%s1031 + $0x458] sm:$0xf]
        %v1238 = vld [vmem:[%s1031 + $0x45c] sm:$0xff]
        %v1239 = vld [vmem:[%s1031 + $0x464] sm:$0xff]
        %v1240 = vld [vmem:[%s1031 + $0x46c] sm:$0xff]
        %v1241 = vld [vmem:[%s1031 + $0x474] sm:$0xff]
        %v1242 = vld [vmem:[%s1031 + $0x47c] sm:$0xf]
        %v1243 = vld [vmem:[%s1031 + $0x480] sm:$0xff]
        %v1244 = vld [vmem:[%s1031 + $0x488] sm:$0xff]
        %v1245 = vld [vmem:[%s1031 + $0x490] sm:$0xff]
        %v1246 = vld [vmem:[%s1031 + $0x498] sm:$0xff]
        %v1247 = vld [vmem:[%s1031 + $0x4a0] sm:$0xf]
        %v1248 = vld [vmem:[%s1031 + $0x4a4] sm:$0xff]
        %v1249 = vld [vmem:[%s1031 + $0x4ac] sm:$0xff]
        %v1250 = vld [vmem:[%s1031 + $0x4b4] sm:$0xff]
        %v1251 = vld [vmem:[%s1031 + $0x4bc] sm:$0xff]
        %v1252 = vld [vmem:[%s1031 + $0x4c4] sm:$0xf]
        %v1253 = vld [vmem:[%s1031 + $0x4c8] sm:$0xff]
        %v1254 = vld [vmem:[%s1031 + $0x4d0] sm:$0xff]
        %v1255 = vld [vmem:[%s1031 + $0x4d8] sm:$0xff]
        %v1256 = vld [vmem:[%s1031 + $0x4e0] sm:$0xff]
        %v1257 = vld [vmem:[%s1031 + $0x4e8] sm:$0xf]
        %v1258 = vld [vmem:[%s1031 + $0x4ec] sm:$0xff]
        %v1259 = vld [vmem:[%s1031 + $0x4f4] sm:$0xff]
        %v1260 = vld [vmem:[%s1031 + $0x4fc] sm:$0xff]
        %v1261 = vld [vmem:[%s1031 + $0x504] sm:$0xff]
        %v1262 = vld [vmem:[%s1031 + $0x50c] sm:$0xf]
        %v1263 = vld [vmem:[%s1031 + $0x510] sm:$0xff]
        %v1264 = vld [vmem:[%s1031 + $0x518] sm:$0xff]
        %v1265 = vld [vmem:[%s1031 + $0x520] sm:$0xff]
        %v1266 = vld [vmem:[%s1031 + $0x528] sm:$0xff]
        %v1267 = vld [vmem:[%s1031 + $0x530] sm:$0xf]
        %v1268 = vld [vmem:[%s1031 + $0x534] sm:$0xff]
        %v1269 = vld [vmem:[%s1031 + $0x53c] sm:$0xff]
        %v1270 = vld [vmem:[%s1031 + $0x544] sm:$0xff]
        %v1271 = vld [vmem:[%s1031 + $0x54c] sm:$0xff]
        %v1272 = vld [vmem:[%s1031 + $0x554] sm:$0xf]
        %v1273 = vld [vmem:[%s1031 + $0x558] sm:$0xff]
        %v1274 = vld [vmem:[%s1031 + $0x560] sm:$0xff]
        %v1275 = vld [vmem:[%s1031 + $0x568] sm:$0xff]
        %v1276 = vld [vmem:[%s1031 + $0x570] sm:$0xff]
        %v1277 = vld [vmem:[%s1031 + $0x578] sm:$0xf]
        %v1278 = vld [vmem:[%s1031 + $0x57c] sm:$0xff]
        %v1279 = vld [vmem:[%s1031 + $0x584] sm:$0xff]
        %v1280 = vld [vmem:[%s1031 + $0x58c] sm:$0xff]
        %v1281 = vld [vmem:[%s1031 + $0x594] sm:$0xff]
        %v1282 = vld [vmem:[%s1031 + $0x59c] sm:$0xf]
        %v1283 = vld [vmem:[%s1031 + $0x5a0] sm:$0xff]
        %v1284 = vld [vmem:[%s1031 + $0x5a8] sm:$0xff]
        %v1285 = vld [vmem:[%s1031 + $0x5b0] sm:$0xff]
        %v1286 = vld [vmem:[%s1031 + $0x5b8] sm:$0xff]
        %v1287 = vld [vmem:[%s1031 + $0x5c0] sm:$0xf]
        %v1288 = vld [vmem:[%s1031 + $0x5c4] sm:$0xff]
        %v1289 = vld [vmem:[%s1031 + $0x5cc] sm:$0xff]
        %v1290 = vld [vmem:[%s1031 + $0x5d4] sm:$0xff]
        %v1291 = vld [vmem:[%s1031 + $0x5dc] sm:$0xff]
        %v1292 = vld [vmem:[%s1031 + $0x5e4] sm:$0xf]
        %v1293 = vld [vmem:[%s1031 + $0x5e8] sm:$0xff]
        %v1294 = vld [vmem:[%s1031 + $0x5f0] sm:$0xff]
        %v1295 = vld [vmem:[%s1031 + $0x5f8] sm:$0xff]
        %v1296 = vld [vmem:[%s1031 + $0x600] sm:$0xff]
        %v1297 = vld [vmem:[%s1031 + $0x608] sm:$0xf]
        %v1298 = vld [vmem:[%s1031 + $0x60c] sm:$0xff]
        %v1299 = vld [vmem:[%s1031 + $0x614] sm:$0xff]
        %v1300 = vld [vmem:[%s1031 + $0x61c] sm:$0xff]
        %v1301 = vld [vmem:[%s1031 + $0x624] sm:$0xff]
        %v1302 = vld [vmem:[%s1031 + $0x62c] sm:$0xf]
        %v1303 = vld [vmem:[%s1031 + $0x630] sm:$0xff]
        %v1304 = vld [vmem:[%s1031 + $0x638] sm:$0xff]
        %v1305 = vld [vmem:[%s1031 + $0x640] sm:$0xff]
        %v1306 = vld [vmem:[%s1031 + $0x648] sm:$0xff]
        %v1307 = vld [vmem:[%s1031 + $0x650] sm:$0xf]
        %v1308 = vld [vmem:[%s1031 + $0x654] sm:$0xff]
        %v1309 = vld [vmem:[%s1031 + $0x65c] sm:$0xff]
        %v1310 = vld [vmem:[%s1031 + $0x664] sm:$0xff]
        %v1311 = vld [vmem:[%s1031 + $0x66c] sm:$0xff]
        %v1312 = vld [vmem:[%s1031 + $0x674] sm:$0xf]
        %v1313 = vld [vmem:[%s1031 + $0x678] sm:$0xff]
        %v1314 = vld [vmem:[%s1031 + $0x680] sm:$0xff]
        %v1315 = vld [vmem:[%s1031 + $0x688] sm:$0xff]
        %v1316 = vld [vmem:[%s1031 + $0x690] sm:$0xff]
        %v1317 = vld [vmem:[%s1031 + $0x698] sm:$0xf]
        %v1318 = vld [vmem:[%s1031 + $0x69c] sm:$0xff]
        %v1319 = vld [vmem:[%s1031 + $0x6a4] sm:$0xff]
        %v1320 = vld [vmem:[%s1031 + $0x6ac] sm:$0xff]
        %v1321 = vld [vmem:[%s1031 + $0x6b4] sm:$0xff]
        %v1322 = vld [vmem:[%s1031 + $0x6bc] sm:$0xf]
        %v1323 = vld [vmem:[%s1031 + $0x6c0] sm:$0xff]
        %v1324 = vld [vmem:[%s1031 + $0x6c8] sm:$0xff]
        %v1325 = vld [vmem:[%s1031 + $0x6d0] sm:$0xff]
        %v1326 = vld [vmem:[%s1031 + $0x6d8] sm:$0xff]
        %v1327 = vld [vmem:[%s1031 + $0x6e0] sm:$0xf]
        %v1328 = vld [vmem:[%s1031 + $0x6e4] sm:$0xff]
        %v1329 = vld [vmem:[%s1031 + $0x6ec] sm:$0xff]
        %v1330 = vld [vmem:[%s1031 + $0x6f4] sm:$0xff]
        %v1331 = vld [vmem:[%s1031 + $0x6fc] sm:$0xff]
        %v1332 = vld [vmem:[%s1031 + $0x704] sm:$0xf]
        %v1333 = vld [vmem:[%s1031 + $0x708] sm:$0xff]
        %v1334 = vld [vmem:[%s1031 + $0x710] sm:$0xff]
        %v1335 = vld [vmem:[%s1031 + $0x718] sm:$0xff]
        %v1336 = vld [vmem:[%s1031 + $0x720] sm:$0xff]
        %v1337 = vld [vmem:[%s1031 + $0x728] sm:$0xf]
        %v1338 = vld [vmem:[%s1031 + $0x72c] sm:$0xff]
        %v1339 = vld [vmem:[%s1031 + $0x734] sm:$0xff]
        %v1340 = vld [vmem:[%s1031 + $0x73c] sm:$0xff]
        %v1341 = vld [vmem:[%s1031 + $0x744] sm:$0xff]
        %v1342 = vld [vmem:[%s1031 + $0x74c] sm:$0xf]
        %v1343 = vld [vmem:[%s1031 + $0x750] sm:$0xff]
        %v1344 = vld [vmem:[%s1031 + $0x758] sm:$0xff]
        %v1345 = vld [vmem:[%s1031 + $0x760] sm:$0xff]
        %v1346 = vld [vmem:[%s1031 + $0x768] sm:$0xff]
        %v1347 = vld [vmem:[%s1031 + $0x770] sm:$0xf]
        %v1348 = vld [vmem:[%s1031 + $0x774] sm:$0xff]
        %v1349 = vld [vmem:[%s1031 + $0x77c] sm:$0xff]
        %v1350 = vld [vmem:[%s1031 + $0x784] sm:$0xff]
        %v1351 = vld [vmem:[%s1031 + $0x78c] sm:$0xff]
        %v1352 = vld [vmem:[%s1031 + $0x794] sm:$0xf]
        %v1353 = vld [vmem:[%s1031 + $0x798] sm:$0xff]
        %v1354 = vld [vmem:[%s1031 + $0x7a0] sm:$0xff]
        %v1355 = vld [vmem:[%s1031 + $0x7a8] sm:$0xff]
        %v1356 = vld [vmem:[%s1031 + $0x7b0] sm:$0xff]
        %v1357 = vld [vmem:[%s1031 + $0x7b8] sm:$0xf]
        %v1358 = vld [vmem:[%s1031 + $0x7bc] sm:$0xff]
        %v1359 = vld [vmem:[%s1031 + $0x7c4] sm:$0xff]
        %v1360 = vld [vmem:[%s1031 + $0x7cc] sm:$0xff]
        %v1361 = vld [vmem:[%s1031 + $0x7d4] sm:$0xff]
        %v1362 = vld [vmem:[%s1031 + $0x7dc] sm:$0xf]
        %v1363 = vld [vmem:[%s1031 + $0x7e0] sm:$0xff]
        %v1364 = vld [vmem:[%s1031 + $0x7e8] sm:$0xff]
        %v1365 = vld [vmem:[%s1031 + $0x7f0] sm:$0xff]
        %v1366 = vld [vmem:[%s1031 + $0x7f8] sm:$0xff]
        %v1367 = vld [vmem:[%s1031 + $0x800] sm:$0xf]
        %v1368 = vld [vmem:[%s1031 + $0x804] sm:$0xff]
        %v1369 = vld [vmem:[%s1031 + $0x80c] sm:$0xff]
        %v1370 = vld [vmem:[%s1031 + $0x814] sm:$0xff]
        %v1371 = vld [vmem:[%s1031 + $0x81c] sm:$0xff]
        %v1372 = vld [vmem:[%s1031 + $0x824] sm:$0xf]
        %v1373 = vld [vmem:[%s1031 + $0x828] sm:$0xff]
        %v1374 = vld [vmem:[%s1031 + $0x830] sm:$0xff]
        %v1375 = vld [vmem:[%s1031 + $0x838] sm:$0xff]
        %v1376 = vld [vmem:[%s1031 + $0x840] sm:$0xff]
        %v1377 = vld [vmem:[%s1031 + $0x848] sm:$0xf]
        %v1378 = vld [vmem:[%s1031 + $0x84c] sm:$0xff]
        %v1379 = vld [vmem:[%s1031 + $0x854] sm:$0xff]
        %v1380 = vld [vmem:[%s1031 + $0x85c] sm:$0xff]
        %v1381 = vld [vmem:[%s1031 + $0x864] sm:$0xff]
        %v1382 = vld [vmem:[%s1031 + $0x86c] sm:$0xf]
        %v1383 = vld [vmem:[%s1031 + $0x870] sm:$0xff]
        %v1384 = vld [vmem:[%s1031 + $0x878] sm:$0xff]
        %v1385 = vld [vmem:[%s1031 + $0x880] sm:$0xff]
        %v1386 = vld [vmem:[%s1031 + $0x888] sm:$0xff]
        %v1387 = vld [vmem:[%s1031 + $0x890] sm:$0xf]
        %v1388 = vld [vmem:[%s1031 + $0x894] sm:$0xff]
        %v1389 = vld [vmem:[%s1031 + $0x89c] sm:$0xff]
        %v1390 = vld [vmem:[%s1031 + $0x8a4] sm:$0xff]
        %v1391 = vld [vmem:[%s1031 + $0x8ac] sm:$0xff]
        %v1392 = vld [vmem:[%s1031 + $0x8b4] sm:$0xf]
        %v1393 = vld [vmem:[%s1031 + $0x8b8] sm:$0xff]
        %v1394 = vld [vmem:[%s1031 + $0x8c0] sm:$0xff]
        %v1395 = vld [vmem:[%s1031 + $0x8c8] sm:$0xff]
        %v1396 = vld [vmem:[%s1031 + $0x8d0] sm:$0xff]
        %v1397 = vld [vmem:[%s1031 + $0x8d8] sm:$0xf]
        %v1398 = vld [vmem:[%s1031 + $0x8dc] sm:$0xff]
        %v1399 = vld [vmem:[%s1031 + $0x8e4] sm:$0xff]
        %v1400 = vld [vmem:[%s1031 + $0x8ec] sm:$0xff]
        %v1401 = vld [vmem:[%s1031 + $0x8f4] sm:$0xff]
        %v1402 = vld [vmem:[%s1031 + $0x8fc] sm:$0xf]
        %v1403 = vld [vmem:[%s1031 + $0x900] sm:$0xff]
        %v1404 = vld [vmem:[%s1031 + $0x908] sm:$0xff]
        %v1405 = vld [vmem:[%s1031 + $0x910] sm:$0xff]
        %v1406 = vld [vmem:[%s1031 + $0x918] sm:$0xff]
        %v1407 = vld [vmem:[%s1031 + $0x920] sm:$0xf]
        %v1408 = vld [vmem:[%s1031 + $0x924] sm:$0xff]
        %v1409 = vld [vmem:[%s1031 + $0x92c] sm:$0xff]
        %v1410 = vld [vmem:[%s1031 + $0x934] sm:$0xff]
        %v1411 = vld [vmem:[%s1031 + $0x93c] sm:$0xff]
        %v1412 = vld [vmem:[%s1031 + $0x944] sm:$0xf]
        %v1413 = vld [vmem:[%s1031 + $0x948] sm:$0xff]
        %v1414 = vld [vmem:[%s1031 + $0x950] sm:$0xff]
        %v1415 = vld [vmem:[%s1031 + $0x958] sm:$0xff]
        %v1416 = vld [vmem:[%s1031 + $0x960] sm:$0xff]
        %v1417 = vld [vmem:[%s1031 + $0x968] sm:$0xf]
        %v1418 = vld [vmem:[%s1031 + $0x96c] sm:$0xff]
        %v1419 = vld [vmem:[%s1031 + $0x974] sm:$0xff]
        %v1420 = vld [vmem:[%s1031 + $0x97c] sm:$0xff]
        %v1421 = vld [vmem:[%s1031 + $0x984] sm:$0xff]
        %v1422 = vld [vmem:[%s1031 + $0x98c] sm:$0xf]
        %v1423 = vld [vmem:[%s1031 + $0x990] sm:$0xff]
        %v1424 = vld [vmem:[%s1031 + $0x998] sm:$0xff]
        %v1425 = vld [vmem:[%s1031 + $0x9a0] sm:$0xff]
        %v1426 = vld [vmem:[%s1031 + $0x9a8] sm:$0xff]
        %v1427 = vld [vmem:[%s1031 + $0x9b0] sm:$0xf]
        %v1428 = vld [vmem:[%s1031 + $0x9b4] sm:$0xff]
        %v1429 = vld [vmem:[%s1031 + $0x9bc] sm:$0xff]
        %v1430 = vld [vmem:[%s1031 + $0x9c4] sm:$0xff]
        %v1431 = vld [vmem:[%s1031 + $0x9cc] sm:$0xff]
        %v1432 = vld [vmem:[%s1031 + $0x9d4] sm:$0xf]
        %v1433 = vld [vmem:[%s1031 + $0x9d8] sm:$0xff]
        %v1434 = vld [vmem:[%s1031 + $0x9e0] sm:$0xff]
        %v1435 = vld [vmem:[%s1031 + $0x9e8] sm:$0xff]
        %v1436 = vld [vmem:[%s1031 + $0x9f0] sm:$0xff]
        %v1437 = vld [vmem:[%s1031 + $0x9f8] sm:$0xf]
        %v1438 = vld [vmem:[%s1031 + $0x9fc] sm:$0xff]
        %v1439 = vld [vmem:[%s1031 + $0xa04] sm:$0xff]
        %v1440 = vld [vmem:[%s1031 + $0xa0c] sm:$0xff]
        %v1441 = vld [vmem:[%s1031 + $0xa14] sm:$0xff]
        %v1442 = vld [vmem:[%s1031 + $0xa1c] sm:$0xf]
        %v1443 = vld [vmem:[%s3] sm:$0xff]
        %v1444 = vld [vmem:[%s3 + $0x8] sm:$0xff]
        %v1445 = vld [vmem:[%s3 + $0x10] sm:$0xf]
        %v1446 = vld [vmem:[%s3 + $0x14] sm:$0xff]
        %v1447 = vld [vmem:[%s3 + $0x1c] sm:$0xff]
        %v1448 = vld [vmem:[%s3 + $0x24] sm:$0xf]
        %v1449 = vld [vmem:[%s3 + $0x28] sm:$0xff]
        %v1450 = vld [vmem:[%s3 + $0x30] sm:$0xff]
        %v1451 = vld [vmem:[%s3 + $0x38] sm:$0xf]
        %v1452 = vld [vmem:[%s3 + $0x3c] sm:$0xff]
        %v1453 = vld [vmem:[%s3 + $0x44] sm:$0xff]
        %v1454 = vld [vmem:[%s3 + $0x4c] sm:$0xf]
        %v1455 = vld [vmem:[%s3 + $0x50] sm:$0xff]
        %v1456 = vld [vmem:[%s3 + $0x58] sm:$0xff]
        %v1457 = vld [vmem:[%s3 + $0x60] sm:$0xf]
        %v1458 = vld [vmem:[%s3 + $0x64] sm:$0xff]
        %v1459 = vld [vmem:[%s3 + $0x6c] sm:$0xff]
        %v1460 = vld [vmem:[%s3 + $0x74] sm:$0xf]
        %v1461 = vld [vmem:[%s3 + $0x78] sm:$0xff]
        %v1462 = vld [vmem:[%s3 + $0x80] sm:$0xff]
        %v1463 = vld [vmem:[%s3 + $0x88] sm:$0xf]
        %v1464 = vld [vmem:[%s3 + $0x8c] sm:$0xff]
        %v1465 = vld [vmem:[%s3 + $0x94] sm:$0xff]
        %v1466 = vld [vmem:[%s3 + $0x9c] sm:$0xf]
        %v1467 = vld [vmem:[%s3 + $0xa0] sm:$0xff]
        %v1468 = vld [vmem:[%s3 + $0xa8] sm:$0xff]
        %v1469 = vld [vmem:[%s3 + $0xb0] sm:$0xf]
        %v1470 = vld [vmem:[%s3 + $0xb4] sm:$0xff]
        %v1471 = vld [vmem:[%s3 + $0xbc] sm:$0xff]
        %v1472 = vld [vmem:[%s3 + $0xc4] sm:$0xf]
        %v1473 = vld [vmem:[%s3 + $0xc8] sm:$0xff]
        %v1474 = vld [vmem:[%s3 + $0xd0] sm:$0xff]
        %v1475 = vld [vmem:[%s3 + $0xd8] sm:$0xf]
        %v1476 = vld [vmem:[%s3 + $0xdc] sm:$0xff]
        %v1477 = vld [vmem:[%s3 + $0xe4] sm:$0xff]
        %v1478 = vld [vmem:[%s3 + $0xec] sm:$0xf]
        %v1479 = vld [vmem:[%s3 + $0xf0] sm:$0xff]
        %v1480 = vld [vmem:[%s3 + $0xf8] sm:$0xff]
        %v1481 = vld [vmem:[%s3 + $0x100] sm:$0xf]
        %v1482 = vld [vmem:[%s3 + $0x104] sm:$0xff]
        %v1483 = vld [vmem:[%s3 + $0x10c] sm:$0xff]
        %v1484 = vld [vmem:[%s3 + $0x114] sm:$0xf]
        %v1485 = vld [vmem:[%s3 + $0x118] sm:$0xff]
        %v1486 = vld [vmem:[%s3 + $0x120] sm:$0xff]
        %v1487 = vld [vmem:[%s3 + $0x128] sm:$0xf]
        %v1488 = vld [vmem:[%s3 + $0x12c] sm:$0xff]
        %v1489 = vld [vmem:[%s3 + $0x134] sm:$0xff]
        %v1490 = vld [vmem:[%s3 + $0x13c] sm:$0xf]
        %v1491 = vld [vmem:[%s4] sm:$0xff]
        %v1492 = vld [vmem:[%s4 + $0x8] sm:$0xff]
        %v1493 = vld [vmem:[%s4 + $0x10] sm:$0xff]
        %v1494 = vld [vmem:[%s4 + $0x18] sm:$0xff]
        %v1495 = vld [vmem:[%s4 + $0x20] sm:$0xff]
        %v1496 = vld [vmem:[%s4 + $0x28] sm:$0xff]
        %v1497 = vld [vmem:[%s4 + $0x30] sm:$0xff]
        %v1498 = vld [vmem:[%s4 + $0x38] sm:$0xff]
        %v1499 = vld [vmem:[%s4 + $0x40] sm:$0xff]
        %v1500 = vld [vmem:[%s4 + $0x48] sm:$0xff]
        %v1501 = vld [vmem:[%s4 + $0x50] sm:$0xff]
        %v1502 = vld [vmem:[%s4 + $0x58] sm:$0xff]
        %v1503 = vld [vmem:[%s4 + $0x60] sm:$0xff]
        %v1504 = vld [vmem:[%s4 + $0x68] sm:$0xff]
        %v1505 = vld [vmem:[%s4 + $0x70] sm:$0xff]
        %v1506 = vld [vmem:[%s4 + $0x78] sm:$0xff]
        %1508 = vset.pattern.permute.xlu0 0
        %1509 = vperm.xlu0 %1508, %v1491
        %v1510 = vpop.permute.xlu0 %1509
        %1513 = vset.pattern.permute.xlu0 0
        %1514 = vperm.xlu0 %1513, %v1492
        %v1515 = vpop.permute.xlu0 %1514
        %1518 = vset.pattern.permute.xlu0 0
        %1519 = vperm.xlu0 %1518, %v1493
        %v1520 = vpop.permute.xlu0 %1519
        %1523 = vset.pattern.permute.xlu0 0
        %1524 = vperm.xlu0 %1523, %v1494
        %v1525 = vpop.permute.xlu0 %1524
        %1528 = vset.pattern.permute.xlu0 0
        %1529 = vperm.xlu0 %1528, %v1495
        %v1530 = vpop.permute.xlu0 %1529
        %1533 = vset.pattern.permute.xlu0 0
        %1534 = vperm.xlu0 %1533, %v1496
        %v1535 = vpop.permute.xlu0 %1534
        %1538 = vset.pattern.permute.xlu0 0
        %1539 = vperm.xlu0 %1538, %v1497
        %v1540 = vpop.permute.xlu0 %1539
        %1543 = vset.pattern.permute.xlu0 0
        %1544 = vperm.xlu0 %1543, %v1498
        %v1545 = vpop.permute.xlu0 %1544
        %1548 = vset.pattern.permute.xlu0 0
        %1549 = vperm.xlu0 %1548, %v1499
        %v1550 = vpop.permute.xlu0 %1549
        %1553 = vset.pattern.permute.xlu0 0
        %1554 = vperm.xlu0 %1553, %v1500
        %v1555 = vpop.permute.xlu0 %1554
        %1558 = vset.pattern.permute.xlu0 0
        %1559 = vperm.xlu0 %1558, %v1501
        %v1560 = vpop.permute.xlu0 %1559
        %1563 = vset.pattern.permute.xlu0 0
        %1564 = vperm.xlu0 %1563, %v1502
        %v1565 = vpop.permute.xlu0 %1564
        %1568 = vset.pattern.permute.xlu0 0
        %1569 = vperm.xlu0 %1568, %v1503
        %v1570 = vpop.permute.xlu0 %1569
        %1573 = vset.pattern.permute.xlu0 0
        %1574 = vperm.xlu0 %1573, %v1504
        %v1575 = vpop.permute.xlu0 %1574
        %1578 = vset.pattern.permute.xlu0 0
        %1579 = vperm.xlu0 %1578, %v1505
        %v1580 = vpop.permute.xlu0 %1579
        %1583 = vset.pattern.permute.xlu0 0
        %1584 = vperm.xlu0 %1583, %v1506
        %v1585 = vpop.permute.xlu0 %1584
        %v1635 = vunpack.c.l.b16 %v1443
        %v1636 = vunpack.c.h.b16 %v1443
        %v1637 = vunpack.c.l.b16 %v1444
        %v1638 = vunpack.c.h.b16 %v1444
        %v1639 = vunpack.c.l.b16 %v1445
        %v1640 = vunpack.c.l.b16 %v1446
        %v1641 = vunpack.c.h.b16 %v1446
        %v1642 = vunpack.c.l.b16 %v1447
        %v1643 = vunpack.c.h.b16 %v1447
        %v1644 = vunpack.c.l.b16 %v1448
        %v1645 = vunpack.c.l.b16 %v1449
        %v1646 = vunpack.c.h.b16 %v1449
        %v1647 = vunpack.c.l.b16 %v1450
        %v1648 = vunpack.c.h.b16 %v1450
        %v1649 = vunpack.c.l.b16 %v1451
        %v1650 = vunpack.c.l.b16 %v1452
        %v1651 = vunpack.c.h.b16 %v1452
        %v1652 = vunpack.c.l.b16 %v1453
        %v1653 = vunpack.c.h.b16 %v1453
        %v1654 = vunpack.c.l.b16 %v1454
        %v1655 = vunpack.c.l.b16 %v1455
        %v1656 = vunpack.c.h.b16 %v1455
        %v1657 = vunpack.c.l.b16 %v1456
        %v1658 = vunpack.c.h.b16 %v1456
        %v1659 = vunpack.c.l.b16 %v1457
        %v1660 = vunpack.c.l.b16 %v1458
        %v1661 = vunpack.c.h.b16 %v1458
        %v1662 = vunpack.c.l.b16 %v1459
        %v1663 = vunpack.c.h.b16 %v1459
        %v1664 = vunpack.c.l.b16 %v1460
        %v1665 = vunpack.c.l.b16 %v1461
        %v1666 = vunpack.c.h.b16 %v1461
        %v1667 = vunpack.c.l.b16 %v1462
        %v1668 = vunpack.c.h.b16 %v1462
        %v1669 = vunpack.c.l.b16 %v1463
        %v1670 = vunpack.c.l.b16 %v1464
        %v1671 = vunpack.c.h.b16 %v1464
        %v1672 = vunpack.c.l.b16 %v1465
        %v1673 = vunpack.c.h.b16 %v1465
        %v1674 = vunpack.c.l.b16 %v1466
        %v1675 = vunpack.c.l.b16 %v1467
        %v1676 = vunpack.c.h.b16 %v1467
        %v1677 = vunpack.c.l.b16 %v1468
        %v1678 = vunpack.c.h.b16 %v1468
        %v1679 = vunpack.c.l.b16 %v1469
        %v1680 = vunpack.c.l.b16 %v1470
        %v1681 = vunpack.c.h.b16 %v1470
        %v1682 = vunpack.c.l.b16 %v1471
        %v1683 = vunpack.c.h.b16 %v1471
        %v1684 = vunpack.c.l.b16 %v1472
        %v1685 = vunpack.c.l.b16 %v1473
        %v1686 = vunpack.c.h.b16 %v1473
        %v1687 = vunpack.c.l.b16 %v1474
        %v1688 = vunpack.c.h.b16 %v1474
        %v1689 = vunpack.c.l.b16 %v1475
        %v1690 = vunpack.c.l.b16 %v1476
        %v1691 = vunpack.c.h.b16 %v1476
        %v1692 = vunpack.c.l.b16 %v1477
        %v1693 = vunpack.c.h.b16 %v1477
        %v1694 = vunpack.c.l.b16 %v1478
        %v1695 = vunpack.c.l.b16 %v1479
        %v1696 = vunpack.c.h.b16 %v1479
        %v1697 = vunpack.c.l.b16 %v1480
        %v1698 = vunpack.c.h.b16 %v1480
        %v1699 = vunpack.c.l.b16 %v1481
        %v1700 = vunpack.c.l.b16 %v1482
        %v1701 = vunpack.c.h.b16 %v1482
        %v1702 = vunpack.c.l.b16 %v1483
        %v1703 = vunpack.c.h.b16 %v1483
        %v1704 = vunpack.c.l.b16 %v1484
        %v1705 = vunpack.c.l.b16 %v1485
        %v1706 = vunpack.c.h.b16 %v1485
        %v1707 = vunpack.c.l.b16 %v1486
        %v1708 = vunpack.c.h.b16 %v1486
        %v1709 = vunpack.c.l.b16 %v1487
        %v1710 = vunpack.c.l.b16 %v1488
        %v1711 = vunpack.c.h.b16 %v1488
        %v1712 = vunpack.c.l.b16 %v1489
        %v1713 = vunpack.c.h.b16 %v1489
        %v1714 = vunpack.c.l.b16 %v1490
        %v1715 = vpack.c.b16 %v1640, %v1635
        %v1716 = vpack.c.b16 %v1641, %v1636
        %v1717 = vpack.c.b16 %v1642, %v1637
        %v1718 = vpack.c.b16 %v1643, %v1638
        %v1719 = vpack.c.b16 %v1644, %v1639
        %v1720 = vpack.c.b16 %v1650, %v1645
        %v1721 = vpack.c.b16 %v1651, %v1646
        %v1722 = vpack.c.b16 %v1652, %v1647
        %v1723 = vpack.c.b16 %v1653, %v1648
        %v1724 = vpack.c.b16 %v1654, %v1649
        %v1725 = vpack.c.b16 %v1660, %v1655
        %v1726 = vpack.c.b16 %v1661, %v1656
        %v1727 = vpack.c.b16 %v1662, %v1657
        %v1728 = vpack.c.b16 %v1663, %v1658
        %v1729 = vpack.c.b16 %v1664, %v1659
        %v1730 = vpack.c.b16 %v1670, %v1665
        %v1731 = vpack.c.b16 %v1671, %v1666
        %v1732 = vpack.c.b16 %v1672, %v1667
        %v1733 = vpack.c.b16 %v1673, %v1668
        %v1734 = vpack.c.b16 %v1674, %v1669
        %v1735 = vpack.c.b16 %v1680, %v1675
        %v1736 = vpack.c.b16 %v1681, %v1676
        %v1737 = vpack.c.b16 %v1682, %v1677
        %v1738 = vpack.c.b16 %v1683, %v1678
        %v1739 = vpack.c.b16 %v1684, %v1679
        %v1740 = vpack.c.b16 %v1690, %v1685
        %v1741 = vpack.c.b16 %v1691, %v1686
        %v1742 = vpack.c.b16 %v1692, %v1687
        %v1743 = vpack.c.b16 %v1693, %v1688
        %v1744 = vpack.c.b16 %v1694, %v1689
        %v1745 = vpack.c.b16 %v1700, %v1695
        %v1746 = vpack.c.b16 %v1701, %v1696
        %v1747 = vpack.c.b16 %v1702, %v1697
        %v1748 = vpack.c.b16 %v1703, %v1698
        %v1749 = vpack.c.b16 %v1704, %v1699
        %v1750 = vpack.c.b16 %v1710, %v1705
        %v1751 = vpack.c.b16 %v1711, %v1706
        %v1752 = vpack.c.b16 %v1712, %v1707
        %v1753 = vpack.c.b16 %v1713, %v1708
        %v1754 = vpack.c.b16 %v1714, %v1709
        %v2147 = vunpack.c.l.b16 %v1083
        %v2148 = vunpack.c.h.b16 %v1083
        %v2149 = vunpack.c.l.b16 %v1084
        %v2150 = vunpack.c.h.b16 %v1084
        %v2151 = vunpack.c.l.b16 %v1085
        %v2152 = vunpack.c.h.b16 %v1085
        %v2153 = vunpack.c.l.b16 %v1086
        %v2154 = vunpack.c.h.b16 %v1086
        %v2155 = vunpack.c.l.b16 %v1087
        %v2156 = vunpack.c.l.b16 %v1088
        %v2157 = vunpack.c.h.b16 %v1088
        %v2158 = vunpack.c.l.b16 %v1089
        %v2159 = vunpack.c.h.b16 %v1089
        %v2160 = vunpack.c.l.b16 %v1090
        %v2161 = vunpack.c.h.b16 %v1090
        %v2162 = vunpack.c.l.b16 %v1091
        %v2163 = vunpack.c.h.b16 %v1091
        %v2164 = vunpack.c.l.b16 %v1092
        %v2165 = vunpack.c.l.b16 %v1093
        %v2166 = vunpack.c.h.b16 %v1093
        %v2167 = vunpack.c.l.b16 %v1094
        %v2168 = vunpack.c.h.b16 %v1094
        %v2169 = vunpack.c.l.b16 %v1095
        %v2170 = vunpack.c.h.b16 %v1095
        %v2171 = vunpack.c.l.b16 %v1096
        %v2172 = vunpack.c.h.b16 %v1096
        %v2173 = vunpack.c.l.b16 %v1097
        %v2174 = vunpack.c.l.b16 %v1098
        %v2175 = vunpack.c.h.b16 %v1098
        %v2176 = vunpack.c.l.b16 %v1099
        %v2177 = vunpack.c.h.b16 %v1099
        %v2178 = vunpack.c.l.b16 %v1100
        %v2179 = vunpack.c.h.b16 %v1100
        %v2180 = vunpack.c.l.b16 %v1101
        %v2181 = vunpack.c.h.b16 %v1101
        %v2182 = vunpack.c.l.b16 %v1102
        %v2183 = vunpack.c.l.b16 %v1103
        %v2184 = vunpack.c.h.b16 %v1103
        %v2185 = vunpack.c.l.b16 %v1104
        %v2186 = vunpack.c.h.b16 %v1104
        %v2187 = vunpack.c.l.b16 %v1105
        %v2188 = vunpack.c.h.b16 %v1105
        %v2189 = vunpack.c.l.b16 %v1106
        %v2190 = vunpack.c.h.b16 %v1106
        %v2191 = vunpack.c.l.b16 %v1107
        %v2192 = vunpack.c.l.b16 %v1108
        %v2193 = vunpack.c.h.b16 %v1108
        %v2194 = vunpack.c.l.b16 %v1109
        %v2195 = vunpack.c.h.b16 %v1109
        %v2196 = vunpack.c.l.b16 %v1110
        %v2197 = vunpack.c.h.b16 %v1110
        %v2198 = vunpack.c.l.b16 %v1111
        %v2199 = vunpack.c.h.b16 %v1111
        %v2200 = vunpack.c.l.b16 %v1112
        %v2201 = vunpack.c.l.b16 %v1113
        %v2202 = vunpack.c.h.b16 %v1113
        %v2203 = vunpack.c.l.b16 %v1114
        %v2204 = vunpack.c.h.b16 %v1114
        %v2205 = vunpack.c.l.b16 %v1115
        %v2206 = vunpack.c.h.b16 %v1115
        %v2207 = vunpack.c.l.b16 %v1116
        %v2208 = vunpack.c.h.b16 %v1116
        %v2209 = vunpack.c.l.b16 %v1117
        %v2210 = vunpack.c.l.b16 %v1118
        %v2211 = vunpack.c.h.b16 %v1118
        %v2212 = vunpack.c.l.b16 %v1119
        %v2213 = vunpack.c.h.b16 %v1119
        %v2214 = vunpack.c.l.b16 %v1120
        %v2215 = vunpack.c.h.b16 %v1120
        %v2216 = vunpack.c.l.b16 %v1121
        %v2217 = vunpack.c.h.b16 %v1121
        %v2218 = vunpack.c.l.b16 %v1122
        %v2219 = vunpack.c.l.b16 %v1123
        %v2220 = vunpack.c.h.b16 %v1123
        %v2221 = vunpack.c.l.b16 %v1124
        %v2222 = vunpack.c.h.b16 %v1124
        %v2223 = vunpack.c.l.b16 %v1125
        %v2224 = vunpack.c.h.b16 %v1125
        %v2225 = vunpack.c.l.b16 %v1126
        %v2226 = vunpack.c.h.b16 %v1126
        %v2227 = vunpack.c.l.b16 %v1127
        %v2228 = vunpack.c.l.b16 %v1128
        %v2229 = vunpack.c.h.b16 %v1128
        %v2230 = vunpack.c.l.b16 %v1129
        %v2231 = vunpack.c.h.b16 %v1129
        %v2232 = vunpack.c.l.b16 %v1130
        %v2233 = vunpack.c.h.b16 %v1130
        %v2234 = vunpack.c.l.b16 %v1131
        %v2235 = vunpack.c.h.b16 %v1131
        %v2236 = vunpack.c.l.b16 %v1132
        %v2237 = vunpack.c.l.b16 %v1133
        %v2238 = vunpack.c.h.b16 %v1133
        %v2239 = vunpack.c.l.b16 %v1134
        %v2240 = vunpack.c.h.b16 %v1134
        %v2241 = vunpack.c.l.b16 %v1135
        %v2242 = vunpack.c.h.b16 %v1135
        %v2243 = vunpack.c.l.b16 %v1136
        %v2244 = vunpack.c.h.b16 %v1136
        %v2245 = vunpack.c.l.b16 %v1137
        %v2246 = vunpack.c.l.b16 %v1138
        %v2247 = vunpack.c.h.b16 %v1138
        %v2248 = vunpack.c.l.b16 %v1139
        %v2249 = vunpack.c.h.b16 %v1139
        %v2250 = vunpack.c.l.b16 %v1140
        %v2251 = vunpack.c.h.b16 %v1140
        %v2252 = vunpack.c.l.b16 %v1141
        %v2253 = vunpack.c.h.b16 %v1141
        %v2254 = vunpack.c.l.b16 %v1142
        %v2255 = vunpack.c.l.b16 %v1143
        %v2256 = vunpack.c.h.b16 %v1143
        %v2257 = vunpack.c.l.b16 %v1144
        %v2258 = vunpack.c.h.b16 %v1144
        %v2259 = vunpack.c.l.b16 %v1145
        %v2260 = vunpack.c.h.b16 %v1145
        %v2261 = vunpack.c.l.b16 %v1146
        %v2262 = vunpack.c.h.b16 %v1146
        %v2263 = vunpack.c.l.b16 %v1147
        %v2264 = vunpack.c.l.b16 %v1148
        %v2265 = vunpack.c.h.b16 %v1148
        %v2266 = vunpack.c.l.b16 %v1149
        %v2267 = vunpack.c.h.b16 %v1149
        %v2268 = vunpack.c.l.b16 %v1150
        %v2269 = vunpack.c.h.b16 %v1150
        %v2270 = vunpack.c.l.b16 %v1151
        %v2271 = vunpack.c.h.b16 %v1151
        %v2272 = vunpack.c.l.b16 %v1152
        %v2273 = vunpack.c.l.b16 %v1153
        %v2274 = vunpack.c.h.b16 %v1153
        %v2275 = vunpack.c.l.b16 %v1154
        %v2276 = vunpack.c.h.b16 %v1154
        %v2277 = vunpack.c.l.b16 %v1155
        %v2278 = vunpack.c.h.b16 %v1155
        %v2279 = vunpack.c.l.b16 %v1156
        %v2280 = vunpack.c.h.b16 %v1156
        %v2281 = vunpack.c.l.b16 %v1157
        %v2282 = vunpack.c.l.b16 %v1158
        %v2283 = vunpack.c.h.b16 %v1158
        %v2284 = vunpack.c.l.b16 %v1159
        %v2285 = vunpack.c.h.b16 %v1159
        %v2286 = vunpack.c.l.b16 %v1160
        %v2287 = vunpack.c.h.b16 %v1160
        %v2288 = vunpack.c.l.b16 %v1161
        %v2289 = vunpack.c.h.b16 %v1161
        %v2290 = vunpack.c.l.b16 %v1162
        %v2291 = vunpack.c.l.b16 %v1163
        %v2292 = vunpack.c.h.b16 %v1163
        %v2293 = vunpack.c.l.b16 %v1164
        %v2294 = vunpack.c.h.b16 %v1164
        %v2295 = vunpack.c.l.b16 %v1165
        %v2296 = vunpack.c.h.b16 %v1165
        %v2297 = vunpack.c.l.b16 %v1166
        %v2298 = vunpack.c.h.b16 %v1166
        %v2299 = vunpack.c.l.b16 %v1167
        %v2300 = vunpack.c.l.b16 %v1168
        %v2301 = vunpack.c.h.b16 %v1168
        %v2302 = vunpack.c.l.b16 %v1169
        %v2303 = vunpack.c.h.b16 %v1169
        %v2304 = vunpack.c.l.b16 %v1170
        %v2305 = vunpack.c.h.b16 %v1170
        %v2306 = vunpack.c.l.b16 %v1171
        %v2307 = vunpack.c.h.b16 %v1171
        %v2308 = vunpack.c.l.b16 %v1172
        %v2309 = vunpack.c.l.b16 %v1173
        %v2310 = vunpack.c.h.b16 %v1173
        %v2311 = vunpack.c.l.b16 %v1174
        %v2312 = vunpack.c.h.b16 %v1174
        %v2313 = vunpack.c.l.b16 %v1175
        %v2314 = vunpack.c.h.b16 %v1175
        %v2315 = vunpack.c.l.b16 %v1176
        %v2316 = vunpack.c.h.b16 %v1176
        %v2317 = vunpack.c.l.b16 %v1177
        %v2318 = vunpack.c.l.b16 %v1178
        %v2319 = vunpack.c.h.b16 %v1178
        %v2320 = vunpack.c.l.b16 %v1179
        %v2321 = vunpack.c.h.b16 %v1179
        %v2322 = vunpack.c.l.b16 %v1180
        %v2323 = vunpack.c.h.b16 %v1180
        %v2324 = vunpack.c.l.b16 %v1181
        %v2325 = vunpack.c.h.b16 %v1181
        %v2326 = vunpack.c.l.b16 %v1182
        %v2327 = vunpack.c.l.b16 %v1183
        %v2328 = vunpack.c.h.b16 %v1183
        %v2329 = vunpack.c.l.b16 %v1184
        %v2330 = vunpack.c.h.b16 %v1184
        %v2331 = vunpack.c.l.b16 %v1185
        %v2332 = vunpack.c.h.b16 %v1185
        %v2333 = vunpack.c.l.b16 %v1186
        %v2334 = vunpack.c.h.b16 %v1186
        %v2335 = vunpack.c.l.b16 %v1187
        %v2336 = vunpack.c.l.b16 %v1188
        %v2337 = vunpack.c.h.b16 %v1188
        %v2338 = vunpack.c.l.b16 %v1189
        %v2339 = vunpack.c.h.b16 %v1189
        %v2340 = vunpack.c.l.b16 %v1190
        %v2341 = vunpack.c.h.b16 %v1190
        %v2342 = vunpack.c.l.b16 %v1191
        %v2343 = vunpack.c.h.b16 %v1191
        %v2344 = vunpack.c.l.b16 %v1192
        %v2345 = vunpack.c.l.b16 %v1193
        %v2346 = vunpack.c.h.b16 %v1193
        %v2347 = vunpack.c.l.b16 %v1194
        %v2348 = vunpack.c.h.b16 %v1194
        %v2349 = vunpack.c.l.b16 %v1195
        %v2350 = vunpack.c.h.b16 %v1195
        %v2351 = vunpack.c.l.b16 %v1196
        %v2352 = vunpack.c.h.b16 %v1196
        %v2353 = vunpack.c.l.b16 %v1197
        %v2354 = vunpack.c.l.b16 %v1198
        %v2355 = vunpack.c.h.b16 %v1198
        %v2356 = vunpack.c.l.b16 %v1199
        %v2357 = vunpack.c.h.b16 %v1199
        %v2358 = vunpack.c.l.b16 %v1200
        %v2359 = vunpack.c.h.b16 %v1200
        %v2360 = vunpack.c.l.b16 %v1201
        %v2361 = vunpack.c.h.b16 %v1201
        %v2362 = vunpack.c.l.b16 %v1202
        %v2363 = vunpack.c.l.b16 %v1203
        %v2364 = vunpack.c.h.b16 %v1203
        %v2365 = vunpack.c.l.b16 %v1204
        %v2366 = vunpack.c.h.b16 %v1204
        %v2367 = vunpack.c.l.b16 %v1205
        %v2368 = vunpack.c.h.b16 %v1205
        %v2369 = vunpack.c.l.b16 %v1206
        %v2370 = vunpack.c.h.b16 %v1206
        %v2371 = vunpack.c.l.b16 %v1207
        %v2372 = vunpack.c.l.b16 %v1208
        %v2373 = vunpack.c.h.b16 %v1208
        %v2374 = vunpack.c.l.b16 %v1209
        %v2375 = vunpack.c.h.b16 %v1209
        %v2376 = vunpack.c.l.b16 %v1210
        %v2377 = vunpack.c.h.b16 %v1210
        %v2378 = vunpack.c.l.b16 %v1211
        %v2379 = vunpack.c.h.b16 %v1211
        %v2380 = vunpack.c.l.b16 %v1212
        %v2381 = vunpack.c.l.b16 %v1213
        %v2382 = vunpack.c.h.b16 %v1213
        %v2383 = vunpack.c.l.b16 %v1214
        %v2384 = vunpack.c.h.b16 %v1214
        %v2385 = vunpack.c.l.b16 %v1215
        %v2386 = vunpack.c.h.b16 %v1215
        %v2387 = vunpack.c.l.b16 %v1216
        %v2388 = vunpack.c.h.b16 %v1216
        %v2389 = vunpack.c.l.b16 %v1217
        %v2390 = vunpack.c.l.b16 %v1218
        %v2391 = vunpack.c.h.b16 %v1218
        %v2392 = vunpack.c.l.b16 %v1219
        %v2393 = vunpack.c.h.b16 %v1219
        %v2394 = vunpack.c.l.b16 %v1220
        %v2395 = vunpack.c.h.b16 %v1220
        %v2396 = vunpack.c.l.b16 %v1221
        %v2397 = vunpack.c.h.b16 %v1221
        %v2398 = vunpack.c.l.b16 %v1222
        %v2399 = vunpack.c.l.b16 %v1223
        %v2400 = vunpack.c.h.b16 %v1223
        %v2401 = vunpack.c.l.b16 %v1224
        %v2402 = vunpack.c.h.b16 %v1224
        %v2403 = vunpack.c.l.b16 %v1225
        %v2404 = vunpack.c.h.b16 %v1225
        %v2405 = vunpack.c.l.b16 %v1226
        %v2406 = vunpack.c.h.b16 %v1226
        %v2407 = vunpack.c.l.b16 %v1227
        %v2408 = vunpack.c.l.b16 %v1228
        %v2409 = vunpack.c.h.b16 %v1228
        %v2410 = vunpack.c.l.b16 %v1229
        %v2411 = vunpack.c.h.b16 %v1229
        %v2412 = vunpack.c.l.b16 %v1230
        %v2413 = vunpack.c.h.b16 %v1230
        %v2414 = vunpack.c.l.b16 %v1231
        %v2415 = vunpack.c.h.b16 %v1231
        %v2416 = vunpack.c.l.b16 %v1232
        %v2417 = vunpack.c.l.b16 %v1233
        %v2418 = vunpack.c.h.b16 %v1233
        %v2419 = vunpack.c.l.b16 %v1234
        %v2420 = vunpack.c.h.b16 %v1234
        %v2421 = vunpack.c.l.b16 %v1235
        %v2422 = vunpack.c.h.b16 %v1235
        %v2423 = vunpack.c.l.b16 %v1236
        %v2424 = vunpack.c.h.b16 %v1236
        %v2425 = vunpack.c.l.b16 %v1237
        %v2426 = vunpack.c.l.b16 %v1238
        %v2427 = vunpack.c.h.b16 %v1238
        %v2428 = vunpack.c.l.b16 %v1239
        %v2429 = vunpack.c.h.b16 %v1239
        %v2430 = vunpack.c.l.b16 %v1240
        %v2431 = vunpack.c.h.b16 %v1240
        %v2432 = vunpack.c.l.b16 %v1241
        %v2433 = vunpack.c.h.b16 %v1241
        %v2434 = vunpack.c.l.b16 %v1242
        %v2435 = vunpack.c.l.b16 %v1243
        %v2436 = vunpack.c.h.b16 %v1243
        %v2437 = vunpack.c.l.b16 %v1244
        %v2438 = vunpack.c.h.b16 %v1244
        %v2439 = vunpack.c.l.b16 %v1245
        %v2440 = vunpack.c.h.b16 %v1245
        %v2441 = vunpack.c.l.b16 %v1246
        %v2442 = vunpack.c.h.b16 %v1246
        %v2443 = vunpack.c.l.b16 %v1247
        %v2444 = vunpack.c.l.b16 %v1248
        %v2445 = vunpack.c.h.b16 %v1248
        %v2446 = vunpack.c.l.b16 %v1249
        %v2447 = vunpack.c.h.b16 %v1249
        %v2448 = vunpack.c.l.b16 %v1250
        %v2449 = vunpack.c.h.b16 %v1250
        %v2450 = vunpack.c.l.b16 %v1251
        %v2451 = vunpack.c.h.b16 %v1251
        %v2452 = vunpack.c.l.b16 %v1252
        %v2453 = vunpack.c.l.b16 %v1253
        %v2454 = vunpack.c.h.b16 %v1253
        %v2455 = vunpack.c.l.b16 %v1254
        %v2456 = vunpack.c.h.b16 %v1254
        %v2457 = vunpack.c.l.b16 %v1255
        %v2458 = vunpack.c.h.b16 %v1255
        %v2459 = vunpack.c.l.b16 %v1256
        %v2460 = vunpack.c.h.b16 %v1256
        %v2461 = vunpack.c.l.b16 %v1257
        %v2462 = vunpack.c.l.b16 %v1258
        %v2463 = vunpack.c.h.b16 %v1258
        %v2464 = vunpack.c.l.b16 %v1259
        %v2465 = vunpack.c.h.b16 %v1259
        %v2466 = vunpack.c.l.b16 %v1260
        %v2467 = vunpack.c.h.b16 %v1260
        %v2468 = vunpack.c.l.b16 %v1261
        %v2469 = vunpack.c.h.b16 %v1261
        %v2470 = vunpack.c.l.b16 %v1262
        %v2471 = vunpack.c.l.b16 %v1263
        %v2472 = vunpack.c.h.b16 %v1263
        %v2473 = vunpack.c.l.b16 %v1264
        %v2474 = vunpack.c.h.b16 %v1264
        %v2475 = vunpack.c.l.b16 %v1265
        %v2476 = vunpack.c.h.b16 %v1265
        %v2477 = vunpack.c.l.b16 %v1266
        %v2478 = vunpack.c.h.b16 %v1266
        %v2479 = vunpack.c.l.b16 %v1267
        %v2480 = vunpack.c.l.b16 %v1268
        %v2481 = vunpack.c.h.b16 %v1268
        %v2482 = vunpack.c.l.b16 %v1269
        %v2483 = vunpack.c.h.b16 %v1269
        %v2484 = vunpack.c.l.b16 %v1270
        %v2485 = vunpack.c.h.b16 %v1270
        %v2486 = vunpack.c.l.b16 %v1271
        %v2487 = vunpack.c.h.b16 %v1271
        %v2488 = vunpack.c.l.b16 %v1272
        %v2489 = vunpack.c.l.b16 %v1273
        %v2490 = vunpack.c.h.b16 %v1273
        %v2491 = vunpack.c.l.b16 %v1274
        %v2492 = vunpack.c.h.b16 %v1274
        %v2493 = vunpack.c.l.b16 %v1275
        %v2494 = vunpack.c.h.b16 %v1275
        %v2495 = vunpack.c.l.b16 %v1276
        %v2496 = vunpack.c.h.b16 %v1276
        %v2497 = vunpack.c.l.b16 %v1277
        %v2498 = vunpack.c.l.b16 %v1278
        %v2499 = vunpack.c.h.b16 %v1278
        %v2500 = vunpack.c.l.b16 %v1279
        %v2501 = vunpack.c.h.b16 %v1279
        %v2502 = vunpack.c.l.b16 %v1280
        %v2503 = vunpack.c.h.b16 %v1280
        %v2504 = vunpack.c.l.b16 %v1281
        %v2505 = vunpack.c.h.b16 %v1281
        %v2506 = vunpack.c.l.b16 %v1282
        %v2507 = vunpack.c.l.b16 %v1283
        %v2508 = vunpack.c.h.b16 %v1283
        %v2509 = vunpack.c.l.b16 %v1284
        %v2510 = vunpack.c.h.b16 %v1284
        %v2511 = vunpack.c.l.b16 %v1285
        %v2512 = vunpack.c.h.b16 %v1285
        %v2513 = vunpack.c.l.b16 %v1286
        %v2514 = vunpack.c.h.b16 %v1286
        %v2515 = vunpack.c.l.b16 %v1287
        %v2516 = vunpack.c.l.b16 %v1288
        %v2517 = vunpack.c.h.b16 %v1288
        %v2518 = vunpack.c.l.b16 %v1289
        %v2519 = vunpack.c.h.b16 %v1289
        %v2520 = vunpack.c.l.b16 %v1290
        %v2521 = vunpack.c.h.b16 %v1290
        %v2522 = vunpack.c.l.b16 %v1291
        %v2523 = vunpack.c.h.b16 %v1291
        %v2524 = vunpack.c.l.b16 %v1292
        %v2525 = vunpack.c.l.b16 %v1293
        %v2526 = vunpack.c.h.b16 %v1293
        %v2527 = vunpack.c.l.b16 %v1294
        %v2528 = vunpack.c.h.b16 %v1294
        %v2529 = vunpack.c.l.b16 %v1295
        %v2530 = vunpack.c.h.b16 %v1295
        %v2531 = vunpack.c.l.b16 %v1296
        %v2532 = vunpack.c.h.b16 %v1296
        %v2533 = vunpack.c.l.b16 %v1297
        %v2534 = vunpack.c.l.b16 %v1298
        %v2535 = vunpack.c.h.b16 %v1298
        %v2536 = vunpack.c.l.b16 %v1299
        %v2537 = vunpack.c.h.b16 %v1299
        %v2538 = vunpack.c.l.b16 %v1300
        %v2539 = vunpack.c.h.b16 %v1300
        %v2540 = vunpack.c.l.b16 %v1301
        %v2541 = vunpack.c.h.b16 %v1301
        %v2542 = vunpack.c.l.b16 %v1302
        %v2543 = vunpack.c.l.b16 %v1303
        %v2544 = vunpack.c.h.b16 %v1303
        %v2545 = vunpack.c.l.b16 %v1304
        %v2546 = vunpack.c.h.b16 %v1304
        %v2547 = vunpack.c.l.b16 %v1305
        %v2548 = vunpack.c.h.b16 %v1305
        %v2549 = vunpack.c.l.b16 %v1306
        %v2550 = vunpack.c.h.b16 %v1306
        %v2551 = vunpack.c.l.b16 %v1307
        %v2552 = vunpack.c.l.b16 %v1308
        %v2553 = vunpack.c.h.b16 %v1308
        %v2554 = vunpack.c.l.b16 %v1309
        %v2555 = vunpack.c.h.b16 %v1309
        %v2556 = vunpack.c.l.b16 %v1310
        %v2557 = vunpack.c.h.b16 %v1310
        %v2558 = vunpack.c.l.b16 %v1311
        %v2559 = vunpack.c.h.b16 %v1311
        %v2560 = vunpack.c.l.b16 %v1312
        %v2561 = vunpack.c.l.b16 %v1313
        %v2562 = vunpack.c.h.b16 %v1313
        %v2563 = vunpack.c.l.b16 %v1314
        %v2564 = vunpack.c.h.b16 %v1314
        %v2565 = vunpack.c.l.b16 %v1315
        %v2566 = vunpack.c.h.b16 %v1315
        %v2567 = vunpack.c.l.b16 %v1316
        %v2568 = vunpack.c.h.b16 %v1316
        %v2569 = vunpack.c.l.b16 %v1317
        %v2570 = vunpack.c.l.b16 %v1318
        %v2571 = vunpack.c.h.b16 %v1318
        %v2572 = vunpack.c.l.b16 %v1319
        %v2573 = vunpack.c.h.b16 %v1319
        %v2574 = vunpack.c.l.b16 %v1320
        %v2575 = vunpack.c.h.b16 %v1320
        %v2576 = vunpack.c.l.b16 %v1321
        %v2577 = vunpack.c.h.b16 %v1321
        %v2578 = vunpack.c.l.b16 %v1322
        %v2579 = vunpack.c.l.b16 %v1323
        %v2580 = vunpack.c.h.b16 %v1323
        %v2581 = vunpack.c.l.b16 %v1324
        %v2582 = vunpack.c.h.b16 %v1324
        %v2583 = vunpack.c.l.b16 %v1325
        %v2584 = vunpack.c.h.b16 %v1325
        %v2585 = vunpack.c.l.b16 %v1326
        %v2586 = vunpack.c.h.b16 %v1326
        %v2587 = vunpack.c.l.b16 %v1327
        %v2588 = vunpack.c.l.b16 %v1328
        %v2589 = vunpack.c.h.b16 %v1328
        %v2590 = vunpack.c.l.b16 %v1329
        %v2591 = vunpack.c.h.b16 %v1329
        %v2592 = vunpack.c.l.b16 %v1330
        %v2593 = vunpack.c.h.b16 %v1330
        %v2594 = vunpack.c.l.b16 %v1331
        %v2595 = vunpack.c.h.b16 %v1331
        %v2596 = vunpack.c.l.b16 %v1332
        %v2597 = vunpack.c.l.b16 %v1333
        %v2598 = vunpack.c.h.b16 %v1333
        %v2599 = vunpack.c.l.b16 %v1334
        %v2600 = vunpack.c.h.b16 %v1334
        %v2601 = vunpack.c.l.b16 %v1335
        %v2602 = vunpack.c.h.b16 %v1335
        %v2603 = vunpack.c.l.b16 %v1336
        %v2604 = vunpack.c.h.b16 %v1336
        %v2605 = vunpack.c.l.b16 %v1337
        %v2606 = vunpack.c.l.b16 %v1338
        %v2607 = vunpack.c.h.b16 %v1338
        %v2608 = vunpack.c.l.b16 %v1339
        %v2609 = vunpack.c.h.b16 %v1339
        %v2610 = vunpack.c.l.b16 %v1340
        %v2611 = vunpack.c.h.b16 %v1340
        %v2612 = vunpack.c.l.b16 %v1341
        %v2613 = vunpack.c.h.b16 %v1341
        %v2614 = vunpack.c.l.b16 %v1342
        %v2615 = vunpack.c.l.b16 %v1343
        %v2616 = vunpack.c.h.b16 %v1343
        %v2617 = vunpack.c.l.b16 %v1344
        %v2618 = vunpack.c.h.b16 %v1344
        %v2619 = vunpack.c.l.b16 %v1345
        %v2620 = vunpack.c.h.b16 %v1345
        %v2621 = vunpack.c.l.b16 %v1346
        %v2622 = vunpack.c.h.b16 %v1346
        %v2623 = vunpack.c.l.b16 %v1347
        %v2624 = vunpack.c.l.b16 %v1348
        %v2625 = vunpack.c.h.b16 %v1348
        %v2626 = vunpack.c.l.b16 %v1349
        %v2627 = vunpack.c.h.b16 %v1349
        %v2628 = vunpack.c.l.b16 %v1350
        %v2629 = vunpack.c.h.b16 %v1350
        %v2630 = vunpack.c.l.b16 %v1351
        %v2631 = vunpack.c.h.b16 %v1351
        %v2632 = vunpack.c.l.b16 %v1352
        %v2633 = vunpack.c.l.b16 %v1353
        %v2634 = vunpack.c.h.b16 %v1353
        %v2635 = vunpack.c.l.b16 %v1354
        %v2636 = vunpack.c.h.b16 %v1354
        %v2637 = vunpack.c.l.b16 %v1355
        %v2638 = vunpack.c.h.b16 %v1355
        %v2639 = vunpack.c.l.b16 %v1356
        %v2640 = vunpack.c.h.b16 %v1356
        %v2641 = vunpack.c.l.b16 %v1357
        %v2642 = vunpack.c.l.b16 %v1358
        %v2643 = vunpack.c.h.b16 %v1358
        %v2644 = vunpack.c.l.b16 %v1359
        %v2645 = vunpack.c.h.b16 %v1359
        %v2646 = vunpack.c.l.b16 %v1360
        %v2647 = vunpack.c.h.b16 %v1360
        %v2648 = vunpack.c.l.b16 %v1361
        %v2649 = vunpack.c.h.b16 %v1361
        %v2650 = vunpack.c.l.b16 %v1362
        %v2651 = vunpack.c.l.b16 %v1363
        %v2652 = vunpack.c.h.b16 %v1363
        %v2653 = vunpack.c.l.b16 %v1364
        %v2654 = vunpack.c.h.b16 %v1364
        %v2655 = vunpack.c.l.b16 %v1365
        %v2656 = vunpack.c.h.b16 %v1365
        %v2657 = vunpack.c.l.b16 %v1366
        %v2658 = vunpack.c.h.b16 %v1366
        %v2659 = vunpack.c.l.b16 %v1367
        %v2660 = vunpack.c.l.b16 %v1368
        %v2661 = vunpack.c.h.b16 %v1368
        %v2662 = vunpack.c.l.b16 %v1369
        %v2663 = vunpack.c.h.b16 %v1369
        %v2664 = vunpack.c.l.b16 %v1370
        %v2665 = vunpack.c.h.b16 %v1370
        %v2666 = vunpack.c.l.b16 %v1371
        %v2667 = vunpack.c.h.b16 %v1371
        %v2668 = vunpack.c.l.b16 %v1372
        %v2669 = vunpack.c.l.b16 %v1373
        %v2670 = vunpack.c.h.b16 %v1373
        %v2671 = vunpack.c.l.b16 %v1374
        %v2672 = vunpack.c.h.b16 %v1374
        %v2673 = vunpack.c.l.b16 %v1375
        %v2674 = vunpack.c.h.b16 %v1375
        %v2675 = vunpack.c.l.b16 %v1376
        %v2676 = vunpack.c.h.b16 %v1376
        %v2677 = vunpack.c.l.b16 %v1377
        %v2678 = vunpack.c.l.b16 %v1378
        %v2679 = vunpack.c.h.b16 %v1378
        %v2680 = vunpack.c.l.b16 %v1379
        %v2681 = vunpack.c.h.b16 %v1379
        %v2682 = vunpack.c.l.b16 %v1380
        %v2683 = vunpack.c.h.b16 %v1380
        %v2684 = vunpack.c.l.b16 %v1381
        %v2685 = vunpack.c.h.b16 %v1381
        %v2686 = vunpack.c.l.b16 %v1382
        %v2687 = vunpack.c.l.b16 %v1383
        %v2688 = vunpack.c.h.b16 %v1383
        %v2689 = vunpack.c.l.b16 %v1384
        %v2690 = vunpack.c.h.b16 %v1384
        %v2691 = vunpack.c.l.b16 %v1385
        %v2692 = vunpack.c.h.b16 %v1385
        %v2693 = vunpack.c.l.b16 %v1386
        %v2694 = vunpack.c.h.b16 %v1386
        %v2695 = vunpack.c.l.b16 %v1387
        %v2696 = vunpack.c.l.b16 %v1388
        %v2697 = vunpack.c.h.b16 %v1388
        %v2698 = vunpack.c.l.b16 %v1389
        %v2699 = vunpack.c.h.b16 %v1389
        %v2700 = vunpack.c.l.b16 %v1390
        %v2701 = vunpack.c.h.b16 %v1390
        %v2702 = vunpack.c.l.b16 %v1391
        %v2703 = vunpack.c.h.b16 %v1391
        %v2704 = vunpack.c.l.b16 %v1392
        %v2705 = vunpack.c.l.b16 %v1393
        %v2706 = vunpack.c.h.b16 %v1393
        %v2707 = vunpack.c.l.b16 %v1394
        %v2708 = vunpack.c.h.b16 %v1394
        %v2709 = vunpack.c.l.b16 %v1395
        %v2710 = vunpack.c.h.b16 %v1395
        %v2711 = vunpack.c.l.b16 %v1396
        %v2712 = vunpack.c.h.b16 %v1396
        %v2713 = vunpack.c.l.b16 %v1397
        %v2714 = vunpack.c.l.b16 %v1398
        %v2715 = vunpack.c.h.b16 %v1398
        %v2716 = vunpack.c.l.b16 %v1399
        %v2717 = vunpack.c.h.b16 %v1399
        %v2718 = vunpack.c.l.b16 %v1400
        %v2719 = vunpack.c.h.b16 %v1400
        %v2720 = vunpack.c.l.b16 %v1401
        %v2721 = vunpack.c.h.b16 %v1401
        %v2722 = vunpack.c.l.b16 %v1402
        %v2723 = vunpack.c.l.b16 %v1403
        %v2724 = vunpack.c.h.b16 %v1403
        %v2725 = vunpack.c.l.b16 %v1404
        %v2726 = vunpack.c.h.b16 %v1404
        %v2727 = vunpack.c.l.b16 %v1405
        %v2728 = vunpack.c.h.b16 %v1405
        %v2729 = vunpack.c.l.b16 %v1406
        %v2730 = vunpack.c.h.b16 %v1406
        %v2731 = vunpack.c.l.b16 %v1407
        %v2732 = vunpack.c.l.b16 %v1408
        %v2733 = vunpack.c.h.b16 %v1408
        %v2734 = vunpack.c.l.b16 %v1409
        %v2735 = vunpack.c.h.b16 %v1409
        %v2736 = vunpack.c.l.b16 %v1410
        %v2737 = vunpack.c.h.b16 %v1410
        %v2738 = vunpack.c.l.b16 %v1411
        %v2739 = vunpack.c.h.b16 %v1411
        %v2740 = vunpack.c.l.b16 %v1412
        %v2741 = vunpack.c.l.b16 %v1413
        %v2742 = vunpack.c.h.b16 %v1413
        %v2743 = vunpack.c.l.b16 %v1414
        %v2744 = vunpack.c.h.b16 %v1414
        %v2745 = vunpack.c.l.b16 %v1415
        %v2746 = vunpack.c.h.b16 %v1415
        %v2747 = vunpack.c.l.b16 %v1416
        %v2748 = vunpack.c.h.b16 %v1416
        %v2749 = vunpack.c.l.b16 %v1417
        %v2750 = vunpack.c.l.b16 %v1418
        %v2751 = vunpack.c.h.b16 %v1418
        %v2752 = vunpack.c.l.b16 %v1419
        %v2753 = vunpack.c.h.b16 %v1419
        %v2754 = vunpack.c.l.b16 %v1420
        %v2755 = vunpack.c.h.b16 %v1420
        %v2756 = vunpack.c.l.b16 %v1421
        %v2757 = vunpack.c.h.b16 %v1421
        %v2758 = vunpack.c.l.b16 %v1422
        %v2759 = vunpack.c.l.b16 %v1423
        %v2760 = vunpack.c.h.b16 %v1423
        %v2761 = vunpack.c.l.b16 %v1424
        %v2762 = vunpack.c.h.b16 %v1424
        %v2763 = vunpack.c.l.b16 %v1425
        %v2764 = vunpack.c.h.b16 %v1425
        %v2765 = vunpack.c.l.b16 %v1426
        %v2766 = vunpack.c.h.b16 %v1426
        %v2767 = vunpack.c.l.b16 %v1427
        %v2768 = vunpack.c.l.b16 %v1428
        %v2769 = vunpack.c.h.b16 %v1428
        %v2770 = vunpack.c.l.b16 %v1429
        %v2771 = vunpack.c.h.b16 %v1429
        %v2772 = vunpack.c.l.b16 %v1430
        %v2773 = vunpack.c.h.b16 %v1430
        %v2774 = vunpack.c.l.b16 %v1431
        %v2775 = vunpack.c.h.b16 %v1431
        %v2776 = vunpack.c.l.b16 %v1432
        %v2777 = vunpack.c.l.b16 %v1433
        %v2778 = vunpack.c.h.b16 %v1433
        %v2779 = vunpack.c.l.b16 %v1434
        %v2780 = vunpack.c.h.b16 %v1434
        %v2781 = vunpack.c.l.b16 %v1435
        %v2782 = vunpack.c.h.b16 %v1435
        %v2783 = vunpack.c.l.b16 %v1436
        %v2784 = vunpack.c.h.b16 %v1436
        %v2785 = vunpack.c.l.b16 %v1437
        %v2786 = vunpack.c.l.b16 %v1438
        %v2787 = vunpack.c.h.b16 %v1438
        %v2788 = vunpack.c.l.b16 %v1439
        %v2789 = vunpack.c.h.b16 %v1439
        %v2790 = vunpack.c.l.b16 %v1440
        %v2791 = vunpack.c.h.b16 %v1440
        %v2792 = vunpack.c.l.b16 %v1441
        %v2793 = vunpack.c.h.b16 %v1441
        %v2794 = vunpack.c.l.b16 %v1442
        %v2795 = vpack.c.b16 %v2156, %v2147
        %v2796 = vpack.c.b16 %v2157, %v2148
        %v2797 = vpack.c.b16 %v2158, %v2149
        %v2798 = vpack.c.b16 %v2159, %v2150
        %v2799 = vpack.c.b16 %v2160, %v2151
        %v2800 = vpack.c.b16 %v2161, %v2152
        %v2801 = vpack.c.b16 %v2162, %v2153
        %v2802 = vpack.c.b16 %v2163, %v2154
        %v2803 = vpack.c.b16 %v2164, %v2155
        %v2804 = vpack.c.b16 %v2174, %v2165
        %v2805 = vpack.c.b16 %v2175, %v2166
        %v2806 = vpack.c.b16 %v2176, %v2167
        %v2807 = vpack.c.b16 %v2177, %v2168
        %v2808 = vpack.c.b16 %v2178, %v2169
        %v2809 = vpack.c.b16 %v2179, %v2170
        %v2810 = vpack.c.b16 %v2180, %v2171
        %v2811 = vpack.c.b16 %v2181, %v2172
        %v2812 = vpack.c.b16 %v2182, %v2173
        %v2813 = vpack.c.b16 %v2192, %v2183
        %v2814 = vpack.c.b16 %v2193, %v2184
        %v2815 = vpack.c.b16 %v2194, %v2185
        %v2816 = vpack.c.b16 %v2195, %v2186
        %v2817 = vpack.c.b16 %v2196, %v2187
        %v2818 = vpack.c.b16 %v2197, %v2188
        %v2819 = vpack.c.b16 %v2198, %v2189
        %v2820 = vpack.c.b16 %v2199, %v2190
        %v2821 = vpack.c.b16 %v2200, %v2191
        %v2822 = vpack.c.b16 %v2210, %v2201
        %v2823 = vpack.c.b16 %v2211, %v2202
        %v2824 = vpack.c.b16 %v2212, %v2203
        %v2825 = vpack.c.b16 %v2213, %v2204
        %v2826 = vpack.c.b16 %v2214, %v2205
        %v2827 = vpack.c.b16 %v2215, %v2206
        %v2828 = vpack.c.b16 %v2216, %v2207
        %v2829 = vpack.c.b16 %v2217, %v2208
        %v2830 = vpack.c.b16 %v2218, %v2209
        %v2831 = vpack.c.b16 %v2228, %v2219
        %v2832 = vpack.c.b16 %v2229, %v2220
        %v2833 = vpack.c.b16 %v2230, %v2221
        %v2834 = vpack.c.b16 %v2231, %v2222
        %v2835 = vpack.c.b16 %v2232, %v2223
        %v2836 = vpack.c.b16 %v2233, %v2224
        %v2837 = vpack.c.b16 %v2234, %v2225
        %v2838 = vpack.c.b16 %v2235, %v2226
        %v2839 = vpack.c.b16 %v2236, %v2227
        %v2840 = vpack.c.b16 %v2246, %v2237
        %v2841 = vpack.c.b16 %v2247, %v2238
        %v2842 = vpack.c.b16 %v2248, %v2239
        %v2843 = vpack.c.b16 %v2249, %v2240
        %v2844 = vpack.c.b16 %v2250, %v2241
        %v2845 = vpack.c.b16 %v2251, %v2242
        %v2846 = vpack.c.b16 %v2252, %v2243
        %v2847 = vpack.c.b16 %v2253, %v2244
        %v2848 = vpack.c.b16 %v2254, %v2245
        %v2849 = vpack.c.b16 %v2264, %v2255
        %v2850 = vpack.c.b16 %v2265, %v2256
        %v2851 = vpack.c.b16 %v2266, %v2257
        %v2852 = vpack.c.b16 %v2267, %v2258
        %v2853 = vpack.c.b16 %v2268, %v2259
        %v2854 = vpack.c.b16 %v2269, %v2260
        %v2855 = vpack.c.b16 %v2270, %v2261
        %v2856 = vpack.c.b16 %v2271, %v2262
        %v2857 = vpack.c.b16 %v2272, %v2263
        %v2858 = vpack.c.b16 %v2282, %v2273
        %v2859 = vpack.c.b16 %v2283, %v2274
        %v2860 = vpack.c.b16 %v2284, %v2275
        %v2861 = vpack.c.b16 %v2285, %v2276
        %v2862 = vpack.c.b16 %v2286, %v2277
        %v2863 = vpack.c.b16 %v2287, %v2278
        %v2864 = vpack.c.b16 %v2288, %v2279
        %v2865 = vpack.c.b16 %v2289, %v2280
        %v2866 = vpack.c.b16 %v2290, %v2281
        %v2867 = vpack.c.b16 %v2300, %v2291
        %v2868 = vpack.c.b16 %v2301, %v2292
        %v2869 = vpack.c.b16 %v2302, %v2293
        %v2870 = vpack.c.b16 %v2303, %v2294
        %v2871 = vpack.c.b16 %v2304, %v2295
        %v2872 = vpack.c.b16 %v2305, %v2296
        %v2873 = vpack.c.b16 %v2306, %v2297
        %v2874 = vpack.c.b16 %v2307, %v2298
        %v2875 = vpack.c.b16 %v2308, %v2299
        %v2876 = vpack.c.b16 %v2318, %v2309
        %v2877 = vpack.c.b16 %v2319, %v2310
        %v2878 = vpack.c.b16 %v2320, %v2311
        %v2879 = vpack.c.b16 %v2321, %v2312
        %v2880 = vpack.c.b16 %v2322, %v2313
        %v2881 = vpack.c.b16 %v2323, %v2314
        %v2882 = vpack.c.b16 %v2324, %v2315
        %v2883 = vpack.c.b16 %v2325, %v2316
        %v2884 = vpack.c.b16 %v2326, %v2317
        %v2885 = vpack.c.b16 %v2336, %v2327
        %v2886 = vpack.c.b16 %v2337, %v2328
        %v2887 = vpack.c.b16 %v2338, %v2329
        %v2888 = vpack.c.b16 %v2339, %v2330
        %v2889 = vpack.c.b16 %v2340, %v2331
        %v2890 = vpack.c.b16 %v2341, %v2332
        %v2891 = vpack.c.b16 %v2342, %v2333
        %v2892 = vpack.c.b16 %v2343, %v2334
        %v2893 = vpack.c.b16 %v2344, %v2335
        %v2894 = vpack.c.b16 %v2354, %v2345
        %v2895 = vpack.c.b16 %v2355, %v2346
        %v2896 = vpack.c.b16 %v2356, %v2347
        %v2897 = vpack.c.b16 %v2357, %v2348
        %v2898 = vpack.c.b16 %v2358, %v2349
        %v2899 = vpack.c.b16 %v2359, %v2350
        %v2900 = vpack.c.b16 %v2360, %v2351
        %v2901 = vpack.c.b16 %v2361, %v2352
        %v2902 = vpack.c.b16 %v2362, %v2353
        %v2903 = vpack.c.b16 %v2372, %v2363
        %v2904 = vpack.c.b16 %v2373, %v2364
        %v2905 = vpack.c.b16 %v2374, %v2365
        %v2906 = vpack.c.b16 %v2375, %v2366
        %v2907 = vpack.c.b16 %v2376, %v2367
        %v2908 = vpack.c.b16 %v2377, %v2368
        %v2909 = vpack.c.b16 %v2378, %v2369
        %v2910 = vpack.c.b16 %v2379, %v2370
        %v2911 = vpack.c.b16 %v2380, %v2371
        %v2912 = vpack.c.b16 %v2390, %v2381
        %v2913 = vpack.c.b16 %v2391, %v2382
        %v2914 = vpack.c.b16 %v2392, %v2383
        %v2915 = vpack.c.b16 %v2393, %v2384
        %v2916 = vpack.c.b16 %v2394, %v2385
        %v2917 = vpack.c.b16 %v2395, %v2386
        %v2918 = vpack.c.b16 %v2396, %v2387
        %v2919 = vpack.c.b16 %v2397, %v2388
        %v2920 = vpack.c.b16 %v2398, %v2389
        %v2921 = vpack.c.b16 %v2408, %v2399
        %v2922 = vpack.c.b16 %v2409, %v2400
        %v2923 = vpack.c.b16 %v2410, %v2401
        %v2924 = vpack.c.b16 %v2411, %v2402
        %v2925 = vpack.c.b16 %v2412, %v2403
        %v2926 = vpack.c.b16 %v2413, %v2404
        %v2927 = vpack.c.b16 %v2414, %v2405
        %v2928 = vpack.c.b16 %v2415, %v2406
        %v2929 = vpack.c.b16 %v2416, %v2407
        %v2930 = vpack.c.b16 %v2426, %v2417
        %v2931 = vpack.c.b16 %v2427, %v2418
        %v2932 = vpack.c.b16 %v2428, %v2419
        %v2933 = vpack.c.b16 %v2429, %v2420
        %v2934 = vpack.c.b16 %v2430, %v2421
        %v2935 = vpack.c.b16 %v2431, %v2422
        %v2936 = vpack.c.b16 %v2432, %v2423
        %v2937 = vpack.c.b16 %v2433, %v2424
        %v2938 = vpack.c.b16 %v2434, %v2425
        %v2939 = vpack.c.b16 %v2444, %v2435
        %v2940 = vpack.c.b16 %v2445, %v2436
        %v2941 = vpack.c.b16 %v2446, %v2437
        %v2942 = vpack.c.b16 %v2447, %v2438
        %v2943 = vpack.c.b16 %v2448, %v2439
        %v2944 = vpack.c.b16 %v2449, %v2440
        %v2945 = vpack.c.b16 %v2450, %v2441
        %v2946 = vpack.c.b16 %v2451, %v2442
        %v2947 = vpack.c.b16 %v2452, %v2443
        %v2948 = vpack.c.b16 %v2462, %v2453
        %v2949 = vpack.c.b16 %v2463, %v2454
        %v2950 = vpack.c.b16 %v2464, %v2455
        %v2951 = vpack.c.b16 %v2465, %v2456
        %v2952 = vpack.c.b16 %v2466, %v2457
        %v2953 = vpack.c.b16 %v2467, %v2458
        %v2954 = vpack.c.b16 %v2468, %v2459
        %v2955 = vpack.c.b16 %v2469, %v2460
        %v2956 = vpack.c.b16 %v2470, %v2461
        %v2957 = vpack.c.b16 %v2480, %v2471
        %v2958 = vpack.c.b16 %v2481, %v2472
        %v2959 = vpack.c.b16 %v2482, %v2473
        %v2960 = vpack.c.b16 %v2483, %v2474
        %v2961 = vpack.c.b16 %v2484, %v2475
        %v2962 = vpack.c.b16 %v2485, %v2476
        %v2963 = vpack.c.b16 %v2486, %v2477
        %v2964 = vpack.c.b16 %v2487, %v2478
        %v2965 = vpack.c.b16 %v2488, %v2479
        %v2966 = vpack.c.b16 %v2498, %v2489
        %v2967 = vpack.c.b16 %v2499, %v2490
        %v2968 = vpack.c.b16 %v2500, %v2491
        %v2969 = vpack.c.b16 %v2501, %v2492
        %v2970 = vpack.c.b16 %v2502, %v2493
        %v2971 = vpack.c.b16 %v2503, %v2494
        %v2972 = vpack.c.b16 %v2504, %v2495
        %v2973 = vpack.c.b16 %v2505, %v2496
        %v2974 = vpack.c.b16 %v2506, %v2497
        %v2975 = vpack.c.b16 %v2516, %v2507
        %v2976 = vpack.c.b16 %v2517, %v2508
        %v2977 = vpack.c.b16 %v2518, %v2509
        %v2978 = vpack.c.b16 %v2519, %v2510
        %v2979 = vpack.c.b16 %v2520, %v2511
        %v2980 = vpack.c.b16 %v2521, %v2512
        %v2981 = vpack.c.b16 %v2522, %v2513
        %v2982 = vpack.c.b16 %v2523, %v2514
        %v2983 = vpack.c.b16 %v2524, %v2515
        %v2984 = vpack.c.b16 %v2534, %v2525
        %v2985 = vpack.c.b16 %v2535, %v2526
        %v2986 = vpack.c.b16 %v2536, %v2527
        %v2987 = vpack.c.b16 %v2537, %v2528
        %v2988 = vpack.c.b16 %v2538, %v2529
        %v2989 = vpack.c.b16 %v2539, %v2530
        %v2990 = vpack.c.b16 %v2540, %v2531
        %v2991 = vpack.c.b16 %v2541, %v2532
        %v2992 = vpack.c.b16 %v2542, %v2533
        %v2993 = vpack.c.b16 %v2552, %v2543
        %v2994 = vpack.c.b16 %v2553, %v2544
        %v2995 = vpack.c.b16 %v2554, %v2545
        %v2996 = vpack.c.b16 %v2555, %v2546
        %v2997 = vpack.c.b16 %v2556, %v2547
        %v2998 = vpack.c.b16 %v2557, %v2548
        %v2999 = vpack.c.b16 %v2558, %v2549
        %v3000 = vpack.c.b16 %v2559, %v2550
        %v3001 = vpack.c.b16 %v2560, %v2551
        %v3002 = vpack.c.b16 %v2570, %v2561
        %v3003 = vpack.c.b16 %v2571, %v2562
        %v3004 = vpack.c.b16 %v2572, %v2563
        %v3005 = vpack.c.b16 %v2573, %v2564
        %v3006 = vpack.c.b16 %v2574, %v2565
        %v3007 = vpack.c.b16 %v2575, %v2566
        %v3008 = vpack.c.b16 %v2576, %v2567
        %v3009 = vpack.c.b16 %v2577, %v2568
        %v3010 = vpack.c.b16 %v2578, %v2569
        %v3011 = vpack.c.b16 %v2588, %v2579
        %v3012 = vpack.c.b16 %v2589, %v2580
        %v3013 = vpack.c.b16 %v2590, %v2581
        %v3014 = vpack.c.b16 %v2591, %v2582
        %v3015 = vpack.c.b16 %v2592, %v2583
        %v3016 = vpack.c.b16 %v2593, %v2584
        %v3017 = vpack.c.b16 %v2594, %v2585
        %v3018 = vpack.c.b16 %v2595, %v2586
        %v3019 = vpack.c.b16 %v2596, %v2587
        %v3020 = vpack.c.b16 %v2606, %v2597
        %v3021 = vpack.c.b16 %v2607, %v2598
        %v3022 = vpack.c.b16 %v2608, %v2599
        %v3023 = vpack.c.b16 %v2609, %v2600
        %v3024 = vpack.c.b16 %v2610, %v2601
        %v3025 = vpack.c.b16 %v2611, %v2602
        %v3026 = vpack.c.b16 %v2612, %v2603
        %v3027 = vpack.c.b16 %v2613, %v2604
        %v3028 = vpack.c.b16 %v2614, %v2605
        %v3029 = vpack.c.b16 %v2624, %v2615
        %v3030 = vpack.c.b16 %v2625, %v2616
        %v3031 = vpack.c.b16 %v2626, %v2617
        %v3032 = vpack.c.b16 %v2627, %v2618
        %v3033 = vpack.c.b16 %v2628, %v2619
        %v3034 = vpack.c.b16 %v2629, %v2620
        %v3035 = vpack.c.b16 %v2630, %v2621
        %v3036 = vpack.c.b16 %v2631, %v2622
        %v3037 = vpack.c.b16 %v2632, %v2623
        %v3038 = vpack.c.b16 %v2642, %v2633
        %v3039 = vpack.c.b16 %v2643, %v2634
        %v3040 = vpack.c.b16 %v2644, %v2635
        %v3041 = vpack.c.b16 %v2645, %v2636
        %v3042 = vpack.c.b16 %v2646, %v2637
        %v3043 = vpack.c.b16 %v2647, %v2638
        %v3044 = vpack.c.b16 %v2648, %v2639
        %v3045 = vpack.c.b16 %v2649, %v2640
        %v3046 = vpack.c.b16 %v2650, %v2641
        %v3047 = vpack.c.b16 %v2660, %v2651
        %v3048 = vpack.c.b16 %v2661, %v2652
        %v3049 = vpack.c.b16 %v2662, %v2653
        %v3050 = vpack.c.b16 %v2663, %v2654
        %v3051 = vpack.c.b16 %v2664, %v2655
        %v3052 = vpack.c.b16 %v2665, %v2656
        %v3053 = vpack.c.b16 %v2666, %v2657
        %v3054 = vpack.c.b16 %v2667, %v2658
        %v3055 = vpack.c.b16 %v2668, %v2659
        %v3056 = vpack.c.b16 %v2678, %v2669
        %v3057 = vpack.c.b16 %v2679, %v2670
        %v3058 = vpack.c.b16 %v2680, %v2671
        %v3059 = vpack.c.b16 %v2681, %v2672
        %v3060 = vpack.c.b16 %v2682, %v2673
        %v3061 = vpack.c.b16 %v2683, %v2674
        %v3062 = vpack.c.b16 %v2684, %v2675
        %v3063 = vpack.c.b16 %v2685, %v2676
        %v3064 = vpack.c.b16 %v2686, %v2677
        %v3065 = vpack.c.b16 %v2696, %v2687
        %v3066 = vpack.c.b16 %v2697, %v2688
        %v3067 = vpack.c.b16 %v2698, %v2689
        %v3068 = vpack.c.b16 %v2699, %v2690
        %v3069 = vpack.c.b16 %v2700, %v2691
        %v3070 = vpack.c.b16 %v2701, %v2692
        %v3071 = vpack.c.b16 %v2702, %v2693
        %v3072 = vpack.c.b16 %v2703, %v2694
        %v3073 = vpack.c.b16 %v2704, %v2695
        %v3074 = vpack.c.b16 %v2714, %v2705
        %v3075 = vpack.c.b16 %v2715, %v2706
        %v3076 = vpack.c.b16 %v2716, %v2707
        %v3077 = vpack.c.b16 %v2717, %v2708
        %v3078 = vpack.c.b16 %v2718, %v2709
        %v3079 = vpack.c.b16 %v2719, %v2710
        %v3080 = vpack.c.b16 %v2720, %v2711
        %v3081 = vpack.c.b16 %v2721, %v2712
        %v3082 = vpack.c.b16 %v2722, %v2713
        %v3083 = vpack.c.b16 %v2732, %v2723
        %v3084 = vpack.c.b16 %v2733, %v2724
        %v3085 = vpack.c.b16 %v2734, %v2725
        %v3086 = vpack.c.b16 %v2735, %v2726
        %v3087 = vpack.c.b16 %v2736, %v2727
        %v3088 = vpack.c.b16 %v2737, %v2728
        %v3089 = vpack.c.b16 %v2738, %v2729
        %v3090 = vpack.c.b16 %v2739, %v2730
        %v3091 = vpack.c.b16 %v2740, %v2731
        %v3092 = vpack.c.b16 %v2750, %v2741
        %v3093 = vpack.c.b16 %v2751, %v2742
        %v3094 = vpack.c.b16 %v2752, %v2743
        %v3095 = vpack.c.b16 %v2753, %v2744
        %v3096 = vpack.c.b16 %v2754, %v2745
        %v3097 = vpack.c.b16 %v2755, %v2746
        %v3098 = vpack.c.b16 %v2756, %v2747
        %v3099 = vpack.c.b16 %v2757, %v2748
        %v3100 = vpack.c.b16 %v2758, %v2749
        %v3101 = vpack.c.b16 %v2768, %v2759
        %v3102 = vpack.c.b16 %v2769, %v2760
        %v3103 = vpack.c.b16 %v2770, %v2761
        %v3104 = vpack.c.b16 %v2771, %v2762
        %v3105 = vpack.c.b16 %v2772, %v2763
        %v3106 = vpack.c.b16 %v2773, %v2764
        %v3107 = vpack.c.b16 %v2774, %v2765
        %v3108 = vpack.c.b16 %v2775, %v2766
        %v3109 = vpack.c.b16 %v2776, %v2767
        %v3110 = vpack.c.b16 %v2786, %v2777
        %v3111 = vpack.c.b16 %v2787, %v2778
        %v3112 = vpack.c.b16 %v2788, %v2779
        %v3113 = vpack.c.b16 %v2789, %v2780
        %v3114 = vpack.c.b16 %v2790, %v2781
        %v3115 = vpack.c.b16 %v2791, %v2782
        %v3116 = vpack.c.b16 %v2792, %v2783
        %v3117 = vpack.c.b16 %v2793, %v2784
        %v3118 = vpack.c.b16 %v2794, %v2785
        %vm3443 = vcmask 523264
        %v3445 = vsel %vm3443, %v1719, 0
        %v3448 = vsel %vm3443, %v1724, 0
        %v3451 = vsel %vm3443, %v1729, 0
        %v3454 = vsel %vm3443, %v1734, 0
        %v3457 = vsel %vm3443, %v1739, 0
        %v3460 = vsel %vm3443, %v1744, 0
        %v3463 = vsel %vm3443, %v1749, 0
        %v3466 = vsel %vm3443, %v1754, 0
        %3468 = vmatprep.subr.bf16.mxu0 %v2796
        %3469 = vmatpush1.bf16.msra.mxu0 %v2795
        %3470 = vmatprep.subr.bf16.mxu0 %v2805
        %3471 = vmatpush1.bf16.msra.mxu0 %v2804
        %3472 = vmatprep.subr.bf16.mxu0 %v2814
        %3473 = vmatpush1.bf16.msra.mxu0 %v2813
        %3474 = vmatprep.subr.bf16.mxu0 %v2823
        %3475 = vmatpush1.bf16.msra.mxu0 %v2822
        %3476 = vmatprep.subr.bf16.mxu0 %v2832
        %3477 = vmatpush1.bf16.msra.mxu0 %v2831
        %3478 = vmatprep.subr.bf16.mxu0 %v2841
        %3479 = vmatpush1.bf16.msra.mxu0 %v2840
        %3480 = vmatprep.subr.bf16.mxu0 %v2850
        %3481 = vmatpush1.bf16.msra.mxu0 %v2849
        %3482 = vmatprep.subr.bf16.mxu0 %v2859
        %3483 = vmatpush1.bf16.msra.mxu0 %v2858
        %3484 = vmatprep.subr.bf16.mxu0 %v2868
        %3485 = vmatpush1.bf16.msra.mxu0 %v2867
        %3486 = vmatprep.subr.bf16.mxu0 %v2877
        %3487 = vmatpush1.bf16.msra.mxu0 %v2876
        %3488 = vmatprep.subr.bf16.mxu0 %v2886
        %3489 = vmatpush1.bf16.msra.mxu0 %v2885
        %3490 = vmatprep.subr.bf16.mxu0 %v2895
        %3491 = vmatpush1.bf16.msra.mxu0 %v2894
        %3492 = vmatprep.subr.bf16.mxu0 %v2904
        %3493 = vmatpush1.bf16.msra.mxu0 %v2903
        %3494 = vmatprep.subr.bf16.mxu0 %v2913
        %3495 = vmatpush1.bf16.msra.mxu0 %v2912
        %3496 = vmatprep.subr.bf16.mxu0 %v2922
        %3497 = vmatpush1.bf16.msra.mxu0 %v2921
        %3498 = vmatprep.subr.bf16.mxu0 %v2931
        %3499 = vmatpush1.bf16.msra.mxu0 %v2930
        %3500 = vmatprep.mubr.bf16.mxu0 %v1716
        %3501 = vmatmul.mubr.bf16.gmra.mrb[0].mxu0 %v1715
        %v3502 = vpop.f32.mrb[0].mxu0
        %v3503 = vadd.f32 %v1510, %v3502
        %v3504 = vpop.f32.mrb[0].mxu0
        %v3505 = vadd.f32 %v1510, %v3504
        %v3506 = vpop.f32.mrb[0].mxu0
        %v3507 = vadd.f32 %v1515, %v3506
        %v3508 = vpop.f32.mrb[0].mxu0
        %v3509 = vadd.f32 %v1515, %v3508
        %3510 = vmatprep.mubr.bf16.mxu0 %v1721
        %3511 = vmatmul.mubr.bf16.gmra.mrb[0].mxu0 %v1720
        %v3512 = vpop.f32.mrb[0].mxu0
        %v3513 = vadd.f32 %v1520, %v3512
        %v3514 = vpop.f32.mrb[0].mxu0
        %v3515 = vadd.f32 %v1520, %v3514
        %v3516 = vpop.f32.mrb[0].mxu0
        %v3517 = vadd.f32 %v1525, %v3516
        %v3518 = vpop.f32.mrb[0].mxu0
        %v3519 = vadd.f32 %v1525, %v3518
        %3520 = vmatprep.mubr.bf16.mxu0 %v1726
        %3521 = vmatmul.mubr.bf16.gmra.mrb[0].mxu0 %v1725
        %v3522 = vpop.f32.mrb[0].mxu0
        %v3523 = vadd.f32 %v1530, %v3522
        %v3524 = vpop.f32.mrb[0].mxu0
        %v3525 = vadd.f32 %v1530, %v3524
        %v3526 = vpop.f32.mrb[0].mxu0
        %v3527 = vadd.f32 %v1535, %v3526
        %v3528 = vpop.f32.mrb[0].mxu0
        %v3529 = vadd.f32 %v1535, %v3528
        %3530 = vmatprep.mubr.bf16.mxu0 %v1731
        %3531 = vmatmul.mubr.bf16.gmra.mrb[0].mxu0 %v1730
        %v3532 = vpop.f32.mrb[0].mxu0
        %v3533 = vadd.f32 %v1540, %v3532
        %v3534 = vpop.f32.mrb[0].mxu0
        %v3535 = vadd.f32 %v1540, %v3534
        %v3536 = vpop.f32.mrb[0].mxu0
        %v3537 = vadd.f32 %v1545, %v3536
        %v3538 = vpop.f32.mrb[0].mxu0
        %v3539 = vadd.f32 %v1545, %v3538
        %3540 = vmatprep.mubr.bf16.mxu0 %v1736
        %3541 = vmatmul.mubr.bf16.gmra.mrb[0].mxu0 %v1735
        %v3542 = vpop.f32.mrb[0].mxu0
        %v3543 = vadd.f32 %v1550, %v3542
        %v3544 = vpop.f32.mrb[0].mxu0
        %v3545 = vadd.f32 %v1550, %v3544
        %v3546 = vpop.f32.mrb[0].mxu0
        %v3547 = vadd.f32 %v1555, %v3546
        %v3548 = vpop.f32.mrb[0].mxu0
        %v3549 = vadd.f32 %v1555, %v3548
        %3550 = vmatprep.mubr.bf16.mxu0 %v1741
        %3551 = vmatmul.mubr.bf16.gmra.mrb[0].mxu0 %v1740
        %v3552 = vpop.f32.mrb[0].mxu0
        %v3553 = vadd.f32 %v1560, %v3552
        %v3554 = vpop.f32.mrb[0].mxu0
        %v3555 = vadd.f32 %v1560, %v3554
        %v3556 = vpop.f32.mrb[0].mxu0
        %v3557 = vadd.f32 %v1565, %v3556
        %v3558 = vpop.f32.mrb[0].mxu0
        %v3559 = vadd.f32 %v1565, %v3558
        %3560 = vmatprep.mubr.bf16.mxu0 %v1746
        %3561 = vmatmul.mubr.bf16.gmra.mrb[0].mxu0 %v1745
        %v3562 = vpop.f32.mrb[0].mxu0
        %v3563 = vadd.f32 %v1570, %v3562
        %v3564 = vpop.f32.mrb[0].mxu0
        %v3565 = vadd.f32 %v1570, %v3564
        %v3566 = vpop.f32.mrb[0].mxu0
        %v3567 = vadd.f32 %v1575, %v3566
        %v3568 = vpop.f32.mrb[0].mxu0
        %v3569 = vadd.f32 %v1575, %v3568
        %3570 = vmatprep.mubr.bf16.mxu0 %v1751
        %3571 = vmatmul.mubr.bf16.gmra.mrb[0].mxu0 %v1750
        %v3572 = vpop.f32.mrb[0].mxu0
        %v3573 = vadd.f32 %v1580, %v3572
        %v3574 = vpop.f32.mrb[0].mxu0
        %v3575 = vadd.f32 %v1580, %v3574
        %v3576 = vpop.f32.mrb[0].mxu0
        %v3577 = vadd.f32 %v1585, %v3576
        %v3578 = vpop.f32.mrb[0].mxu0
        %v3579 = vadd.f32 %v1585, %v3578
        %3580 = vdwg.mxu0
        %3581 = vmatprep.subr.bf16.mxu0 %v2940
        %3582 = vmatpush1.bf16.msra.mxu0 %v2939
        %3583 = vmatprep.subr.bf16.mxu0 %v2949
        %3584 = vmatpush1.bf16.msra.mxu0 %v2948
        %3585 = vmatprep.subr.bf16.mxu0 %v2958
        %3586 = vmatpush1.bf16.msra.mxu0 %v2957
        %3587 = vmatprep.subr.bf16.mxu0 %v2967
        %3588 = vmatpush1.bf16.msra.mxu0 %v2966
        %3589 = vmatprep.subr.bf16.mxu0 %v2976
        %3590 = vmatpush1.bf16.msra.mxu0 %v2975
        %3591 = vmatprep.subr.bf16.mxu0 %v2985
        %3592 = vmatpush1.bf16.msra.mxu0 %v2984
        %3593 = vmatprep.subr.bf16.mxu0 %v2994
        %3594 = vmatpush1.bf16.msra.mxu0 %v2993
        %3595 = vmatprep.subr.bf16.mxu0 %v3003
        %3596 = vmatpush1.bf16.msra.mxu0 %v3002
        %3597 = vmatprep.subr.bf16.mxu0 %v3012
        %3598 = vmatpush1.bf16.msra.mxu0 %v3011
        %3599 = vmatprep.subr.bf16.mxu0 %v3021
        %3600 = vmatpush1.bf16.msra.mxu0 %v3020
        %3601 = vmatprep.subr.bf16.mxu0 %v3030
        %3602 = vmatpush1.bf16.msra.mxu0 %v3029
        %3603 = vmatprep.subr.bf16.mxu0 %v3039
        %3604 = vmatpush1.bf16.msra.mxu0 %v3038
        %3605 = vmatprep.subr.bf16.mxu0 %v3048
        %3606 = vmatpush1.bf16.msra.mxu0 %v3047
        %3607 = vmatprep.subr.bf16.mxu0 %v3057
        %3608 = vmatpush1.bf16.msra.mxu0 %v3056
        %3609 = vmatprep.subr.bf16.mxu0 %v3066
        %3610 = vmatpush1.bf16.msra.mxu0 %v3065
        %3611 = vmatprep.subr.bf16.mxu0 %v3075
        %3612 = vmatpush1.bf16.msra.mxu0 %v3074
        %3613 = vmatprep.mubr.bf16.mxu0 %v1718
        %3614 = vmatmul.mubr.bf16.gmra.mrb[0].mxu0 %v1717
        %v3615 = vpop.f32.mrb[0].mxu0
        %v3616 = vadd.f32 %v3503, %v3615
        %v3617 = vpop.f32.mrb[0].mxu0
        %v3618 = vadd.f32 %v3505, %v3617
        %v3619 = vpop.f32.mrb[0].mxu0
        %v3620 = vadd.f32 %v3507, %v3619
        %v3621 = vpop.f32.mrb[0].mxu0
        %v3622 = vadd.f32 %v3509, %v3621
        %3623 = vmatprep.mubr.bf16.mxu0 %v1723
        %3624 = vmatmul.mubr.bf16.gmra.mrb[0].mxu0 %v1722
        %v3625 = vpop.f32.mrb[0].mxu0
        %v3626 = vadd.f32 %v3513, %v3625
        %v3627 = vpop.f32.mrb[0].mxu0
        %v3628 = vadd.f32 %v3515, %v3627
        %v3629 = vpop.f32.mrb[0].mxu0
        %v3630 = vadd.f32 %v3517, %v3629
        %v3631 = vpop.f32.mrb[0].mxu0
        %v3632 = vadd.f32 %v3519, %v3631
        %3633 = vmatprep.mubr.bf16.mxu0 %v1728
        %3634 = vmatmul.mubr.bf16.gmra.mrb[0].mxu0 %v1727
        %v3635 = vpop.f32.mrb[0].mxu0
        %v3636 = vadd.f32 %v3523, %v3635
        %v3637 = vpop.f32.mrb[0].mxu0
        %v3638 = vadd.f32 %v3525, %v3637
        %v3639 = vpop.f32.mrb[0].mxu0
        %v3640 = vadd.f32 %v3527, %v3639
        %v3641 = vpop.f32.mrb[0].mxu0
        %v3642 = vadd.f32 %v3529, %v3641
        %3643 = vmatprep.mubr.bf16.mxu0 %v1733
        %3644 = vmatmul.mubr.bf16.gmra.mrb[0].mxu0 %v1732
        %v3645 = vpop.f32.mrb[0].mxu0
        %v3646 = vadd.f32 %v3533, %v3645
        %v3647 = vpop.f32.mrb[0].mxu0
        %v3648 = vadd.f32 %v3535, %v3647
        %v3649 = vpop.f32.mrb[0].mxu0
        %v3650 = vadd.f32 %v3537, %v3649
        %v3651 = vpop.f32.mrb[0].mxu0
        %v3652 = vadd.f32 %v3539, %v3651
        %3653 = vmatprep.mubr.bf16.mxu0 %v1738
        %3654 = vmatmul.mubr.bf16.gmra.mrb[0].mxu0 %v1737
        %v3655 = vpop.f32.mrb[0].mxu0
        %v3656 = vadd.f32 %v3543, %v3655
        %v3657 = vpop.f32.mrb[0].mxu0
        %v3658 = vadd.f32 %v3545, %v3657
        %v3659 = vpop.f32.mrb[0].mxu0
        %v3660 = vadd.f32 %v3547, %v3659
        %v3661 = vpop.f32.mrb[0].mxu0
        %v3662 = vadd.f32 %v3549, %v3661
        %3663 = vmatprep.mubr.bf16.mxu0 %v1743
        %3664 = vmatmul.mubr.bf16.gmra.mrb[0].mxu0 %v1742
        %v3665 = vpop.f32.mrb[0].mxu0
        %v3666 = vadd.f32 %v3553, %v3665
        %v3667 = vpop.f32.mrb[0].mxu0
        %v3668 = vadd.f32 %v3555, %v3667
        %v3669 = vpop.f32.mrb[0].mxu0
        %v3670 = vadd.f32 %v3557, %v3669
        %v3671 = vpop.f32.mrb[0].mxu0
        %v3672 = vadd.f32 %v3559, %v3671
        %3673 = vmatprep.mubr.bf16.mxu0 %v1748
        %3674 = vmatmul.mubr.bf16.gmra.mrb[0].mxu0 %v1747
        %v3675 = vpop.f32.mrb[0].mxu0
        %v3676 = vadd.f32 %v3563, %v3675
        %v3677 = vpop.f32.mrb[0].mxu0
        %v3678 = vadd.f32 %v3565, %v3677
        %v3679 = vpop.f32.mrb[0].mxu0
        %v3680 = vadd.f32 %v3567, %v3679
        %v3681 = vpop.f32.mrb[0].mxu0
        %v3682 = vadd.f32 %v3569, %v3681
        %3683 = vmatprep.mubr.bf16.mxu0 %v1753
        %3684 = vmatmul.mubr.bf16.gmra.mrb[0].mxu0 %v1752
        %v3685 = vpop.f32.mrb[0].mxu0
        %v3686 = vadd.f32 %v3573, %v3685
        %v3687 = vpop.f32.mrb[0].mxu0
        %v3688 = vadd.f32 %v3575, %v3687
        %v3689 = vpop.f32.mrb[0].mxu0
        %v3690 = vadd.f32 %v3577, %v3689
        %v3691 = vpop.f32.mrb[0].mxu0
        %v3692 = vadd.f32 %v3579, %v3691
        %3693 = vdwg.mxu0
        %3694 = vmatprep.subr.bf16.mxu0 %v3084
        %3695 = vmatpush1.bf16.msra.mxu0 %v3083
        %3696 = vmatprep.subr.bf16.mxu0 %v3093
        %3697 = vmatpush1.bf16.msra.mxu0 %v3092
        %3698 = vmatprep.subr.bf16.mxu0 %v3102
        %3699 = vmatpush1.bf16.msra.mxu0 %v3101
        %3700 = vmatprep.subr.bf16.mxu0 %v3111
        %3701 = vmatpush1.bf16.msra.mxu0 %v3110
        %3702 = vmatprep.subr.bf16.mxu0 0
        %3703 = vmatpush1.bf16.msra.mxu0 0
        %3704 = vmatprep.subr.bf16.mxu0 0
        %3705 = vmatpush1.bf16.msra.mxu0 0
        %3706 = vmatprep.subr.bf16.mxu0 0
        %3707 = vmatpush1.bf16.msra.mxu0 0
        %3708 = vmatprep.subr.bf16.mxu0 0
        %3709 = vmatpush1.bf16.msra.mxu0 0
        %3710 = vmatprep.subr.bf16.mxu0 0
        %3711 = vmatpush1.bf16.msra.mxu0 0
        %3712 = vmatprep.subr.bf16.mxu0 0
        %3713 = vmatpush1.bf16.msra.mxu0 0
        %3714 = vmatprep.subr.bf16.mxu0 0
        %3715 = vmatpush1.bf16.msra.mxu0 0
        %3716 = vmatprep.subr.bf16.mxu0 0
        %3717 = vmatpush1.bf16.msra.mxu0 0
        %3718 = vmatprep.subr.bf16.mxu0 0
        %3719 = vmatpush1.bf16.msra.mxu0 0
        %3720 = vmatprep.subr.bf16.mxu0 0
        %3721 = vmatpush1.bf16.msra.mxu0 0
        %3722 = vmatprep.subr.bf16.mxu0 0
        %3723 = vmatpush1.bf16.msra.mxu0 0
        %3724 = vmatprep.subr.bf16.mxu0 0
        %3725 = vmatpush1.bf16.msra.mxu0 0
        %3726 = vmatprep.mubr.bf16.mxu0 0
        %3727 = vmatmul.mubr.bf16.gmra.mrb[0].mxu0 %v3445
        %v3728 = vpop.f32.mrb[0].mxu0
        %v3729 = vadd.f32 %v3616, %v3728
        %v3730 = vpop.f32.mrb[0].mxu0
        %v3731 = vadd.f32 %v3618, %v3730
        %v3732 = vpop.f32.mrb[0].mxu0
        %v3733 = vadd.f32 %v3620, %v3732
        %v3734 = vpop.f32.mrb[0].mxu0
        %v3735 = vadd.f32 %v3622, %v3734
        %3736 = vmatprep.mubr.bf16.mxu0 0
        %3737 = vmatmul.mubr.bf16.gmra.mrb[0].mxu0 %v3448
        %v3738 = vpop.f32.mrb[0].mxu0
        %v3739 = vadd.f32 %v3626, %v3738
        %v3740 = vpop.f32.mrb[0].mxu0
        %v3741 = vadd.f32 %v3628, %v3740
        %v3742 = vpop.f32.mrb[0].mxu0
        %v3743 = vadd.f32 %v3630, %v3742
        %v3744 = vpop.f32.mrb[0].mxu0
        %v3745 = vadd.f32 %v3632, %v3744
        %3746 = vmatprep.mubr.bf16.mxu0 0
        %3747 = vmatmul.mubr.bf16.gmra.mrb[0].mxu0 %v3451
        %v3748 = vpop.f32.mrb[0].mxu0
        %v3749 = vadd.f32 %v3636, %v3748
        %v3750 = vpop.f32.mrb[0].mxu0
        %v3751 = vadd.f32 %v3638, %v3750
        %v3752 = vpop.f32.mrb[0].mxu0
        %v3753 = vadd.f32 %v3640, %v3752
        %v3754 = vpop.f32.mrb[0].mxu0
        %v3755 = vadd.f32 %v3642, %v3754
        %3756 = vmatprep.mubr.bf16.mxu0 0
        %3757 = vmatmul.mubr.bf16.gmra.mrb[0].mxu0 %v3454
        %v3758 = vpop.f32.mrb[0].mxu0
        %v3759 = vadd.f32 %v3646, %v3758
        %v3760 = vpop.f32.mrb[0].mxu0
        %v3761 = vadd.f32 %v3648, %v3760
        %v3762 = vpop.f32.mrb[0].mxu0
        %v3763 = vadd.f32 %v3650, %v3762
        %v3764 = vpop.f32.mrb[0].mxu0
        %v3765 = vadd.f32 %v3652, %v3764
        %3766 = vmatprep.mubr.bf16.mxu0 0
        %3767 = vmatmul.mubr.bf16.gmra.mrb[0].mxu0 %v3457
        %v3768 = vpop.f32.mrb[0].mxu0
        %v3769 = vadd.f32 %v3656, %v3768
        %v3770 = vpop.f32.mrb[0].mxu0
        %v3771 = vadd.f32 %v3658, %v3770
        %v3772 = vpop.f32.mrb[0].mxu0
        %v3773 = vadd.f32 %v3660, %v3772
        %v3774 = vpop.f32.mrb[0].mxu0
        %v3775 = vadd.f32 %v3662, %v3774
        %3776 = vmatprep.mubr.bf16.mxu0 0
        %3777 = vmatmul.mubr.bf16.gmra.mrb[0].mxu0 %v3460
        %v3778 = vpop.f32.mrb[0].mxu0
        %v3779 = vadd.f32 %v3666, %v3778
        %v3780 = vpop.f32.mrb[0].mxu0
        %v3781 = vadd.f32 %v3668, %v3780
        %v3782 = vpop.f32.mrb[0].mxu0
        %v3783 = vadd.f32 %v3670, %v3782
        %v3784 = vpop.f32.mrb[0].mxu0
        %v3785 = vadd.f32 %v3672, %v3784
        %3786 = vmatprep.mubr.bf16.mxu0 0
        %3787 = vmatmul.mubr.bf16.gmra.mrb[0].mxu0 %v3463
        %v3788 = vpop.f32.mrb[0].mxu0
        %v3789 = vadd.f32 %v3676, %v3788
        %v3790 = vpop.f32.mrb[0].mxu0
        %v3791 = vadd.f32 %v3678, %v3790
        %v3792 = vpop.f32.mrb[0].mxu0
        %v3793 = vadd.f32 %v3680, %v3792
        %v3794 = vpop.f32.mrb[0].mxu0
        %v3795 = vadd.f32 %v3682, %v3794
        %3796 = vmatprep.mubr.bf16.mxu0 0
        %3797 = vmatmul.mubr.bf16.gmra.mrb[0].mxu0 %v3466
        %v3798 = vpop.f32.mrb[0].mxu0
        %v3799 = vadd.f32 %v3686, %v3798
        %v3800 = vpop.f32.mrb[0].mxu0
        %v3801 = vadd.f32 %v3688, %v3800
        %v3802 = vpop.f32.mrb[0].mxu0
        %v3803 = vadd.f32 %v3690, %v3802
        %v3804 = vpop.f32.mrb[0].mxu0
        %v3805 = vadd.f32 %v3692, %v3804
        %3806 = vdwg.mxu0
        %3807 = vmatprep.subr.bf16.mxu0 %v2798
        %3808 = vmatpush1.bf16.msra.mxu0 %v2797
        %3809 = vmatprep.subr.bf16.mxu0 %v2807
        %3810 = vmatpush1.bf16.msra.mxu0 %v2806
        %3811 = vmatprep.subr.bf16.mxu0 %v2816
        %3812 = vmatpush1.bf16.msra.mxu0 %v2815
        %3813 = vmatprep.subr.bf16.mxu0 %v2825
        %3814 = vmatpush1.bf16.msra.mxu0 %v2824
        %3815 = vmatprep.subr.bf16.mxu0 %v2834
        %3816 = vmatpush1.bf16.msra.mxu0 %v2833
        %3817 = vmatprep.subr.bf16.mxu0 %v2843
        %3818 = vmatpush1.bf16.msra.mxu0 %v2842
        %3819 = vmatprep.subr.bf16.mxu0 %v2852
        %3820 = vmatpush1.bf16.msra.mxu0 %v2851
        %3821 = vmatprep.subr.bf16.mxu0 %v2861
        %3822 = vmatpush1.bf16.msra.mxu0 %v2860
        %3823 = vmatprep.subr.bf16.mxu0 %v2870
        %3824 = vmatpush1.bf16.msra.mxu0 %v2869
        %3825 = vmatprep.subr.bf16.mxu0 %v2879
        %3826 = vmatpush1.bf16.msra.mxu0 %v2878
        %3827 = vmatprep.subr.bf16.mxu0 %v2888
        %3828 = vmatpush1.bf16.msra.mxu0 %v2887
        %3829 = vmatprep.subr.bf16.mxu0 %v2897
        %3830 = vmatpush1.bf16.msra.mxu0 %v2896
        %3831 = vmatprep.subr.bf16.mxu0 %v2906
        %3832 = vmatpush1.bf16.msra.mxu0 %v2905
        %3833 = vmatprep.subr.bf16.mxu0 %v2915
        %3834 = vmatpush1.bf16.msra.mxu0 %v2914
        %3835 = vmatprep.subr.bf16.mxu0 %v2924
        %3836 = vmatpush1.bf16.msra.mxu0 %v2923
        %3837 = vmatprep.subr.bf16.mxu0 %v2933
        %3838 = vmatpush1.bf16.msra.mxu0 %v2932
        %3839 = vmatprep.mubr.bf16.mxu0 %v1716
        %3840 = vmatmul.mubr.bf16.gmra.mrb[0].mxu0 %v1715
        %v3841 = vpop.f32.mrb[0].mxu0
        %v3842 = vadd.f32 %v1510, %v3841
        %v3843 = vpop.f32.mrb[0].mxu0
        %v3844 = vadd.f32 %v1510, %v3843
        %v3845 = vpop.f32.mrb[0].mxu0
        %v3846 = vadd.f32 %v1515, %v3845
        %v3847 = vpop.f32.mrb[0].mxu0
        %v3848 = vadd.f32 %v1515, %v3847
        %3849 = vmatprep.mubr.bf16.mxu0 %v1721
        %3850 = vmatmul.mubr.bf16.gmra.mrb[0].mxu0 %v1720
        %v3851 = vpop.f32.mrb[0].mxu0
        %v3852 = vadd.f32 %v1520, %v3851
        %v3853 = vpop.f32.mrb[0].mxu0
        %v3854 = vadd.f32 %v1520, %v3853
        %v3855 = vpop.f32.mrb[0].mxu0
        %v3856 = vadd.f32 %v1525, %v3855
        %v3857 = vpop.f32.mrb[0].mxu0
        %v3858 = vadd.f32 %v1525, %v3857
        %3859 = vmatprep.mubr.bf16.mxu0 %v1726
        %3860 = vmatmul.mubr.bf16.gmra.mrb[0].mxu0 %v1725
        %v3861 = vpop.f32.mrb[0].mxu0
        %v3862 = vadd.f32 %v1530, %v3861
        %v3863 = vpop.f32.mrb[0].mxu0
        %v3864 = vadd.f32 %v1530, %v3863
        %v3865 = vpop.f32.mrb[0].mxu0
        %v3866 = vadd.f32 %v1535, %v3865
        %v3867 = vpop.f32.mrb[0].mxu0
        %v3868 = vadd.f32 %v1535, %v3867
        %3869 = vmatprep.mubr.bf16.mxu0 %v1731
        %3870 = vmatmul.mubr.bf16.gmra.mrb[0].mxu0 %v1730
        %v3871 = vpop.f32.mrb[0].mxu0
        %v3872 = vadd.f32 %v1540, %v3871
        %v3873 = vpop.f32.mrb[0].mxu0
        %v3874 = vadd.f32 %v1540, %v3873
        %v3875 = vpop.f32.mrb[0].mxu0
        %v3876 = vadd.f32 %v1545, %v3875
        %v3877 = vpop.f32.mrb[0].mxu0
        %v3878 = vadd.f32 %v1545, %v3877
        %3879 = vmatprep.mubr.bf16.mxu0 %v1736
        %3880 = vmatmul.mubr.bf16.gmra.mrb[0].mxu0 %v1735
        %v3881 = vpop.f32.mrb[0].mxu0
        %v3882 = vadd.f32 %v1550, %v3881
        %v3883 = vpop.f32.mrb[0].mxu0
        %v3884 = vadd.f32 %v1550, %v3883
        %v3885 = vpop.f32.mrb[0].mxu0
        %v3886 = vadd.f32 %v1555, %v3885
        %v3887 = vpop.f32.mrb[0].mxu0
        %v3888 = vadd.f32 %v1555, %v3887
        %3889 = vmatprep.mubr.bf16.mxu0 %v1741
        %3890 = vmatmul.mubr.bf16.gmra.mrb[0].mxu0 %v1740
        %v3891 = vpop.f32.mrb[0].mxu0
        %v3892 = vadd.f32 %v1560, %v3891
        %v3893 = vpop.f32.mrb[0].mxu0
        %v3894 = vadd.f32 %v1560, %v3893
        %v3895 = vpop.f32.mrb[0].mxu0
        %v3896 = vadd.f32 %v1565, %v3895
        %v3897 = vpop.f32.mrb[0].mxu0
        %v3898 = vadd.f32 %v1565, %v3897
        %3899 = vmatprep.mubr.bf16.mxu0 %v1746
        %3900 = vmatmul.mubr.bf16.gmra.mrb[0].mxu0 %v1745
        %v3901 = vpop.f32.mrb[0].mxu0
        %v3902 = vadd.f32 %v1570, %v3901
        %v3903 = vpop.f32.mrb[0].mxu0
        %v3904 = vadd.f32 %v1570, %v3903
        %v3905 = vpop.f32.mrb[0].mxu0
        %v3906 = vadd.f32 %v1575, %v3905
        %v3907 = vpop.f32.mrb[0].mxu0
        %v3908 = vadd.f32 %v1575, %v3907
        %3909 = vmatprep.mubr.bf16.mxu0 %v1751
        %3910 = vmatmul.mubr.bf16.gmra.mrb[0].mxu0 %v1750
        %v3911 = vpop.f32.mrb[0].mxu0
        %v3912 = vadd.f32 %v1580, %v3911
        %v3913 = vpop.f32.mrb[0].mxu0
        %v3914 = vadd.f32 %v1580, %v3913
        %v3915 = vpop.f32.mrb[0].mxu0
        %v3916 = vadd.f32 %v1585, %v3915
        %v3917 = vpop.f32.mrb[0].mxu0
        %v3918 = vadd.f32 %v1585, %v3917
        %3919 = vdwg.mxu0
        %3920 = vmatprep.subr.bf16.mxu0 %v2942
        %3921 = vmatpush1.bf16.msra.mxu0 %v2941
        %3922 = vmatprep.subr.bf16.mxu0 %v2951
        %3923 = vmatpush1.bf16.msra.mxu0 %v2950
        %3924 = vmatprep.subr.bf16.mxu0 %v2960
        %3925 = vmatpush1.bf16.msra.mxu0 %v2959
        %3926 = vmatprep.subr.bf16.mxu0 %v2969
        %3927 = vmatpush1.bf16.msra.mxu0 %v2968
        %3928 = vmatprep.subr.bf16.mxu0 %v2978
        %3929 = vmatpush1.bf16.msra.mxu0 %v2977
        %3930 = vmatprep.subr.bf16.mxu0 %v2987
        %3931 = vmatpush1.bf16.msra.mxu0 %v2986
        %3932 = vmatprep.subr.bf16.mxu0 %v2996
        %3933 = vmatpush1.bf16.msra.mxu0 %v2995
        %3934 = vmatprep.subr.bf16.mxu0 %v3005
        %3935 = vmatpush1.bf16.msra.mxu0 %v3004
        %3936 = vmatprep.subr.bf16.mxu0 %v3014
        %3937 = vmatpush1.bf16.msra.mxu0 %v3013
        %3938 = vmatprep.subr.bf16.mxu0 %v3023
        %3939 = vmatpush1.bf16.msra.mxu0 %v3022
        %3940 = vmatprep.subr.bf16.mxu0 %v3032
        %3941 = vmatpush1.bf16.msra.mxu0 %v3031
        %3942 = vmatprep.subr.bf16.mxu0 %v3041
        %3943 = vmatpush1.bf16.msra.mxu0 %v3040
        %3944 = vmatprep.subr.bf16.mxu0 %v3050
        %3945 = vmatpush1.bf16.msra.mxu0 %v3049
        %3946 = vmatprep.subr.bf16.mxu0 %v3059
        %3947 = vmatpush1.bf16.msra.mxu0 %v3058
        %3948 = vmatprep.subr.bf16.mxu0 %v3068
        %3949 = vmatpush1.bf16.msra.mxu0 %v3067
        %3950 = vmatprep.subr.bf16.mxu0 %v3077
        %3951 = vmatpush1.bf16.msra.mxu0 %v3076
        %3952 = vmatprep.mubr.bf16.mxu0 %v1718
        %3953 = vmatmul.mubr.bf16.gmra.mrb[0].mxu0 %v1717
        %v3954 = vpop.f32.mrb[0].mxu0
        %v3955 = vadd.f32 %v3842, %v3954
        %v3956 = vpop.f32.mrb[0].mxu0
        %v3957 = vadd.f32 %v3844, %v3956
        %v3958 = vpop.f32.mrb[0].mxu0
        %v3959 = vadd.f32 %v3846, %v3958
        %v3960 = vpop.f32.mrb[0].mxu0
        %v3961 = vadd.f32 %v3848, %v3960
        %3962 = vmatprep.mubr.bf16.mxu0 %v1723
        %3963 = vmatmul.mubr.bf16.gmra.mrb[0].mxu0 %v1722
        %v3964 = vpop.f32.mrb[0].mxu0
        %v3965 = vadd.f32 %v3852, %v3964
        %v3966 = vpop.f32.mrb[0].mxu0
        %v3967 = vadd.f32 %v3854, %v3966
        %v3968 = vpop.f32.mrb[0].mxu0
        %v3969 = vadd.f32 %v3856, %v3968
        %v3970 = vpop.f32.mrb[0].mxu0
        %v3971 = vadd.f32 %v3858, %v3970
        %3972 = vmatprep.mubr.bf16.mxu0 %v1728
        %3973 = vmatmul.mubr.bf16.gmra.mrb[0].mxu0 %v1727
        %v3974 = vpop.f32.mrb[0].mxu0
        %v3975 = vadd.f32 %v3862, %v3974
        %v3976 = vpop.f32.mrb[0].mxu0
        %v3977 = vadd.f32 %v3864, %v3976
        %v3978 = vpop.f32.mrb[0].mxu0
        %v3979 = vadd.f32 %v3866, %v3978
        %v3980 = vpop.f32.mrb[0].mxu0
        %v3981 = vadd.f32 %v3868, %v3980
        %3982 = vmatprep.mubr.bf16.mxu0 %v1733
        %3983 = vmatmul.mubr.bf16.gmra.mrb[0].mxu0 %v1732
        %v3984 = vpop.f32.mrb[0].mxu0
        %v3985 = vadd.f32 %v3872, %v3984
        %v3986 = vpop.f32.mrb[0].mxu0
        %v3987 = vadd.f32 %v3874, %v3986
        %v3988 = vpop.f32.mrb[0].mxu0
        %v3989 = vadd.f32 %v3876, %v3988
        %v3990 = vpop.f32.mrb[0].mxu0
        %v3991 = vadd.f32 %v3878, %v3990
        %3992 = vmatprep.mubr.bf16.mxu0 %v1738
        %3993 = vmatmul.mubr.bf16.gmra.mrb[0].mxu0 %v1737
        %v3994 = vpop.f32.mrb[0].mxu0
        %v3995 = vadd.f32 %v3882, %v3994
        %v3996 = vpop.f32.mrb[0].mxu0
        %v3997 = vadd.f32 %v3884, %v3996
        %v3998 = vpop.f32.mrb[0].mxu0
        %v3999 = vadd.f32 %v3886, %v3998
        %v4000 = vpop.f32.mrb[0].mxu0
        %v4001 = vadd.f32 %v3888, %v4000
        %4002 = vmatprep.mubr.bf16.mxu0 %v1743
        %4003 = vmatmul.mubr.bf16.gmra.mrb[0].mxu0 %v1742
        %v4004 = vpop.f32.mrb[0].mxu0
        %v4005 = vadd.f32 %v3892, %v4004
        %v4006 = vpop.f32.mrb[0].mxu0
        %v4007 = vadd.f32 %v3894, %v4006
        %v4008 = vpop.f32.mrb[0].mxu0
        %v4009 = vadd.f32 %v3896, %v4008
        %v4010 = vpop.f32.mrb[0].mxu0
        %v4011 = vadd.f32 %v3898, %v4010
        %4012 = vmatprep.mubr.bf16.mxu0 %v1748
        %4013 = vmatmul.mubr.bf16.gmra.mrb[0].mxu0 %v1747
        %v4014 = vpop.f32.mrb[0].mxu0
        %v4015 = vadd.f32 %v3902, %v4014
        %v4016 = vpop.f32.mrb[0].mxu0
        %v4017 = vadd.f32 %v3904, %v4016
        %v4018 = vpop.f32.mrb[0].mxu0
        %v4019 = vadd.f32 %v3906, %v4018
        %v4020 = vpop.f32.mrb[0].mxu0
        %v4021 = vadd.f32 %v3908, %v4020
        %4022 = vmatprep.mubr.bf16.mxu0 %v1753
        %4023 = vmatmul.mubr.bf16.gmra.mrb[0].mxu0 %v1752
        %v4024 = vpop.f32.mrb[0].mxu0
        %v4025 = vadd.f32 %v3912, %v4024
        %v4026 = vpop.f32.mrb[0].mxu0
        %v4027 = vadd.f32 %v3914, %v4026
        %v4028 = vpop.f32.mrb[0].mxu0
        %v4029 = vadd.f32 %v3916, %v4028
        %v4030 = vpop.f32.mrb[0].mxu0
        %v4031 = vadd.f32 %v3918, %v4030
        %4032 = vdwg.mxu0
        %4033 = vmatprep.subr.bf16.mxu0 %v3086
        %4034 = vmatpush1.bf16.msra.mxu0 %v3085
        %4035 = vmatprep.subr.bf16.mxu0 %v3095
        %4036 = vmatpush1.bf16.msra.mxu0 %v3094
        %4037 = vmatprep.subr.bf16.mxu0 %v3104
        %4038 = vmatpush1.bf16.msra.mxu0 %v3103
        %4039 = vmatprep.subr.bf16.mxu0 %v3113
        %4040 = vmatpush1.bf16.msra.mxu0 %v3112
        %4041 = vmatprep.subr.bf16.mxu0 0
        %4042 = vmatpush1.bf16.msra.mxu0 0
        %4043 = vmatprep.subr.bf16.mxu0 0
        %4044 = vmatpush1.bf16.msra.mxu0 0
        %4045 = vmatprep.subr.bf16.mxu0 0
        %4046 = vmatpush1.bf16.msra.mxu0 0
        %4047 = vmatprep.subr.bf16.mxu0 0
        %4048 = vmatpush1.bf16.msra.mxu0 0
        %4049 = vmatprep.subr.bf16.mxu0 0
        %4050 = vmatpush1.bf16.msra.mxu0 0
        %4051 = vmatprep.subr.bf16.mxu0 0
        %4052 = vmatpush1.bf16.msra.mxu0 0
        %4053 = vmatprep.subr.bf16.mxu0 0
        %4054 = vmatpush1.bf16.msra.mxu0 0
        %4055 = vmatprep.subr.bf16.mxu0 0
        %4056 = vmatpush1.bf16.msra.mxu0 0
        %4057 = vmatprep.subr.bf16.mxu0 0
        %4058 = vmatpush1.bf16.msra.mxu0 0
        %4059 = vmatprep.subr.bf16.mxu0 0
        %4060 = vmatpush1.bf16.msra.mxu0 0
        %4061 = vmatprep.subr.bf16.mxu0 0
        %4062 = vmatpush1.bf16.msra.mxu0 0
        %4063 = vmatprep.subr.bf16.mxu0 0
        %4064 = vmatpush1.bf16.msra.mxu0 0
        %4065 = vmatprep.mubr.bf16.mxu0 0
        %4066 = vmatmul.mubr.bf16.gmra.mrb[0].mxu0 %v3445
        %v4067 = vpop.f32.mrb[0].mxu0
        %v4068 = vadd.f32 %v3955, %v4067
        %v4069 = vpop.f32.mrb[0].mxu0
        %v4070 = vadd.f32 %v3957, %v4069
        %v4071 = vpop.f32.mrb[0].mxu0
        %v4072 = vadd.f32 %v3959, %v4071
        %v4073 = vpop.f32.mrb[0].mxu0
        %v4074 = vadd.f32 %v3961, %v4073
        %4075 = vmatprep.mubr.bf16.mxu0 0
        %4076 = vmatmul.mubr.bf16.gmra.mrb[0].mxu0 %v3448
        %v4077 = vpop.f32.mrb[0].mxu0
        %v4078 = vadd.f32 %v3965, %v4077
        %v4079 = vpop.f32.mrb[0].mxu0
        %v4080 = vadd.f32 %v3967, %v4079
        %v4081 = vpop.f32.mrb[0].mxu0
        %v4082 = vadd.f32 %v3969, %v4081
        %v4083 = vpop.f32.mrb[0].mxu0
        %v4084 = vadd.f32 %v3971, %v4083
        %4085 = vmatprep.mubr.bf16.mxu0 0
        %4086 = vmatmul.mubr.bf16.gmra.mrb[0].mxu0 %v3451
        %v4087 = vpop.f32.mrb[0].mxu0
        %v4088 = vadd.f32 %v3975, %v4087
        %v4089 = vpop.f32.mrb[0].mxu0
        %v4090 = vadd.f32 %v3977, %v4089
        %v4091 = vpop.f32.mrb[0].mxu0
        %v4092 = vadd.f32 %v3979, %v4091
        %v4093 = vpop.f32.mrb[0].mxu0
        %v4094 = vadd.f32 %v3981, %v4093
        %4095 = vmatprep.mubr.bf16.mxu0 0
        %4096 = vmatmul.mubr.bf16.gmra.mrb[0].mxu0 %v3454
        %v4097 = vpop.f32.mrb[0].mxu0
        %v4098 = vadd.f32 %v3985, %v4097
        %v4099 = vpop.f32.mrb[0].mxu0
        %v4100 = vadd.f32 %v3987, %v4099
        %v4101 = vpop.f32.mrb[0].mxu0
        %v4102 = vadd.f32 %v3989, %v4101
        %v4103 = vpop.f32.mrb[0].mxu0
        %v4104 = vadd.f32 %v3991, %v4103
        %4105 = vmatprep.mubr.bf16.mxu0 0
        %4106 = vmatmul.mubr.bf16.gmra.mrb[0].mxu0 %v3457
        %v4107 = vpop.f32.mrb[0].mxu0
        %v4108 = vadd.f32 %v3995, %v4107
        %v4109 = vpop.f32.mrb[0].mxu0
        %v4110 = vadd.f32 %v3997, %v4109
        %v4111 = vpop.f32.mrb[0].mxu0
        %v4112 = vadd.f32 %v3999, %v4111
        %v4113 = vpop.f32.mrb[0].mxu0
        %v4114 = vadd.f32 %v4001, %v4113
        %4115 = vmatprep.mubr.bf16.mxu0 0
        %4116 = vmatmul.mubr.bf16.gmra.mrb[0].mxu0 %v3460
        %v4117 = vpop.f32.mrb[0].mxu0
        %v4118 = vadd.f32 %v4005, %v4117
        %v4119 = vpop.f32.mrb[0].mxu0
        %v4120 = vadd.f32 %v4007, %v4119
        %v4121 = vpop.f32.mrb[0].mxu0
        %v4122 = vadd.f32 %v4009, %v4121
        %v4123 = vpop.f32.mrb[0].mxu0
        %v4124 = vadd.f32 %v4011, %v4123
        %4125 = vmatprep.mubr.bf16.mxu0 0
        %4126 = vmatmul.mubr.bf16.gmra.mrb[0].mxu0 %v3463
        %v4127 = vpop.f32.mrb[0].mxu0
        %v4128 = vadd.f32 %v4015, %v4127
        %v4129 = vpop.f32.mrb[0].mxu0
        %v4130 = vadd.f32 %v4017, %v4129
        %v4131 = vpop.f32.mrb[0].mxu0
        %v4132 = vadd.f32 %v4019, %v4131
        %v4133 = vpop.f32.mrb[0].mxu0
        %v4134 = vadd.f32 %v4021, %v4133
        %4135 = vmatprep.mubr.bf16.mxu0 0
        %4136 = vmatmul.mubr.bf16.gmra.mrb[0].mxu0 %v3466
        %v4137 = vpop.f32.mrb[0].mxu0
        %v4138 = vadd.f32 %v4025, %v4137
        %v4139 = vpop.f32.mrb[0].mxu0
        %v4140 = vadd.f32 %v4027, %v4139
        %v4141 = vpop.f32.mrb[0].mxu0
        %v4142 = vadd.f32 %v4029, %v4141
        %v4143 = vpop.f32.mrb[0].mxu0
        %v4144 = vadd.f32 %v4031, %v4143
        %4145 = vdwg.mxu0
        %4146 = vmatprep.subr.bf16.mxu0 %v2800
        %4147 = vmatpush1.bf16.msra.mxu0 %v2799
        %4148 = vmatprep.subr.bf16.mxu0 %v2809
        %4149 = vmatpush1.bf16.msra.mxu0 %v2808
        %4150 = vmatprep.subr.bf16.mxu0 %v2818
        %4151 = vmatpush1.bf16.msra.mxu0 %v2817
        %4152 = vmatprep.subr.bf16.mxu0 %v2827
        %4153 = vmatpush1.bf16.msra.mxu0 %v2826
        %4154 = vmatprep.subr.bf16.mxu0 %v2836
        %4155 = vmatpush1.bf16.msra.mxu0 %v2835
        %4156 = vmatprep.subr.bf16.mxu0 %v2845
        %4157 = vmatpush1.bf16.msra.mxu0 %v2844
        %4158 = vmatprep.subr.bf16.mxu0 %v2854
        %4159 = vmatpush1.bf16.msra.mxu0 %v2853
        %4160 = vmatprep.subr.bf16.mxu0 %v2863
        %4161 = vmatpush1.bf16.msra.mxu0 %v2862
        %4162 = vmatprep.subr.bf16.mxu0 %v2872
        %4163 = vmatpush1.bf16.msra.mxu0 %v2871
        %4164 = vmatprep.subr.bf16.mxu0 %v2881
        %4165 = vmatpush1.bf16.msra.mxu0 %v2880
        %4166 = vmatprep.subr.bf16.mxu0 %v2890
        %4167 = vmatpush1.bf16.msra.mxu0 %v2889
        %4168 = vmatprep.subr.bf16.mxu0 %v2899
        %4169 = vmatpush1.bf16.msra.mxu0 %v2898
        %4170 = vmatprep.subr.bf16.mxu0 %v2908
        %4171 = vmatpush1.bf16.msra.mxu0 %v2907
        %4172 = vmatprep.subr.bf16.mxu0 %v2917
        %4173 = vmatpush1.bf16.msra.mxu0 %v2916
        %4174 = vmatprep.subr.bf16.mxu0 %v2926
        %4175 = vmatpush1.bf16.msra.mxu0 %v2925
        %4176 = vmatprep.subr.bf16.mxu0 %v2935
        %4177 = vmatpush1.bf16.msra.mxu0 %v2934
        %4178 = vmatprep.mubr.bf16.mxu0 %v1716
        %4179 = vmatmul.mubr.bf16.gmra.mrb[0].mxu0 %v1715
        %v4180 = vpop.f32.mrb[0].mxu0
        %v4181 = vadd.f32 %v1510, %v4180
        %v4182 = vpop.f32.mrb[0].mxu0
        %v4183 = vadd.f32 %v1510, %v4182
        %v4184 = vpop.f32.mrb[0].mxu0
        %v4185 = vadd.f32 %v1515, %v4184
        %v4186 = vpop.f32.mrb[0].mxu0
        %v4187 = vadd.f32 %v1515, %v4186
        %4188 = vmatprep.mubr.bf16.mxu0 %v1721
        %4189 = vmatmul.mubr.bf16.gmra.mrb[0].mxu0 %v1720
        %v4190 = vpop.f32.mrb[0].mxu0
        %v4191 = vadd.f32 %v1520, %v4190
        %v4192 = vpop.f32.mrb[0].mxu0
        %v4193 = vadd.f32 %v1520, %v4192
        %v4194 = vpop.f32.mrb[0].mxu0
        %v4195 = vadd.f32 %v1525, %v4194
        %v4196 = vpop.f32.mrb[0].mxu0
        %v4197 = vadd.f32 %v1525, %v4196
        %4198 = vmatprep.mubr.bf16.mxu0 %v1726
        %4199 = vmatmul.mubr.bf16.gmra.mrb[0].mxu0 %v1725
        %v4200 = vpop.f32.mrb[0].mxu0
        %v4201 = vadd.f32 %v1530, %v4200
        %v4202 = vpop.f32.mrb[0].mxu0
        %v4203 = vadd.f32 %v1530, %v4202
        %v4204 = vpop.f32.mrb[0].mxu0
        %v4205 = vadd.f32 %v1535, %v4204
        %v4206 = vpop.f32.mrb[0].mxu0
        %v4207 = vadd.f32 %v1535, %v4206
        %4208 = vmatprep.mubr.bf16.mxu0 %v1731
        %4209 = vmatmul.mubr.bf16.gmra.mrb[0].mxu0 %v1730
        %v4210 = vpop.f32.mrb[0].mxu0
        %v4211 = vadd.f32 %v1540, %v4210
        %v4212 = vpop.f32.mrb[0].mxu0
        %v4213 = vadd.f32 %v1540, %v4212
        %v4214 = vpop.f32.mrb[0].mxu0
        %v4215 = vadd.f32 %v1545, %v4214
        %v4216 = vpop.f32.mrb[0].mxu0
        %v4217 = vadd.f32 %v1545, %v4216
        %4218 = vmatprep.mubr.bf16.mxu0 %v1736
        %4219 = vmatmul.mubr.bf16.gmra.mrb[0].mxu0 %v1735
        %v4220 = vpop.f32.mrb[0].mxu0
        %v4221 = vadd.f32 %v1550, %v4220
        %v4222 = vpop.f32.mrb[0].mxu0
        %v4223 = vadd.f32 %v1550, %v4222
        %v4224 = vpop.f32.mrb[0].mxu0
        %v4225 = vadd.f32 %v1555, %v4224
        %v4226 = vpop.f32.mrb[0].mxu0
        %v4227 = vadd.f32 %v1555, %v4226
        %4228 = vmatprep.mubr.bf16.mxu0 %v1741
        %4229 = vmatmul.mubr.bf16.gmra.mrb[0].mxu0 %v1740
        %v4230 = vpop.f32.mrb[0].mxu0
        %v4231 = vadd.f32 %v1560, %v4230
        %v4232 = vpop.f32.mrb[0].mxu0
        %v4233 = vadd.f32 %v1560, %v4232
        %v4234 = vpop.f32.mrb[0].mxu0
        %v4235 = vadd.f32 %v1565, %v4234
        %v4236 = vpop.f32.mrb[0].mxu0
        %v4237 = vadd.f32 %v1565, %v4236
        %4238 = vmatprep.mubr.bf16.mxu0 %v1746
        %4239 = vmatmul.mubr.bf16.gmra.mrb[0].mxu0 %v1745
        %v4240 = vpop.f32.mrb[0].mxu0
        %v4241 = vadd.f32 %v1570, %v4240
        %v4242 = vpop.f32.mrb[0].mxu0
        %v4243 = vadd.f32 %v1570, %v4242
        %v4244 = vpop.f32.mrb[0].mxu0
        %v4245 = vadd.f32 %v1575, %v4244
        %v4246 = vpop.f32.mrb[0].mxu0
        %v4247 = vadd.f32 %v1575, %v4246
        %4248 = vmatprep.mubr.bf16.mxu0 %v1751
        %4249 = vmatmul.mubr.bf16.gmra.mrb[0].mxu0 %v1750
        %v4250 = vpop.f32.mrb[0].mxu0
        %v4251 = vadd.f32 %v1580, %v4250
        %v4252 = vpop.f32.mrb[0].mxu0
        %v4253 = vadd.f32 %v1580, %v4252
        %v4254 = vpop.f32.mrb[0].mxu0
        %v4255 = vadd.f32 %v1585, %v4254
        %v4256 = vpop.f32.mrb[0].mxu0
        %v4257 = vadd.f32 %v1585, %v4256
        %4258 = vdwg.mxu0
        %4259 = vmatprep.subr.bf16.mxu0 %v2944
        %4260 = vmatpush1.bf16.msra.mxu0 %v2943
        %4261 = vmatprep.subr.bf16.mxu0 %v2953
        %4262 = vmatpush1.bf16.msra.mxu0 %v2952
        %4263 = vmatprep.subr.bf16.mxu0 %v2962
        %4264 = vmatpush1.bf16.msra.mxu0 %v2961
        %4265 = vmatprep.subr.bf16.mxu0 %v2971
        %4266 = vmatpush1.bf16.msra.mxu0 %v2970
        %4267 = vmatprep.subr.bf16.mxu0 %v2980
        %4268 = vmatpush1.bf16.msra.mxu0 %v2979
        %4269 = vmatprep.subr.bf16.mxu0 %v2989
        %4270 = vmatpush1.bf16.msra.mxu0 %v2988
        %4271 = vmatprep.subr.bf16.mxu0 %v2998
        %4272 = vmatpush1.bf16.msra.mxu0 %v2997
        %4273 = vmatprep.subr.bf16.mxu0 %v3007
        %4274 = vmatpush1.bf16.msra.mxu0 %v3006
        %4275 = vmatprep.subr.bf16.mxu0 %v3016
        %4276 = vmatpush1.bf16.msra.mxu0 %v3015
        %4277 = vmatprep.subr.bf16.mxu0 %v3025
        %4278 = vmatpush1.bf16.msra.mxu0 %v3024
        %4279 = vmatprep.subr.bf16.mxu0 %v3034
        %4280 = vmatpush1.bf16.msra.mxu0 %v3033
        %4281 = vmatprep.subr.bf16.mxu0 %v3043
        %4282 = vmatpush1.bf16.msra.mxu0 %v3042
        %4283 = vmatprep.subr.bf16.mxu0 %v3052
        %4284 = vmatpush1.bf16.msra.mxu0 %v3051
        %4285 = vmatprep.subr.bf16.mxu0 %v3061
        %4286 = vmatpush1.bf16.msra.mxu0 %v3060
        %4287 = vmatprep.subr.bf16.mxu0 %v3070
        %4288 = vmatpush1.bf16.msra.mxu0 %v3069
        %4289 = vmatprep.subr.bf16.mxu0 %v3079
        %4290 = vmatpush1.bf16.msra.mxu0 %v3078
        %4291 = vmatprep.mubr.bf16.mxu0 %v1718
        %4292 = vmatmul.mubr.bf16.gmra.mrb[0].mxu0 %v1717
        %v4293 = vpop.f32.mrb[0].mxu0
        %v4294 = vadd.f32 %v4181, %v4293
        %v4295 = vpop.f32.mrb[0].mxu0
        %v4296 = vadd.f32 %v4183, %v4295
        %v4297 = vpop.f32.mrb[0].mxu0
        %v4298 = vadd.f32 %v4185, %v4297
        %v4299 = vpop.f32.mrb[0].mxu0
        %v4300 = vadd.f32 %v4187, %v4299
        %4301 = vmatprep.mubr.bf16.mxu0 %v1723
        %4302 = vmatmul.mubr.bf16.gmra.mrb[0].mxu0 %v1722
        %v4303 = vpop.f32.mrb[0].mxu0
        %v4304 = vadd.f32 %v4191, %v4303
        %v4305 = vpop.f32.mrb[0].mxu0
        %v4306 = vadd.f32 %v4193, %v4305
        %v4307 = vpop.f32.mrb[0].mxu0
        %v4308 = vadd.f32 %v4195, %v4307
        %v4309 = vpop.f32.mrb[0].mxu0
        %v4310 = vadd.f32 %v4197, %v4309
        %4311 = vmatprep.mubr.bf16.mxu0 %v1728
        %4312 = vmatmul.mubr.bf16.gmra.mrb[0].mxu0 %v1727
        %v4313 = vpop.f32.mrb[0].mxu0
        %v4314 = vadd.f32 %v4201, %v4313
        %v4315 = vpop.f32.mrb[0].mxu0
        %v4316 = vadd.f32 %v4203, %v4315
        %v4317 = vpop.f32.mrb[0].mxu0
        %v4318 = vadd.f32 %v4205, %v4317
        %v4319 = vpop.f32.mrb[0].mxu0
        %v4320 = vadd.f32 %v4207, %v4319
        %4321 = vmatprep.mubr.bf16.mxu0 %v1733
        %4322 = vmatmul.mubr.bf16.gmra.mrb[0].mxu0 %v1732
        %v4323 = vpop.f32.mrb[0].mxu0
        %v4324 = vadd.f32 %v4211, %v4323
        %v4325 = vpop.f32.mrb[0].mxu0
        %v4326 = vadd.f32 %v4213, %v4325
        %v4327 = vpop.f32.mrb[0].mxu0
        %v4328 = vadd.f32 %v4215, %v4327
        %v4329 = vpop.f32.mrb[0].mxu0
        %v4330 = vadd.f32 %v4217, %v4329
        %4331 = vmatprep.mubr.bf16.mxu0 %v1738
        %4332 = vmatmul.mubr.bf16.gmra.mrb[0].mxu0 %v1737
        %v4333 = vpop.f32.mrb[0].mxu0
        %v4334 = vadd.f32 %v4221, %v4333
        %v4335 = vpop.f32.mrb[0].mxu0
        %v4336 = vadd.f32 %v4223, %v4335
        %v4337 = vpop.f32.mrb[0].mxu0
        %v4338 = vadd.f32 %v4225, %v4337
        %v4339 = vpop.f32.mrb[0].mxu0
        %v4340 = vadd.f32 %v4227, %v4339
        %4341 = vmatprep.mubr.bf16.mxu0 %v1743
        %4342 = vmatmul.mubr.bf16.gmra.mrb[0].mxu0 %v1742
        %v4343 = vpop.f32.mrb[0].mxu0
        %v4344 = vadd.f32 %v4231, %v4343
        %v4345 = vpop.f32.mrb[0].mxu0
        %v4346 = vadd.f32 %v4233, %v4345
        %v4347 = vpop.f32.mrb[0].mxu0
        %v4348 = vadd.f32 %v4235, %v4347
        %v4349 = vpop.f32.mrb[0].mxu0
        %v4350 = vadd.f32 %v4237, %v4349
        %4351 = vmatprep.mubr.bf16.mxu0 %v1748
        %4352 = vmatmul.mubr.bf16.gmra.mrb[0].mxu0 %v1747
        %v4353 = vpop.f32.mrb[0].mxu0
        %v4354 = vadd.f32 %v4241, %v4353
        %v4355 = vpop.f32.mrb[0].mxu0
        %v4356 = vadd.f32 %v4243, %v4355
        %v4357 = vpop.f32.mrb[0].mxu0
        %v4358 = vadd.f32 %v4245, %v4357
        %v4359 = vpop.f32.mrb[0].mxu0
        %v4360 = vadd.f32 %v4247, %v4359
        %4361 = vmatprep.mubr.bf16.mxu0 %v1753
        %4362 = vmatmul.mubr.bf16.gmra.mrb[0].mxu0 %v1752
        %v4363 = vpop.f32.mrb[0].mxu0
        %v4364 = vadd.f32 %v4251, %v4363
        %v4365 = vpop.f32.mrb[0].mxu0
        %v4366 = vadd.f32 %v4253, %v4365
        %v4367 = vpop.f32.mrb[0].mxu0
        %v4368 = vadd.f32 %v4255, %v4367
        %v4369 = vpop.f32.mrb[0].mxu0
        %v4370 = vadd.f32 %v4257, %v4369
        %4371 = vdwg.mxu0
        %4372 = vmatprep.subr.bf16.mxu0 %v3088
        %4373 = vmatpush1.bf16.msra.mxu0 %v3087
        %4374 = vmatprep.subr.bf16.mxu0 %v3097
        %4375 = vmatpush1.bf16.msra.mxu0 %v3096
        %4376 = vmatprep.subr.bf16.mxu0 %v3106
        %4377 = vmatpush1.bf16.msra.mxu0 %v3105
        %4378 = vmatprep.subr.bf16.mxu0 %v3115
        %4379 = vmatpush1.bf16.msra.mxu0 %v3114
        %4380 = vmatprep.subr.bf16.mxu0 0
        %4381 = vmatpush1.bf16.msra.mxu0 0
        %4382 = vmatprep.subr.bf16.mxu0 0
        %4383 = vmatpush1.bf16.msra.mxu0 0
        %4384 = vmatprep.subr.bf16.mxu0 0
        %4385 = vmatpush1.bf16.msra.mxu0 0
        %4386 = vmatprep.subr.bf16.mxu0 0
        %4387 = vmatpush1.bf16.msra.mxu0 0
        %4388 = vmatprep.subr.bf16.mxu0 0
        %4389 = vmatpush1.bf16.msra.mxu0 0
        %4390 = vmatprep.subr.bf16.mxu0 0
        %4391 = vmatpush1.bf16.msra.mxu0 0
        %4392 = vmatprep.subr.bf16.mxu0 0
        %4393 = vmatpush1.bf16.msra.mxu0 0
        %4394 = vmatprep.subr.bf16.mxu0 0
        %4395 = vmatpush1.bf16.msra.mxu0 0
        %4396 = vmatprep.subr.bf16.mxu0 0
        %4397 = vmatpush1.bf16.msra.mxu0 0
        %4398 = vmatprep.subr.bf16.mxu0 0
        %4399 = vmatpush1.bf16.msra.mxu0 0
        %4400 = vmatprep.subr.bf16.mxu0 0
        %4401 = vmatpush1.bf16.msra.mxu0 0
        %4402 = vmatprep.subr.bf16.mxu0 0
        %4403 = vmatpush1.bf16.msra.mxu0 0
        %4404 = vmatprep.mubr.bf16.mxu0 0
        %4405 = vmatmul.mubr.bf16.gmra.mrb[0].mxu0 %v3445
        %v4406 = vpop.f32.mrb[0].mxu0
        %v4407 = vadd.f32 %v4294, %v4406
        %v4408 = vpop.f32.mrb[0].mxu0
        %v4409 = vadd.f32 %v4296, %v4408
        %v4410 = vpop.f32.mrb[0].mxu0
        %v4411 = vadd.f32 %v4298, %v4410
        %v4412 = vpop.f32.mrb[0].mxu0
        %v4413 = vadd.f32 %v4300, %v4412
        %4414 = vmatprep.mubr.bf16.mxu0 0
        %4415 = vmatmul.mubr.bf16.gmra.mrb[0].mxu0 %v3448
        %v4416 = vpop.f32.mrb[0].mxu0
        %v4417 = vadd.f32 %v4304, %v4416
        %v4418 = vpop.f32.mrb[0].mxu0
        %v4419 = vadd.f32 %v4306, %v4418
        %v4420 = vpop.f32.mrb[0].mxu0
        %v4421 = vadd.f32 %v4308, %v4420
        %v4422 = vpop.f32.mrb[0].mxu0
        %v4423 = vadd.f32 %v4310, %v4422
        %4424 = vmatprep.mubr.bf16.mxu0 0
        %4425 = vmatmul.mubr.bf16.gmra.mrb[0].mxu0 %v3451
        %v4426 = vpop.f32.mrb[0].mxu0
        %v4427 = vadd.f32 %v4314, %v4426
        %v4428 = vpop.f32.mrb[0].mxu0
        %v4429 = vadd.f32 %v4316, %v4428
        %v4430 = vpop.f32.mrb[0].mxu0
        %v4431 = vadd.f32 %v4318, %v4430
        %v4432 = vpop.f32.mrb[0].mxu0
        %v4433 = vadd.f32 %v4320, %v4432
        %4434 = vmatprep.mubr.bf16.mxu0 0
        %4435 = vmatmul.mubr.bf16.gmra.mrb[0].mxu0 %v3454
        %v4436 = vpop.f32.mrb[0].mxu0
        %v4437 = vadd.f32 %v4324, %v4436
        %v4438 = vpop.f32.mrb[0].mxu0
        %v4439 = vadd.f32 %v4326, %v4438
        %v4440 = vpop.f32.mrb[0].mxu0
        %v4441 = vadd.f32 %v4328, %v4440
        %v4442 = vpop.f32.mrb[0].mxu0
        %v4443 = vadd.f32 %v4330, %v4442
        %4444 = vmatprep.mubr.bf16.mxu0 0
        %4445 = vmatmul.mubr.bf16.gmra.mrb[0].mxu0 %v3457
        %v4446 = vpop.f32.mrb[0].mxu0
        %v4447 = vadd.f32 %v4334, %v4446
        %v4448 = vpop.f32.mrb[0].mxu0
        %v4449 = vadd.f32 %v4336, %v4448
        %v4450 = vpop.f32.mrb[0].mxu0
        %v4451 = vadd.f32 %v4338, %v4450
        %v4452 = vpop.f32.mrb[0].mxu0
        %v4453 = vadd.f32 %v4340, %v4452
        %4454 = vmatprep.mubr.bf16.mxu0 0
        %4455 = vmatmul.mubr.bf16.gmra.mrb[0].mxu0 %v3460
        %v4456 = vpop.f32.mrb[0].mxu0
        %v4457 = vadd.f32 %v4344, %v4456
        %v4458 = vpop.f32.mrb[0].mxu0
        %v4459 = vadd.f32 %v4346, %v4458
        %v4460 = vpop.f32.mrb[0].mxu0
        %v4461 = vadd.f32 %v4348, %v4460
        %v4462 = vpop.f32.mrb[0].mxu0
        %v4463 = vadd.f32 %v4350, %v4462
        %4464 = vmatprep.mubr.bf16.mxu0 0
        %4465 = vmatmul.mubr.bf16.gmra.mrb[0].mxu0 %v3463
        %v4466 = vpop.f32.mrb[0].mxu0
        %v4467 = vadd.f32 %v4354, %v4466
        %v4468 = vpop.f32.mrb[0].mxu0
        %v4469 = vadd.f32 %v4356, %v4468
        %v4470 = vpop.f32.mrb[0].mxu0
        %v4471 = vadd.f32 %v4358, %v4470
        %v4472 = vpop.f32.mrb[0].mxu0
        %v4473 = vadd.f32 %v4360, %v4472
        %4474 = vmatprep.mubr.bf16.mxu0 0
        %4475 = vmatmul.mubr.bf16.gmra.mrb[0].mxu0 %v3466
        %v4476 = vpop.f32.mrb[0].mxu0
        %v4477 = vadd.f32 %v4364, %v4476
        %v4478 = vpop.f32.mrb[0].mxu0
        %v4479 = vadd.f32 %v4366, %v4478
        %v4480 = vpop.f32.mrb[0].mxu0
        %v4481 = vadd.f32 %v4368, %v4480
        %v4482 = vpop.f32.mrb[0].mxu0
        %v4483 = vadd.f32 %v4370, %v4482
        %4484 = vdwg.mxu0
        %4485 = vmatprep.subr.bf16.mxu0 %v2802
        %4486 = vmatpush1.bf16.msra.mxu0 %v2801
        %4487 = vmatprep.subr.bf16.mxu0 %v2811
        %4488 = vmatpush1.bf16.msra.mxu0 %v2810
        %4489 = vmatprep.subr.bf16.mxu0 %v2820
        %4490 = vmatpush1.bf16.msra.mxu0 %v2819
        %4491 = vmatprep.subr.bf16.mxu0 %v2829
        %4492 = vmatpush1.bf16.msra.mxu0 %v2828
        %4493 = vmatprep.subr.bf16.mxu0 %v2838
        %4494 = vmatpush1.bf16.msra.mxu0 %v2837
        %4495 = vmatprep.subr.bf16.mxu0 %v2847
        %4496 = vmatpush1.bf16.msra.mxu0 %v2846
        %4497 = vmatprep.subr.bf16.mxu0 %v2856
        %4498 = vmatpush1.bf16.msra.mxu0 %v2855
        %4499 = vmatprep.subr.bf16.mxu0 %v2865
        %4500 = vmatpush1.bf16.msra.mxu0 %v2864
        %4501 = vmatprep.subr.bf16.mxu0 %v2874
        %4502 = vmatpush1.bf16.msra.mxu0 %v2873
        %4503 = vmatprep.subr.bf16.mxu0 %v2883
        %4504 = vmatpush1.bf16.msra.mxu0 %v2882
        %4505 = vmatprep.subr.bf16.mxu0 %v2892
        %4506 = vmatpush1.bf16.msra.mxu0 %v2891
        %4507 = vmatprep.subr.bf16.mxu0 %v2901
        %4508 = vmatpush1.bf16.msra.mxu0 %v2900
        %4509 = vmatprep.subr.bf16.mxu0 %v2910
        %4510 = vmatpush1.bf16.msra.mxu0 %v2909
        %4511 = vmatprep.subr.bf16.mxu0 %v2919
        %4512 = vmatpush1.bf16.msra.mxu0 %v2918
        %4513 = vmatprep.subr.bf16.mxu0 %v2928
        %4514 = vmatpush1.bf16.msra.mxu0 %v2927
        %4515 = vmatprep.subr.bf16.mxu0 %v2937
        %4516 = vmatpush1.bf16.msra.mxu0 %v2936
        %4517 = vmatprep.mubr.bf16.mxu0 %v1716
        %4518 = vmatmul.mubr.bf16.gmra.mrb[0].mxu0 %v1715
        %v4519 = vpop.f32.mrb[0].mxu0
        %v4520 = vadd.f32 %v1510, %v4519
        %v4521 = vpop.f32.mrb[0].mxu0
        %v4522 = vadd.f32 %v1510, %v4521
        %v4523 = vpop.f32.mrb[0].mxu0
        %v4524 = vadd.f32 %v1515, %v4523
        %v4525 = vpop.f32.mrb[0].mxu0
        %v4526 = vadd.f32 %v1515, %v4525
        %4527 = vmatprep.mubr.bf16.mxu0 %v1721
        %4528 = vmatmul.mubr.bf16.gmra.mrb[0].mxu0 %v1720
        %v4529 = vpop.f32.mrb[0].mxu0
        %v4530 = vadd.f32 %v1520, %v4529
        %v4531 = vpop.f32.mrb[0].mxu0
        %v4532 = vadd.f32 %v1520, %v4531
        %v4533 = vpop.f32.mrb[0].mxu0
        %v4534 = vadd.f32 %v1525, %v4533
        %v4535 = vpop.f32.mrb[0].mxu0
        %v4536 = vadd.f32 %v1525, %v4535
        %4537 = vmatprep.mubr.bf16.mxu0 %v1726
        %4538 = vmatmul.mubr.bf16.gmra.mrb[0].mxu0 %v1725
        %v4539 = vpop.f32.mrb[0].mxu0
        %v4540 = vadd.f32 %v1530, %v4539
        %v4541 = vpop.f32.mrb[0].mxu0
        %v4542 = vadd.f32 %v1530, %v4541
        %v4543 = vpop.f32.mrb[0].mxu0
        %v4544 = vadd.f32 %v1535, %v4543
        %v4545 = vpop.f32.mrb[0].mxu0
        %v4546 = vadd.f32 %v1535, %v4545
        %4547 = vmatprep.mubr.bf16.mxu0 %v1731
        %4548 = vmatmul.mubr.bf16.gmra.mrb[0].mxu0 %v1730
        %v4549 = vpop.f32.mrb[0].mxu0
        %v4550 = vadd.f32 %v1540, %v4549
        %v4551 = vpop.f32.mrb[0].mxu0
        %v4552 = vadd.f32 %v1540, %v4551
        %v4553 = vpop.f32.mrb[0].mxu0
        %v4554 = vadd.f32 %v1545, %v4553
        %v4555 = vpop.f32.mrb[0].mxu0
        %v4556 = vadd.f32 %v1545, %v4555
        %4557 = vmatprep.mubr.bf16.mxu0 %v1736
        %4558 = vmatmul.mubr.bf16.gmra.mrb[0].mxu0 %v1735
        %v4559 = vpop.f32.mrb[0].mxu0
        %v4560 = vadd.f32 %v1550, %v4559
        %v4561 = vpop.f32.mrb[0].mxu0
        %v4562 = vadd.f32 %v1550, %v4561
        %v4563 = vpop.f32.mrb[0].mxu0
        %v4564 = vadd.f32 %v1555, %v4563
        %v4565 = vpop.f32.mrb[0].mxu0
        %v4566 = vadd.f32 %v1555, %v4565
        %4567 = vmatprep.mubr.bf16.mxu0 %v1741
        %4568 = vmatmul.mubr.bf16.gmra.mrb[0].mxu0 %v1740
        %v4569 = vpop.f32.mrb[0].mxu0
        %v4570 = vadd.f32 %v1560, %v4569
        %v4571 = vpop.f32.mrb[0].mxu0
        %v4572 = vadd.f32 %v1560, %v4571
        %v4573 = vpop.f32.mrb[0].mxu0
        %v4574 = vadd.f32 %v1565, %v4573
        %v4575 = vpop.f32.mrb[0].mxu0
        %v4576 = vadd.f32 %v1565, %v4575
        %4577 = vmatprep.mubr.bf16.mxu0 %v1746
        %4578 = vmatmul.mubr.bf16.gmra.mrb[0].mxu0 %v1745
        %v4579 = vpop.f32.mrb[0].mxu0
        %v4580 = vadd.f32 %v1570, %v4579
        %v4581 = vpop.f32.mrb[0].mxu0
        %v4582 = vadd.f32 %v1570, %v4581
        %v4583 = vpop.f32.mrb[0].mxu0
        %v4584 = vadd.f32 %v1575, %v4583
        %v4585 = vpop.f32.mrb[0].mxu0
        %v4586 = vadd.f32 %v1575, %v4585
        %4587 = vmatprep.mubr.bf16.mxu0 %v1751
        %4588 = vmatmul.mubr.bf16.gmra.mrb[0].mxu0 %v1750
        %v4589 = vpop.f32.mrb[0].mxu0
        %v4590 = vadd.f32 %v1580, %v4589
        %v4591 = vpop.f32.mrb[0].mxu0
        %v4592 = vadd.f32 %v1580, %v4591
        %v4593 = vpop.f32.mrb[0].mxu0
        %v4594 = vadd.f32 %v1585, %v4593
        %v4595 = vpop.f32.mrb[0].mxu0
        %v4596 = vadd.f32 %v1585, %v4595
        %4597 = vdwg.mxu0
        %4598 = vmatprep.subr.bf16.mxu0 %v2946
        %4599 = vmatpush1.bf16.msra.mxu0 %v2945
        %4600 = vmatprep.subr.bf16.mxu0 %v2955
        %4601 = vmatpush1.bf16.msra.mxu0 %v2954
        %4602 = vmatprep.subr.bf16.mxu0 %v2964
        %4603 = vmatpush1.bf16.msra.mxu0 %v2963
        %4604 = vmatprep.subr.bf16.mxu0 %v2973
        %4605 = vmatpush1.bf16.msra.mxu0 %v2972
        %4606 = vmatprep.subr.bf16.mxu0 %v2982
        %4607 = vmatpush1.bf16.msra.mxu0 %v2981
        %4608 = vmatprep.subr.bf16.mxu0 %v2991
        %4609 = vmatpush1.bf16.msra.mxu0 %v2990
        %4610 = vmatprep.subr.bf16.mxu0 %v3000
        %4611 = vmatpush1.bf16.msra.mxu0 %v2999
        %4612 = vmatprep.subr.bf16.mxu0 %v3009
        %4613 = vmatpush1.bf16.msra.mxu0 %v3008
        %4614 = vmatprep.subr.bf16.mxu0 %v3018
        %4615 = vmatpush1.bf16.msra.mxu0 %v3017
        %4616 = vmatprep.subr.bf16.mxu0 %v3027
        %4617 = vmatpush1.bf16.msra.mxu0 %v3026
        %4618 = vmatprep.subr.bf16.mxu0 %v3036
        %4619 = vmatpush1.bf16.msra.mxu0 %v3035
        %4620 = vmatprep.subr.bf16.mxu0 %v3045
        %4621 = vmatpush1.bf16.msra.mxu0 %v3044
        %4622 = vmatprep.subr.bf16.mxu0 %v3054
        %4623 = vmatpush1.bf16.msra.mxu0 %v3053
        %4624 = vmatprep.subr.bf16.mxu0 %v3063
        %4625 = vmatpush1.bf16.msra.mxu0 %v3062
        %4626 = vmatprep.subr.bf16.mxu0 %v3072
        %4627 = vmatpush1.bf16.msra.mxu0 %v3071
        %4628 = vmatprep.subr.bf16.mxu0 %v3081
        %4629 = vmatpush1.bf16.msra.mxu0 %v3080
        %4630 = vmatprep.mubr.bf16.mxu0 %v1718
        %4631 = vmatmul.mubr.bf16.gmra.mrb[0].mxu0 %v1717
        %v4632 = vpop.f32.mrb[0].mxu0
        %v4633 = vadd.f32 %v4520, %v4632
        %v4634 = vpop.f32.mrb[0].mxu0
        %v4635 = vadd.f32 %v4522, %v4634
        %v4636 = vpop.f32.mrb[0].mxu0
        %v4637 = vadd.f32 %v4524, %v4636
        %v4638 = vpop.f32.mrb[0].mxu0
        %v4639 = vadd.f32 %v4526, %v4638
        %4640 = vmatprep.mubr.bf16.mxu0 %v1723
        %4641 = vmatmul.mubr.bf16.gmra.mrb[0].mxu0 %v1722
        %v4642 = vpop.f32.mrb[0].mxu0
        %v4643 = vadd.f32 %v4530, %v4642
        %v4644 = vpop.f32.mrb[0].mxu0
        %v4645 = vadd.f32 %v4532, %v4644
        %v4646 = vpop.f32.mrb[0].mxu0
        %v4647 = vadd.f32 %v4534, %v4646
        %v4648 = vpop.f32.mrb[0].mxu0
        %v4649 = vadd.f32 %v4536, %v4648
        %4650 = vmatprep.mubr.bf16.mxu0 %v1728
        %4651 = vmatmul.mubr.bf16.gmra.mrb[0].mxu0 %v1727
        %v4652 = vpop.f32.mrb[0].mxu0
        %v4653 = vadd.f32 %v4540, %v4652
        %v4654 = vpop.f32.mrb[0].mxu0
        %v4655 = vadd.f32 %v4542, %v4654
        %v4656 = vpop.f32.mrb[0].mxu0
        %v4657 = vadd.f32 %v4544, %v4656
        %v4658 = vpop.f32.mrb[0].mxu0
        %v4659 = vadd.f32 %v4546, %v4658
        %4660 = vmatprep.mubr.bf16.mxu0 %v1733
        %4661 = vmatmul.mubr.bf16.gmra.mrb[0].mxu0 %v1732
        %v4662 = vpop.f32.mrb[0].mxu0
        %v4663 = vadd.f32 %v4550, %v4662
        %v4664 = vpop.f32.mrb[0].mxu0
        %v4665 = vadd.f32 %v4552, %v4664
        %v4666 = vpop.f32.mrb[0].mxu0
        %v4667 = vadd.f32 %v4554, %v4666
        %v4668 = vpop.f32.mrb[0].mxu0
        %v4669 = vadd.f32 %v4556, %v4668
        %4670 = vmatprep.mubr.bf16.mxu0 %v1738
        %4671 = vmatmul.mubr.bf16.gmra.mrb[0].mxu0 %v1737
        %v4672 = vpop.f32.mrb[0].mxu0
        %v4673 = vadd.f32 %v4560, %v4672
        %v4674 = vpop.f32.mrb[0].mxu0
        %v4675 = vadd.f32 %v4562, %v4674
        %v4676 = vpop.f32.mrb[0].mxu0
        %v4677 = vadd.f32 %v4564, %v4676
        %v4678 = vpop.f32.mrb[0].mxu0
        %v4679 = vadd.f32 %v4566, %v4678
        %4680 = vmatprep.mubr.bf16.mxu0 %v1743
        %4681 = vmatmul.mubr.bf16.gmra.mrb[0].mxu0 %v1742
        %v4682 = vpop.f32.mrb[0].mxu0
        %v4683 = vadd.f32 %v4570, %v4682
        %v4684 = vpop.f32.mrb[0].mxu0
        %v4685 = vadd.f32 %v4572, %v4684
        %v4686 = vpop.f32.mrb[0].mxu0
        %v4687 = vadd.f32 %v4574, %v4686
        %v4688 = vpop.f32.mrb[0].mxu0
        %v4689 = vadd.f32 %v4576, %v4688
        %4690 = vmatprep.mubr.bf16.mxu0 %v1748
        %4691 = vmatmul.mubr.bf16.gmra.mrb[0].mxu0 %v1747
        %v4692 = vpop.f32.mrb[0].mxu0
        %v4693 = vadd.f32 %v4580, %v4692
        %v4694 = vpop.f32.mrb[0].mxu0
        %v4695 = vadd.f32 %v4582, %v4694
        %v4696 = vpop.f32.mrb[0].mxu0
        %v4697 = vadd.f32 %v4584, %v4696
        %v4698 = vpop.f32.mrb[0].mxu0
        %v4699 = vadd.f32 %v4586, %v4698
        %4700 = vmatprep.mubr.bf16.mxu0 %v1753
        %4701 = vmatmul.mubr.bf16.gmra.mrb[0].mxu0 %v1752
        %v4702 = vpop.f32.mrb[0].mxu0
        %v4703 = vadd.f32 %v4590, %v4702
        %v4704 = vpop.f32.mrb[0].mxu0
        %v4705 = vadd.f32 %v4592, %v4704
        %v4706 = vpop.f32.mrb[0].mxu0
        %v4707 = vadd.f32 %v4594, %v4706
        %v4708 = vpop.f32.mrb[0].mxu0
        %v4709 = vadd.f32 %v4596, %v4708
        %4710 = vdwg.mxu0
        %4711 = vmatprep.subr.bf16.mxu0 %v3090
        %4712 = vmatpush1.bf16.msra.mxu0 %v3089
        %4713 = vmatprep.subr.bf16.mxu0 %v3099
        %4714 = vmatpush1.bf16.msra.mxu0 %v3098
        %4715 = vmatprep.subr.bf16.mxu0 %v3108
        %4716 = vmatpush1.bf16.msra.mxu0 %v3107
        %4717 = vmatprep.subr.bf16.mxu0 %v3117
        %4718 = vmatpush1.bf16.msra.mxu0 %v3116
        %4719 = vmatprep.subr.bf16.mxu0 0
        %4720 = vmatpush1.bf16.msra.mxu0 0
        %4721 = vmatprep.subr.bf16.mxu0 0
        %4722 = vmatpush1.bf16.msra.mxu0 0
        %4723 = vmatprep.subr.bf16.mxu0 0
        %4724 = vmatpush1.bf16.msra.mxu0 0
        %4725 = vmatprep.subr.bf16.mxu0 0
        %4726 = vmatpush1.bf16.msra.mxu0 0
        %4727 = vmatprep.subr.bf16.mxu0 0
        %4728 = vmatpush1.bf16.msra.mxu0 0
        %4729 = vmatprep.subr.bf16.mxu0 0
        %4730 = vmatpush1.bf16.msra.mxu0 0
        %4731 = vmatprep.subr.bf16.mxu0 0
        %4732 = vmatpush1.bf16.msra.mxu0 0
        %4733 = vmatprep.subr.bf16.mxu0 0
        %4734 = vmatpush1.bf16.msra.mxu0 0
        %4735 = vmatprep.subr.bf16.mxu0 0
        %4736 = vmatpush1.bf16.msra.mxu0 0
        %4737 = vmatprep.subr.bf16.mxu0 0
        %4738 = vmatpush1.bf16.msra.mxu0 0
        %4739 = vmatprep.subr.bf16.mxu0 0
        %4740 = vmatpush1.bf16.msra.mxu0 0
        %4741 = vmatprep.subr.bf16.mxu0 0
        %4742 = vmatpush1.bf16.msra.mxu0 0
        %4743 = vmatprep.mubr.bf16.mxu0 0
        %4744 = vmatmul.mubr.bf16.gmra.mrb[0].mxu0 %v3445
        %v4745 = vpop.f32.mrb[0].mxu0
        %v4746 = vadd.f32 %v4633, %v4745
        %v4747 = vpop.f32.mrb[0].mxu0
        %v4748 = vadd.f32 %v4635, %v4747
        %v4749 = vpop.f32.mrb[0].mxu0
        %v4750 = vadd.f32 %v4637, %v4749
        %v4751 = vpop.f32.mrb[0].mxu0
        %v4752 = vadd.f32 %v4639, %v4751
        %4753 = vmatprep.mubr.bf16.mxu0 0
        %4754 = vmatmul.mubr.bf16.gmra.mrb[0].mxu0 %v3448
        %v4755 = vpop.f32.mrb[0].mxu0
        %v4756 = vadd.f32 %v4643, %v4755
        %v4757 = vpop.f32.mrb[0].mxu0
        %v4758 = vadd.f32 %v4645, %v4757
        %v4759 = vpop.f32.mrb[0].mxu0
        %v4760 = vadd.f32 %v4647, %v4759
        %v4761 = vpop.f32.mrb[0].mxu0
        %v4762 = vadd.f32 %v4649, %v4761
        %4763 = vmatprep.mubr.bf16.mxu0 0
        %4764 = vmatmul.mubr.bf16.gmra.mrb[0].mxu0 %v3451
        %v4765 = vpop.f32.mrb[0].mxu0
        %v4766 = vadd.f32 %v4653, %v4765
        %v4767 = vpop.f32.mrb[0].mxu0
        %v4768 = vadd.f32 %v4655, %v4767
        %v4769 = vpop.f32.mrb[0].mxu0
        %v4770 = vadd.f32 %v4657, %v4769
        %v4771 = vpop.f32.mrb[0].mxu0
        %v4772 = vadd.f32 %v4659, %v4771
        %4773 = vmatprep.mubr.bf16.mxu0 0
        %4774 = vmatmul.mubr.bf16.gmra.mrb[0].mxu0 %v3454
        %v4775 = vpop.f32.mrb[0].mxu0
        %v4776 = vadd.f32 %v4663, %v4775
        %v4777 = vpop.f32.mrb[0].mxu0
        %v4778 = vadd.f32 %v4665, %v4777
        %v4779 = vpop.f32.mrb[0].mxu0
        %v4780 = vadd.f32 %v4667, %v4779
        %v4781 = vpop.f32.mrb[0].mxu0
        %v4782 = vadd.f32 %v4669, %v4781
        %4783 = vmatprep.mubr.bf16.mxu0 0
        %4784 = vmatmul.mubr.bf16.gmra.mrb[0].mxu0 %v3457
        %v4785 = vpop.f32.mrb[0].mxu0
        %v4786 = vadd.f32 %v4673, %v4785
        %v4787 = vpop.f32.mrb[0].mxu0
        %v4788 = vadd.f32 %v4675, %v4787
        %v4789 = vpop.f32.mrb[0].mxu0
        %v4790 = vadd.f32 %v4677, %v4789
        %v4791 = vpop.f32.mrb[0].mxu0
        %v4792 = vadd.f32 %v4679, %v4791
        %4793 = vmatprep.mubr.bf16.mxu0 0
        %4794 = vmatmul.mubr.bf16.gmra.mrb[0].mxu0 %v3460
        %v4795 = vpop.f32.mrb[0].mxu0
        %v4796 = vadd.f32 %v4683, %v4795
        %v4797 = vpop.f32.mrb[0].mxu0
        %v4798 = vadd.f32 %v4685, %v4797
        %v4799 = vpop.f32.mrb[0].mxu0
        %v4800 = vadd.f32 %v4687, %v4799
        %v4801 = vpop.f32.mrb[0].mxu0
        %v4802 = vadd.f32 %v4689, %v4801
        %4803 = vmatprep.mubr.bf16.mxu0 0
        %4804 = vmatmul.mubr.bf16.gmra.mrb[0].mxu0 %v3463
        %v4805 = vpop.f32.mrb[0].mxu0
        %v4806 = vadd.f32 %v4693, %v4805
        %v4807 = vpop.f32.mrb[0].mxu0
        %v4808 = vadd.f32 %v4695, %v4807
        %v4809 = vpop.f32.mrb[0].mxu0
        %v4810 = vadd.f32 %v4697, %v4809
        %v4811 = vpop.f32.mrb[0].mxu0
        %v4812 = vadd.f32 %v4699, %v4811
        %4813 = vmatprep.mubr.bf16.mxu0 0
        %4814 = vmatmul.mubr.bf16.gmra.mrb[0].mxu0 %v3466
        %v4815 = vpop.f32.mrb[0].mxu0
        %v4816 = vadd.f32 %v4703, %v4815
        %v4817 = vpop.f32.mrb[0].mxu0
        %v4818 = vadd.f32 %v4705, %v4817
        %v4819 = vpop.f32.mrb[0].mxu0
        %v4820 = vadd.f32 %v4707, %v4819
        %v4821 = vpop.f32.mrb[0].mxu0
        %v4822 = vadd.f32 %v4709, %v4821
        %4823 = vdwg.mxu0
        %4824 = vmatprep.subr.bf16.mxu0 0
        %4825 = vmatpush1.bf16.msra.mxu0 %v2803
        %4826 = vmatprep.subr.bf16.mxu0 0
        %4827 = vmatpush1.bf16.msra.mxu0 %v2812
        %4828 = vmatprep.subr.bf16.mxu0 0
        %4829 = vmatpush1.bf16.msra.mxu0 %v2821
        %4830 = vmatprep.subr.bf16.mxu0 0
        %4831 = vmatpush1.bf16.msra.mxu0 %v2830
        %4832 = vmatprep.subr.bf16.mxu0 0
        %4833 = vmatpush1.bf16.msra.mxu0 %v2839
        %4834 = vmatprep.subr.bf16.mxu0 0
        %4835 = vmatpush1.bf16.msra.mxu0 %v2848
        %4836 = vmatprep.subr.bf16.mxu0 0
        %4837 = vmatpush1.bf16.msra.mxu0 %v2857
        %4838 = vmatprep.subr.bf16.mxu0 0
        %4839 = vmatpush1.bf16.msra.mxu0 %v2866
        %4840 = vmatprep.subr.bf16.mxu0 0
        %4841 = vmatpush1.bf16.msra.mxu0 %v2875
        %4842 = vmatprep.subr.bf16.mxu0 0
        %4843 = vmatpush1.bf16.msra.mxu0 %v2884
        %4844 = vmatprep.subr.bf16.mxu0 0
        %4845 = vmatpush1.bf16.msra.mxu0 %v2893
        %4846 = vmatprep.subr.bf16.mxu0 0
        %4847 = vmatpush1.bf16.msra.mxu0 %v2902
        %4848 = vmatprep.subr.bf16.mxu0 0
        %4849 = vmatpush1.bf16.msra.mxu0 %v2911
        %4850 = vmatprep.subr.bf16.mxu0 0
        %4851 = vmatpush1.bf16.msra.mxu0 %v2920
        %4852 = vmatprep.subr.bf16.mxu0 0
        %4853 = vmatpush1.bf16.msra.mxu0 %v2929
        %4854 = vmatprep.subr.bf16.mxu0 0
        %4855 = vmatpush1.bf16.msra.mxu0 %v2938
        %4856 = vmatprep.mubr.bf16.mxu0 %v1716
        %4857 = vmatmul.mubr.bf16.gmra.mrb[0].mxu0 %v1715
        %v4858 = vpop.f32.mrb[0].mxu0
        %v4859 = vadd.f32 %v1510, %v4858
        %v4860 = vpop.f32.mrb[0].mxu0
        %v4861 = vpop.f32.mrb[0].mxu0
        %v4862 = vadd.f32 %v1515, %v4861
        %v4863 = vpop.f32.mrb[0].mxu0
        %4864 = vmatprep.mubr.bf16.mxu0 %v1721
        %4865 = vmatmul.mubr.bf16.gmra.mrb[0].mxu0 %v1720
        %v4866 = vpop.f32.mrb[0].mxu0
        %v4867 = vadd.f32 %v1520, %v4866
        %v4868 = vpop.f32.mrb[0].mxu0
        %v4869 = vpop.f32.mrb[0].mxu0
        %v4870 = vadd.f32 %v1525, %v4869
        %v4871 = vpop.f32.mrb[0].mxu0
        %4872 = vmatprep.mubr.bf16.mxu0 %v1726
        %4873 = vmatmul.mubr.bf16.gmra.mrb[0].mxu0 %v1725
        %v4874 = vpop.f32.mrb[0].mxu0
        %v4875 = vadd.f32 %v1530, %v4874
        %v4876 = vpop.f32.mrb[0].mxu0
        %v4877 = vpop.f32.mrb[0].mxu0
        %v4878 = vadd.f32 %v1535, %v4877
        %v4879 = vpop.f32.mrb[0].mxu0
        %4880 = vmatprep.mubr.bf16.mxu0 %v1731
        %4881 = vmatmul.mubr.bf16.gmra.mrb[0].mxu0 %v1730
        %v4882 = vpop.f32.mrb[0].mxu0
        %v4883 = vadd.f32 %v1540, %v4882
        %v4884 = vpop.f32.mrb[0].mxu0
        %v4885 = vpop.f32.mrb[0].mxu0
        %v4886 = vadd.f32 %v1545, %v4885
        %v4887 = vpop.f32.mrb[0].mxu0
        %4888 = vmatprep.mubr.bf16.mxu0 %v1736
        %4889 = vmatmul.mubr.bf16.gmra.mrb[0].mxu0 %v1735
        %v4890 = vpop.f32.mrb[0].mxu0
        %v4891 = vadd.f32 %v1550, %v4890
        %v4892 = vpop.f32.mrb[0].mxu0
        %v4893 = vpop.f32.mrb[0].mxu0
        %v4894 = vadd.f32 %v1555, %v4893
        %v4895 = vpop.f32.mrb[0].mxu0
        %4896 = vmatprep.mubr.bf16.mxu0 %v1741
        %4897 = vmatmul.mubr.bf16.gmra.mrb[0].mxu0 %v1740
        %v4898 = vpop.f32.mrb[0].mxu0
        %v4899 = vadd.f32 %v1560, %v4898
        %v4900 = vpop.f32.mrb[0].mxu0
        %v4901 = vpop.f32.mrb[0].mxu0
        %v4902 = vadd.f32 %v1565, %v4901
        %v4903 = vpop.f32.mrb[0].mxu0
        %4904 = vmatprep.mubr.bf16.mxu0 %v1746
        %4905 = vmatmul.mubr.bf16.gmra.mrb[0].mxu0 %v1745
        %v4906 = vpop.f32.mrb[0].mxu0
        %v4907 = vadd.f32 %v1570, %v4906
        %v4908 = vpop.f32.mrb[0].mxu0
        %v4909 = vpop.f32.mrb[0].mxu0
        %v4910 = vadd.f32 %v1575, %v4909
        %v4911 = vpop.f32.mrb[0].mxu0
        %4912 = vmatprep.mubr.bf16.mxu0 %v1751
        %4913 = vmatmul.mubr.bf16.gmra.mrb[0].mxu0 %v1750
        %v4914 = vpop.f32.mrb[0].mxu0
        %v4915 = vadd.f32 %v1580, %v4914
        %v4916 = vpop.f32.mrb[0].mxu0
        %v4917 = vpop.f32.mrb[0].mxu0
        %v4918 = vadd.f32 %v1585, %v4917
        %v4919 = vpop.f32.mrb[0].mxu0
        %4920 = vdwg.mxu0
        %4921 = vmatprep.subr.bf16.mxu0 0
        %4922 = vmatpush1.bf16.msra.mxu0 %v2947
        %4923 = vmatprep.subr.bf16.mxu0 0
        %4924 = vmatpush1.bf16.msra.mxu0 %v2956
        %4925 = vmatprep.subr.bf16.mxu0 0
        %4926 = vmatpush1.bf16.msra.mxu0 %v2965
        %4927 = vmatprep.subr.bf16.mxu0 0
        %4928 = vmatpush1.bf16.msra.mxu0 %v2974
        %4929 = vmatprep.subr.bf16.mxu0 0
        %4930 = vmatpush1.bf16.msra.mxu0 %v2983
        %4931 = vmatprep.subr.bf16.mxu0 0
        %4932 = vmatpush1.bf16.msra.mxu0 %v2992
        %4933 = vmatprep.subr.bf16.mxu0 0
        %4934 = vmatpush1.bf16.msra.mxu0 %v3001
        %4935 = vmatprep.subr.bf16.mxu0 0
        %4936 = vmatpush1.bf16.msra.mxu0 %v3010
        %4937 = vmatprep.subr.bf16.mxu0 0
        %4938 = vmatpush1.bf16.msra.mxu0 %v3019
        %4939 = vmatprep.subr.bf16.mxu0 0
        %4940 = vmatpush1.bf16.msra.mxu0 %v3028
        %4941 = vmatprep.subr.bf16.mxu0 0
        %4942 = vmatpush1.bf16.msra.mxu0 %v3037
        %4943 = vmatprep.subr.bf16.mxu0 0
        %4944 = vmatpush1.bf16.msra.mxu0 %v3046
        %4945 = vmatprep.subr.bf16.mxu0 0
        %4946 = vmatpush1.bf16.msra.mxu0 %v3055
        %4947 = vmatprep.subr.bf16.mxu0 0
        %4948 = vmatpush1.bf16.msra.mxu0 %v3064
        %4949 = vmatprep.subr.bf16.mxu0 0
        %4950 = vmatpush1.bf16.msra.mxu0 %v3073
        %4951 = vmatprep.subr.bf16.mxu0 0
        %4952 = vmatpush1.bf16.msra.mxu0 %v3082
        %4953 = vmatprep.mubr.bf16.mxu0 %v1718
        %4954 = vmatmul.mubr.bf16.gmra.mrb[0].mxu0 %v1717
        %v4955 = vpop.f32.mrb[0].mxu0
        %v4956 = vadd.f32 %v4859, %v4955
        %v4957 = vpop.f32.mrb[0].mxu0
        %v4958 = vpop.f32.mrb[0].mxu0
        %v4959 = vadd.f32 %v4862, %v4958
        %v4960 = vpop.f32.mrb[0].mxu0
        %4961 = vmatprep.mubr.bf16.mxu0 %v1723
        %4962 = vmatmul.mubr.bf16.gmra.mrb[0].mxu0 %v1722
        %v4963 = vpop.f32.mrb[0].mxu0
        %v4964 = vadd.f32 %v4867, %v4963
        %v4965 = vpop.f32.mrb[0].mxu0
        %v4966 = vpop.f32.mrb[0].mxu0
        %v4967 = vadd.f32 %v4870, %v4966
        %v4968 = vpop.f32.mrb[0].mxu0
        %4969 = vmatprep.mubr.bf16.mxu0 %v1728
        %4970 = vmatmul.mubr.bf16.gmra.mrb[0].mxu0 %v1727
        %v4971 = vpop.f32.mrb[0].mxu0
        %v4972 = vadd.f32 %v4875, %v4971
        %v4973 = vpop.f32.mrb[0].mxu0
        %v4974 = vpop.f32.mrb[0].mxu0
        %v4975 = vadd.f32 %v4878, %v4974
        %v4976 = vpop.f32.mrb[0].mxu0
        %4977 = vmatprep.mubr.bf16.mxu0 %v1733
        %4978 = vmatmul.mubr.bf16.gmra.mrb[0].mxu0 %v1732
        %v4979 = vpop.f32.mrb[0].mxu0
        %v4980 = vadd.f32 %v4883, %v4979
        %v4981 = vpop.f32.mrb[0].mxu0
        %v4982 = vpop.f32.mrb[0].mxu0
        %v4983 = vadd.f32 %v4886, %v4982
        %v4984 = vpop.f32.mrb[0].mxu0
        %4985 = vmatprep.mubr.bf16.mxu0 %v1738
        %4986 = vmatmul.mubr.bf16.gmra.mrb[0].mxu0 %v1737
        %v4987 = vpop.f32.mrb[0].mxu0
        %v4988 = vadd.f32 %v4891, %v4987
        %v4989 = vpop.f32.mrb[0].mxu0
        %v4990 = vpop.f32.mrb[0].mxu0
        %v4991 = vadd.f32 %v4894, %v4990
        %v4992 = vpop.f32.mrb[0].mxu0
        %4993 = vmatprep.mubr.bf16.mxu0 %v1743
        %4994 = vmatmul.mubr.bf16.gmra.mrb[0].mxu0 %v1742
        %v4995 = vpop.f32.mrb[0].mxu0
        %v4996 = vadd.f32 %v4899, %v4995
        %v4997 = vpop.f32.mrb[0].mxu0
        %v4998 = vpop.f32.mrb[0].mxu0
        %v4999 = vadd.f32 %v4902, %v4998
        %v5000 = vpop.f32.mrb[0].mxu0
        %5001 = vmatprep.mubr.bf16.mxu0 %v1748
        %5002 = vmatmul.mubr.bf16.gmra.mrb[0].mxu0 %v1747
        %v5003 = vpop.f32.mrb[0].mxu0
        %v5004 = vadd.f32 %v4907, %v5003
        %v5005 = vpop.f32.mrb[0].mxu0
        %v5006 = vpop.f32.mrb[0].mxu0
        %v5007 = vadd.f32 %v4910, %v5006
        %v5008 = vpop.f32.mrb[0].mxu0
        %5009 = vmatprep.mubr.bf16.mxu0 %v1753
        %5010 = vmatmul.mubr.bf16.gmra.mrb[0].mxu0 %v1752
        %v5011 = vpop.f32.mrb[0].mxu0
        %v5012 = vadd.f32 %v4915, %v5011
        %v5013 = vpop.f32.mrb[0].mxu0
        %v5014 = vpop.f32.mrb[0].mxu0
        %v5015 = vadd.f32 %v4918, %v5014
        %v5016 = vpop.f32.mrb[0].mxu0
        %5017 = vdwg.mxu0
        %5018 = vmatprep.subr.bf16.mxu0 0
        %5019 = vmatpush1.bf16.msra.mxu0 %v3091
        %5020 = vmatprep.subr.bf16.mxu0 0
        %5021 = vmatpush1.bf16.msra.mxu0 %v3100
        %5022 = vmatprep.subr.bf16.mxu0 0
        %5023 = vmatpush1.bf16.msra.mxu0 %v3109
        %5024 = vmatprep.subr.bf16.mxu0 0
        %5025 = vmatpush1.bf16.msra.mxu0 %v3118
        %5026 = vmatprep.subr.bf16.mxu0 0
        %5027 = vmatpush1.bf16.msra.mxu0 0
        %5028 = vmatprep.subr.bf16.mxu0 0
        %5029 = vmatpush1.bf16.msra.mxu0 0
        %5030 = vmatprep.subr.bf16.mxu0 0
        %5031 = vmatpush1.bf16.msra.mxu0 0
        %5032 = vmatprep.subr.bf16.mxu0 0
        %5033 = vmatpush1.bf16.msra.mxu0 0
        %5034 = vmatprep.subr.bf16.mxu0 0
        %5035 = vmatpush1.bf16.msra.mxu0 0
        %5036 = vmatprep.subr.bf16.mxu0 0
        %5037 = vmatpush1.bf16.msra.mxu0 0
        %5038 = vmatprep.subr.bf16.mxu0 0
        %5039 = vmatpush1.bf16.msra.mxu0 0
        %5040 = vmatprep.subr.bf16.mxu0 0
        %5041 = vmatpush1.bf16.msra.mxu0 0
        %5042 = vmatprep.subr.bf16.mxu0 0
        %5043 = vmatpush1.bf16.msra.mxu0 0
        %5044 = vmatprep.subr.bf16.mxu0 0
        %5045 = vmatpush1.bf16.msra.mxu0 0
        %5046 = vmatprep.subr.bf16.mxu0 0
        %5047 = vmatpush1.bf16.msra.mxu0 0
        %5048 = vmatprep.subr.bf16.mxu0 0
        %5049 = vmatpush1.bf16.msra.mxu0 0
        %5050 = vmatprep.mubr.bf16.mxu0 0
        %5051 = vmatmul.mubr.bf16.gmra.mrb[0].mxu0 %v3445
        %v5052 = vpop.f32.mrb[0].mxu0
        %v5053 = vadd.f32 %v4956, %v5052
        %v5054 = vpop.f32.mrb[0].mxu0
        %v5055 = vpop.f32.mrb[0].mxu0
        %v5056 = vadd.f32 %v4959, %v5055
        %v5057 = vpop.f32.mrb[0].mxu0
        %5058 = vmatprep.mubr.bf16.mxu0 0
        %5059 = vmatmul.mubr.bf16.gmra.mrb[0].mxu0 %v3448
        %v5060 = vpop.f32.mrb[0].mxu0
        %v5061 = vadd.f32 %v4964, %v5060
        %v5062 = vpop.f32.mrb[0].mxu0
        %v5063 = vpop.f32.mrb[0].mxu0
        %v5064 = vadd.f32 %v4967, %v5063
        %v5065 = vpop.f32.mrb[0].mxu0
        %5066 = vmatprep.mubr.bf16.mxu0 0
        %5067 = vmatmul.mubr.bf16.gmra.mrb[0].mxu0 %v3451
        %v5068 = vpop.f32.mrb[0].mxu0
        %v5069 = vadd.f32 %v4972, %v5068
        %v5070 = vpop.f32.mrb[0].mxu0
        %v5071 = vpop.f32.mrb[0].mxu0
        %v5072 = vadd.f32 %v4975, %v5071
        %v5073 = vpop.f32.mrb[0].mxu0
        %5074 = vmatprep.mubr.bf16.mxu0 0
        %5075 = vmatmul.mubr.bf16.gmra.mrb[0].mxu0 %v3454
        %v5076 = vpop.f32.mrb[0].mxu0
        %v5077 = vadd.f32 %v4980, %v5076
        %v5078 = vpop.f32.mrb[0].mxu0
        %v5079 = vpop.f32.mrb[0].mxu0
        %v5080 = vadd.f32 %v4983, %v5079
        %v5081 = vpop.f32.mrb[0].mxu0
        %5082 = vmatprep.mubr.bf16.mxu0 0
        %5083 = vmatmul.mubr.bf16.gmra.mrb[0].mxu0 %v3457
        %v5084 = vpop.f32.mrb[0].mxu0
        %v5085 = vadd.f32 %v4988, %v5084
        %v5086 = vpop.f32.mrb[0].mxu0
        %v5087 = vpop.f32.mrb[0].mxu0
        %v5088 = vadd.f32 %v4991, %v5087
        %v5089 = vpop.f32.mrb[0].mxu0
        %5090 = vmatprep.mubr.bf16.mxu0 0
        %5091 = vmatmul.mubr.bf16.gmra.mrb[0].mxu0 %v3460
        %v5092 = vpop.f32.mrb[0].mxu0
        %v5093 = vadd.f32 %v4996, %v5092
        %v5094 = vpop.f32.mrb[0].mxu0
        %v5095 = vpop.f32.mrb[0].mxu0
        %v5096 = vadd.f32 %v4999, %v5095
        %v5097 = vpop.f32.mrb[0].mxu0
        %5098 = vmatprep.mubr.bf16.mxu0 0
        %5099 = vmatmul.mubr.bf16.gmra.mrb[0].mxu0 %v3463
        %v5100 = vpop.f32.mrb[0].mxu0
        %v5101 = vadd.f32 %v5004, %v5100
        %v5102 = vpop.f32.mrb[0].mxu0
        %v5103 = vpop.f32.mrb[0].mxu0
        %v5104 = vadd.f32 %v5007, %v5103
        %v5105 = vpop.f32.mrb[0].mxu0
        %5106 = vmatprep.mubr.bf16.mxu0 0
        %5107 = vmatmul.mubr.bf16.gmra.mrb[0].mxu0 %v3466
        %v5108 = vpop.f32.mrb[0].mxu0
        %v5109 = vadd.f32 %v5012, %v5108
        %v5110 = vpop.f32.mrb[0].mxu0
        %v5111 = vpop.f32.mrb[0].mxu0
        %v5112 = vadd.f32 %v5015, %v5111
        %v5113 = vpop.f32.mrb[0].mxu0
        %5114 = vdwg.mxu0
        %v5115 = vmax.f32 %v3729, 0.0
        %v5116 = vmax.f32 %v3731, 0.0
        %v5117 = vmax.f32 %v4068, 0.0
        %v5118 = vmax.f32 %v4070, 0.0
        %v5119 = vmax.f32 %v4407, 0.0
        %v5120 = vmax.f32 %v4409, 0.0
        %v5121 = vmax.f32 %v4746, 0.0
        %v5122 = vmax.f32 %v4748, 0.0
        %v5123 = vmax.f32 %v5053, 0.0
        %v5124 = vmax.f32 %v3733, 0.0
        %v5125 = vmax.f32 %v3735, 0.0
        %v5126 = vmax.f32 %v4072, 0.0
        %v5127 = vmax.f32 %v4074, 0.0
        %v5128 = vmax.f32 %v4411, 0.0
        %v5129 = vmax.f32 %v4413, 0.0
        %v5130 = vmax.f32 %v4750, 0.0
        %v5131 = vmax.f32 %v4752, 0.0
        %v5132 = vmax.f32 %v5056, 0.0
        %v5133 = vmax.f32 %v3739, 0.0
        %v5134 = vmax.f32 %v3741, 0.0
        %v5135 = vmax.f32 %v4078, 0.0
        %v5136 = vmax.f32 %v4080, 0.0
        %v5137 = vmax.f32 %v4417, 0.0
        %v5138 = vmax.f32 %v4419, 0.0
        %v5139 = vmax.f32 %v4756, 0.0
        %v5140 = vmax.f32 %v4758, 0.0
        %v5141 = vmax.f32 %v5061, 0.0
        %v5142 = vmax.f32 %v3743, 0.0
        %v5143 = vmax.f32 %v3745, 0.0
        %v5144 = vmax.f32 %v4082, 0.0
        %v5145 = vmax.f32 %v4084, 0.0
        %v5146 = vmax.f32 %v4421, 0.0
        %v5147 = vmax.f32 %v4423, 0.0
        %v5148 = vmax.f32 %v4760, 0.0
        %v5149 = vmax.f32 %v4762, 0.0
        %v5150 = vmax.f32 %v5064, 0.0
        %v5151 = vmax.f32 %v3749, 0.0
        %v5152 = vmax.f32 %v3751, 0.0
        %v5153 = vmax.f32 %v4088, 0.0
        %v5154 = vmax.f32 %v4090, 0.0
        %v5155 = vmax.f32 %v4427, 0.0
        %v5156 = vmax.f32 %v4429, 0.0
        %v5157 = vmax.f32 %v4766, 0.0
        %v5158 = vmax.f32 %v4768, 0.0
        %v5159 = vmax.f32 %v5069, 0.0
        %v5160 = vmax.f32 %v3753, 0.0
        %v5161 = vmax.f32 %v3755, 0.0
        %v5162 = vmax.f32 %v4092, 0.0
        %v5163 = vmax.f32 %v4094, 0.0
        %v5164 = vmax.f32 %v4431, 0.0
        %v5165 = vmax.f32 %v4433, 0.0
        %v5166 = vmax.f32 %v4770, 0.0
        %v5167 = vmax.f32 %v4772, 0.0
        %v5168 = vmax.f32 %v5072, 0.0
        %v5169 = vmax.f32 %v3759, 0.0
        %v5170 = vmax.f32 %v3761, 0.0
        %v5171 = vmax.f32 %v4098, 0.0
        %v5172 = vmax.f32 %v4100, 0.0
        %v5173 = vmax.f32 %v4437, 0.0
        %v5174 = vmax.f32 %v4439, 0.0
        %v5175 = vmax.f32 %v4776, 0.0
        %v5176 = vmax.f32 %v4778, 0.0
        %v5177 = vmax.f32 %v5077, 0.0
        %v5178 = vmax.f32 %v3763, 0.0
        %v5179 = vmax.f32 %v3765, 0.0
        %v5180 = vmax.f32 %v4102, 0.0
        %v5181 = vmax.f32 %v4104, 0.0
        %v5182 = vmax.f32 %v4441, 0.0
        %v5183 = vmax.f32 %v4443, 0.0
        %v5184 = vmax.f32 %v4780, 0.0
        %v5185 = vmax.f32 %v4782, 0.0
        %v5186 = vmax.f32 %v5080, 0.0
        %v5187 = vmax.f32 %v3769, 0.0
        %v5188 = vmax.f32 %v3771, 0.0
        %v5189 = vmax.f32 %v4108, 0.0
        %v5190 = vmax.f32 %v4110, 0.0
        %v5191 = vmax.f32 %v4447, 0.0
        %v5192 = vmax.f32 %v4449, 0.0
        %v5193 = vmax.f32 %v4786, 0.0
        %v5194 = vmax.f32 %v4788, 0.0
        %v5195 = vmax.f32 %v5085, 0.0
        %v5196 = vmax.f32 %v3773, 0.0
        %v5197 = vmax.f32 %v3775, 0.0
        %v5198 = vmax.f32 %v4112, 0.0
        %v5199 = vmax.f32 %v4114, 0.0
        %v5200 = vmax.f32 %v4451, 0.0
        %v5201 = vmax.f32 %v4453, 0.0
        %v5202 = vmax.f32 %v4790, 0.0
        %v5203 = vmax.f32 %v4792, 0.0
        %v5204 = vmax.f32 %v5088, 0.0
        %v5205 = vmax.f32 %v3779, 0.0
        %v5206 = vmax.f32 %v3781, 0.0
        %v5207 = vmax.f32 %v4118, 0.0
        %v5208 = vmax.f32 %v4120, 0.0
        %v5209 = vmax.f32 %v4457, 0.0
        %v5210 = vmax.f32 %v4459, 0.0
        %v5211 = vmax.f32 %v4796, 0.0
        %v5212 = vmax.f32 %v4798, 0.0
        %v5213 = vmax.f32 %v5093, 0.0
        %v5214 = vmax.f32 %v3783, 0.0
        %v5215 = vmax.f32 %v3785, 0.0
        %v5216 = vmax.f32 %v4122, 0.0
        %v5217 = vmax.f32 %v4124, 0.0
        %v5218 = vmax.f32 %v4461, 0.0
        %v5219 = vmax.f32 %v4463, 0.0
        %v5220 = vmax.f32 %v4800, 0.0
        %v5221 = vmax.f32 %v4802, 0.0
        %v5222 = vmax.f32 %v5096, 0.0
        %v5223 = vmax.f32 %v3789, 0.0
        %v5224 = vmax.f32 %v3791, 0.0
        %v5225 = vmax.f32 %v4128, 0.0
        %v5226 = vmax.f32 %v4130, 0.0
        %v5227 = vmax.f32 %v4467, 0.0
        %v5228 = vmax.f32 %v4469, 0.0
        %v5229 = vmax.f32 %v4806, 0.0
        %v5230 = vmax.f32 %v4808, 0.0
        %v5231 = vmax.f32 %v5101, 0.0
        %v5232 = vmax.f32 %v3793, 0.0
        %v5233 = vmax.f32 %v3795, 0.0
        %v5234 = vmax.f32 %v4132, 0.0
        %v5235 = vmax.f32 %v4134, 0.0
        %v5236 = vmax.f32 %v4471, 0.0
        %v5237 = vmax.f32 %v4473, 0.0
        %v5238 = vmax.f32 %v4810, 0.0
        %v5239 = vmax.f32 %v4812, 0.0
        %v5240 = vmax.f32 %v5104, 0.0
        %v5241 = vmax.f32 %v3799, 0.0
        %v5242 = vmax.f32 %v3801, 0.0
        %v5243 = vmax.f32 %v4138, 0.0
        %v5244 = vmax.f32 %v4140, 0.0
        %v5245 = vmax.f32 %v4477, 0.0
        %v5246 = vmax.f32 %v4479, 0.0
        %v5247 = vmax.f32 %v4816, 0.0
        %v5248 = vmax.f32 %v4818, 0.0
        %v5249 = vmax.f32 %v5109, 0.0
        %v5250 = vmax.f32 %v3803, 0.0
        %v5251 = vmax.f32 %v3805, 0.0
        %v5252 = vmax.f32 %v4142, 0.0
        %v5253 = vmax.f32 %v4144, 0.0
        %v5254 = vmax.f32 %v4481, 0.0
        %v5255 = vmax.f32 %v4483, 0.0
        %v5256 = vmax.f32 %v4820, 0.0
        %v5257 = vmax.f32 %v4822, 0.0
        %v5258 = vmax.f32 %v5112, 0.0
        %v5259 = vld [vmem:[%s1080] sm:$0xff]
        %v5260 = vld [vmem:[%s1080 + $0x8] sm:$0xff]
        %v5261 = vld [vmem:[%s1080 + $0x10] sm:$0xff]
        %v5262 = vld [vmem:[%s1080 + $0x18] sm:$0xff]
        %v5263 = vld [vmem:[%s1080 + $0x20] sm:$0xff]
        %v5264 = vld [vmem:[%s1080 + $0x28] sm:$0xff]
        %v5265 = vld [vmem:[%s1080 + $0x30] sm:$0xff]
        %v5266 = vld [vmem:[%s1080 + $0x38] sm:$0xff]
        %v5267 = vld [vmem:[%s1080 + $0x40] sm:$0xff]
        %v5268 = vld [vmem:[%s1080 + $0x48] sm:$0xff]
        %v5269 = vld [vmem:[%s1080 + $0x50] sm:$0xff]
        %v5270 = vld [vmem:[%s1080 + $0x58] sm:$0xff]
        %v5271 = vld [vmem:[%s1080 + $0x60] sm:$0xff]
        %v5272 = vld [vmem:[%s1080 + $0x68] sm:$0xff]
        %v5273 = vld [vmem:[%s1080 + $0x70] sm:$0xff]
        %v5274 = vld [vmem:[%s1080 + $0x78] sm:$0xff]
        %v5275 = vld [vmem:[%s1074] sm:$0xff]
        %v5276 = vld [vmem:[%s1074 + $0x8] sm:$0xff]
        %v5277 = vld [vmem:[%s1074 + $0x10] sm:$0x3]
        %5279 = vset.pattern.permute.xlu0 0
        %5280 = vperm.xlu0 %5279, %v5259
        %v5281 = vpop.permute.xlu0 %5280
        %5284 = vset.pattern.permute.xlu0 0
        %5285 = vperm.xlu0 %5284, %v5260
        %v5286 = vpop.permute.xlu0 %5285
        %5289 = vset.pattern.permute.xlu0 0
        %5290 = vperm.xlu0 %5289, %v5261
        %v5291 = vpop.permute.xlu0 %5290
        %5294 = vset.pattern.permute.xlu0 0
        %5295 = vperm.xlu0 %5294, %v5262
        %v5296 = vpop.permute.xlu0 %5295
        %5299 = vset.pattern.permute.xlu0 0
        %5300 = vperm.xlu0 %5299, %v5263
        %v5301 = vpop.permute.xlu0 %5300
        %5304 = vset.pattern.permute.xlu0 0
        %5305 = vperm.xlu0 %5304, %v5264
        %v5306 = vpop.permute.xlu0 %5305
        %5309 = vset.pattern.permute.xlu0 0
        %5310 = vperm.xlu0 %5309, %v5265
        %v5311 = vpop.permute.xlu0 %5310
        %5314 = vset.pattern.permute.xlu0 0
        %5315 = vperm.xlu0 %5314, %v5266
        %v5316 = vpop.permute.xlu0 %5315
        %5319 = vset.pattern.permute.xlu0 0
        %5320 = vperm.xlu0 %5319, %v5267
        %v5321 = vpop.permute.xlu0 %5320
        %5324 = vset.pattern.permute.xlu0 0
        %5325 = vperm.xlu0 %5324, %v5268
        %v5326 = vpop.permute.xlu0 %5325
        %5329 = vset.pattern.permute.xlu0 0
        %5330 = vperm.xlu0 %5329, %v5269
        %v5331 = vpop.permute.xlu0 %5330
        %5334 = vset.pattern.permute.xlu0 0
        %5335 = vperm.xlu0 %5334, %v5270
        %v5336 = vpop.permute.xlu0 %5335
        %5339 = vset.pattern.permute.xlu0 0
        %5340 = vperm.xlu0 %5339, %v5271
        %v5341 = vpop.permute.xlu0 %5340
        %5344 = vset.pattern.permute.xlu0 0
        %5345 = vperm.xlu0 %5344, %v5272
        %v5346 = vpop.permute.xlu0 %5345
        %5349 = vset.pattern.permute.xlu0 0
        %5350 = vperm.xlu0 %5349, %v5273
        %v5351 = vpop.permute.xlu0 %5350
        %5354 = vset.pattern.permute.xlu0 0
        %5355 = vperm.xlu0 %5354, %v5274
        %v5356 = vpop.permute.xlu0 %5355
        %v5361 = vlaneseq
        %v5362 = vshrl.u32 %v5361, 7
        %v5363 = vsub.s32 0, %v5362
        %v5364 = vrot.slane %v5275, %v5363
        %v5365 = vlaneseq
        %v5366 = vshrl.u32 %v5365, 7
        %v5367 = vsub.s32 2, %v5366
        %v5368 = vrot.slane %v5275, %v5367
        %v5369 = vlaneseq
        %v5370 = vshrl.u32 %v5369, 7
        %v5371 = vsub.s32 4, %v5370
        %v5372 = vrot.slane %v5275, %v5371
        %v5373 = vlaneseq
        %v5374 = vshrl.u32 %v5373, 7
        %v5375 = vsub.s32 6, %v5374
        %v5376 = vrot.slane %v5275, %v5375
        %v5377 = vlaneseq
        %v5378 = vshrl.u32 %v5377, 7
        %v5379 = vsub.s32 0, %v5378
        %v5380 = vrot.slane %v5276, %v5379
        %v5381 = vlaneseq
        %v5382 = vshrl.u32 %v5381, 7
        %v5383 = vsub.s32 2, %v5382
        %v5384 = vrot.slane %v5276, %v5383
        %v5385 = vlaneseq
        %v5386 = vshrl.u32 %v5385, 7
        %v5387 = vsub.s32 4, %v5386
        %v5388 = vrot.slane %v5276, %v5387
        %v5389 = vlaneseq
        %v5390 = vshrl.u32 %v5389, 7
        %v5391 = vsub.s32 6, %v5390
        %v5392 = vrot.slane %v5276, %v5391
        %v5393 = vlaneseq
        %v5394 = vshrl.u32 %v5393, 7
        %v5395 = vsub.s32 0, %v5394
        %v5396 = vrot.slane %v5277, %v5395
        %v5406 = vlaneseq
        %v5407 = vshrl.u32 %v5406, 7
        %v5408 = vsub.s32 0, %v5407
        %v5409 = vrot.slane %v5364, %v5408
        %v5410 = vlaneseq
        %v5411 = vshrl.u32 %v5410, 7
        %v5412 = vsub.s32 0, %v5411
        %v5413 = vrot.slane %v5368, %v5412
        %v5414 = vlaneseq
        %v5415 = vshrl.u32 %v5414, 7
        %v5416 = vsub.s32 0, %v5415
        %v5417 = vrot.slane %v5372, %v5416
        %v5418 = vlaneseq
        %v5419 = vshrl.u32 %v5418, 7
        %v5420 = vsub.s32 0, %v5419
        %v5421 = vrot.slane %v5376, %v5420
        %v5422 = vlaneseq
        %v5423 = vshrl.u32 %v5422, 7
        %v5424 = vsub.s32 0, %v5423
        %v5425 = vrot.slane %v5380, %v5424
        %v5426 = vlaneseq
        %v5427 = vshrl.u32 %v5426, 7
        %v5428 = vsub.s32 0, %v5427
        %v5429 = vrot.slane %v5384, %v5428
        %v5430 = vlaneseq
        %v5431 = vshrl.u32 %v5430, 7
        %v5432 = vsub.s32 0, %v5431
        %v5433 = vrot.slane %v5388, %v5432
        %v5434 = vlaneseq
        %v5435 = vshrl.u32 %v5434, 7
        %v5436 = vsub.s32 0, %v5435
        %v5437 = vrot.slane %v5392, %v5436
        %v5438 = vlaneseq
        %v5439 = vshrl.u32 %v5438, 7
        %v5440 = vsub.s32 0, %v5439
        %v5441 = vrot.slane %v5396, %v5440
        %v5442 = vmul.f32 %v5281, %v5409
        %v5443 = vmul.f32 %v5281, %v5413
        %v5444 = vmul.f32 %v5281, %v5417
        %v5445 = vmul.f32 %v5281, %v5421
        %v5446 = vmul.f32 %v5281, %v5425
        %v5447 = vmul.f32 %v5281, %v5429
        %v5448 = vmul.f32 %v5281, %v5433
        %v5449 = vmul.f32 %v5281, %v5437
        %v5450 = vmul.f32 %v5281, %v5441
        %v5451 = vmul.f32 %v5286, %v5409
        %v5452 = vmul.f32 %v5286, %v5413
        %v5453 = vmul.f32 %v5286, %v5417
        %v5454 = vmul.f32 %v5286, %v5421
        %v5455 = vmul.f32 %v5286, %v5425
        %v5456 = vmul.f32 %v5286, %v5429
        %v5457 = vmul.f32 %v5286, %v5433
        %v5458 = vmul.f32 %v5286, %v5437
        %v5459 = vmul.f32 %v5286, %v5441
        %v5460 = vmul.f32 %v5291, %v5409
        %v5461 = vmul.f32 %v5291, %v5413
        %v5462 = vmul.f32 %v5291, %v5417
        %v5463 = vmul.f32 %v5291, %v5421
        %v5464 = vmul.f32 %v5291, %v5425
        %v5465 = vmul.f32 %v5291, %v5429
        %v5466 = vmul.f32 %v5291, %v5433
        %v5467 = vmul.f32 %v5291, %v5437
        %v5468 = vmul.f32 %v5291, %v5441
        %v5469 = vmul.f32 %v5296, %v5409
        %v5470 = vmul.f32 %v5296, %v5413
        %v5471 = vmul.f32 %v5296, %v5417
        %v5472 = vmul.f32 %v5296, %v5421
        %v5473 = vmul.f32 %v5296, %v5425
        %v5474 = vmul.f32 %v5296, %v5429
        %v5475 = vmul.f32 %v5296, %v5433
        %v5476 = vmul.f32 %v5296, %v5437
        %v5477 = vmul.f32 %v5296, %v5441
        %v5478 = vmul.f32 %v5301, %v5409
        %v5479 = vmul.f32 %v5301, %v5413
        %v5480 = vmul.f32 %v5301, %v5417
        %v5481 = vmul.f32 %v5301, %v5421
        %v5482 = vmul.f32 %v5301, %v5425
        %v5483 = vmul.f32 %v5301, %v5429
        %v5484 = vmul.f32 %v5301, %v5433
        %v5485 = vmul.f32 %v5301, %v5437
        %v5486 = vmul.f32 %v5301, %v5441
        %v5487 = vmul.f32 %v5306, %v5409
        %v5488 = vmul.f32 %v5306, %v5413
        %v5489 = vmul.f32 %v5306, %v5417
        %v5490 = vmul.f32 %v5306, %v5421
        %v5491 = vmul.f32 %v5306, %v5425
        %v5492 = vmul.f32 %v5306, %v5429
        %v5493 = vmul.f32 %v5306, %v5433
        %v5494 = vmul.f32 %v5306, %v5437
        %v5495 = vmul.f32 %v5306, %v5441
        %v5496 = vmul.f32 %v5311, %v5409
        %v5497 = vmul.f32 %v5311, %v5413
        %v5498 = vmul.f32 %v5311, %v5417
        %v5499 = vmul.f32 %v5311, %v5421
        %v5500 = vmul.f32 %v5311, %v5425
        %v5501 = vmul.f32 %v5311, %v5429
        %v5502 = vmul.f32 %v5311, %v5433
        %v5503 = vmul.f32 %v5311, %v5437
        %v5504 = vmul.f32 %v5311, %v5441
        %v5505 = vmul.f32 %v5316, %v5409
        %v5506 = vmul.f32 %v5316, %v5413
        %v5507 = vmul.f32 %v5316, %v5417
        %v5508 = vmul.f32 %v5316, %v5421
        %v5509 = vmul.f32 %v5316, %v5425
        %v5510 = vmul.f32 %v5316, %v5429
        %v5511 = vmul.f32 %v5316, %v5433
        %v5512 = vmul.f32 %v5316, %v5437
        %v5513 = vmul.f32 %v5316, %v5441
        %v5514 = vmul.f32 %v5321, %v5409
        %v5515 = vmul.f32 %v5321, %v5413
        %v5516 = vmul.f32 %v5321, %v5417
        %v5517 = vmul.f32 %v5321, %v5421
        %v5518 = vmul.f32 %v5321, %v5425
        %v5519 = vmul.f32 %v5321, %v5429
        %v5520 = vmul.f32 %v5321, %v5433
        %v5521 = vmul.f32 %v5321, %v5437
        %v5522 = vmul.f32 %v5321, %v5441
        %v5523 = vmul.f32 %v5326, %v5409
        %v5524 = vmul.f32 %v5326, %v5413
        %v5525 = vmul.f32 %v5326, %v5417
        %v5526 = vmul.f32 %v5326, %v5421
        %v5527 = vmul.f32 %v5326, %v5425
        %v5528 = vmul.f32 %v5326, %v5429
        %v5529 = vmul.f32 %v5326, %v5433
        %v5530 = vmul.f32 %v5326, %v5437
        %v5531 = vmul.f32 %v5326, %v5441
        %v5532 = vmul.f32 %v5331, %v5409
        %v5533 = vmul.f32 %v5331, %v5413
        %v5534 = vmul.f32 %v5331, %v5417
        %v5535 = vmul.f32 %v5331, %v5421
        %v5536 = vmul.f32 %v5331, %v5425
        %v5537 = vmul.f32 %v5331, %v5429
        %v5538 = vmul.f32 %v5331, %v5433
        %v5539 = vmul.f32 %v5331, %v5437
        %v5540 = vmul.f32 %v5331, %v5441
        %v5541 = vmul.f32 %v5336, %v5409
        %v5542 = vmul.f32 %v5336, %v5413
        %v5543 = vmul.f32 %v5336, %v5417
        %v5544 = vmul.f32 %v5336, %v5421
        %v5545 = vmul.f32 %v5336, %v5425
        %v5546 = vmul.f32 %v5336, %v5429
        %v5547 = vmul.f32 %v5336, %v5433
        %v5548 = vmul.f32 %v5336, %v5437
        %v5549 = vmul.f32 %v5336, %v5441
        %v5550 = vmul.f32 %v5341, %v5409
        %v5551 = vmul.f32 %v5341, %v5413
        %v5552 = vmul.f32 %v5341, %v5417
        %v5553 = vmul.f32 %v5341, %v5421
        %v5554 = vmul.f32 %v5341, %v5425
        %v5555 = vmul.f32 %v5341, %v5429
        %v5556 = vmul.f32 %v5341, %v5433
        %v5557 = vmul.f32 %v5341, %v5437
        %v5558 = vmul.f32 %v5341, %v5441
        %v5559 = vmul.f32 %v5346, %v5409
        %v5560 = vmul.f32 %v5346, %v5413
        %v5561 = vmul.f32 %v5346, %v5417
        %v5562 = vmul.f32 %v5346, %v5421
        %v5563 = vmul.f32 %v5346, %v5425
        %v5564 = vmul.f32 %v5346, %v5429
        %v5565 = vmul.f32 %v5346, %v5433
        %v5566 = vmul.f32 %v5346, %v5437
        %v5567 = vmul.f32 %v5346, %v5441
        %v5568 = vmul.f32 %v5351, %v5409
        %v5569 = vmul.f32 %v5351, %v5413
        %v5570 = vmul.f32 %v5351, %v5417
        %v5571 = vmul.f32 %v5351, %v5421
        %v5572 = vmul.f32 %v5351, %v5425
        %v5573 = vmul.f32 %v5351, %v5429
        %v5574 = vmul.f32 %v5351, %v5433
        %v5575 = vmul.f32 %v5351, %v5437
        %v5576 = vmul.f32 %v5351, %v5441
        %v5577 = vmul.f32 %v5356, %v5409
        %v5578 = vmul.f32 %v5356, %v5413
        %v5579 = vmul.f32 %v5356, %v5417
        %v5580 = vmul.f32 %v5356, %v5421
        %v5581 = vmul.f32 %v5356, %v5425
        %v5582 = vmul.f32 %v5356, %v5429
        %v5583 = vmul.f32 %v5356, %v5433
        %v5584 = vmul.f32 %v5356, %v5437
        %v5585 = vmul.f32 %v5356, %v5441
        %5586 = vset.pattern.permute.xlu0 1
        %5587 = vperm.xlu0 %5586, %v5259
        %v5588 = vpop.permute.xlu0 %5587
        %5590 = vset.pattern.permute.xlu0 1
        %5591 = vperm.xlu0 %5590, %v5260
        %v5592 = vpop.permute.xlu0 %5591
        %5594 = vset.pattern.permute.xlu0 1
        %5595 = vperm.xlu0 %5594, %v5261
        %v5596 = vpop.permute.xlu0 %5595
        %5598 = vset.pattern.permute.xlu0 1
        %5599 = vperm.xlu0 %5598, %v5262
        %v5600 = vpop.permute.xlu0 %5599
        %5602 = vset.pattern.permute.xlu0 1
        %5603 = vperm.xlu0 %5602, %v5263
        %v5604 = vpop.permute.xlu0 %5603
        %5606 = vset.pattern.permute.xlu0 1
        %5607 = vperm.xlu0 %5606, %v5264
        %v5608 = vpop.permute.xlu0 %5607
        %5610 = vset.pattern.permute.xlu0 1
        %5611 = vperm.xlu0 %5610, %v5265
        %v5612 = vpop.permute.xlu0 %5611
        %5614 = vset.pattern.permute.xlu0 1
        %5615 = vperm.xlu0 %5614, %v5266
        %v5616 = vpop.permute.xlu0 %5615
        %5618 = vset.pattern.permute.xlu0 1
        %5619 = vperm.xlu0 %5618, %v5267
        %v5620 = vpop.permute.xlu0 %5619
        %5622 = vset.pattern.permute.xlu0 1
        %5623 = vperm.xlu0 %5622, %v5268
        %v5624 = vpop.permute.xlu0 %5623
        %5626 = vset.pattern.permute.xlu0 1
        %5627 = vperm.xlu0 %5626, %v5269
        %v5628 = vpop.permute.xlu0 %5627
        %5630 = vset.pattern.permute.xlu0 1
        %5631 = vperm.xlu0 %5630, %v5270
        %v5632 = vpop.permute.xlu0 %5631
        %5634 = vset.pattern.permute.xlu0 1
        %5635 = vperm.xlu0 %5634, %v5271
        %v5636 = vpop.permute.xlu0 %5635
        %5638 = vset.pattern.permute.xlu0 1
        %5639 = vperm.xlu0 %5638, %v5272
        %v5640 = vpop.permute.xlu0 %5639
        %5642 = vset.pattern.permute.xlu0 1
        %5643 = vperm.xlu0 %5642, %v5273
        %v5644 = vpop.permute.xlu0 %5643
        %5646 = vset.pattern.permute.xlu0 1
        %5647 = vperm.xlu0 %5646, %v5274
        %v5648 = vpop.permute.xlu0 %5647
        %v5650 = vlaneseq
        %v5651 = vshrl.u32 %v5650, 7
        %v5652 = vsub.s32 1, %v5651
        %v5653 = vrot.slane %v5275, %v5652
        %v5654 = vlaneseq
        %v5655 = vshrl.u32 %v5654, 7
        %v5656 = vsub.s32 3, %v5655
        %v5657 = vrot.slane %v5275, %v5656
        %v5658 = vlaneseq
        %v5659 = vshrl.u32 %v5658, 7
        %v5660 = vsub.s32 5, %v5659
        %v5661 = vrot.slane %v5275, %v5660
        %v5662 = vlaneseq
        %v5663 = vshrl.u32 %v5662, 7
        %v5664 = vsub.s32 7, %v5663
        %v5665 = vrot.slane %v5275, %v5664
        %v5666 = vlaneseq
        %v5667 = vshrl.u32 %v5666, 7
        %v5668 = vsub.s32 1, %v5667
        %v5669 = vrot.slane %v5276, %v5668
        %v5670 = vlaneseq
        %v5671 = vshrl.u32 %v5670, 7
        %v5672 = vsub.s32 3, %v5671
        %v5673 = vrot.slane %v5276, %v5672
        %v5674 = vlaneseq
        %v5675 = vshrl.u32 %v5674, 7
        %v5676 = vsub.s32 5, %v5675
        %v5677 = vrot.slane %v5276, %v5676
        %v5678 = vlaneseq
        %v5679 = vshrl.u32 %v5678, 7
        %v5680 = vsub.s32 7, %v5679
        %v5681 = vrot.slane %v5276, %v5680
        %v5682 = vlaneseq
        %v5683 = vshrl.u32 %v5682, 7
        %v5684 = vsub.s32 1, %v5683
        %v5685 = vrot.slane %v5277, %v5684
        %v5695 = vlaneseq
        %v5696 = vshrl.u32 %v5695, 7
        %v5697 = vsub.s32 1, %v5696
        %v5698 = vrot.slane %v5653, %v5697
        %v5699 = vlaneseq
        %v5700 = vshrl.u32 %v5699, 7
        %v5701 = vsub.s32 1, %v5700
        %v5702 = vrot.slane %v5657, %v5701
        %v5703 = vlaneseq
        %v5704 = vshrl.u32 %v5703, 7
        %v5705 = vsub.s32 1, %v5704
        %v5706 = vrot.slane %v5661, %v5705
        %v5707 = vlaneseq
        %v5708 = vshrl.u32 %v5707, 7
        %v5709 = vsub.s32 1, %v5708
        %v5710 = vrot.slane %v5665, %v5709
        %v5711 = vlaneseq
        %v5712 = vshrl.u32 %v5711, 7
        %v5713 = vsub.s32 1, %v5712
        %v5714 = vrot.slane %v5669, %v5713
        %v5715 = vlaneseq
        %v5716 = vshrl.u32 %v5715, 7
        %v5717 = vsub.s32 1, %v5716
        %v5718 = vrot.slane %v5673, %v5717
        %v5719 = vlaneseq
        %v5720 = vshrl.u32 %v5719, 7
        %v5721 = vsub.s32 1, %v5720
        %v5722 = vrot.slane %v5677, %v5721
        %v5723 = vlaneseq
        %v5724 = vshrl.u32 %v5723, 7
        %v5725 = vsub.s32 1, %v5724
        %v5726 = vrot.slane %v5681, %v5725
        %v5727 = vlaneseq
        %v5728 = vshrl.u32 %v5727, 7
        %v5729 = vsub.s32 1, %v5728
        %v5730 = vrot.slane %v5685, %v5729
        %v5731 = vmul.f32 %v5588, %v5698
        %v5732 = vmul.f32 %v5588, %v5702
        %v5733 = vmul.f32 %v5588, %v5706
        %v5734 = vmul.f32 %v5588, %v5710
        %v5735 = vmul.f32 %v5588, %v5714
        %v5736 = vmul.f32 %v5588, %v5718
        %v5737 = vmul.f32 %v5588, %v5722
        %v5738 = vmul.f32 %v5588, %v5726
        %v5739 = vmul.f32 %v5588, %v5730
        %v5740 = vmul.f32 %v5592, %v5698
        %v5741 = vmul.f32 %v5592, %v5702
        %v5742 = vmul.f32 %v5592, %v5706
        %v5743 = vmul.f32 %v5592, %v5710
        %v5744 = vmul.f32 %v5592, %v5714
        %v5745 = vmul.f32 %v5592, %v5718
        %v5746 = vmul.f32 %v5592, %v5722
        %v5747 = vmul.f32 %v5592, %v5726
        %v5748 = vmul.f32 %v5592, %v5730
        %v5749 = vmul.f32 %v5596, %v5698
        %v5750 = vmul.f32 %v5596, %v5702
        %v5751 = vmul.f32 %v5596, %v5706
        %v5752 = vmul.f32 %v5596, %v5710
        %v5753 = vmul.f32 %v5596, %v5714
        %v5754 = vmul.f32 %v5596, %v5718
        %v5755 = vmul.f32 %v5596, %v5722
        %v5756 = vmul.f32 %v5596, %v5726
        %v5757 = vmul.f32 %v5596, %v5730
        %v5758 = vmul.f32 %v5600, %v5698
        %v5759 = vmul.f32 %v5600, %v5702
        %v5760 = vmul.f32 %v5600, %v5706
        %v5761 = vmul.f32 %v5600, %v5710
        %v5762 = vmul.f32 %v5600, %v5714
        %v5763 = vmul.f32 %v5600, %v5718
        %v5764 = vmul.f32 %v5600, %v5722
        %v5765 = vmul.f32 %v5600, %v5726
        %v5766 = vmul.f32 %v5600, %v5730
        %v5767 = vmul.f32 %v5604, %v5698
        %v5768 = vmul.f32 %v5604, %v5702
        %v5769 = vmul.f32 %v5604, %v5706
        %v5770 = vmul.f32 %v5604, %v5710
        %v5771 = vmul.f32 %v5604, %v5714
        %v5772 = vmul.f32 %v5604, %v5718
        %v5773 = vmul.f32 %v5604, %v5722
        %v5774 = vmul.f32 %v5604, %v5726
        %v5775 = vmul.f32 %v5604, %v5730
        %v5776 = vmul.f32 %v5608, %v5698
        %v5777 = vmul.f32 %v5608, %v5702
        %v5778 = vmul.f32 %v5608, %v5706
        %v5779 = vmul.f32 %v5608, %v5710
        %v5780 = vmul.f32 %v5608, %v5714
        %v5781 = vmul.f32 %v5608, %v5718
        %v5782 = vmul.f32 %v5608, %v5722
        %v5783 = vmul.f32 %v5608, %v5726
        %v5784 = vmul.f32 %v5608, %v5730
        %v5785 = vmul.f32 %v5612, %v5698
        %v5786 = vmul.f32 %v5612, %v5702
        %v5787 = vmul.f32 %v5612, %v5706
        %v5788 = vmul.f32 %v5612, %v5710
        %v5789 = vmul.f32 %v5612, %v5714
        %v5790 = vmul.f32 %v5612, %v5718
        %v5791 = vmul.f32 %v5612, %v5722
        %v5792 = vmul.f32 %v5612, %v5726
        %v5793 = vmul.f32 %v5612, %v5730
        %v5794 = vmul.f32 %v5616, %v5698
        %v5795 = vmul.f32 %v5616, %v5702
        %v5796 = vmul.f32 %v5616, %v5706
        %v5797 = vmul.f32 %v5616, %v5710
        %v5798 = vmul.f32 %v5616, %v5714
        %v5799 = vmul.f32 %v5616, %v5718
        %v5800 = vmul.f32 %v5616, %v5722
        %v5801 = vmul.f32 %v5616, %v5726
        %v5802 = vmul.f32 %v5616, %v5730
        %v5803 = vmul.f32 %v5620, %v5698
        %v5804 = vmul.f32 %v5620, %v5702
        %v5805 = vmul.f32 %v5620, %v5706
        %v5806 = vmul.f32 %v5620, %v5710
        %v5807 = vmul.f32 %v5620, %v5714
        %v5808 = vmul.f32 %v5620, %v5718
        %v5809 = vmul.f32 %v5620, %v5722
        %v5810 = vmul.f32 %v5620, %v5726
        %v5811 = vmul.f32 %v5620, %v5730
        %v5812 = vmul.f32 %v5624, %v5698
        %v5813 = vmul.f32 %v5624, %v5702
        %v5814 = vmul.f32 %v5624, %v5706
        %v5815 = vmul.f32 %v5624, %v5710
        %v5816 = vmul.f32 %v5624, %v5714
        %v5817 = vmul.f32 %v5624, %v5718
        %v5818 = vmul.f32 %v5624, %v5722
        %v5819 = vmul.f32 %v5624, %v5726
        %v5820 = vmul.f32 %v5624, %v5730
        %v5821 = vmul.f32 %v5628, %v5698
        %v5822 = vmul.f32 %v5628, %v5702
        %v5823 = vmul.f32 %v5628, %v5706
        %v5824 = vmul.f32 %v5628, %v5710
        %v5825 = vmul.f32 %v5628, %v5714
        %v5826 = vmul.f32 %v5628, %v5718
        %v5827 = vmul.f32 %v5628, %v5722
        %v5828 = vmul.f32 %v5628, %v5726
        %v5829 = vmul.f32 %v5628, %v5730
        %v5830 = vmul.f32 %v5632, %v5698
        %v5831 = vmul.f32 %v5632, %v5702
        %v5832 = vmul.f32 %v5632, %v5706
        %v5833 = vmul.f32 %v5632, %v5710
        %v5834 = vmul.f32 %v5632, %v5714
        %v5835 = vmul.f32 %v5632, %v5718
        %v5836 = vmul.f32 %v5632, %v5722
        %v5837 = vmul.f32 %v5632, %v5726
        %v5838 = vmul.f32 %v5632, %v5730
        %v5839 = vmul.f32 %v5636, %v5698
        %v5840 = vmul.f32 %v5636, %v5702
        %v5841 = vmul.f32 %v5636, %v5706
        %v5842 = vmul.f32 %v5636, %v5710
        %v5843 = vmul.f32 %v5636, %v5714
        %v5844 = vmul.f32 %v5636, %v5718
        %v5845 = vmul.f32 %v5636, %v5722
        %v5846 = vmul.f32 %v5636, %v5726
        %v5847 = vmul.f32 %v5636, %v5730
        %v5848 = vmul.f32 %v5640, %v5698
        %v5849 = vmul.f32 %v5640, %v5702
        %v5850 = vmul.f32 %v5640, %v5706
        %v5851 = vmul.f32 %v5640, %v5710
        %v5852 = vmul.f32 %v5640, %v5714
        %v5853 = vmul.f32 %v5640, %v5718
        %v5854 = vmul.f32 %v5640, %v5722
        %v5855 = vmul.f32 %v5640, %v5726
        %v5856 = vmul.f32 %v5640, %v5730
        %v5857 = vmul.f32 %v5644, %v5698
        %v5858 = vmul.f32 %v5644, %v5702
        %v5859 = vmul.f32 %v5644, %v5706
        %v5860 = vmul.f32 %v5644, %v5710
        %v5861 = vmul.f32 %v5644, %v5714
        %v5862 = vmul.f32 %v5644, %v5718
        %v5863 = vmul.f32 %v5644, %v5722
        %v5864 = vmul.f32 %v5644, %v5726
        %v5865 = vmul.f32 %v5644, %v5730
        %v5866 = vmul.f32 %v5648, %v5698
        %v5867 = vmul.f32 %v5648, %v5702
        %v5868 = vmul.f32 %v5648, %v5706
        %v5869 = vmul.f32 %v5648, %v5710
        %v5870 = vmul.f32 %v5648, %v5714
        %v5871 = vmul.f32 %v5648, %v5718
        %v5872 = vmul.f32 %v5648, %v5722
        %v5873 = vmul.f32 %v5648, %v5726
        %v5874 = vmul.f32 %v5648, %v5730
        %v5875 = vadd.f32 %v5442, %v5731
        %v5876 = vadd.f32 %v5443, %v5732
        %v5877 = vadd.f32 %v5444, %v5733
        %v5878 = vadd.f32 %v5445, %v5734
        %v5879 = vadd.f32 %v5446, %v5735
        %v5880 = vadd.f32 %v5447, %v5736
        %v5881 = vadd.f32 %v5448, %v5737
        %v5882 = vadd.f32 %v5449, %v5738
        %v5883 = vadd.f32 %v5450, %v5739
        %v5884 = vadd.f32 %v5451, %v5740
        %v5885 = vadd.f32 %v5452, %v5741
        %v5886 = vadd.f32 %v5453, %v5742
        %v5887 = vadd.f32 %v5454, %v5743
        %v5888 = vadd.f32 %v5455, %v5744
        %v5889 = vadd.f32 %v5456, %v5745
        %v5890 = vadd.f32 %v5457, %v5746
        %v5891 = vadd.f32 %v5458, %v5747
        %v5892 = vadd.f32 %v5459, %v5748
        %v5893 = vadd.f32 %v5460, %v5749
        %v5894 = vadd.f32 %v5461, %v5750
        %v5895 = vadd.f32 %v5462, %v5751
        %v5896 = vadd.f32 %v5463, %v5752
        %v5897 = vadd.f32 %v5464, %v5753
        %v5898 = vadd.f32 %v5465, %v5754
        %v5899 = vadd.f32 %v5466, %v5755
        %v5900 = vadd.f32 %v5467, %v5756
        %v5901 = vadd.f32 %v5468, %v5757
        %v5902 = vadd.f32 %v5469, %v5758
        %v5903 = vadd.f32 %v5470, %v5759
        %v5904 = vadd.f32 %v5471, %v5760
        %v5905 = vadd.f32 %v5472, %v5761
        %v5906 = vadd.f32 %v5473, %v5762
        %v5907 = vadd.f32 %v5474, %v5763
        %v5908 = vadd.f32 %v5475, %v5764
        %v5909 = vadd.f32 %v5476, %v5765
        %v5910 = vadd.f32 %v5477, %v5766
        %v5911 = vadd.f32 %v5478, %v5767
        %v5912 = vadd.f32 %v5479, %v5768
        %v5913 = vadd.f32 %v5480, %v5769
        %v5914 = vadd.f32 %v5481, %v5770
        %v5915 = vadd.f32 %v5482, %v5771
        %v5916 = vadd.f32 %v5483, %v5772
        %v5917 = vadd.f32 %v5484, %v5773
        %v5918 = vadd.f32 %v5485, %v5774
        %v5919 = vadd.f32 %v5486, %v5775
        %v5920 = vadd.f32 %v5487, %v5776
        %v5921 = vadd.f32 %v5488, %v5777
        %v5922 = vadd.f32 %v5489, %v5778
        %v5923 = vadd.f32 %v5490, %v5779
        %v5924 = vadd.f32 %v5491, %v5780
        %v5925 = vadd.f32 %v5492, %v5781
        %v5926 = vadd.f32 %v5493, %v5782
        %v5927 = vadd.f32 %v5494, %v5783
        %v5928 = vadd.f32 %v5495, %v5784
        %v5929 = vadd.f32 %v5496, %v5785
        %v5930 = vadd.f32 %v5497, %v5786
        %v5931 = vadd.f32 %v5498, %v5787
        %v5932 = vadd.f32 %v5499, %v5788
        %v5933 = vadd.f32 %v5500, %v5789
        %v5934 = vadd.f32 %v5501, %v5790
        %v5935 = vadd.f32 %v5502, %v5791
        %v5936 = vadd.f32 %v5503, %v5792
        %v5937 = vadd.f32 %v5504, %v5793
        %v5938 = vadd.f32 %v5505, %v5794
        %v5939 = vadd.f32 %v5506, %v5795
        %v5940 = vadd.f32 %v5507, %v5796
        %v5941 = vadd.f32 %v5508, %v5797
        %v5942 = vadd.f32 %v5509, %v5798
        %v5943 = vadd.f32 %v5510, %v5799
        %v5944 = vadd.f32 %v5511, %v5800
        %v5945 = vadd.f32 %v5512, %v5801
        %v5946 = vadd.f32 %v5513, %v5802
        %v5947 = vadd.f32 %v5514, %v5803
        %v5948 = vadd.f32 %v5515, %v5804
        %v5949 = vadd.f32 %v5516, %v5805
        %v5950 = vadd.f32 %v5517, %v5806
        %v5951 = vadd.f32 %v5518, %v5807
        %v5952 = vadd.f32 %v5519, %v5808
        %v5953 = vadd.f32 %v5520, %v5809
        %v5954 = vadd.f32 %v5521, %v5810
        %v5955 = vadd.f32 %v5522, %v5811
        %v5956 = vadd.f32 %v5523, %v5812
        %v5957 = vadd.f32 %v5524, %v5813
        %v5958 = vadd.f32 %v5525, %v5814
        %v5959 = vadd.f32 %v5526, %v5815
        %v5960 = vadd.f32 %v5527, %v5816
        %v5961 = vadd.f32 %v5528, %v5817
        %v5962 = vadd.f32 %v5529, %v5818
        %v5963 = vadd.f32 %v5530, %v5819
        %v5964 = vadd.f32 %v5531, %v5820
        %v5965 = vadd.f32 %v5532, %v5821
        %v5966 = vadd.f32 %v5533, %v5822
        %v5967 = vadd.f32 %v5534, %v5823
        %v5968 = vadd.f32 %v5535, %v5824
        %v5969 = vadd.f32 %v5536, %v5825
        %v5970 = vadd.f32 %v5537, %v5826
        %v5971 = vadd.f32 %v5538, %v5827
        %v5972 = vadd.f32 %v5539, %v5828
        %v5973 = vadd.f32 %v5540, %v5829
        %v5974 = vadd.f32 %v5541, %v5830
        %v5975 = vadd.f32 %v5542, %v5831
        %v5976 = vadd.f32 %v5543, %v5832
        %v5977 = vadd.f32 %v5544, %v5833
        %v5978 = vadd.f32 %v5545, %v5834
        %v5979 = vadd.f32 %v5546, %v5835
        %v5980 = vadd.f32 %v5547, %v5836
        %v5981 = vadd.f32 %v5548, %v5837
        %v5982 = vadd.f32 %v5549, %v5838
        %v5983 = vadd.f32 %v5550, %v5839
        %v5984 = vadd.f32 %v5551, %v5840
        %v5985 = vadd.f32 %v5552, %v5841
        %v5986 = vadd.f32 %v5553, %v5842
        %v5987 = vadd.f32 %v5554, %v5843
        %v5988 = vadd.f32 %v5555, %v5844
        %v5989 = vadd.f32 %v5556, %v5845
        %v5990 = vadd.f32 %v5557, %v5846
        %v5991 = vadd.f32 %v5558, %v5847
        %v5992 = vadd.f32 %v5559, %v5848
        %v5993 = vadd.f32 %v5560, %v5849
        %v5994 = vadd.f32 %v5561, %v5850
        %v5995 = vadd.f32 %v5562, %v5851
        %v5996 = vadd.f32 %v5563, %v5852
        %v5997 = vadd.f32 %v5564, %v5853
        %v5998 = vadd.f32 %v5565, %v5854
        %v5999 = vadd.f32 %v5566, %v5855
        %v6000 = vadd.f32 %v5567, %v5856
        %v6001 = vadd.f32 %v5568, %v5857
        %v6002 = vadd.f32 %v5569, %v5858
        %v6003 = vadd.f32 %v5570, %v5859
        %v6004 = vadd.f32 %v5571, %v5860
        %v6005 = vadd.f32 %v5572, %v5861
        %v6006 = vadd.f32 %v5573, %v5862
        %v6007 = vadd.f32 %v5574, %v5863
        %v6008 = vadd.f32 %v5575, %v5864
        %v6009 = vadd.f32 %v5576, %v5865
        %v6010 = vadd.f32 %v5577, %v5866
        %v6011 = vadd.f32 %v5578, %v5867
        %v6012 = vadd.f32 %v5579, %v5868
        %v6013 = vadd.f32 %v5580, %v5869
        %v6014 = vadd.f32 %v5581, %v5870
        %v6015 = vadd.f32 %v5582, %v5871
        %v6016 = vadd.f32 %v5583, %v5872
        %v6017 = vadd.f32 %v5584, %v5873
        %v6018 = vadd.f32 %v5585, %v5874
        %v6019 = vmul.f32 %v5115, %v5875
        %v6020 = vmul.f32 %v5116, %v5876
        %v6021 = vmul.f32 %v5117, %v5877
        %v6022 = vmul.f32 %v5118, %v5878
        %v6023 = vmul.f32 %v5119, %v5879
        %v6024 = vmul.f32 %v5120, %v5880
        %v6025 = vmul.f32 %v5121, %v5881
        %v6026 = vmul.f32 %v5122, %v5882
        %v6027 = vmul.f32 %v5123, %v5883
        %v6028 = vmul.f32 %v5124, %v5884
        %v6029 = vmul.f32 %v5125, %v5885
        %v6030 = vmul.f32 %v5126, %v5886
        %v6031 = vmul.f32 %v5127, %v5887
        %v6032 = vmul.f32 %v5128, %v5888
        %v6033 = vmul.f32 %v5129, %v5889
        %v6034 = vmul.f32 %v5130, %v5890
        %v6035 = vmul.f32 %v5131, %v5891
        %v6036 = vmul.f32 %v5132, %v5892
        %v6037 = vmul.f32 %v5133, %v5893
        %v6038 = vmul.f32 %v5134, %v5894
        %v6039 = vmul.f32 %v5135, %v5895
        %v6040 = vmul.f32 %v5136, %v5896
        %v6041 = vmul.f32 %v5137, %v5897
        %v6042 = vmul.f32 %v5138, %v5898
        %v6043 = vmul.f32 %v5139, %v5899
        %v6044 = vmul.f32 %v5140, %v5900
        %v6045 = vmul.f32 %v5141, %v5901
        %v6046 = vmul.f32 %v5142, %v5902
        %v6047 = vmul.f32 %v5143, %v5903
        %v6048 = vmul.f32 %v5144, %v5904
        %v6049 = vmul.f32 %v5145, %v5905
        %v6050 = vmul.f32 %v5146, %v5906
        %v6051 = vmul.f32 %v5147, %v5907
        %v6052 = vmul.f32 %v5148, %v5908
        %v6053 = vmul.f32 %v5149, %v5909
        %v6054 = vmul.f32 %v5150, %v5910
        %v6055 = vmul.f32 %v5151, %v5911
        %v6056 = vmul.f32 %v5152, %v5912
        %v6057 = vmul.f32 %v5153, %v5913
        %v6058 = vmul.f32 %v5154, %v5914
        %v6059 = vmul.f32 %v5155, %v5915
        %v6060 = vmul.f32 %v5156, %v5916
        %v6061 = vmul.f32 %v5157, %v5917
        %v6062 = vmul.f32 %v5158, %v5918
        %v6063 = vmul.f32 %v5159, %v5919
        %v6064 = vmul.f32 %v5160, %v5920
        %v6065 = vmul.f32 %v5161, %v5921
        %v6066 = vmul.f32 %v5162, %v5922
        %v6067 = vmul.f32 %v5163, %v5923
        %v6068 = vmul.f32 %v5164, %v5924
        %v6069 = vmul.f32 %v5165, %v5925
        %v6070 = vmul.f32 %v5166, %v5926
        %v6071 = vmul.f32 %v5167, %v5927
        %v6072 = vmul.f32 %v5168, %v5928
        %v6073 = vmul.f32 %v5169, %v5929
        %v6074 = vmul.f32 %v5170, %v5930
        %v6075 = vmul.f32 %v5171, %v5931
        %v6076 = vmul.f32 %v5172, %v5932
        %v6077 = vmul.f32 %v5173, %v5933
        %v6078 = vmul.f32 %v5174, %v5934
        %v6079 = vmul.f32 %v5175, %v5935
        %v6080 = vmul.f32 %v5176, %v5936
        %v6081 = vmul.f32 %v5177, %v5937
        %v6082 = vmul.f32 %v5178, %v5938
        %v6083 = vmul.f32 %v5179, %v5939
        %v6084 = vmul.f32 %v5180, %v5940
        %v6085 = vmul.f32 %v5181, %v5941
        %v6086 = vmul.f32 %v5182, %v5942
        %v6087 = vmul.f32 %v5183, %v5943
        %v6088 = vmul.f32 %v5184, %v5944
        %v6089 = vmul.f32 %v5185, %v5945
        %v6090 = vmul.f32 %v5186, %v5946
        %v6091 = vmul.f32 %v5187, %v5947
        %v6092 = vmul.f32 %v5188, %v5948
        %v6093 = vmul.f32 %v5189, %v5949
        %v6094 = vmul.f32 %v5190, %v5950
        %v6095 = vmul.f32 %v5191, %v5951
        %v6096 = vmul.f32 %v5192, %v5952
        %v6097 = vmul.f32 %v5193, %v5953
        %v6098 = vmul.f32 %v5194, %v5954
        %v6099 = vmul.f32 %v5195, %v5955
        %v6100 = vmul.f32 %v5196, %v5956
        %v6101 = vmul.f32 %v5197, %v5957
        %v6102 = vmul.f32 %v5198, %v5958
        %v6103 = vmul.f32 %v5199, %v5959
        %v6104 = vmul.f32 %v5200, %v5960
        %v6105 = vmul.f32 %v5201, %v5961
        %v6106 = vmul.f32 %v5202, %v5962
        %v6107 = vmul.f32 %v5203, %v5963
        %v6108 = vmul.f32 %v5204, %v5964
        %v6109 = vmul.f32 %v5205, %v5965
        %v6110 = vmul.f32 %v5206, %v5966
        %v6111 = vmul.f32 %v5207, %v5967
        %v6112 = vmul.f32 %v5208, %v5968
        %v6113 = vmul.f32 %v5209, %v5969
        %v6114 = vmul.f32 %v5210, %v5970
        %v6115 = vmul.f32 %v5211, %v5971
        %v6116 = vmul.f32 %v5212, %v5972
        %v6117 = vmul.f32 %v5213, %v5973
        %v6118 = vmul.f32 %v5214, %v5974
        %v6119 = vmul.f32 %v5215, %v5975
        %v6120 = vmul.f32 %v5216, %v5976
        %v6121 = vmul.f32 %v5217, %v5977
        %v6122 = vmul.f32 %v5218, %v5978
        %v6123 = vmul.f32 %v5219, %v5979
        %v6124 = vmul.f32 %v5220, %v5980
        %v6125 = vmul.f32 %v5221, %v5981
        %v6126 = vmul.f32 %v5222, %v5982
        %v6127 = vmul.f32 %v5223, %v5983
        %v6128 = vmul.f32 %v5224, %v5984
        %v6129 = vmul.f32 %v5225, %v5985
        %v6130 = vmul.f32 %v5226, %v5986
        %v6131 = vmul.f32 %v5227, %v5987
        %v6132 = vmul.f32 %v5228, %v5988
        %v6133 = vmul.f32 %v5229, %v5989
        %v6134 = vmul.f32 %v5230, %v5990
        %v6135 = vmul.f32 %v5231, %v5991
        %v6136 = vmul.f32 %v5232, %v5992
        %v6137 = vmul.f32 %v5233, %v5993
        %v6138 = vmul.f32 %v5234, %v5994
        %v6139 = vmul.f32 %v5235, %v5995
        %v6140 = vmul.f32 %v5236, %v5996
        %v6141 = vmul.f32 %v5237, %v5997
        %v6142 = vmul.f32 %v5238, %v5998
        %v6143 = vmul.f32 %v5239, %v5999
        %v6144 = vmul.f32 %v5240, %v6000
        %v6145 = vmul.f32 %v5241, %v6001
        %v6146 = vmul.f32 %v5242, %v6002
        %v6147 = vmul.f32 %v5243, %v6003
        %v6148 = vmul.f32 %v5244, %v6004
        %v6149 = vmul.f32 %v5245, %v6005
        %v6150 = vmul.f32 %v5246, %v6006
        %v6151 = vmul.f32 %v5247, %v6007
        %v6152 = vmul.f32 %v5248, %v6008
        %v6153 = vmul.f32 %v5249, %v6009
        %v6154 = vmul.f32 %v5250, %v6010
        %v6155 = vmul.f32 %v5251, %v6011
        %v6156 = vmul.f32 %v5252, %v6012
        %v6157 = vmul.f32 %v5253, %v6013
        %v6158 = vmul.f32 %v5254, %v6014
        %v6159 = vmul.f32 %v5255, %v6015
        %v6160 = vmul.f32 %v5256, %v6016
        %v6161 = vmul.f32 %v5257, %v6017
        %v6162 = vmul.f32 %v5258, %v6018
        %v6163 = vpack.c.bf16 %v6028, %v6019
        %v6164 = vpack.c.bf16 %v6029, %v6020
        %v6165 = vpack.c.bf16 %v6030, %v6021
        %v6166 = vpack.c.bf16 %v6031, %v6022
        %v6167 = vpack.c.bf16 %v6032, %v6023
        %v6168 = vpack.c.bf16 %v6033, %v6024
        %v6169 = vpack.c.bf16 %v6034, %v6025
        %v6170 = vpack.c.bf16 %v6035, %v6026
        %v6171 = vpack.c.bf16 %v6036, %v6027
        %v6172 = vpack.c.bf16 %v6046, %v6037
        %v6173 = vpack.c.bf16 %v6047, %v6038
        %v6174 = vpack.c.bf16 %v6048, %v6039
        %v6175 = vpack.c.bf16 %v6049, %v6040
        %v6176 = vpack.c.bf16 %v6050, %v6041
        %v6177 = vpack.c.bf16 %v6051, %v6042
        %v6178 = vpack.c.bf16 %v6052, %v6043
        %v6179 = vpack.c.bf16 %v6053, %v6044
        %v6180 = vpack.c.bf16 %v6054, %v6045
        %v6181 = vpack.c.bf16 %v6064, %v6055
        %v6182 = vpack.c.bf16 %v6065, %v6056
        %v6183 = vpack.c.bf16 %v6066, %v6057
        %v6184 = vpack.c.bf16 %v6067, %v6058
        %v6185 = vpack.c.bf16 %v6068, %v6059
        %v6186 = vpack.c.bf16 %v6069, %v6060
        %v6187 = vpack.c.bf16 %v6070, %v6061
        %v6188 = vpack.c.bf16 %v6071, %v6062
        %v6189 = vpack.c.bf16 %v6072, %v6063
        %v6190 = vpack.c.bf16 %v6082, %v6073
        %v6191 = vpack.c.bf16 %v6083, %v6074
        %v6192 = vpack.c.bf16 %v6084, %v6075
        %v6193 = vpack.c.bf16 %v6085, %v6076
        %v6194 = vpack.c.bf16 %v6086, %v6077
        %v6195 = vpack.c.bf16 %v6087, %v6078
        %v6196 = vpack.c.bf16 %v6088, %v6079
        %v6197 = vpack.c.bf16 %v6089, %v6080
        %v6198 = vpack.c.bf16 %v6090, %v6081
        %v6199 = vpack.c.bf16 %v6100, %v6091
        %v6200 = vpack.c.bf16 %v6101, %v6092
        %v6201 = vpack.c.bf16 %v6102, %v6093
        %v6202 = vpack.c.bf16 %v6103, %v6094
        %v6203 = vpack.c.bf16 %v6104, %v6095
        %v6204 = vpack.c.bf16 %v6105, %v6096
        %v6205 = vpack.c.bf16 %v6106, %v6097
        %v6206 = vpack.c.bf16 %v6107, %v6098
        %v6207 = vpack.c.bf16 %v6108, %v6099
        %v6208 = vpack.c.bf16 %v6118, %v6109
        %v6209 = vpack.c.bf16 %v6119, %v6110
        %v6210 = vpack.c.bf16 %v6120, %v6111
        %v6211 = vpack.c.bf16 %v6121, %v6112
        %v6212 = vpack.c.bf16 %v6122, %v6113
        %v6213 = vpack.c.bf16 %v6123, %v6114
        %v6214 = vpack.c.bf16 %v6124, %v6115
        %v6215 = vpack.c.bf16 %v6125, %v6116
        %v6216 = vpack.c.bf16 %v6126, %v6117
        %v6217 = vpack.c.bf16 %v6136, %v6127
        %v6218 = vpack.c.bf16 %v6137, %v6128
        %v6219 = vpack.c.bf16 %v6138, %v6129
        %v6220 = vpack.c.bf16 %v6139, %v6130
        %v6221 = vpack.c.bf16 %v6140, %v6131
        %v6222 = vpack.c.bf16 %v6141, %v6132
        %v6223 = vpack.c.bf16 %v6142, %v6133
        %v6224 = vpack.c.bf16 %v6143, %v6134
        %v6225 = vpack.c.bf16 %v6144, %v6135
        %v6226 = vpack.c.bf16 %v6154, %v6145
        %v6227 = vpack.c.bf16 %v6155, %v6146
        %v6228 = vpack.c.bf16 %v6156, %v6147
        %v6229 = vpack.c.bf16 %v6157, %v6148
        %v6230 = vpack.c.bf16 %v6158, %v6149
        %v6231 = vpack.c.bf16 %v6159, %v6150
        %v6232 = vpack.c.bf16 %v6160, %v6151
        %v6233 = vpack.c.bf16 %v6161, %v6152
        %v6234 = vpack.c.bf16 %v6162, %v6153
        %v6235 = vld [vmem:[%s5] sm:$0xf]
        %v6236 = vld [vmem:[%s5 + $0x4] sm:$0xf]
        %v6237 = vld [vmem:[%s5 + $0x8] sm:$0x3]
        %v6238 = vld [vmem:[%s6] sm:$0xff]
        %v6239 = vld [vmem:[%s6 + $0x8] sm:$0xff]
        %v6240 = vld [vmem:[%s6 + $0x10] sm:$0x7]
        %6242 = vset.pattern.permute.xlu0 0
        %6243 = vperm.xlu0 %6242, %v6238
        %v6244 = vpop.permute.xlu0 %6243
        %6247 = vset.pattern.permute.xlu0 0
        %6248 = vperm.xlu0 %6247, %v6239
        %v6249 = vpop.permute.xlu0 %6248
        %6252 = vset.pattern.permute.xlu0 0
        %6253 = vperm.xlu0 %6252, %v6240
        %v6254 = vpop.permute.xlu0 %6253
        %v6259 = vunpack.c.l.b16 %v6235
        %v6260 = vunpack.c.l.b16 %v6236
        %v6261 = vunpack.c.l.b16 %v6237
        %v6262 = vpack.c.b16 %v6260, %v6259
        %v6263 = vpack.c.b16 %v6261, %v6261
        %6266 = vmatprep.subr.bf16.mxu0 %v6164
        %6267 = vmatpush1.bf16.msra.mxu0 %v6163
        %6268 = vmatprep.subr.bf16.mxu0 %v6173
        %6269 = vmatpush1.bf16.msra.mxu0 %v6172
        %6270 = vmatprep.subr.bf16.mxu0 %v6182
        %6271 = vmatpush1.bf16.msra.mxu0 %v6181
        %6272 = vmatprep.subr.bf16.mxu0 %v6191
        %6273 = vmatpush1.bf16.msra.mxu0 %v6190
        %6274 = vmatprep.subr.bf16.mxu0 %v6200
        %6275 = vmatpush1.bf16.msra.mxu0 %v6199
        %6276 = vmatprep.subr.bf16.mxu0 %v6209
        %6277 = vmatpush1.bf16.msra.mxu0 %v6208
        %6278 = vmatprep.subr.bf16.mxu0 %v6218
        %6279 = vmatpush1.bf16.msra.mxu0 %v6217
        %6280 = vmatprep.subr.bf16.mxu0 %v6227
        %6281 = vmatpush1.bf16.msra.mxu0 %v6226
        %6282 = vmatprep.subr.bf16.mxu0 0
        %6283 = vmatpush1.bf16.msra.mxu0 0
        %6284 = vmatprep.subr.bf16.mxu0 0
        %6285 = vmatpush1.bf16.msra.mxu0 0
        %6286 = vmatprep.subr.bf16.mxu0 0
        %6287 = vmatpush1.bf16.msra.mxu0 0
        %6288 = vmatprep.subr.bf16.mxu0 0
        %6289 = vmatpush1.bf16.msra.mxu0 0
        %6290 = vmatprep.subr.bf16.mxu0 0
        %6291 = vmatpush1.bf16.msra.mxu0 0
        %6292 = vmatprep.subr.bf16.mxu0 0
        %6293 = vmatpush1.bf16.msra.mxu0 0
        %6294 = vmatprep.subr.bf16.mxu0 0
        %6295 = vmatpush1.bf16.msra.mxu0 0
        %6296 = vmatprep.subr.bf16.mxu0 0
        %6297 = vmatpush1.bf16.msra.mxu0 0
        %6298 = vmatprep.mubr.bf16.mxu0 0
        %6299 = vmatmul.mubr.bf16.gmra.mrb[0].mxu0 %v6262
        %v6300 = vpop.f32.mrb[0].mxu0
        %v6301 = vadd.f32 %v6244, %v6300
        %v6302 = vpop.f32.mrb[0].mxu0
        %v6303 = vadd.f32 %v6244, %v6302
        %v6304 = vpop.f32.mrb[0].mxu0
        %v6305 = vadd.f32 %v6249, %v6304
        %v6306 = vpop.f32.mrb[0].mxu0
        %v6307 = vadd.f32 %v6249, %v6306
        %6308 = vmatprep.mubr.bf16.mxu0 0
        %6309 = vmatmul.mubr.bf16.gmra.mrb[0].mxu0 %v6263
        %v6310 = vpop.f32.mrb[0].mxu0
        %v6311 = vadd.f32 %v6254, %v6310
        %v6312 = vpop.f32.mrb[0].mxu0
        %v6313 = vadd.f32 %v6254, %v6312
        %v6314 = vpop.f32.mrb[0].mxu0
        %v6315 = vpop.f32.mrb[0].mxu0
        %6316 = vdwg.mxu0
        %6317 = vmatprep.subr.bf16.mxu0 %v6166
        %6318 = vmatpush1.bf16.msra.mxu0 %v6165
        %6319 = vmatprep.subr.bf16.mxu0 %v6175
        %6320 = vmatpush1.bf16.msra.mxu0 %v6174
        %6321 = vmatprep.subr.bf16.mxu0 %v6184
        %6322 = vmatpush1.bf16.msra.mxu0 %v6183
        %6323 = vmatprep.subr.bf16.mxu0 %v6193
        %6324 = vmatpush1.bf16.msra.mxu0 %v6192
        %6325 = vmatprep.subr.bf16.mxu0 %v6202
        %6326 = vmatpush1.bf16.msra.mxu0 %v6201
        %6327 = vmatprep.subr.bf16.mxu0 %v6211
        %6328 = vmatpush1.bf16.msra.mxu0 %v6210
        %6329 = vmatprep.subr.bf16.mxu0 %v6220
        %6330 = vmatpush1.bf16.msra.mxu0 %v6219
        %6331 = vmatprep.subr.bf16.mxu0 %v6229
        %6332 = vmatpush1.bf16.msra.mxu0 %v6228
        %6333 = vmatprep.subr.bf16.mxu0 0
        %6334 = vmatpush1.bf16.msra.mxu0 0
        %6335 = vmatprep.subr.bf16.mxu0 0
        %6336 = vmatpush1.bf16.msra.mxu0 0
        %6337 = vmatprep.subr.bf16.mxu0 0
        %6338 = vmatpush1.bf16.msra.mxu0 0
        %6339 = vmatprep.subr.bf16.mxu0 0
        %6340 = vmatpush1.bf16.msra.mxu0 0
        %6341 = vmatprep.subr.bf16.mxu0 0
        %6342 = vmatpush1.bf16.msra.mxu0 0
        %6343 = vmatprep.subr.bf16.mxu0 0
        %6344 = vmatpush1.bf16.msra.mxu0 0
        %6345 = vmatprep.subr.bf16.mxu0 0
        %6346 = vmatpush1.bf16.msra.mxu0 0
        %6347 = vmatprep.subr.bf16.mxu0 0
        %6348 = vmatpush1.bf16.msra.mxu0 0
        %6349 = vmatprep.mubr.bf16.mxu0 0
        %6350 = vmatmul.mubr.bf16.gmra.mrb[0].mxu0 %v6262
        %v6351 = vpop.f32.mrb[0].mxu0
        %v6352 = vadd.f32 %v6244, %v6351
        %v6353 = vpop.f32.mrb[0].mxu0
        %v6354 = vadd.f32 %v6244, %v6353
        %v6355 = vpop.f32.mrb[0].mxu0
        %v6356 = vadd.f32 %v6249, %v6355
        %v6357 = vpop.f32.mrb[0].mxu0
        %v6358 = vadd.f32 %v6249, %v6357
        %6359 = vmatprep.mubr.bf16.mxu0 0
        %6360 = vmatmul.mubr.bf16.gmra.mrb[0].mxu0 %v6263
        %v6361 = vpop.f32.mrb[0].mxu0
        %v6362 = vadd.f32 %v6254, %v6361
        %v6363 = vpop.f32.mrb[0].mxu0
        %v6364 = vadd.f32 %v6254, %v6363
        %v6365 = vpop.f32.mrb[0].mxu0
        %v6366 = vpop.f32.mrb[0].mxu0
        %6367 = vdwg.mxu0
        %6368 = vmatprep.subr.bf16.mxu0 %v6168
        %6369 = vmatpush1.bf16.msra.mxu0 %v6167
        %6370 = vmatprep.subr.bf16.mxu0 %v6177
        %6371 = vmatpush1.bf16.msra.mxu0 %v6176
        %6372 = vmatprep.subr.bf16.mxu0 %v6186
        %6373 = vmatpush1.bf16.msra.mxu0 %v6185
        %6374 = vmatprep.subr.bf16.mxu0 %v6195
        %6375 = vmatpush1.bf16.msra.mxu0 %v6194
        %6376 = vmatprep.subr.bf16.mxu0 %v6204
        %6377 = vmatpush1.bf16.msra.mxu0 %v6203
        %6378 = vmatprep.subr.bf16.mxu0 %v6213
        %6379 = vmatpush1.bf16.msra.mxu0 %v6212
        %6380 = vmatprep.subr.bf16.mxu0 %v6222
        %6381 = vmatpush1.bf16.msra.mxu0 %v6221
        %6382 = vmatprep.subr.bf16.mxu0 %v6231
        %6383 = vmatpush1.bf16.msra.mxu0 %v6230
        %6384 = vmatprep.subr.bf16.mxu0 0
        %6385 = vmatpush1.bf16.msra.mxu0 0
        %6386 = vmatprep.subr.bf16.mxu0 0
        %6387 = vmatpush1.bf16.msra.mxu0 0
        %6388 = vmatprep.subr.bf16.mxu0 0
        %6389 = vmatpush1.bf16.msra.mxu0 0
        %6390 = vmatprep.subr.bf16.mxu0 0
        %6391 = vmatpush1.bf16.msra.mxu0 0
        %6392 = vmatprep.subr.bf16.mxu0 0
        %6393 = vmatpush1.bf16.msra.mxu0 0
        %6394 = vmatprep.subr.bf16.mxu0 0
        %6395 = vmatpush1.bf16.msra.mxu0 0
        %6396 = vmatprep.subr.bf16.mxu0 0
        %6397 = vmatpush1.bf16.msra.mxu0 0
        %6398 = vmatprep.subr.bf16.mxu0 0
        %6399 = vmatpush1.bf16.msra.mxu0 0
        %6400 = vmatprep.mubr.bf16.mxu0 0
        %6401 = vmatmul.mubr.bf16.gmra.mrb[0].mxu0 %v6262
        %v6402 = vpop.f32.mrb[0].mxu0
        %v6403 = vadd.f32 %v6244, %v6402
        %v6404 = vpop.f32.mrb[0].mxu0
        %v6405 = vadd.f32 %v6244, %v6404
        %v6406 = vpop.f32.mrb[0].mxu0
        %v6407 = vadd.f32 %v6249, %v6406
        %v6408 = vpop.f32.mrb[0].mxu0
        %v6409 = vadd.f32 %v6249, %v6408
        %6410 = vmatprep.mubr.bf16.mxu0 0
        %6411 = vmatmul.mubr.bf16.gmra.mrb[0].mxu0 %v6263
        %v6412 = vpop.f32.mrb[0].mxu0
        %v6413 = vadd.f32 %v6254, %v6412
        %v6414 = vpop.f32.mrb[0].mxu0
        %v6415 = vadd.f32 %v6254, %v6414
        %v6416 = vpop.f32.mrb[0].mxu0
        %v6417 = vpop.f32.mrb[0].mxu0
        %6418 = vdwg.mxu0
        %6419 = vmatprep.subr.bf16.mxu0 %v6170
        %6420 = vmatpush1.bf16.msra.mxu0 %v6169
        %6421 = vmatprep.subr.bf16.mxu0 %v6179
        %6422 = vmatpush1.bf16.msra.mxu0 %v6178
        %6423 = vmatprep.subr.bf16.mxu0 %v6188
        %6424 = vmatpush1.bf16.msra.mxu0 %v6187
        %6425 = vmatprep.subr.bf16.mxu0 %v6197
        %6426 = vmatpush1.bf16.msra.mxu0 %v6196
        %6427 = vmatprep.subr.bf16.mxu0 %v6206
        %6428 = vmatpush1.bf16.msra.mxu0 %v6205
        %6429 = vmatprep.subr.bf16.mxu0 %v6215
        %6430 = vmatpush1.bf16.msra.mxu0 %v6214
        %6431 = vmatprep.subr.bf16.mxu0 %v6224
        %6432 = vmatpush1.bf16.msra.mxu0 %v6223
        %6433 = vmatprep.subr.bf16.mxu0 %v6233
        %6434 = vmatpush1.bf16.msra.mxu0 %v6232
        %6435 = vmatprep.subr.bf16.mxu0 0
        %6436 = vmatpush1.bf16.msra.mxu0 0
        %6437 = vmatprep.subr.bf16.mxu0 0
        %6438 = vmatpush1.bf16.msra.mxu0 0
        %6439 = vmatprep.subr.bf16.mxu0 0
        %6440 = vmatpush1.bf16.msra.mxu0 0
        %6441 = vmatprep.subr.bf16.mxu0 0
        %6442 = vmatpush1.bf16.msra.mxu0 0
        %6443 = vmatprep.subr.bf16.mxu0 0
        %6444 = vmatpush1.bf16.msra.mxu0 0
        %6445 = vmatprep.subr.bf16.mxu0 0
        %6446 = vmatpush1.bf16.msra.mxu0 0
        %6447 = vmatprep.subr.bf16.mxu0 0
        %6448 = vmatpush1.bf16.msra.mxu0 0
        %6449 = vmatprep.subr.bf16.mxu0 0
        %6450 = vmatpush1.bf16.msra.mxu0 0
        %6451 = vmatprep.mubr.bf16.mxu0 0
        %6452 = vmatmul.mubr.bf16.gmra.mrb[0].mxu0 %v6262
        %v6453 = vpop.f32.mrb[0].mxu0
        %v6454 = vadd.f32 %v6244, %v6453
        %v6455 = vpop.f32.mrb[0].mxu0
        %v6456 = vadd.f32 %v6244, %v6455
        %v6457 = vpop.f32.mrb[0].mxu0
        %v6458 = vadd.f32 %v6249, %v6457
        %v6459 = vpop.f32.mrb[0].mxu0
        %v6460 = vadd.f32 %v6249, %v6459
        %6461 = vmatprep.mubr.bf16.mxu0 0
        %6462 = vmatmul.mubr.bf16.gmra.mrb[0].mxu0 %v6263
        %v6463 = vpop.f32.mrb[0].mxu0
        %v6464 = vadd.f32 %v6254, %v6463
        %v6465 = vpop.f32.mrb[0].mxu0
        %v6466 = vadd.f32 %v6254, %v6465
        %v6467 = vpop.f32.mrb[0].mxu0
        %v6468 = vpop.f32.mrb[0].mxu0
        %6469 = vdwg.mxu0
        %6470 = vmatprep.subr.bf16.mxu0 0
        %6471 = vmatpush1.bf16.msra.mxu0 %v6171
        %6472 = vmatprep.subr.bf16.mxu0 0
        %6473 = vmatpush1.bf16.msra.mxu0 %v6180
        %6474 = vmatprep.subr.bf16.mxu0 0
        %6475 = vmatpush1.bf16.msra.mxu0 %v6189
        %6476 = vmatprep.subr.bf16.mxu0 0
        %6477 = vmatpush1.bf16.msra.mxu0 %v6198
        %6478 = vmatprep.subr.bf16.mxu0 0
        %6479 = vmatpush1.bf16.msra.mxu0 %v6207
        %6480 = vmatprep.subr.bf16.mxu0 0
        %6481 = vmatpush1.bf16.msra.mxu0 %v6216
        %6482 = vmatprep.subr.bf16.mxu0 0
        %6483 = vmatpush1.bf16.msra.mxu0 %v6225
        %6484 = vmatprep.subr.bf16.mxu0 0
        %6485 = vmatpush1.bf16.msra.mxu0 %v6234
        %6486 = vmatprep.subr.bf16.mxu0 0
        %6487 = vmatpush1.bf16.msra.mxu0 0
        %6488 = vmatprep.subr.bf16.mxu0 0
        %6489 = vmatpush1.bf16.msra.mxu0 0
        %6490 = vmatprep.subr.bf16.mxu0 0
        %6491 = vmatpush1.bf16.msra.mxu0 0
        %6492 = vmatprep.subr.bf16.mxu0 0
        %6493 = vmatpush1.bf16.msra.mxu0 0
        %6494 = vmatprep.subr.bf16.mxu0 0
        %6495 = vmatpush1.bf16.msra.mxu0 0
        %6496 = vmatprep.subr.bf16.mxu0 0
        %6497 = vmatpush1.bf16.msra.mxu0 0
        %6498 = vmatprep.subr.bf16.mxu0 0
        %6499 = vmatpush1.bf16.msra.mxu0 0
        %6500 = vmatprep.subr.bf16.mxu0 0
        %6501 = vmatpush1.bf16.msra.mxu0 0
        %6502 = vmatprep.mubr.bf16.mxu0 0
        %6503 = vmatmul.mubr.bf16.gmra.mrb[0].mxu0 %v6262
        %v6504 = vpop.f32.mrb[0].mxu0
        %v6505 = vadd.f32 %v6244, %v6504
        %v6506 = vpop.f32.mrb[0].mxu0
        %v6507 = vpop.f32.mrb[0].mxu0
        %v6508 = vadd.f32 %v6249, %v6507
        %v6509 = vpop.f32.mrb[0].mxu0
        %6510 = vmatprep.mubr.bf16.mxu0 0
        %6511 = vmatmul.mubr.bf16.gmra.mrb[0].mxu0 %v6263
        %v6512 = vpop.f32.mrb[0].mxu0
        %v6513 = vadd.f32 %v6254, %v6512
        %v6514 = vpop.f32.mrb[0].mxu0
        %v6515 = vpop.f32.mrb[0].mxu0
        %v6516 = vpop.f32.mrb[0].mxu0
        %6517 = vdwg.mxu0
        %6518 = vst [vmem:[%s1068] sm:$0xff] %v6301
        %6519 = vst [vmem:[%s1068 + $0x8] sm:$0xff] %v6303
        %6520 = vst [vmem:[%s1068 + $0x10] sm:$0xff] %v6352
        %6521 = vst [vmem:[%s1068 + $0x18] sm:$0xff] %v6354
        %6522 = vst [vmem:[%s1068 + $0x20] sm:$0xff] %v6403
        %6523 = vst [vmem:[%s1068 + $0x28] sm:$0xff] %v6405
        %6524 = vst [vmem:[%s1068 + $0x30] sm:$0xff] %v6454
        %6525 = vst [vmem:[%s1068 + $0x38] sm:$0xff] %v6456
        %6526 = vst [vmem:[%s1068 + $0x40] sm:$0xff] %v6505
        %6527 = vst [vmem:[%s1068 + $0x48] sm:$0xff] %v6305
        %6528 = vst [vmem:[%s1068 + $0x50] sm:$0xff] %v6307
        %6529 = vst [vmem:[%s1068 + $0x58] sm:$0xff] %v6356
        %6530 = vst [vmem:[%s1068 + $0x60] sm:$0xff] %v6358
        %6531 = vst [vmem:[%s1068 + $0x68] sm:$0xff] %v6407
        %6532 = vst [vmem:[%s1068 + $0x70] sm:$0xff] %v6409
        %6533 = vst [vmem:[%s1068 + $0x78] sm:$0xff] %v6458
        %6534 = vst [vmem:[%s1068 + $0x80] sm:$0xff] %v6460
        %6535 = vst [vmem:[%s1068 + $0x88] sm:$0xff] %v6508
        %6536 = vst [vmem:[%s1068 + $0x90] sm:$0x7] %v6311
        %6537 = vst [vmem:[%s1068 + $0x98] sm:$0x7] %v6313
        %6538 = vst [vmem:[%s1068 + $0xa0] sm:$0x7] %v6362
        %6539 = vst [vmem:[%s1068 + $0xa8] sm:$0x7] %v6364
        %6540 = vst [vmem:[%s1068 + $0xb0] sm:$0x7] %v6413
        %6541 = vst [vmem:[%s1068 + $0xb8] sm:$0x7] %v6415
        %6542 = vst [vmem:[%s1068 + $0xc0] sm:$0x7] %v6464
        %6543 = vst [vmem:[%s1068 + $0xc8] sm:$0x7] %v6466
        %6544 = vst [vmem:[%s1068 + $0xd0] sm:$0x7] %v6513
        %s6545 = sand.u32 %s204, 1
        %s6546 = sand.u32 %s204, 1
        %s6547 = smul.addr %s6546, 216
        %s6548 = scalar_lea.vmem [#allocation3], %s6547
        // Predicated region
        $region75: #{head_forward.1} parent=69 // pred_check
          %p6549 = pneg %p214
        $region76: #{head_forward.1} parent=69 // pred_check_branch
          %6551 = sbr.rel (%p6549) target = $region78
        $region77: #{head_forward.1} parent=69 // pred_region
          %s6552 = smul.u32 9, %s23
          %s6553 = smul.addr %s22, 81
          %s6554 = sadd.s32 %s6552, %s6553
          %s6555 = smul.addr %s6554, 8
          %s6556 = scalar_lea.vmem %s7, %s6555
          // Predicated region
          $region79: #{head_forward.1} parent=77 // pred_check
            _
          $region80: #{head_forward.1} parent=77 // pred_check_branch
            %6558 = sbr.rel (0) target = $region82
          $region81: #{head_forward.1} parent=77 // pred_region
            // Predicated region
            $region83: #{head_forward.1} parent=81 // pred_check
              _
            $region84: #{head_forward.1} parent=81 // pred_check_branch
              %6560 = sbr.rel (0) target = $region86
            $region85: #{head_forward.1} parent=81 // pred_region
              loop: start=0, step=1, limit=1
              $region87: #{head_forward.1} parent=85 // loop_pre_header
                _
              $region88: #{head_forward.1} parent=85 // loop_header
                %s6562 = sphi 0, %s6566
                %p6563 = scmp.ge.s32.totalorder %s6562, 1
                %s6567 = sphi %s6548, %s6548
                %s6568 = sphi %s6556, %s6556
              $region89: #{head_forward.1} parent=85 // loop_header_branch
                %6565 = sbr.rel (%p6563) target = $region93
              $region90: #{head_forward.1} parent=85 // loop_body
                %v6569 = vld [vmem:[%s6567] sm:$0xff]
                %6570 = vst [vmem:[%s6568] sm:$0xff] %v6569
                %v6571 = vld [vmem:[%s6567 + $0x8] sm:$0xff]
                %6572 = vst [vmem:[%s6568 + $0x8] sm:$0xff] %v6571
                %v6573 = vld [vmem:[%s6567 + $0x10] sm:$0xff]
                %6574 = vst [vmem:[%s6568 + $0x10] sm:$0xff] %v6573
                %v6575 = vld [vmem:[%s6567 + $0x18] sm:$0xff]
                %6576 = vst [vmem:[%s6568 + $0x18] sm:$0xff] %v6575
                %v6577 = vld [vmem:[%s6567 + $0x20] sm:$0xff]
                %6578 = vst [vmem:[%s6568 + $0x20] sm:$0xff] %v6577
                %v6579 = vld [vmem:[%s6567 + $0x28] sm:$0xff]
                %6580 = vst [vmem:[%s6568 + $0x28] sm:$0xff] %v6579
                %v6581 = vld [vmem:[%s6567 + $0x30] sm:$0xff]
                %6582 = vst [vmem:[%s6568 + $0x30] sm:$0xff] %v6581
                %v6583 = vld [vmem:[%s6567 + $0x38] sm:$0xff]
                %6584 = vst [vmem:[%s6568 + $0x38] sm:$0xff] %v6583
                %v6585 = vld [vmem:[%s6567 + $0x40] sm:$0xff]
                %6586 = vst [vmem:[%s6568 + $0x40] sm:$0xff] %v6585
                %v6587 = vld [vmem:[%s6567 + $0x48] sm:$0xff]
                %6588 = vst [vmem:[%s6568 + $0xd8] sm:$0xff] %v6587
                %v6589 = vld [vmem:[%s6567 + $0x50] sm:$0xff]
                %6590 = vst [vmem:[%s6568 + $0xe0] sm:$0xff] %v6589
                %v6591 = vld [vmem:[%s6567 + $0x58] sm:$0xff]
                %6592 = vst [vmem:[%s6568 + $0xe8] sm:$0xff] %v6591
                %v6593 = vld [vmem:[%s6567 + $0x60] sm:$0xff]
                %6594 = vst [vmem:[%s6568 + $0xf0] sm:$0xff] %v6593
                %v6595 = vld [vmem:[%s6567 + $0x68] sm:$0xff]
                %6596 = vst [vmem:[%s6568 + $0xf8] sm:$0xff] %v6595
                %v6597 = vld [vmem:[%s6567 + $0x70] sm:$0xff]
                %6598 = vst [vmem:[%s6568 + $0x100] sm:$0xff] %v6597
                %v6599 = vld [vmem:[%s6567 + $0x78] sm:$0xff]
                %6600 = vst [vmem:[%s6568 + $0x108] sm:$0xff] %v6599
                %v6601 = vld [vmem:[%s6567 + $0x80] sm:$0xff]
                %6602 = vst [vmem:[%s6568 + $0x110] sm:$0xff] %v6601
                %v6603 = vld [vmem:[%s6567 + $0x88] sm:$0xff]
                %6604 = vst [vmem:[%s6568 + $0x118] sm:$0xff] %v6603
                %v6605 = vld [vmem:[%s6567 + $0x90] sm:$0xff]
                %6606 = vst [vmem:[%s6568 + $0x1b0] sm:$0xff] %v6605
                %v6607 = vld [vmem:[%s6567 + $0x98] sm:$0xff]
                %6608 = vst [vmem:[%s6568 + $0x1b8] sm:$0xff] %v6607
                %v6609 = vld [vmem:[%s6567 + $0xa0] sm:$0xff]
                %6610 = vst [vmem:[%s6568 + $0x1c0] sm:$0xff] %v6609
                %v6611 = vld [vmem:[%s6567 + $0xa8] sm:$0xff]
                %6612 = vst [vmem:[%s6568 + $0x1c8] sm:$0xff] %v6611
                %v6613 = vld [vmem:[%s6567 + $0xb0] sm:$0xff]
                %6614 = vst [vmem:[%s6568 + $0x1d0] sm:$0xff] %v6613
                %v6615 = vld [vmem:[%s6567 + $0xb8] sm:$0xff]
                %6616 = vst [vmem:[%s6568 + $0x1d8] sm:$0xff] %v6615
                %v6617 = vld [vmem:[%s6567 + $0xc0] sm:$0xff]
                %6618 = vst [vmem:[%s6568 + $0x1e0] sm:$0xff] %v6617
                %v6619 = vld [vmem:[%s6567 + $0xc8] sm:$0xff]
                %6620 = vst [vmem:[%s6568 + $0x1e8] sm:$0xff] %v6619
                %v6621 = vld [vmem:[%s6567 + $0xd0] sm:$0xff]
                %6622 = vst [vmem:[%s6568 + $0x1f0] sm:$0xff] %v6621
              $region91: #{head_forward.1} parent=85 // loop_footer
                %s6566 = sadd.s32 1, %s6562
              $region92: #{head_forward.1} parent=85 // loop_footer_branch
                %6561 = sbr.rel target = $region88
              $region93: #{head_forward.1} parent=85 // loop_exit
                _
            $region86: #{head_forward.1} parent=81 // pred_fallthru
              _
            // Predicated region
            $region94: #{head_forward.1} parent=81 // pred_check
              _
            $region95: #{head_forward.1} parent=81 // pred_check_branch
              %6624 = sbr.rel target = $region97
            $region96: #{head_forward.1} parent=81 // pred_region
              _
            $region97: #{head_forward.1} parent=81 // pred_fallthru
              _
          $region82: #{head_forward.1} parent=77 // pred_fallthru
            _
          %6625 = vnop
        $region78: #{head_forward.1} parent=69 // pred_fallthru
          _
      $region70: #{head_forward.1} parent=5 // pred_fallthru
        _
      %p6626 = scmp.le.s32.totalorder 2, %s13
      // Predicated region
      $region98: #{head_forward.1} parent=5 // pred_check
        %p6627 = pneg %p6626
      $region99: #{head_forward.1} parent=5 // pred_check_branch
        %6629 = sbr.rel (%p6627) target = $region101
      $region100: #{head_forward.1} parent=5 // pred_region
        %s6630 = ssub.s32 %s13, 2
        // Predicated region
        $region102: #{head_forward.1} parent=100 // pred_check
          %p6631 = pneg %p220
        $region103: #{head_forward.1} parent=100 // pred_check_branch
          %6633 = sbr.rel (%p6631) target = $region105
        $region104: #{head_forward.1} parent=100 // pred_region
          %s6634 = sand.u32 %s205, 1
          %s6635 = sand.u32 %s205, 1
          %s6636 = smul.addr %s6635, 216
          %s6637 = scalar_lea.vmem [#allocation3], %s6636
        $region105: #{head_forward.1} parent=100 // pred_fallthru
          _
      $region101: #{head_forward.1} parent=5 // pred_fallthru
        _
    $region6: #{head_forward.1} parent=1 // loop_footer
      %s17 = sadd.s32 1, %s13
    $region7: #{head_forward.1} parent=1 // loop_footer_branch
      %12 = sbr.rel target = $region3
    $region8: #{head_forward.1} parent=1 // loop_exit
      _

</llo_original>
